<compile_context>
chip_gen: v5e
topology: v5e:2x2
jax: 0.10.0
libtpu: 0.0.40
codegen_flags: <defaults>
</compile_context>

<pallas_src>
import numpy as np
import jax
import jax.numpy as jnp
from jax import lax
from jax.experimental import pallas as pl
from jax.experimental.pallas import tpu as pltpu

jax.config.update("jax_default_matmul_precision", "highest")

# ----------------------------- config (small) -------------------------------
D_MODEL = 32
NUM_HEADS = 4
HEAD_DIM = D_MODEL // NUM_HEADS
FFN_DIM = 64
NUM_LEVELS = 2
NUM_POINTS = 4
SPATIAL_SHAPES = ((4, 4), (2, 4))                 # per-level (H, W)
SEQ_LEN = sum(h * w for h, w in SPATIAL_SHAPES)   # 24
BATCH = 2
NUM_QUERIES = 8
EPS = 1e-5

LP = NUM_LEVELS * NUM_POINTS                      # 8 samples per head
HLP = NUM_HEADS * LP                              # 32 sampling columns (h, l, p)
BQ = BATCH * NUM_QUERIES                          # 16 folded query rows
BS = BATCH * SEQ_LEN                              # 48 folded encoder rows

PAD = 8                                           # sublane-aligned guard band
BLK = PAD + BS + PAD                              # 64 padded flat-index space / head

# static per-column lookup tables for the 32 sampling columns (h-major, l, p)
_COL_LEVEL = np.repeat(np.tile(np.arange(NUM_LEVELS), NUM_HEADS), NUM_POINTS)
_COL_W = np.array([SPATIAL_SHAPES[l][1] for l in _COL_LEVEL], np.float32)
_COL_H = np.array([SPATIAL_SHAPES[l][0] for l in _COL_LEVEL], np.float32)
_SIZES = [h * w for h, w in SPATIAL_SHAPES]
_LEVEL_START = np.array([sum(_SIZES[:i]) for i in range(NUM_LEVELS)], np.float32)
_COL_BASE = np.array([_LEVEL_START[l] + PAD for l in _COL_LEVEL], np.float32)

# all levels here share one row width -> a single static roll shift per corner
# TODO(synk): generalize the deferred-roll scatter to per-level widths.
assert len({int(w) for w in _COL_W}) == 1
W_ROLL = int(_COL_W[0])
assert PAD >= W_ROLL + 1 and BLK >= PAD + BS + W_ROLL + 1

# ----------------------- packed weight-buffer row layout ---------------------
_r = 0
def _rows(n):
    global _r
    start = _r
    _r += n
    return start

R_WQ    = _rows(D_MODEL)
R_WK    = _rows(D_MODEL)
R_WV    = _rows(D_MODEL)
R_WO    = _rows(D_MODEL)
R_WOFFX = _rows(D_MODEL)
R_WOFFY = _rows(D_MODEL)
R_WAW   = _rows(D_MODEL)
R_WVENC = _rows(D_MODEL)
R_WOC   = _rows(D_MODEL)
R_W1    = _rows(D_MODEL)
R_W2    = _rows(FFN_DIM)
R_SEG   = _rows(HLP)          # block-diagonal ones (per-head segment sums)
R_ABIAS = _rows(BQ)           # block-diagonal additive self-attn mask
R_HMASK = _rows(NUM_HEADS)    # per-head value-column masks
R_BQ    = _rows(1)
R_BK    = _rows(1)
R_BV    = _rows(1)
R_BO    = _rows(1)
R_BOFFX = _rows(1)
R_BOFFY = _rows(1)
R_BAW   = _rows(1)
R_BVENC = _rows(1)
R_BOC   = _rows(1)
R_B1    = _rows(1)
R_B2    = _rows(1)
R_LN1W  = _rows(1)
R_LN1B  = _rows(1)
R_LN2W  = _rows(1)
R_LN2B  = _rows(1)
R_LN3W  = _rows(1)
R_LN3B  = _rows(1)
R_COLW  = _rows(1)
R_COLH  = _rows(1)
R_CBASE = _rows(1)
W_ROWS = _r + ((8 - _r % 8) % 8)
W_LANES = 64

# activation buffer row blocks (all (BQ, 32), lane-0 aligned)
A_X, A_POS, A_RCX, A_RCY, A_RW, A_RH, A_BOFF = (i * BQ for i in range(7))
A_ROWS = 7 * BQ


# ------------------------------ kernel helpers ------------------------------
def _layer_norm(x, w, b):
    mu = jnp.mean(x, axis=-1, keepdims=True)
    xc = x - mu
    var = jnp.mean(xc * xc, axis=-1, keepdims=True)
    return xc * lax.rsqrt(var + EPS) * w + b


# ------------------------------ fused kernel --------------------------------
def _decoder_layer_kernel(act_ref, enc_ref, w_ref, out_ref):
    f32 = jnp.float32
    D = D_MODEL

    def mat(r, rows, cols):
        return w_ref[r:r + rows, 0:cols]

    def vec(r, cols=D_MODEL):
        return w_ref[r:r + 1, 0:cols]

    x    = act_ref[A_X:A_X + BQ, :]
    pos  = act_ref[A_POS:A_POS + BQ, :]
    rcx  = act_ref[A_RCX:A_RCX + BQ, :]
    rcy  = act_ref[A_RCY:A_RCY + BQ, :]
    rw   = act_ref[A_RW:A_RW + BQ, :]
    rh   = act_ref[A_RH:A_RH + BQ, :]
    boff = act_ref[A_BOFF:A_BOFF + BQ, :]

    hmask = w_ref[R_HMASK:R_HMASK + NUM_HEADS, 0:D]      # (4, 32) loaded once
    xp = x + pos

    # -------------------- self attention (batch folded) ----------------------
    # q scale is folded into wq / bq at pack time.
    q = jnp.dot(xp, mat(R_WQ, D, D), preferred_element_type=f32) + vec(R_BQ)
    k = jnp.dot(xp, mat(R_WK, D, D), preferred_element_type=f32) + vec(R_BK)
    v = jnp.dot(x,  mat(R_WV, D, D), preferred_element_type=f32) + vec(R_BV)
    attn_bias = w_ref[R_ABIAS:R_ABIAS + BQ, 0:BQ]        # (BQ, BQ) block-diag

    attn = jnp.zeros((BQ, D), f32)
    for h in range(NUM_HEADS):
        sl = slice(h * HEAD_DIM, (h + 1) * HEAD_DIM)
        s = lax.dot_general(q[:, sl], k[:, sl], (((1,), (1,)), ((), ())),
                            preferred_element_type=f32) + attn_bias
        s = s - jnp.max(s, axis=-1, keepdims=True)
        e = jnp.exp(s)
        p_attn = e / jnp.sum(e, axis=-1, keepdims=True)
        attn = attn + jnp.dot(p_attn, v * hmask[h:h + 1, :], preferred_element_type=f32)

    attn = jnp.dot(attn, mat(R_WO, D, D), preferred_element_type=f32) + vec(R_BO)
    h1 = _layer_norm(x + attn, vec(R_LN1W), vec(R_LN1B))

    # ---------------- deformable cross attention -----------------------------
    h1p = h1 + pos
    off_x  = jnp.dot(h1p, mat(R_WOFFX, D, HLP), preferred_element_type=f32) + vec(R_BOFFX, HLP)
    off_y  = jnp.dot(h1p, mat(R_WOFFY, D, HLP), preferred_element_type=f32) + vec(R_BOFFY, HLP)
    logits = jnp.dot(h1p, mat(R_WAW,  D, HLP), preferred_element_type=f32) + vec(R_BAW, HLP)

    # per-head softmax over each head's L*P block: subtracting a per-row
    # constant (full-row max) is mathematically equivalent; block sums come
    # from one matmul with a block-diagonal ones matrix.
    e = jnp.exp(logits - jnp.max(logits, axis=-1, keepdims=True))
    segsum = jnp.dot(e, mat(R_SEG, HLP, HLP), preferred_element_type=f32)
    aw = e / segsum                                           # (BQ, HLP)

    colw  = vec(R_COLW, HLP)
    colh  = vec(R_COLH, HLP)
    cbase = vec(R_CBASE, HLP)                                 # level start + PAD

    # sampling locations -> pixel coords (grid_sample: bilinear, zero padding,
    # align_corners=False)
    loc_x = rcx + off_x * (0.5 / NUM_POINTS) * rw
    loc_y = rcy + off_y * (0.5 / NUM_POINTS) * rh
    px = loc_x * colw - 0.5
    py = loc_y * colh - 0.5
    x0 = jnp.floor(px)
    y0 = jnp.floor(py)
    fx = px - x0
    fy = py - y0
    in_x0 = ((x0 >= 0.0) & (x0 <= colw - 1.0)).astype(f32)
    in_x1 = ((x0 >= -1.0) & (x0 <= colw - 2.0)).astype(f32)
    in_y0 = ((y0 >= 0.0) & (y0 <= colh - 1.0)).astype(f32)
    in_y1 = ((y0 >= -1.0) & (y0 <= colh - 2.0)).astype(f32)
    w00 = aw * (1.0 - fx) * (1.0 - fy) * in_x0 * in_y0
    w01 = aw * fx * (1.0 - fy) * in_x1 * in_y0
    w10 = aw * (1.0 - fx) * fy * in_x0 * in_y1
    w11 = aw * fx * fy * in_x1 * in_y1
    # padded flat index (exact integer-valued f32; keep in f32 on all chips)
    base = cbase + boff + y0 * colw + x0                      # (BQ, HLP)

    # encoder value projection + per-head masked, zero-padded value slab
    val = jnp.dot(enc_ref[...], mat(R_WVENC, D, D), preferred_element_type=f32) + vec(R_BVENC)
    zpad = jnp.zeros((PAD, D), f32)
    slab = jnp.concatenate(
        [jnp.concatenate([zpad, val * hmask[h:h + 1, :], zpad], axis=0)
         for h in range(NUM_HEADS)], axis=0)                  # (4*BLK, D)

    iota = lax.broadcasted_iota(jnp.int32, (1, BLK), 1).astype(f32)

    # TODO(synk): at production RT-DETR sizes (S ~ 8k-20k tokens) replace this
    # dense one-hot scatter with scalar-prefetched DMA gathers / S-tiling.
    aggs = []
    for h in range(NUM_HEADS):
        a00 = jnp.zeros((BQ, BLK), f32)
        a01 = jnp.zeros((BQ, BLK), f32)
        a10 = jnp.zeros((BQ, BLK), f32)
        a11 = jnp.zeros((BQ, BLK), f32)
        for j in range(h * LP, (h + 1) * LP):
            hit = base[:, j:j + 1] == iota            # ONE compare per (head, point)
            a00 = a00 + jnp.where(hit, w00[:, j:j + 1], 0.0)
            a01 = a01 + jnp.where(hit, w01[:, j:j + 1], 0.0)
            a10 = a10 + jnp.where(hit, w10[:, j:j + 1], 0.0)
            a11 = a11 + jnp.where(hit, w11[:, j:j + 1], 0.0)
        # deferred rolls move the extra bilinear corners to +1, +W, +W+1
        aggs.append(a00
                    + jnp.roll(a01, 1, axis=-1)
                    + jnp.roll(a10, W_ROLL, axis=-1)
                    + jnp.roll(a11, W_ROLL + 1, axis=-1))
    agg = jnp.concatenate(aggs, axis=-1)                      # (BQ, 4*BLK)

    # single merged per-head PV matmul
    cross = jnp.dot(agg, slab, preferred_element_type=f32)    # (BQ, D)
    cross = jnp.dot(cross, mat(R_WOC, D, D), preferred_element_type=f32) + vec(R_BOC)
    h2 = _layer_norm(h1 + cross, vec(R_LN2W), vec(R_LN2B))

    # -------------------------------- FFN ------------------------------------
    ff = jnp.dot(h2, mat(R_W1, D, FFN_DIM), preferred_element_type=f32) + vec(R_B1, FFN_DIM)
    ff = jnp.maximum(ff, 0.0)
    ff = jnp.dot(ff, mat(R_W2, FFN_DIM, D), preferred_element_type=f32) + vec(R_B2)
    out_ref[...] = _layer_norm(h2 + ff, vec(R_LN3W), vec(R_LN3B))


# ------------------------- host-side operand packing ------------------------
def pack_weights(p):
    """One-time host-side packing (NOT inside the per-call jit)."""
    buf = np.zeros((W_ROWS, W_LANES), np.float32)

    def put(r, a):
        a = np.asarray(a, np.float32)
        buf[r:r + a.shape[0], 0:a.shape[1]] = a

    scale = HEAD_DIM ** -0.5
    put(R_WQ, np.asarray(p['wq']) * scale)
    put(R_WK, p['wk'])
    put(R_WV, p['wv'])
    put(R_WO, p['wo'])
    w_off = np.asarray(p['w_off'])
    b_off = np.asarray(p['b_off'])
    put(R_WOFFX, w_off[:, 0::2])
    put(R_WOFFY, w_off[:, 1::2])
    put(R_WAW, p['w_aw'])
    put(R_WVENC, p['wv_enc'])
    put(R_WOC, p['wo_cross'])
    put(R_W1, p['w1'])
    put(R_W2, p['w2'])

    seg = np.zeros((HLP, HLP), np.float32)
    for h in range(NUM_HEADS):
        seg[h * LP:(h + 1) * LP, h * LP:(h + 1) * LP] = 1.0
    put(R_SEG, seg)

    ab = np.full((BQ, BQ), -1e9, np.float32)
    for b in range(BATCH):
        ab[b * NUM_QUERIES:(b + 1) * NUM_QUERIES,
           b * NUM_QUERIES:(b + 1) * NUM_QUERIES] = 0.0
    put(R_ABIAS, ab)

    hm = np.zeros((NUM_HEADS, D_MODEL), np.float32)
    for h in range(NUM_HEADS):
        hm[h, h * HEAD_DIM:(h + 1) * HEAD_DIM] = 1.0
    put(R_HMASK, hm)

    put(R_BQ, np.asarray(p['bq']) * scale)
    put(R_BK, p['bk'])
    put(R_BV, p['bv'])
    put(R_BO, p['bo'])
    put(R_BOFFX, b_off[:, 0::2])
    put(R_BOFFY, b_off[:, 1::2])
    put(R_BAW, p['b_aw'])
    put(R_BVENC, p['bv_enc'])
    put(R_BOC, p['bo_cross'])
    put(R_B1, p['b1'])
    put(R_B2, p['b2'])
    put(R_LN1W, p['ln1_w']); put(R_LN1B, p['ln1_b'])
    put(R_LN2W, p['ln2_w']); put(R_LN2B, p['ln2_b'])
    put(R_LN3W, p['ln3_w']); put(R_LN3B, p['ln3_b'])
    put(R_COLW, _COL_W[None, :])
    put(R_COLH, _COL_H[None, :])
    put(R_CBASE, _COL_BASE[None, :])
    return jnp.asarray(buf)


def pack_activations(hidden_states, position_embeddings, reference_points):
    x = hidden_states.reshape(BQ, D_MODEL)
    pos = position_embeddings.reshape(BQ, D_MODEL)
    ref = reference_points.reshape(BQ, NUM_LEVELS, 4)
    refc = ref[:, jnp.asarray(_COL_LEVEL), :]                  # (BQ, HLP, 4)
    boff = (jnp.arange(BQ) // NUM_QUERIES * SEQ_LEN).astype(jnp.float32)
    boff = jnp.broadcast_to(boff[:, None], (BQ, HLP))
    return jnp.concatenate([x, pos, refc[..., 0], refc[..., 1],
                            refc[..., 2], refc[..., 3], boff], axis=0)  # (112, 32)


# ------------------------------ layer forward -------------------------------
@jax.jit
def decoder_layer_forward(hidden_states, position_embeddings, encoder_hidden_states,
                          reference_points, wbuf):
    acts = pack_activations(hidden_states, position_embeddings, reference_points)
    enc = encoder_hidden_states.reshape(BS, D_MODEL)
    # TODO(synk): at production sizes add a "parallel" batch grid axis (v7x has
    # 2 TCs) and tile the encoder sequence; at this toy size one program wins.
    out = pl.pallas_call(
        _decoder_layer_kernel,
        grid=(1,),
        in_specs=[pl.BlockSpec((A_ROWS, D_MODEL), lambda i: (0, 0)),
                  pl.BlockSpec((BS, D_MODEL), lambda i: (0, 0)),
                  pl.BlockSpec((W_ROWS, W_LANES), lambda i: (0, 0))],
        out_specs=pl.BlockSpec((BQ, D_MODEL), lambda i: (0, 0)),
        out_shape=jax.ShapeDtypeStruct((BQ, D_MODEL), jnp.float32),
        compiler_params=pltpu.CompilerParams(dimension_semantics=("arbitrary",)),
    )(acts, enc, wbuf)
    return out.reshape(BATCH, NUM_QUERIES, D_MODEL)


# ----------------------- pure-JAX (independent) reference -------------------
def multi_scale_deformable_attention_ref(value, spatial_shapes, sampling_locations,
                                         attention_weights):
    """Gather-based port of the torch grid_sample MSDA (bilinear, zero padding,
    align_corners=False).  value (B,S,H,Hd); locations (B,Q,H,L,P,2) in [0,1]."""
    B, S, H, Hd = value.shape
    out = jnp.zeros((B, sampling_locations.shape[1], H, Hd), jnp.float32)
    b_idx = jnp.arange(B)[:, None, None, None]
    h_idx = jnp.arange(H)[None, None, :, None]
    start = 0
    for lvl, (Hl, Wl) in enumerate(spatial_shapes):
        v_l = value[:, start:start + Hl * Wl].reshape(B, Hl, Wl, H, Hd)
        grid = 2.0 * sampling_locations[:, :, :, lvl] - 1.0
        x = ((grid[..., 0] + 1.0) * Wl - 1.0) / 2.0
        y = ((grid[..., 1] + 1.0) * Hl - 1.0) / 2.0
        x0 = jnp.floor(x)
        y0 = jnp.floor(y)
        aw_l = attention_weights[:, :, :, lvl]                         # (B,Q,H,P)
        for dy in (0, 1):
            for dx in (0, 1):
                xc = x0 + dx
                yc = y0 + dy
                wgt = (1.0 - jnp.abs(x - xc)) * (1.0 - jnp.abs(y - yc))
                valid = ((xc >= 0) & (xc < Wl) & (yc >= 0) & (yc < Hl)).astype(jnp.float32)
                xi = jnp.clip(xc, 0, Wl - 1).astype(jnp.int32)
                yi = jnp.clip(yc, 0, Hl - 1).astype(jnp.int32)
                g = v_l[b_idx, yi, xi, h_idx]                          # (B,Q,H,P,Hd)
                out = out + ((aw_l * wgt * valid)[..., None] * g).sum(axis=3)
        start += Hl * Wl
    return out.reshape(B, -1, H * Hd)


def reference_forward(hidden_states, position_embeddings, encoder_hidden_states,
                      reference_points, p):
    B, Q, D = hidden_states.shape

    def ln(x, w, b):
        mu = x.mean(-1, keepdims=True)
        var = ((x - mu) ** 2).mean(-1, keepdims=True)
        return (x - mu) / jnp.sqrt(var + EPS) * w + b

    hp = hidden_states + position_embeddings
    q = (hp @ p['wq'] + p['bq']) * (HEAD_DIM ** -0.5)
    k = hp @ p['wk'] + p['bk']
    v = hidden_states @ p['wv'] + p['bv']

    def split(t):
        return t.reshape(B, Q, NUM_HEADS, HEAD_DIM).transpose(0, 2, 1, 3)

    qh, kh, vh = split(q), split(k), split(v)
    s = jnp.einsum('bhqd,bhkd->bhqk', qh, kh)
    a = jax.nn.softmax(s, axis=-1)
    o = jnp.einsum('bhqk,bhkd->bhqd', a, vh).transpose(0, 2, 1, 3).reshape(B, Q, D)
    o = o @ p['wo'] + p['bo']
    h1 = ln(hidden_states + o, p['ln1_w'], p['ln1_b'])

    hp1 = h1 + position_embeddings
    offsets = (hp1 @ p['w_off'] + p['b_off']).reshape(B, Q, NUM_HEADS, NUM_LEVELS, NUM_POINTS, 2)
    aw = (hp1 @ p['w_aw'] + p['b_aw']).reshape(B, Q, NUM_HEADS, NUM_LEVELS * NUM_POINTS)
    aw = jax.nn.softmax(aw, -1).reshape(B, Q, NUM_HEADS, NUM_LEVELS, NUM_POINTS)
    loc = (reference_points[:, :, None, :, None, :2]
           + offsets / NUM_POINTS * reference_points[:, :, None, :, None, 2:] * 0.5)
    value = (encoder_hidden_states @ p['wv_enc'] + p['bv_enc']).reshape(
        B, SEQ_LEN, NUM_HEADS, HEAD_DIM)
    cross = multi_scale_deformable_attention_ref(value, SPATIAL_SHAPES, loc, aw)
    cross = cross @ p['wo_cross'] + p['bo_cross']
    h2 = ln(h1 + cross, p['ln2_w'], p['ln2_b'])
    ff = jnp.maximum(h2 @ p['w1'] + p['b1'], 0.0) @ p['w2'] + p['b2']
    return ln(h2 + ff, p['ln3_w'], p['ln3_b'])


# --------------------------------- params -----------------------------------
def init_params(key):
    keys = jax.random.split(key, 32)
    ki = iter(keys)

    def w(shape, scale=0.05):
        return (scale * jax.random.normal(next(ki), shape)).astype(jnp.float32)

    return dict(
        wq=w((D_MODEL, D_MODEL)), bq=w((1, D_MODEL)),
        wk=w((D_MODEL, D_MODEL)), bk=w((1, D_MODEL)),
        wv=w((D_MODEL, D_MODEL)), bv=w((1, D_MODEL)),
        wo=w((D_MODEL, D_MODEL)), bo=w((1, D_MODEL)),
        ln1_w=1.0 + w((1, D_MODEL)), ln1_b=w((1, D_MODEL)),
        w_off=w((D_MODEL, NUM_HEADS * NUM_LEVELS * NUM_POINTS * 2)),
        b_off=w((1, NUM_HEADS * NUM_LEVELS * NUM_POINTS * 2), 0.5),
        w_aw=w((D_MODEL, NUM_HEADS * NUM_LEVELS * NUM_POINTS)),
        b_aw=w((1, NUM_HEADS * NUM_LEVELS * NUM_POINTS)),
        wv_enc=w((D_MODEL, D_MODEL)), bv_enc=w((1, D_MODEL)),
        wo_cross=w((D_MODEL, D_MODEL)), bo_cross=w((1, D_MODEL)),
        ln2_w=1.0 + w((1, D_MODEL)), ln2_b=w((1, D_MODEL)),
        w1=w((D_MODEL, FFN_DIM)), b1=w((1, FFN_DIM)),
        w2=w((FFN_DIM, D_MODEL)), b2=w((1, D_MODEL)),
        ln3_w=1.0 + w((1, D_MODEL)), ln3_b=w((1, D_MODEL)),
    )


# ----------------------------------- main ------------------------------------
if __name__ == "__main__":
    key = jax.random.PRNGKey(0)
    k1, k2, k3, k4, kp = jax.random.split(key, 5)
    hidden_states = jax.random.normal(k1, (BATCH, NUM_QUERIES, D_MODEL), jnp.float32)
    position_embeddings = jax.random.normal(k2, (BATCH, NUM_QUERIES, D_MODEL), jnp.float32)
    encoder_hidden_states = jax.random.normal(k3, (BATCH, SEQ_LEN, D_MODEL), jnp.float32)
    rp_center = jax.random.uniform(k4, (BATCH, NUM_QUERIES, NUM_LEVELS, 2), minval=0.1, maxval=0.9)
    rp_wh = jax.random.uniform(jax.random.fold_in(k4, 1), (BATCH, NUM_QUERIES, NUM_LEVELS, 2),
                               minval=0.2, maxval=0.6)
    reference_points = jnp.concatenate([rp_center, rp_wh], axis=-1).astype(jnp.float32)

    params = init_params(kp)
    wbuf = pack_weights(params)            # packed ONCE, outside the per-call jit

    out = decoder_layer_forward(hidden_states, position_embeddings, encoder_hidden_states,
                                reference_points, wbuf)
    out = jax.block_until_ready(out)

    ref = reference_forward(hidden_states, position_embeddings, encoder_hidden_states,
                            reference_points, params)
    assert out.shape == (BATCH, NUM_QUERIES, D_MODEL)
    max_err = float(jnp.max(jnp.abs(out - ref)))
    assert jnp.allclose(out, ref, atol=5e-3, rtol=5e-3), f"max abs err {max_err}"
    print("KERNEL_OK")
</pallas_src>

<mosaic_0001>
module attributes {stable_mosaic.version = 11 : i64} {
  func.func @_decoder_layer_kernel(%arg0: i32, %arg1: memref<112x32xf32, #tpu.memory_space<vmem>>, %arg2: memref<48x32xf32, #tpu.memory_space<vmem>>, %arg3: memref<456x64xf32, #tpu.memory_space<vmem>>, %arg4: memref<16x32xf32, #tpu.memory_space<vmem>>) attributes {dimension_semantics = [#tpu.dimension_semantics<arbitrary>], iteration_bounds = array<i64: 1>, scalar_prefetch = 0 : i64, scratch_operands = 0 : i64, tpu.core_type = #tpu.core_type<tc>, window_params = [{pipeline_mode = #tpu.pipeline_mode<synchronous>, transform_indices = @transform_0, window_bounds = array<i64: 112, 32>}, {pipeline_mode = #tpu.pipeline_mode<synchronous>, transform_indices = @transform_1, window_bounds = array<i64: 48, 32>}, {pipeline_mode = #tpu.pipeline_mode<synchronous>, transform_indices = @transform_2, window_bounds = array<i64: 456, 64>}, {pipeline_mode = #tpu.pipeline_mode<synchronous>, transform_indices = @transform_3, window_bounds = array<i64: 16, 32>}]} {
    %c0 = arith.constant 0 : index
    %c0_0 = arith.constant 0 : index
    %0 = vector.load %arg1[%c0, %c0_0] : memref<112x32xf32, #tpu.memory_space<vmem>>, vector<16x32xf32>
    %c16 = arith.constant 16 : index
    %c0_1 = arith.constant 0 : index
    %1 = vector.load %arg1[%c16, %c0_1] : memref<112x32xf32, #tpu.memory_space<vmem>>, vector<16x32xf32>
    %c32 = arith.constant 32 : index
    %c0_2 = arith.constant 0 : index
    %2 = vector.load %arg1[%c32, %c0_2] : memref<112x32xf32, #tpu.memory_space<vmem>>, vector<16x32xf32>
    %c48 = arith.constant 48 : index
    %c0_3 = arith.constant 0 : index
    %3 = vector.load %arg1[%c48, %c0_3] : memref<112x32xf32, #tpu.memory_space<vmem>>, vector<16x32xf32>
    %c64 = arith.constant 64 : index
    %c0_4 = arith.constant 0 : index
    %4 = vector.load %arg1[%c64, %c0_4] : memref<112x32xf32, #tpu.memory_space<vmem>>, vector<16x32xf32>
    %c80 = arith.constant 80 : index
    %c0_5 = arith.constant 0 : index
    %5 = vector.load %arg1[%c80, %c0_5] : memref<112x32xf32, #tpu.memory_space<vmem>>, vector<16x32xf32>
    %c96 = arith.constant 96 : index
    %c0_6 = arith.constant 0 : index
    %6 = vector.load %arg1[%c96, %c0_6] : memref<112x32xf32, #tpu.memory_space<vmem>>, vector<16x32xf32>
    %c432 = arith.constant 432 : index
    %c0_7 = arith.constant 0 : index
    %7 = vector.load %arg3[%c432, %c0_7] : memref<456x64xf32, #tpu.memory_space<vmem>>, vector<4x32xf32>
    %8 = arith.addf %0, %1 : vector<16x32xf32>
    %c0_8 = arith.constant 0 : index
    %c0_9 = arith.constant 0 : index
    %9 = vector.load %arg3[%c0_8, %c0_9] : memref<456x64xf32, #tpu.memory_space<vmem>>, vector<32x32xf32>
    %cst = arith.constant dense<0.000000e+00> : vector<16x32xf32>
    %10 = tpu.matmul %8, %9, %cst {dimension_numbers = #tpu.dot_dimension_numbers<[1], [0], [0], [1], [0, 0, 1, 1], [], []>, precision = #tpu.contract_precision<fp32>} : vector<16x32xf32>, vector<32x32xf32>, vector<16x32xf32> -> vector<16x32xf32>
    %c436 = arith.constant 436 : index
    %c0_10 = arith.constant 0 : index
    %11 = vector.load %arg3[%c436, %c0_10] : memref<456x64xf32, #tpu.memory_space<vmem>>, vector<1x32xf32>
    %12 = vector.broadcast %11 : vector<1x32xf32> to vector<16x32xf32>
    %13 = arith.addf %10, %12 : vector<16x32xf32>
    %c32_11 = arith.constant 32 : index
    %c0_12 = arith.constant 0 : index
    %14 = vector.load %arg3[%c32_11, %c0_12] : memref<456x64xf32, #tpu.memory_space<vmem>>, vector<32x32xf32>
    %cst_13 = arith.constant dense<0.000000e+00> : vector<16x32xf32>
    %15 = tpu.matmul %8, %14, %cst_13 {dimension_numbers = #tpu.dot_dimension_numbers<[1], [0], [0], [1], [0, 0, 1, 1], [], []>, precision = #tpu.contract_precision<fp32>} : vector<16x32xf32>, vector<32x32xf32>, vector<16x32xf32> -> vector<16x32xf32>
    %c437 = arith.constant 437 : index
    %c0_14 = arith.constant 0 : index
    %16 = vector.load %arg3[%c437, %c0_14] : memref<456x64xf32, #tpu.memory_space<vmem>>, vector<1x32xf32>
    %17 = vector.broadcast %16 : vector<1x32xf32> to vector<16x32xf32>
    %18 = arith.addf %15, %17 : vector<16x32xf32>
    %c64_15 = arith.constant 64 : index
    %c0_16 = arith.constant 0 : index
    %19 = vector.load %arg3[%c64_15, %c0_16] : memref<456x64xf32, #tpu.memory_space<vmem>>, vector<32x32xf32>
    %cst_17 = arith.constant dense<0.000000e+00> : vector<16x32xf32>
    %20 = tpu.matmul %0, %19, %cst_17 {dimension_numbers = #tpu.dot_dimension_numbers<[1], [0], [0], [1], [0, 0, 1, 1], [], []>, precision = #tpu.contract_precision<fp32>} : vector<16x32xf32>, vector<32x32xf32>, vector<16x32xf32> -> vector<16x32xf32>
    %c438 = arith.constant 438 : index
    %c0_18 = arith.constant 0 : index
    %21 = vector.load %arg3[%c438, %c0_18] : memref<456x64xf32, #tpu.memory_space<vmem>>, vector<1x32xf32>
    %22 = vector.broadcast %21 : vector<1x32xf32> to vector<16x32xf32>
    %23 = arith.addf %20, %22 : vector<16x32xf32>
    %c416 = arith.constant 416 : index
    %c0_19 = arith.constant 0 : index
    %24 = vector.load %arg3[%c416, %c0_19] : memref<456x64xf32, #tpu.memory_space<vmem>>, vector<16x16xf32>
    %cst_20 = arith.constant 0.000000e+00 : f32
    %25 = vector.broadcast %cst_20 : f32 to vector<16x32xf32>
    %26 = vector.extract_strided_slice %13 {offsets = [0, 0], sizes = [16, 8], strides = [1, 1]} : vector<16x32xf32> to vector<16x8xf32>
    %27 = vector.extract_strided_slice %18 {offsets = [0, 0], sizes = [16, 8], strides = [1, 1]} : vector<16x32xf32> to vector<16x8xf32>
    %cst_21 = arith.constant dense<0.000000e+00> : vector<16x16xf32>
    %28 = tpu.matmul %26, %27, %cst_21 {dimension_numbers = #tpu.dot_dimension_numbers<[1], [1], [0], [0], [0, 0, 1, 0], [], []>, precision = #tpu.contract_precision<fp32>} : vector<16x8xf32>, vector<16x8xf32>, vector<16x16xf32> -> vector<16x16xf32>
    %29 = arith.addf %28, %24 : vector<16x16xf32>
    %cst_22 = arith.constant dense<0xFF800000> : vector<16xf32>
    %30 = vector.multi_reduction <maximumf>, %29, %cst_22 [1] : vector<16x16xf32> to vector<16xf32>
    %31 = vector.shape_cast %30 : vector<16xf32> to vector<16x1xf32>
    %32 = vector.broadcast %31 : vector<16x1xf32> to vector<16x16xf32>
    %33 = arith.subf %29, %32 : vector<16x16xf32>
    %34 = math.exp %33 : vector<16x16xf32>
    %cst_23 = arith.constant dense<0.000000e+00> : vector<16xf32>
    %35 = vector.multi_reduction <add>, %34, %cst_23 [1] : vector<16x16xf32> to vector<16xf32>
    %36 = vector.shape_cast %35 : vector<16xf32> to vector<16x1xf32>
    %37 = vector.broadcast %36 : vector<16x1xf32> to vector<16x16xf32>
    %38 = arith.divf %34, %37 : vector<16x16xf32>
    %39 = vector.extract_strided_slice %7 {offsets = [0, 0], sizes = [1, 32], strides = [1, 1]} : vector<4x32xf32> to vector<1x32xf32>
    %40 = vector.broadcast %39 : vector<1x32xf32> to vector<16x32xf32>
    %41 = arith.mulf %23, %40 : vector<16x32xf32>
    %cst_24 = arith.constant dense<0.000000e+00> : vector<16x32xf32>
    %42 = tpu.matmul %38, %41, %cst_24 {dimension_numbers = #tpu.dot_dimension_numbers<[1], [0], [0], [1], [0, 0, 1, 1], [], []>, precision = #tpu.contract_precision<fp32>} : vector<16x16xf32>, vector<16x32xf32>, vector<16x32xf32> -> vector<16x32xf32>
    %43 = arith.addf %25, %42 : vector<16x32xf32>
    %44 = vector.extract_strided_slice %13 {offsets = [0, 8], sizes = [16, 8], strides = [1, 1]} : vector<16x32xf32> to vector<16x8xf32>
    %45 = vector.extract_strided_slice %18 {offsets = [0, 8], sizes = [16, 8], strides = [1, 1]} : vector<16x32xf32> to vector<16x8xf32>
    %cst_25 = arith.constant dense<0.000000e+00> : vector<16x16xf32>
    %46 = tpu.matmul %44, %45, %cst_25 {dimension_numbers = #tpu.dot_dimension_numbers<[1], [1], [0], [0], [0, 0, 1, 0], [], []>, precision = #tpu.contract_precision<fp32>} : vector<16x8xf32>, vector<16x8xf32>, vector<16x16xf32> -> vector<16x16xf32>
    %47 = arith.addf %46, %24 : vector<16x16xf32>
    %cst_26 = arith.constant dense<0xFF800000> : vector<16xf32>
    %48 = vector.multi_reduction <maximumf>, %47, %cst_26 [1] : vector<16x16xf32> to vector<16xf32>
    %49 = vector.shape_cast %48 : vector<16xf32> to vector<16x1xf32>
    %50 = vector.broadcast %49 : vector<16x1xf32> to vector<16x16xf32>
    %51 = arith.subf %47, %50 : vector<16x16xf32>
    %52 = math.exp %51 : vector<16x16xf32>
    %cst_27 = arith.constant dense<0.000000e+00> : vector<16xf32>
    %53 = vector.multi_reduction <add>, %52, %cst_27 [1] : vector<16x16xf32> to vector<16xf32>
    %54 = vector.shape_cast %53 : vector<16xf32> to vector<16x1xf32>
    %55 = vector.broadcast %54 : vector<16x1xf32> to vector<16x16xf32>
    %56 = arith.divf %52, %55 : vector<16x16xf32>
    %57 = vector.extract_strided_slice %7 {offsets = [1, 0], sizes = [1, 32], strides = [1, 1]} : vector<4x32xf32> to vector<1x32xf32>
    %58 = vector.broadcast %57 : vector<1x32xf32> to vector<16x32xf32>
    %59 = arith.mulf %23, %58 : vector<16x32xf32>
    %cst_28 = arith.constant dense<0.000000e+00> : vector<16x32xf32>
    %60 = tpu.matmul %56, %59, %cst_28 {dimension_numbers = #tpu.dot_dimension_numbers<[1], [0], [0], [1], [0, 0, 1, 1], [], []>, precision = #tpu.contract_precision<fp32>} : vector<16x16xf32>, vector<16x32xf32>, vector<16x32xf32> -> vector<16x32xf32>
    %61 = arith.addf %43, %60 : vector<16x32xf32>
    %62 = vector.extract_strided_slice %13 {offsets = [0, 16], sizes = [16, 8], strides = [1, 1]} : vector<16x32xf32> to vector<16x8xf32>
    %63 = vector.extract_strided_slice %18 {offsets = [0, 16], sizes = [16, 8], strides = [1, 1]} : vector<16x32xf32> to vector<16x8xf32>
    %cst_29 = arith.constant dense<0.000000e+00> : vector<16x16xf32>
    %64 = tpu.matmul %62, %63, %cst_29 {dimension_numbers = #tpu.dot_dimension_numbers<[1], [1], [0], [0], [0, 0, 1, 0], [], []>, precision = #tpu.contract_precision<fp32>} : vector<16x8xf32>, vector<16x8xf32>, vector<16x16xf32> -> vector<16x16xf32>
    %65 = arith.addf %64, %24 : vector<16x16xf32>
    %cst_30 = arith.constant dense<0xFF800000> : vector<16xf32>
    %66 = vector.multi_reduction <maximumf>, %65, %cst_30 [1] : vector<16x16xf32> to vector<16xf32>
    %67 = vector.shape_cast %66 : vector<16xf32> to vector<16x1xf32>
    %68 = vector.broadcast %67 : vector<16x1xf32> to vector<16x16xf32>
    %69 = arith.subf %65, %68 : vector<16x16xf32>
    %70 = math.exp %69 : vector<16x16xf32>
    %cst_31 = arith.constant dense<0.000000e+00> : vector<16xf32>
    %71 = vector.multi_reduction <add>, %70, %cst_31 [1] : vector<16x16xf32> to vector<16xf32>
    %72 = vector.shape_cast %71 : vector<16xf32> to vector<16x1xf32>
    %73 = vector.broadcast %72 : vector<16x1xf32> to vector<16x16xf32>
    %74 = arith.divf %70, %73 : vector<16x16xf32>
    %75 = vector.extract_strided_slice %7 {offsets = [2, 0], sizes = [1, 32], strides = [1, 1]} : vector<4x32xf32> to vector<1x32xf32>
    %76 = vector.broadcast %75 : vector<1x32xf32> to vector<16x32xf32>
    %77 = arith.mulf %23, %76 : vector<16x32xf32>
    %cst_32 = arith.constant dense<0.000000e+00> : vector<16x32xf32>
    %78 = tpu.matmul %74, %77, %cst_32 {dimension_numbers = #tpu.dot_dimension_numbers<[1], [0], [0], [1], [0, 0, 1, 1], [], []>, precision = #tpu.contract_precision<fp32>} : vector<16x16xf32>, vector<16x32xf32>, vector<16x32xf32> -> vector<16x32xf32>
    %79 = arith.addf %61, %78 : vector<16x32xf32>
    %80 = vector.extract_strided_slice %13 {offsets = [0, 24], sizes = [16, 8], strides = [1, 1]} : vector<16x32xf32> to vector<16x8xf32>
    %81 = vector.extract_strided_slice %18 {offsets = [0, 24], sizes = [16, 8], strides = [1, 1]} : vector<16x32xf32> to vector<16x8xf32>
    %cst_33 = arith.constant dense<0.000000e+00> : vector<16x16xf32>
    %82 = tpu.matmul %80, %81, %cst_33 {dimension_numbers = #tpu.dot_dimension_numbers<[1], [1], [0], [0], [0, 0, 1, 0], [], []>, precision = #tpu.contract_precision<fp32>} : vector<16x8xf32>, vector<16x8xf32>, vector<16x16xf32> -> vector<16x16xf32>
    %83 = arith.addf %82, %24 : vector<16x16xf32>
    %cst_34 = arith.constant dense<0xFF800000> : vector<16xf32>
    %84 = vector.multi_reduction <maximumf>, %83, %cst_34 [1] : vector<16x16xf32> to vector<16xf32>
    %85 = vector.shape_cast %84 : vector<16xf32> to vector<16x1xf32>
    %86 = vector.broadcast %85 : vector<16x1xf32> to vector<16x16xf32>
    %87 = arith.subf %83, %86 : vector<16x16xf32>
    %88 = math.exp %87 : vector<16x16xf32>
    %cst_35 = arith.constant dense<0.000000e+00> : vector<16xf32>
    %89 = vector.multi_reduction <add>, %88, %cst_35 [1] : vector<16x16xf32> to vector<16xf32>
    %90 = vector.shape_cast %89 : vector<16xf32> to vector<16x1xf32>
    %91 = vector.broadcast %90 : vector<16x1xf32> to vector<16x16xf32>
    %92 = arith.divf %88, %91 : vector<16x16xf32>
    %93 = vector.extract_strided_slice %7 {offsets = [3, 0], sizes = [1, 32], strides = [1, 1]} : vector<4x32xf32> to vector<1x32xf32>
    %94 = vector.broadcast %93 : vector<1x32xf32> to vector<16x32xf32>
    %95 = arith.mulf %23, %94 : vector<16x32xf32>
    %cst_36 = arith.constant dense<0.000000e+00> : vector<16x32xf32>
    %96 = tpu.matmul %92, %95, %cst_36 {dimension_numbers = #tpu.dot_dimension_numbers<[1], [0], [0], [1], [0, 0, 1, 1], [], []>, precision = #tpu.contract_precision<fp32>} : vector<16x16xf32>, vector<16x32xf32>, vector<16x32xf32> -> vector<16x32xf32>
    %97 = arith.addf %79, %96 : vector<16x32xf32>
    %c96_37 = arith.constant 96 : index
    %c0_38 = arith.constant 0 : index
    %98 = vector.load %arg3[%c96_37, %c0_38] : memref<456x64xf32, #tpu.memory_space<vmem>>, vector<32x32xf32>
    %cst_39 = arith.constant dense<0.000000e+00> : vector<16x32xf32>
    %99 = tpu.matmul %97, %98, %cst_39 {dimension_numbers = #tpu.dot_dimension_numbers<[1], [0], [0], [1], [0, 0, 1, 1], [], []>, precision = #tpu.contract_precision<fp32>} : vector<16x32xf32>, vector<32x32xf32>, vector<16x32xf32> -> vector<16x32xf32>
    %c439 = arith.constant 439 : index
    %c0_40 = arith.constant 0 : index
    %100 = vector.load %arg3[%c439, %c0_40] : memref<456x64xf32, #tpu.memory_space<vmem>>, vector<1x32xf32>
    %101 = vector.broadcast %100 : vector<1x32xf32> to vector<16x32xf32>
    %102 = arith.addf %99, %101 : vector<16x32xf32>
    %103 = arith.addf %0, %102 : vector<16x32xf32>
    %c447 = arith.constant 447 : index
    %c0_41 = arith.constant 0 : index
    %104 = vector.load %arg3[%c447, %c0_41] : memref<456x64xf32, #tpu.memory_space<vmem>>, vector<1x32xf32>
    %c448 = arith.constant 448 : index
    %c0_42 = arith.constant 0 : index
    %105 = vector.load %arg3[%c448, %c0_42] : memref<456x64xf32, #tpu.memory_space<vmem>>, vector<1x32xf32>
    %cst_43 = arith.constant dense<0.000000e+00> : vector<16xf32>
    %106 = vector.multi_reduction <add>, %103, %cst_43 [1] : vector<16x32xf32> to vector<16xf32>
    %107 = vector.shape_cast %106 : vector<16xf32> to vector<16x1xf32>
    %cst_44 = arith.constant 3.200000e+01 : f32
    %108 = vector.broadcast %cst_44 : f32 to vector<16x1xf32>
    %109 = arith.divf %107, %108 : vector<16x1xf32>
    %110 = vector.broadcast %109 : vector<16x1xf32> to vector<16x32xf32>
    %111 = arith.subf %103, %110 : vector<16x32xf32>
    %112 = arith.mulf %111, %111 : vector<16x32xf32>
    %cst_45 = arith.constant dense<0.000000e+00> : vector<16xf32>
    %113 = vector.multi_reduction <add>, %112, %cst_45 [1] : vector<16x32xf32> to vector<16xf32>
    %114 = vector.shape_cast %113 : vector<16xf32> to vector<16x1xf32>
    %cst_46 = arith.constant 3.200000e+01 : f32
    %115 = vector.broadcast %cst_46 : f32 to vector<16x1xf32>
    %116 = arith.divf %114, %115 : vector<16x1xf32>
    %cst_47 = arith.constant 9.99999974E-6 : f32
    %117 = vector.broadcast %cst_47 : f32 to vector<16x1xf32>
    %118 = arith.addf %116, %117 : vector<16x1xf32>
    %119 = math.rsqrt %118 : vector<16x1xf32>
    %120 = vector.broadcast %119 : vector<16x1xf32> to vector<16x32xf32>
    %121 = arith.mulf %111, %120 : vector<16x32xf32>
    %122 = vector.broadcast %104 : vector<1x32xf32> to vector<16x32xf32>
    %123 = arith.mulf %121, %122 : vector<16x32xf32>
    %124 = vector.broadcast %105 : vector<1x32xf32> to vector<16x32xf32>
    %125 = arith.addf %123, %124 : vector<16x32xf32>
    %126 = arith.addf %125, %1 : vector<16x32xf32>
    %c128 = arith.constant 128 : index
    %c0_48 = arith.constant 0 : index
    %127 = vector.load %arg3[%c128, %c0_48] : memref<456x64xf32, #tpu.memory_space<vmem>>, vector<32x32xf32>
    %cst_49 = arith.constant dense<0.000000e+00> : vector<16x32xf32>
    %128 = tpu.matmul %126, %127, %cst_49 {dimension_numbers = #tpu.dot_dimension_numbers<[1], [0], [0], [1], [0, 0, 1, 1], [], []>, precision = #tpu.contract_precision<fp32>} : vector<16x32xf32>, vector<32x32xf32>, vector<16x32xf32> -> vector<16x32xf32>
    %c440 = arith.constant 440 : index
    %c0_50 = arith.constant 0 : index
    %129 = vector.load %arg3[%c440, %c0_50] : memref<456x64xf32, #tpu.memory_space<vmem>>, vector<1x32xf32>
    %130 = vector.broadcast %129 : vector<1x32xf32> to vector<16x32xf32>
    %131 = arith.addf %128, %130 : vector<16x32xf32>
    %c160 = arith.constant 160 : index
    %c0_51 = arith.constant 0 : index
    %132 = vector.load %arg3[%c160, %c0_51] : memref<456x64xf32, #tpu.memory_space<vmem>>, vector<32x32xf32>
    %cst_52 = arith.constant dense<0.000000e+00> : vector<16x32xf32>
    %133 = tpu.matmul %126, %132, %cst_52 {dimension_numbers = #tpu.dot_dimension_numbers<[1], [0], [0], [1], [0, 0, 1, 1], [], []>, precision = #tpu.contract_precision<fp32>} : vector<16x32xf32>, vector<32x32xf32>, vector<16x32xf32> -> vector<16x32xf32>
    %c441 = arith.constant 441 : index
    %c0_53 = arith.constant 0 : index
    %134 = vector.load %arg3[%c441, %c0_53] : memref<456x64xf32, #tpu.memory_space<vmem>>, vector<1x32xf32>
    %135 = vector.broadcast %134 : vector<1x32xf32> to vector<16x32xf32>
    %136 = arith.addf %133, %135 : vector<16x32xf32>
    %c192 = arith.constant 192 : index
    %c0_54 = arith.constant 0 : index
    %137 = vector.load %arg3[%c192, %c0_54] : memref<456x64xf32, #tpu.memory_space<vmem>>, vector<32x32xf32>
    %cst_55 = arith.constant dense<0.000000e+00> : vector<16x32xf32>
    %138 = tpu.matmul %126, %137, %cst_55 {dimension_numbers = #tpu.dot_dimension_numbers<[1], [0], [0], [1], [0, 0, 1, 1], [], []>, precision = #tpu.contract_precision<fp32>} : vector<16x32xf32>, vector<32x32xf32>, vector<16x32xf32> -> vector<16x32xf32>
    %c442 = arith.constant 442 : index
    %c0_56 = arith.constant 0 : index
    %139 = vector.load %arg3[%c442, %c0_56] : memref<456x64xf32, #tpu.memory_space<vmem>>, vector<1x32xf32>
    %140 = vector.broadcast %139 : vector<1x32xf32> to vector<16x32xf32>
    %141 = arith.addf %138, %140 : vector<16x32xf32>
    %cst_57 = arith.constant dense<0xFF800000> : vector<16xf32>
    %142 = vector.multi_reduction <maximumf>, %141, %cst_57 [1] : vector<16x32xf32> to vector<16xf32>
    %143 = vector.shape_cast %142 : vector<16xf32> to vector<16x1xf32>
    %144 = vector.broadcast %143 : vector<16x1xf32> to vector<16x32xf32>
    %145 = arith.subf %141, %144 : vector<16x32xf32>
    %146 = math.exp %145 : vector<16x32xf32>
    %c384 = arith.constant 384 : index
    %c0_58 = arith.constant 0 : index
    %147 = vector.load %arg3[%c384, %c0_58] : memref<456x64xf32, #tpu.memory_space<vmem>>, vector<32x32xf32>
    %cst_59 = arith.constant dense<0.000000e+00> : vector<16x32xf32>
    %148 = tpu.matmul %146, %147, %cst_59 {dimension_numbers = #tpu.dot_dimension_numbers<[1], [0], [0], [1], [0, 0, 1, 1], [], []>, precision = #tpu.contract_precision<fp32>} : vector<16x32xf32>, vector<32x32xf32>, vector<16x32xf32> -> vector<16x32xf32>
    %149 = arith.divf %146, %148 : vector<16x32xf32>
    %c453 = arith.constant 453 : index
    %c0_60 = arith.constant 0 : index
    %150 = vector.load %arg3[%c453, %c0_60] : memref<456x64xf32, #tpu.memory_space<vmem>>, vector<1x32xf32>
    %c454 = arith.constant 454 : index
    %c0_61 = arith.constant 0 : index
    %151 = vector.load %arg3[%c454, %c0_61] : memref<456x64xf32, #tpu.memory_space<vmem>>, vector<1x32xf32>
    %c455 = arith.constant 455 : index
    %c0_62 = arith.constant 0 : index
    %152 = vector.load %arg3[%c455, %c0_62] : memref<456x64xf32, #tpu.memory_space<vmem>>, vector<1x32xf32>
    %cst_63 = arith.constant 1.250000e-01 : f32
    %153 = vector.broadcast %cst_63 : f32 to vector<16x32xf32>
    %154 = arith.mulf %131, %153 : vector<16x32xf32>
    %155 = arith.mulf %154, %4 : vector<16x32xf32>
    %156 = arith.addf %2, %155 : vector<16x32xf32>
    %cst_64 = arith.constant 1.250000e-01 : f32
    %157 = vector.broadcast %cst_64 : f32 to vector<16x32xf32>
    %158 = arith.mulf %136, %157 : vector<16x32xf32>
    %159 = arith.mulf %158, %5 : vector<16x32xf32>
    %160 = arith.addf %3, %159 : vector<16x32xf32>
    %161 = vector.broadcast %150 : vector<1x32xf32> to vector<16x32xf32>
    %162 = arith.mulf %156, %161 : vector<16x32xf32>
    %cst_65 = arith.constant 5.000000e-01 : f32
    %163 = vector.broadcast %cst_65 : f32 to vector<16x32xf32>
    %164 = arith.subf %162, %163 : vector<16x32xf32>
    %165 = vector.broadcast %151 : vector<1x32xf32> to vector<16x32xf32>
    %166 = arith.mulf %160, %165 : vector<16x32xf32>
    %cst_66 = arith.constant 5.000000e-01 : f32
    %167 = vector.broadcast %cst_66 : f32 to vector<16x32xf32>
    %168 = arith.subf %166, %167 : vector<16x32xf32>
    %169 = math.floor %164 : vector<16x32xf32>
    %170 = math.floor %168 : vector<16x32xf32>
    %171 = arith.subf %164, %169 : vector<16x32xf32>
    %172 = arith.subf %168, %170 : vector<16x32xf32>
    %cst_67 = arith.constant 0.000000e+00 : f32
    %173 = vector.broadcast %cst_67 : f32 to vector<16x32xf32>
    %174 = arith.cmpf oge, %169, %173 : vector<16x32xf32>
    %cst_68 = arith.constant 1.000000e+00 : f32
    %175 = vector.broadcast %cst_68 : f32 to vector<1x32xf32>
    %176 = arith.subf %150, %175 : vector<1x32xf32>
    %177 = vector.broadcast %176 : vector<1x32xf32> to vector<16x32xf32>
    %178 = arith.cmpf ole, %169, %177 : vector<16x32xf32>
    %179 = arith.andi %174, %178 : vector<16x32xi1>
    %180 = arith.extui %179 : vector<16x32xi1> to vector<16x32xi32>
    %181 = arith.sitofp %180 : vector<16x32xi32> to vector<16x32xf32>
    %cst_69 = arith.constant -1.000000e+00 : f32
    %182 = vector.broadcast %cst_69 : f32 to vector<16x32xf32>
    %183 = arith.cmpf oge, %169, %182 : vector<16x32xf32>
    %cst_70 = arith.constant 2.000000e+00 : f32
    %184 = vector.broadcast %cst_70 : f32 to vector<1x32xf32>
    %185 = arith.subf %150, %184 : vector<1x32xf32>
    %186 = vector.broadcast %185 : vector<1x32xf32> to vector<16x32xf32>
    %187 = arith.cmpf ole, %169, %186 : vector<16x32xf32>
    %188 = arith.andi %183, %187 : vector<16x32xi1>
    %189 = arith.extui %188 : vector<16x32xi1> to vector<16x32xi32>
    %190 = arith.sitofp %189 : vector<16x32xi32> to vector<16x32xf32>
    %cst_71 = arith.constant 0.000000e+00 : f32
    %191 = vector.broadcast %cst_71 : f32 to vector<16x32xf32>
    %192 = arith.cmpf oge, %170, %191 : vector<16x32xf32>
    %cst_72 = arith.constant 1.000000e+00 : f32
    %193 = vector.broadcast %cst_72 : f32 to vector<1x32xf32>
    %194 = arith.subf %151, %193 : vector<1x32xf32>
    %195 = vector.broadcast %194 : vector<1x32xf32> to vector<16x32xf32>
    %196 = arith.cmpf ole, %170, %195 : vector<16x32xf32>
    %197 = arith.andi %192, %196 : vector<16x32xi1>
    %198 = arith.extui %197 : vector<16x32xi1> to vector<16x32xi32>
    %199 = arith.sitofp %198 : vector<16x32xi32> to vector<16x32xf32>
    %cst_73 = arith.constant -1.000000e+00 : f32
    %200 = vector.broadcast %cst_73 : f32 to vector<16x32xf32>
    %201 = arith.cmpf oge, %170, %200 : vector<16x32xf32>
    %cst_74 = arith.constant 2.000000e+00 : f32
    %202 = vector.broadcast %cst_74 : f32 to vector<1x32xf32>
    %203 = arith.subf %151, %202 : vector<1x32xf32>
    %204 = vector.broadcast %203 : vector<1x32xf32> to vector<16x32xf32>
    %205 = arith.cmpf ole, %170, %204 : vector<16x32xf32>
    %206 = arith.andi %201, %205 : vector<16x32xi1>
    %207 = arith.extui %206 : vector<16x32xi1> to vector<16x32xi32>
    %208 = arith.sitofp %207 : vector<16x32xi32> to vector<16x32xf32>
    %cst_75 = arith.constant 1.000000e+00 : f32
    %209 = vector.broadcast %cst_75 : f32 to vector<16x32xf32>
    %210 = arith.subf %209, %171 : vector<16x32xf32>
    %211 = arith.mulf %149, %210 : vector<16x32xf32>
    %cst_76 = arith.constant 1.000000e+00 : f32
    %212 = vector.broadcast %cst_76 : f32 to vector<16x32xf32>
    %213 = arith.subf %212, %172 : vector<16x32xf32>
    %214 = arith.mulf %211, %213 : vector<16x32xf32>
    %215 = arith.mulf %214, %181 : vector<16x32xf32>
    %216 = arith.mulf %215, %199 : vector<16x32xf32>
    %217 = arith.mulf %149, %171 : vector<16x32xf32>
    %cst_77 = arith.constant 1.000000e+00 : f32
    %218 = vector.broadcast %cst_77 : f32 to vector<16x32xf32>
    %219 = arith.subf %218, %172 : vector<16x32xf32>
    %220 = arith.mulf %217, %219 : vector<16x32xf32>
    %221 = arith.mulf %220, %190 : vector<16x32xf32>
    %222 = arith.mulf %221, %199 : vector<16x32xf32>
    %cst_78 = arith.constant 1.000000e+00 : f32
    %223 = vector.broadcast %cst_78 : f32 to vector<16x32xf32>
    %224 = arith.subf %223, %171 : vector<16x32xf32>
    %225 = arith.mulf %149, %224 : vector<16x32xf32>
    %226 = arith.mulf %225, %172 : vector<16x32xf32>
    %227 = arith.mulf %226, %181 : vector<16x32xf32>
    %228 = arith.mulf %227, %208 : vector<16x32xf32>
    %229 = arith.mulf %149, %171 : vector<16x32xf32>
    %230 = arith.mulf %229, %172 : vector<16x32xf32>
    %231 = arith.mulf %230, %190 : vector<16x32xf32>
    %232 = arith.mulf %231, %208 : vector<16x32xf32>
    %233 = vector.broadcast %152 : vector<1x32xf32> to vector<16x32xf32>
    %234 = arith.addf %233, %6 : vector<16x32xf32>
    %235 = vector.broadcast %150 : vector<1x32xf32> to vector<16x32xf32>
    %236 = arith.mulf %170, %235 : vector<16x32xf32>
    %237 = arith.addf %234, %236 : vector<16x32xf32>
    %238 = arith.addf %237, %169 : vector<16x32xf32>
    %c0_79 = arith.constant 0 : index
    %c0_80 = arith.constant 0 : index
    %239 = vector.load %arg2[%c0_79, %c0_80] : memref<48x32xf32, #tpu.memory_space<vmem>>, vector<48x32xf32>
    %c224 = arith.constant 224 : index
    %c0_81 = arith.constant 0 : index
    %240 = vector.load %arg3[%c224, %c0_81] : memref<456x64xf32, #tpu.memory_space<vmem>>, vector<32x32xf32>
    %cst_82 = arith.constant dense<0.000000e+00> : vector<48x32xf32>
    %241 = tpu.matmul %239, %240, %cst_82 {dimension_numbers = #tpu.dot_dimension_numbers<[1], [0], [0], [1], [0, 0, 1, 1], [], []>, precision = #tpu.contract_precision<fp32>} : vector<48x32xf32>, vector<32x32xf32>, vector<48x32xf32> -> vector<48x32xf32>
    %c443 = arith.constant 443 : index
    %c0_83 = arith.constant 0 : index
    %242 = vector.load %arg3[%c443, %c0_83] : memref<456x64xf32, #tpu.memory_space<vmem>>, vector<1x32xf32>
    %243 = vector.broadcast %242 : vector<1x32xf32> to vector<48x32xf32>
    %244 = arith.addf %241, %243 : vector<48x32xf32>
    %cst_84 = arith.constant 0.000000e+00 : f32
    %245 = vector.broadcast %cst_84 : f32 to vector<8x32xf32>
    %246 = vector.extract_strided_slice %7 {offsets = [0, 0], sizes = [1, 32], strides = [1, 1]} : vector<4x32xf32> to vector<1x32xf32>
    %247 = vector.broadcast %246 : vector<1x32xf32> to vector<48x32xf32>
    %248 = arith.mulf %244, %247 : vector<48x32xf32>
    %249 = tpu.concatenate %245, %248, %245 in 0 : vector<8x32xf32>, vector<48x32xf32>, vector<8x32xf32> -> vector<64x32xf32>
    %250 = vector.extract_strided_slice %7 {offsets = [1, 0], sizes = [1, 32], strides = [1, 1]} : vector<4x32xf32> to vector<1x32xf32>
    %251 = vector.broadcast %250 : vector<1x32xf32> to vector<48x32xf32>
    %252 = arith.mulf %244, %251 : vector<48x32xf32>
    %253 = tpu.concatenate %245, %252, %245 in 0 : vector<8x32xf32>, vector<48x32xf32>, vector<8x32xf32> -> vector<64x32xf32>
    %254 = vector.extract_strided_slice %7 {offsets = [2, 0], sizes = [1, 32], strides = [1, 1]} : vector<4x32xf32> to vector<1x32xf32>
    %255 = vector.broadcast %254 : vector<1x32xf32> to vector<48x32xf32>
    %256 = arith.mulf %244, %255 : vector<48x32xf32>
    %257 = tpu.concatenate %245, %256, %245 in 0 : vector<8x32xf32>, vector<48x32xf32>, vector<8x32xf32> -> vector<64x32xf32>
    %258 = vector.extract_strided_slice %7 {offsets = [3, 0], sizes = [1, 32], strides = [1, 1]} : vector<4x32xf32> to vector<1x32xf32>
    %259 = vector.broadcast %258 : vector<1x32xf32> to vector<48x32xf32>
    %260 = arith.mulf %244, %259 : vector<48x32xf32>
    %261 = tpu.concatenate %245, %260, %245 in 0 : vector<8x32xf32>, vector<48x32xf32>, vector<8x32xf32> -> vector<64x32xf32>
    %262 = tpu.concatenate %249, %253, %257, %261 in 0 : vector<64x32xf32>, vector<64x32xf32>, vector<64x32xf32>, vector<64x32xf32> -> vector<256x32xf32>
    %263 = tpu.iota {dimensions = array<i32: 1>} : vector<1x64xi32>
    %264 = arith.sitofp %263 : vector<1x64xi32> to vector<1x64xf32>
    %cst_85 = arith.constant 0.000000e+00 : f32
    %265 = vector.broadcast %cst_85 : f32 to vector<16x64xf32>
    %cst_86 = arith.constant 0.000000e+00 : f32
    %266 = vector.broadcast %cst_86 : f32 to vector<16x64xf32>
    %cst_87 = arith.constant 0.000000e+00 : f32
    %267 = vector.broadcast %cst_87 : f32 to vector<16x64xf32>
    %cst_88 = arith.constant 0.000000e+00 : f32
    %268 = vector.broadcast %cst_88 : f32 to vector<16x64xf32>
    %269 = vector.extract_strided_slice %238 {offsets = [0, 0], sizes = [16, 1], strides = [1, 1]} : vector<16x32xf32> to vector<16x1xf32>
    %270 = vector.broadcast %269 : vector<16x1xf32> to vector<16x64xf32>
    %271 = vector.broadcast %264 : vector<1x64xf32> to vector<16x64xf32>
    %272 = arith.cmpf oeq, %270, %271 : vector<16x64xf32>
    %273 = vector.extract_strided_slice %216 {offsets = [0, 0], sizes = [16, 1], strides = [1, 1]} : vector<16x32xf32> to vector<16x1xf32>
    %cst_89 = arith.constant 0.000000e+00 : f32
    %274 = vector.shape_cast %273 : vector<16x1xf32> to vector<16x1xf32>
    %275 = vector.broadcast %274 : vector<16x1xf32> to vector<16x64xf32>
    %276 = vector.broadcast %cst_89 : f32 to vector<16x64xf32>
    %277 = arith.select %272, %275, %276 : vector<16x64xi1>, vector<16x64xf32>
    %278 = arith.addf %265, %277 : vector<16x64xf32>
    %279 = vector.extract_strided_slice %222 {offsets = [0, 0], sizes = [16, 1], strides = [1, 1]} : vector<16x32xf32> to vector<16x1xf32>
    %cst_90 = arith.constant 0.000000e+00 : f32
    %280 = vector.shape_cast %279 : vector<16x1xf32> to vector<16x1xf32>
    %281 = vector.broadcast %280 : vector<16x1xf32> to vector<16x64xf32>
    %282 = vector.broadcast %cst_90 : f32 to vector<16x64xf32>
    %283 = arith.select %272, %281, %282 : vector<16x64xi1>, vector<16x64xf32>
    %284 = arith.addf %266, %283 : vector<16x64xf32>
    %285 = vector.extract_strided_slice %228 {offsets = [0, 0], sizes = [16, 1], strides = [1, 1]} : vector<16x32xf32> to vector<16x1xf32>
    %cst_91 = arith.constant 0.000000e+00 : f32
    %286 = vector.shape_cast %285 : vector<16x1xf32> to vector<16x1xf32>
    %287 = vector.broadcast %286 : vector<16x1xf32> to vector<16x64xf32>
    %288 = vector.broadcast %cst_91 : f32 to vector<16x64xf32>
    %289 = arith.select %272, %287, %288 : vector<16x64xi1>, vector<16x64xf32>
    %290 = arith.addf %267, %289 : vector<16x64xf32>
    %291 = vector.extract_strided_slice %232 {offsets = [0, 0], sizes = [16, 1], strides = [1, 1]} : vector<16x32xf32> to vector<16x1xf32>
    %cst_92 = arith.constant 0.000000e+00 : f32
    %292 = vector.shape_cast %291 : vector<16x1xf32> to vector<16x1xf32>
    %293 = vector.broadcast %292 : vector<16x1xf32> to vector<16x64xf32>
    %294 = vector.broadcast %cst_92 : f32 to vector<16x64xf32>
    %295 = arith.select %272, %293, %294 : vector<16x64xi1>, vector<16x64xf32>
    %296 = arith.addf %268, %295 : vector<16x64xf32>
    %297 = vector.extract_strided_slice %238 {offsets = [0, 1], sizes = [16, 1], strides = [1, 1]} : vector<16x32xf32> to vector<16x1xf32>
    %298 = vector.broadcast %297 : vector<16x1xf32> to vector<16x64xf32>
    %299 = vector.broadcast %264 : vector<1x64xf32> to vector<16x64xf32>
    %300 = arith.cmpf oeq, %298, %299 : vector<16x64xf32>
    %301 = vector.extract_strided_slice %216 {offsets = [0, 1], sizes = [16, 1], strides = [1, 1]} : vector<16x32xf32> to vector<16x1xf32>
    %cst_93 = arith.constant 0.000000e+00 : f32
    %302 = vector.shape_cast %301 : vector<16x1xf32> to vector<16x1xf32>
    %303 = vector.broadcast %302 : vector<16x1xf32> to vector<16x64xf32>
    %304 = vector.broadcast %cst_93 : f32 to vector<16x64xf32>
    %305 = arith.select %300, %303, %304 : vector<16x64xi1>, vector<16x64xf32>
    %306 = arith.addf %278, %305 : vector<16x64xf32>
    %307 = vector.extract_strided_slice %222 {offsets = [0, 1], sizes = [16, 1], strides = [1, 1]} : vector<16x32xf32> to vector<16x1xf32>
    %cst_94 = arith.constant 0.000000e+00 : f32
    %308 = vector.shape_cast %307 : vector<16x1xf32> to vector<16x1xf32>
    %309 = vector.broadcast %308 : vector<16x1xf32> to vector<16x64xf32>
    %310 = vector.broadcast %cst_94 : f32 to vector<16x64xf32>
    %311 = arith.select %300, %309, %310 : vector<16x64xi1>, vector<16x64xf32>
    %312 = arith.addf %284, %311 : vector<16x64xf32>
    %313 = vector.extract_strided_slice %228 {offsets = [0, 1], sizes = [16, 1], strides = [1, 1]} : vector<16x32xf32> to vector<16x1xf32>
    %cst_95 = arith.constant 0.000000e+00 : f32
    %314 = vector.shape_cast %313 : vector<16x1xf32> to vector<16x1xf32>
    %315 = vector.broadcast %314 : vector<16x1xf32> to vector<16x64xf32>
    %316 = vector.broadcast %cst_95 : f32 to vector<16x64xf32>
    %317 = arith.select %300, %315, %316 : vector<16x64xi1>, vector<16x64xf32>
    %318 = arith.addf %290, %317 : vector<16x64xf32>
    %319 = vector.extract_strided_slice %232 {offsets = [0, 1], sizes = [16, 1], strides = [1, 1]} : vector<16x32xf32> to vector<16x1xf32>
    %cst_96 = arith.constant 0.000000e+00 : f32
    %320 = vector.shape_cast %319 : vector<16x1xf32> to vector<16x1xf32>
    %321 = vector.broadcast %320 : vector<16x1xf32> to vector<16x64xf32>
    %322 = vector.broadcast %cst_96 : f32 to vector<16x64xf32>
    %323 = arith.select %300, %321, %322 : vector<16x64xi1>, vector<16x64xf32>
    %324 = arith.addf %296, %323 : vector<16x64xf32>
    %325 = vector.extract_strided_slice %238 {offsets = [0, 2], sizes = [16, 1], strides = [1, 1]} : vector<16x32xf32> to vector<16x1xf32>
    %326 = vector.broadcast %325 : vector<16x1xf32> to vector<16x64xf32>
    %327 = vector.broadcast %264 : vector<1x64xf32> to vector<16x64xf32>
    %328 = arith.cmpf oeq, %326, %327 : vector<16x64xf32>
    %329 = vector.extract_strided_slice %216 {offsets = [0, 2], sizes = [16, 1], strides = [1, 1]} : vector<16x32xf32> to vector<16x1xf32>
    %cst_97 = arith.constant 0.000000e+00 : f32
    %330 = vector.shape_cast %329 : vector<16x1xf32> to vector<16x1xf32>
    %331 = vector.broadcast %330 : vector<16x1xf32> to vector<16x64xf32>
    %332 = vector.broadcast %cst_97 : f32 to vector<16x64xf32>
    %333 = arith.select %328, %331, %332 : vector<16x64xi1>, vector<16x64xf32>
    %334 = arith.addf %306, %333 : vector<16x64xf32>
    %335 = vector.extract_strided_slice %222 {offsets = [0, 2], sizes = [16, 1], strides = [1, 1]} : vector<16x32xf32> to vector<16x1xf32>
    %cst_98 = arith.constant 0.000000e+00 : f32
    %336 = vector.shape_cast %335 : vector<16x1xf32> to vector<16x1xf32>
    %337 = vector.broadcast %336 : vector<16x1xf32> to vector<16x64xf32>
    %338 = vector.broadcast %cst_98 : f32 to vector<16x64xf32>
    %339 = arith.select %328, %337, %338 : vector<16x64xi1>, vector<16x64xf32>
    %340 = arith.addf %312, %339 : vector<16x64xf32>
    %341 = vector.extract_strided_slice %228 {offsets = [0, 2], sizes = [16, 1], strides = [1, 1]} : vector<16x32xf32> to vector<16x1xf32>
    %cst_99 = arith.constant 0.000000e+00 : f32
    %342 = vector.shape_cast %341 : vector<16x1xf32> to vector<16x1xf32>
    %343 = vector.broadcast %342 : vector<16x1xf32> to vector<16x64xf32>
    %344 = vector.broadcast %cst_99 : f32 to vector<16x64xf32>
    %345 = arith.select %328, %343, %344 : vector<16x64xi1>, vector<16x64xf32>
    %346 = arith.addf %318, %345 : vector<16x64xf32>
    %347 = vector.extract_strided_slice %232 {offsets = [0, 2], sizes = [16, 1], strides = [1, 1]} : vector<16x32xf32> to vector<16x1xf32>
    %cst_100 = arith.constant 0.000000e+00 : f32
    %348 = vector.shape_cast %347 : vector<16x1xf32> to vector<16x1xf32>
    %349 = vector.broadcast %348 : vector<16x1xf32> to vector<16x64xf32>
    %350 = vector.broadcast %cst_100 : f32 to vector<16x64xf32>
    %351 = arith.select %328, %349, %350 : vector<16x64xi1>, vector<16x64xf32>
    %352 = arith.addf %324, %351 : vector<16x64xf32>
    %353 = vector.extract_strided_slice %238 {offsets = [0, 3], sizes = [16, 1], strides = [1, 1]} : vector<16x32xf32> to vector<16x1xf32>
    %354 = vector.broadcast %353 : vector<16x1xf32> to vector<16x64xf32>
    %355 = vector.broadcast %264 : vector<1x64xf32> to vector<16x64xf32>
    %356 = arith.cmpf oeq, %354, %355 : vector<16x64xf32>
    %357 = vector.extract_strided_slice %216 {offsets = [0, 3], sizes = [16, 1], strides = [1, 1]} : vector<16x32xf32> to vector<16x1xf32>
    %cst_101 = arith.constant 0.000000e+00 : f32
    %358 = vector.shape_cast %357 : vector<16x1xf32> to vector<16x1xf32>
    %359 = vector.broadcast %358 : vector<16x1xf32> to vector<16x64xf32>
    %360 = vector.broadcast %cst_101 : f32 to vector<16x64xf32>
    %361 = arith.select %356, %359, %360 : vector<16x64xi1>, vector<16x64xf32>
    %362 = arith.addf %334, %361 : vector<16x64xf32>
    %363 = vector.extract_strided_slice %222 {offsets = [0, 3], sizes = [16, 1], strides = [1, 1]} : vector<16x32xf32> to vector<16x1xf32>
    %cst_102 = arith.constant 0.000000e+00 : f32
    %364 = vector.shape_cast %363 : vector<16x1xf32> to vector<16x1xf32>
    %365 = vector.broadcast %364 : vector<16x1xf32> to vector<16x64xf32>
    %366 = vector.broadcast %cst_102 : f32 to vector<16x64xf32>
    %367 = arith.select %356, %365, %366 : vector<16x64xi1>, vector<16x64xf32>
    %368 = arith.addf %340, %367 : vector<16x64xf32>
    %369 = vector.extract_strided_slice %228 {offsets = [0, 3], sizes = [16, 1], strides = [1, 1]} : vector<16x32xf32> to vector<16x1xf32>
    %cst_103 = arith.constant 0.000000e+00 : f32
    %370 = vector.shape_cast %369 : vector<16x1xf32> to vector<16x1xf32>
    %371 = vector.broadcast %370 : vector<16x1xf32> to vector<16x64xf32>
    %372 = vector.broadcast %cst_103 : f32 to vector<16x64xf32>
    %373 = arith.select %356, %371, %372 : vector<16x64xi1>, vector<16x64xf32>
    %374 = arith.addf %346, %373 : vector<16x64xf32>
    %375 = vector.extract_strided_slice %232 {offsets = [0, 3], sizes = [16, 1], strides = [1, 1]} : vector<16x32xf32> to vector<16x1xf32>
    %cst_104 = arith.constant 0.000000e+00 : f32
    %376 = vector.shape_cast %375 : vector<16x1xf32> to vector<16x1xf32>
    %377 = vector.broadcast %376 : vector<16x1xf32> to vector<16x64xf32>
    %378 = vector.broadcast %cst_104 : f32 to vector<16x64xf32>
    %379 = arith.select %356, %377, %378 : vector<16x64xi1>, vector<16x64xf32>
    %380 = arith.addf %352, %379 : vector<16x64xf32>
    %381 = vector.extract_strided_slice %238 {offsets = [0, 4], sizes = [16, 1], strides = [1, 1]} : vector<16x32xf32> to vector<16x1xf32>
    %382 = vector.broadcast %381 : vector<16x1xf32> to vector<16x64xf32>
    %383 = vector.broadcast %264 : vector<1x64xf32> to vector<16x64xf32>
    %384 = arith.cmpf oeq, %382, %383 : vector<16x64xf32>
    %385 = vector.extract_strided_slice %216 {offsets = [0, 4], sizes = [16, 1], strides = [1, 1]} : vector<16x32xf32> to vector<16x1xf32>
    %cst_105 = arith.constant 0.000000e+00 : f32
    %386 = vector.shape_cast %385 : vector<16x1xf32> to vector<16x1xf32>
    %387 = vector.broadcast %386 : vector<16x1xf32> to vector<16x64xf32>
    %388 = vector.broadcast %cst_105 : f32 to vector<16x64xf32>
    %389 = arith.select %384, %387, %388 : vector<16x64xi1>, vector<16x64xf32>
    %390 = arith.addf %362, %389 : vector<16x64xf32>
    %391 = vector.extract_strided_slice %222 {offsets = [0, 4], sizes = [16, 1], strides = [1, 1]} : vector<16x32xf32> to vector<16x1xf32>
    %cst_106 = arith.constant 0.000000e+00 : f32
    %392 = vector.shape_cast %391 : vector<16x1xf32> to vector<16x1xf32>
    %393 = vector.broadcast %392 : vector<16x1xf32> to vector<16x64xf32>
    %394 = vector.broadcast %cst_106 : f32 to vector<16x64xf32>
    %395 = arith.select %384, %393, %394 : vector<16x64xi1>, vector<16x64xf32>
    %396 = arith.addf %368, %395 : vector<16x64xf32>
    %397 = vector.extract_strided_slice %228 {offsets = [0, 4], sizes = [16, 1], strides = [1, 1]} : vector<16x32xf32> to vector<16x1xf32>
    %cst_107 = arith.constant 0.000000e+00 : f32
    %398 = vector.shape_cast %397 : vector<16x1xf32> to vector<16x1xf32>
    %399 = vector.broadcast %398 : vector<16x1xf32> to vector<16x64xf32>
    %400 = vector.broadcast %cst_107 : f32 to vector<16x64xf32>
    %401 = arith.select %384, %399, %400 : vector<16x64xi1>, vector<16x64xf32>
    %402 = arith.addf %374, %401 : vector<16x64xf32>
    %403 = vector.extract_strided_slice %232 {offsets = [0, 4], sizes = [16, 1], strides = [1, 1]} : vector<16x32xf32> to vector<16x1xf32>
    %cst_108 = arith.constant 0.000000e+00 : f32
    %404 = vector.shape_cast %403 : vector<16x1xf32> to vector<16x1xf32>
    %405 = vector.broadcast %404 : vector<16x1xf32> to vector<16x64xf32>
    %406 = vector.broadcast %cst_108 : f32 to vector<16x64xf32>
    %407 = arith.select %384, %405, %406 : vector<16x64xi1>, vector<16x64xf32>
    %408 = arith.addf %380, %407 : vector<16x64xf32>
    %409 = vector.extract_strided_slice %238 {offsets = [0, 5], sizes = [16, 1], strides = [1, 1]} : vector<16x32xf32> to vector<16x1xf32>
    %410 = vector.broadcast %409 : vector<16x1xf32> to vector<16x64xf32>
    %411 = vector.broadcast %264 : vector<1x64xf32> to vector<16x64xf32>
    %412 = arith.cmpf oeq, %410, %411 : vector<16x64xf32>
    %413 = vector.extract_strided_slice %216 {offsets = [0, 5], sizes = [16, 1], strides = [1, 1]} : vector<16x32xf32> to vector<16x1xf32>
    %cst_109 = arith.constant 0.000000e+00 : f32
    %414 = vector.shape_cast %413 : vector<16x1xf32> to vector<16x1xf32>
    %415 = vector.broadcast %414 : vector<16x1xf32> to vector<16x64xf32>
    %416 = vector.broadcast %cst_109 : f32 to vector<16x64xf32>
    %417 = arith.select %412, %415, %416 : vector<16x64xi1>, vector<16x64xf32>
    %418 = arith.addf %390, %417 : vector<16x64xf32>
    %419 = vector.extract_strided_slice %222 {offsets = [0, 5], sizes = [16, 1], strides = [1, 1]} : vector<16x32xf32> to vector<16x1xf32>
    %cst_110 = arith.constant 0.000000e+00 : f32
    %420 = vector.shape_cast %419 : vector<16x1xf32> to vector<16x1xf32>
    %421 = vector.broadcast %420 : vector<16x1xf32> to vector<16x64xf32>
    %422 = vector.broadcast %cst_110 : f32 to vector<16x64xf32>
    %423 = arith.select %412, %421, %422 : vector<16x64xi1>, vector<16x64xf32>
    %424 = arith.addf %396, %423 : vector<16x64xf32>
    %425 = vector.extract_strided_slice %228 {offsets = [0, 5], sizes = [16, 1], strides = [1, 1]} : vector<16x32xf32> to vector<16x1xf32>
    %cst_111 = arith.constant 0.000000e+00 : f32
    %426 = vector.shape_cast %425 : vector<16x1xf32> to vector<16x1xf32>
    %427 = vector.broadcast %426 : vector<16x1xf32> to vector<16x64xf32>
    %428 = vector.broadcast %cst_111 : f32 to vector<16x64xf32>
    %429 = arith.select %412, %427, %428 : vector<16x64xi1>, vector<16x64xf32>
    %430 = arith.addf %402, %429 : vector<16x64xf32>
    %431 = vector.extract_strided_slice %232 {offsets = [0, 5], sizes = [16, 1], strides = [1, 1]} : vector<16x32xf32> to vector<16x1xf32>
    %cst_112 = arith.constant 0.000000e+00 : f32
    %432 = vector.shape_cast %431 : vector<16x1xf32> to vector<16x1xf32>
    %433 = vector.broadcast %432 : vector<16x1xf32> to vector<16x64xf32>
    %434 = vector.broadcast %cst_112 : f32 to vector<16x64xf32>
    %435 = arith.select %412, %433, %434 : vector<16x64xi1>, vector<16x64xf32>
    %436 = arith.addf %408, %435 : vector<16x64xf32>
    %437 = vector.extract_strided_slice %238 {offsets = [0, 6], sizes = [16, 1], strides = [1, 1]} : vector<16x32xf32> to vector<16x1xf32>
    %438 = vector.broadcast %437 : vector<16x1xf32> to vector<16x64xf32>
    %439 = vector.broadcast %264 : vector<1x64xf32> to vector<16x64xf32>
    %440 = arith.cmpf oeq, %438, %439 : vector<16x64xf32>
    %441 = vector.extract_strided_slice %216 {offsets = [0, 6], sizes = [16, 1], strides = [1, 1]} : vector<16x32xf32> to vector<16x1xf32>
    %cst_113 = arith.constant 0.000000e+00 : f32
    %442 = vector.shape_cast %441 : vector<16x1xf32> to vector<16x1xf32>
    %443 = vector.broadcast %442 : vector<16x1xf32> to vector<16x64xf32>
    %444 = vector.broadcast %cst_113 : f32 to vector<16x64xf32>
    %445 = arith.select %440, %443, %444 : vector<16x64xi1>, vector<16x64xf32>
    %446 = arith.addf %418, %445 : vector<16x64xf32>
    %447 = vector.extract_strided_slice %222 {offsets = [0, 6], sizes = [16, 1], strides = [1, 1]} : vector<16x32xf32> to vector<16x1xf32>
    %cst_114 = arith.constant 0.000000e+00 : f32
    %448 = vector.shape_cast %447 : vector<16x1xf32> to vector<16x1xf32>
    %449 = vector.broadcast %448 : vector<16x1xf32> to vector<16x64xf32>
    %450 = vector.broadcast %cst_114 : f32 to vector<16x64xf32>
    %451 = arith.select %440, %449, %450 : vector<16x64xi1>, vector<16x64xf32>
    %452 = arith.addf %424, %451 : vector<16x64xf32>
    %453 = vector.extract_strided_slice %228 {offsets = [0, 6], sizes = [16, 1], strides = [1, 1]} : vector<16x32xf32> to vector<16x1xf32>
    %cst_115 = arith.constant 0.000000e+00 : f32
    %454 = vector.shape_cast %453 : vector<16x1xf32> to vector<16x1xf32>
    %455 = vector.broadcast %454 : vector<16x1xf32> to vector<16x64xf32>
    %456 = vector.broadcast %cst_115 : f32 to vector<16x64xf32>
    %457 = arith.select %440, %455, %456 : vector<16x64xi1>, vector<16x64xf32>
    %458 = arith.addf %430, %457 : vector<16x64xf32>
    %459 = vector.extract_strided_slice %232 {offsets = [0, 6], sizes = [16, 1], strides = [1, 1]} : vector<16x32xf32> to vector<16x1xf32>
    %cst_116 = arith.constant 0.000000e+00 : f32
    %460 = vector.shape_cast %459 : vector<16x1xf32> to vector<16x1xf32>
    %461 = vector.broadcast %460 : vector<16x1xf32> to vector<16x64xf32>
    %462 = vector.broadcast %cst_116 : f32 to vector<16x64xf32>
    %463 = arith.select %440, %461, %462 : vector<16x64xi1>, vector<16x64xf32>
    %464 = arith.addf %436, %463 : vector<16x64xf32>
    %465 = vector.extract_strided_slice %238 {offsets = [0, 7], sizes = [16, 1], strides = [1, 1]} : vector<16x32xf32> to vector<16x1xf32>
    %466 = vector.broadcast %465 : vector<16x1xf32> to vector<16x64xf32>
    %467 = vector.broadcast %264 : vector<1x64xf32> to vector<16x64xf32>
    %468 = arith.cmpf oeq, %466, %467 : vector<16x64xf32>
    %469 = vector.extract_strided_slice %216 {offsets = [0, 7], sizes = [16, 1], strides = [1, 1]} : vector<16x32xf32> to vector<16x1xf32>
    %cst_117 = arith.constant 0.000000e+00 : f32
    %470 = vector.shape_cast %469 : vector<16x1xf32> to vector<16x1xf32>
    %471 = vector.broadcast %470 : vector<16x1xf32> to vector<16x64xf32>
    %472 = vector.broadcast %cst_117 : f32 to vector<16x64xf32>
    %473 = arith.select %468, %471, %472 : vector<16x64xi1>, vector<16x64xf32>
    %474 = arith.addf %446, %473 : vector<16x64xf32>
    %475 = vector.extract_strided_slice %222 {offsets = [0, 7], sizes = [16, 1], strides = [1, 1]} : vector<16x32xf32> to vector<16x1xf32>
    %cst_118 = arith.constant 0.000000e+00 : f32
    %476 = vector.shape_cast %475 : vector<16x1xf32> to vector<16x1xf32>
    %477 = vector.broadcast %476 : vector<16x1xf32> to vector<16x64xf32>
    %478 = vector.broadcast %cst_118 : f32 to vector<16x64xf32>
    %479 = arith.select %468, %477, %478 : vector<16x64xi1>, vector<16x64xf32>
    %480 = arith.addf %452, %479 : vector<16x64xf32>
    %481 = vector.extract_strided_slice %228 {offsets = [0, 7], sizes = [16, 1], strides = [1, 1]} : vector<16x32xf32> to vector<16x1xf32>
    %cst_119 = arith.constant 0.000000e+00 : f32
    %482 = vector.shape_cast %481 : vector<16x1xf32> to vector<16x1xf32>
    %483 = vector.broadcast %482 : vector<16x1xf32> to vector<16x64xf32>
    %484 = vector.broadcast %cst_119 : f32 to vector<16x64xf32>
    %485 = arith.select %468, %483, %484 : vector<16x64xi1>, vector<16x64xf32>
    %486 = arith.addf %458, %485 : vector<16x64xf32>
    %487 = vector.extract_strided_slice %232 {offsets = [0, 7], sizes = [16, 1], strides = [1, 1]} : vector<16x32xf32> to vector<16x1xf32>
    %cst_120 = arith.constant 0.000000e+00 : f32
    %488 = vector.shape_cast %487 : vector<16x1xf32> to vector<16x1xf32>
    %489 = vector.broadcast %488 : vector<16x1xf32> to vector<16x64xf32>
    %490 = vector.broadcast %cst_120 : f32 to vector<16x64xf32>
    %491 = arith.select %468, %489, %490 : vector<16x64xi1>, vector<16x64xf32>
    %492 = arith.addf %464, %491 : vector<16x64xf32>
    %493 = vector.extract_strided_slice %480 {offsets = [0, 63], sizes = [16, 1], strides = [1, 1]} : vector<16x64xf32> to vector<16x1xf32>
    %494 = vector.extract_strided_slice %480 {offsets = [0, 0], sizes = [16, 63], strides = [1, 1]} : vector<16x64xf32> to vector<16x63xf32>
    %495 = tpu.concatenate %493, %494 in 1 : vector<16x1xf32>, vector<16x63xf32> -> vector<16x64xf32>
    %496 = arith.addf %474, %495 : vector<16x64xf32>
    %497 = vector.extract_strided_slice %486 {offsets = [0, 60], sizes = [16, 4], strides = [1, 1]} : vector<16x64xf32> to vector<16x4xf32>
    %498 = vector.extract_strided_slice %486 {offsets = [0, 0], sizes = [16, 60], strides = [1, 1]} : vector<16x64xf32> to vector<16x60xf32>
    %499 = tpu.concatenate %497, %498 in 1 : vector<16x4xf32>, vector<16x60xf32> -> vector<16x64xf32>
    %500 = arith.addf %496, %499 : vector<16x64xf32>
    %501 = vector.extract_strided_slice %492 {offsets = [0, 59], sizes = [16, 5], strides = [1, 1]} : vector<16x64xf32> to vector<16x5xf32>
    %502 = vector.extract_strided_slice %492 {offsets = [0, 0], sizes = [16, 59], strides = [1, 1]} : vector<16x64xf32> to vector<16x59xf32>
    %503 = tpu.concatenate %501, %502 in 1 : vector<16x5xf32>, vector<16x59xf32> -> vector<16x64xf32>
    %504 = arith.addf %500, %503 : vector<16x64xf32>
    %cst_121 = arith.constant 0.000000e+00 : f32
    %505 = vector.broadcast %cst_121 : f32 to vector<16x64xf32>
    %cst_122 = arith.constant 0.000000e+00 : f32
    %506 = vector.broadcast %cst_122 : f32 to vector<16x64xf32>
    %cst_123 = arith.constant 0.000000e+00 : f32
    %507 = vector.broadcast %cst_123 : f32 to vector<16x64xf32>
    %cst_124 = arith.constant 0.000000e+00 : f32
    %508 = vector.broadcast %cst_124 : f32 to vector<16x64xf32>
    %509 = vector.extract_strided_slice %238 {offsets = [0, 8], sizes = [16, 1], strides = [1, 1]} : vector<16x32xf32> to vector<16x1xf32>
    %510 = vector.broadcast %509 : vector<16x1xf32> to vector<16x64xf32>
    %511 = vector.broadcast %264 : vector<1x64xf32> to vector<16x64xf32>
    %512 = arith.cmpf oeq, %510, %511 : vector<16x64xf32>
    %513 = vector.extract_strided_slice %216 {offsets = [0, 8], sizes = [16, 1], strides = [1, 1]} : vector<16x32xf32> to vector<16x1xf32>
    %cst_125 = arith.constant 0.000000e+00 : f32
    %514 = vector.shape_cast %513 : vector<16x1xf32> to vector<16x1xf32>
    %515 = vector.broadcast %514 : vector<16x1xf32> to vector<16x64xf32>
    %516 = vector.broadcast %cst_125 : f32 to vector<16x64xf32>
    %517 = arith.select %512, %515, %516 : vector<16x64xi1>, vector<16x64xf32>
    %518 = arith.addf %505, %517 : vector<16x64xf32>
    %519 = vector.extract_strided_slice %222 {offsets = [0, 8], sizes = [16, 1], strides = [1, 1]} : vector<16x32xf32> to vector<16x1xf32>
    %cst_126 = arith.constant 0.000000e+00 : f32
    %520 = vector.shape_cast %519 : vector<16x1xf32> to vector<16x1xf32>
    %521 = vector.broadcast %520 : vector<16x1xf32> to vector<16x64xf32>
    %522 = vector.broadcast %cst_126 : f32 to vector<16x64xf32>
    %523 = arith.select %512, %521, %522 : vector<16x64xi1>, vector<16x64xf32>
    %524 = arith.addf %506, %523 : vector<16x64xf32>
    %525 = vector.extract_strided_slice %228 {offsets = [0, 8], sizes = [16, 1], strides = [1, 1]} : vector<16x32xf32> to vector<16x1xf32>
    %cst_127 = arith.constant 0.000000e+00 : f32
    %526 = vector.shape_cast %525 : vector<16x1xf32> to vector<16x1xf32>
    %527 = vector.broadcast %526 : vector<16x1xf32> to vector<16x64xf32>
    %528 = vector.broadcast %cst_127 : f32 to vector<16x64xf32>
    %529 = arith.select %512, %527, %528 : vector<16x64xi1>, vector<16x64xf32>
    %530 = arith.addf %507, %529 : vector<16x64xf32>
    %531 = vector.extract_strided_slice %232 {offsets = [0, 8], sizes = [16, 1], strides = [1, 1]} : vector<16x32xf32> to vector<16x1xf32>
    %cst_128 = arith.constant 0.000000e+00 : f32
    %532 = vector.shape_cast %531 : vector<16x1xf32> to vector<16x1xf32>
    %533 = vector.broadcast %532 : vector<16x1xf32> to vector<16x64xf32>
    %534 = vector.broadcast %cst_128 : f32 to vector<16x64xf32>
    %535 = arith.select %512, %533, %534 : vector<16x64xi1>, vector<16x64xf32>
    %536 = arith.addf %508, %535 : vector<16x64xf32>
    %537 = vector.extract_strided_slice %238 {offsets = [0, 9], sizes = [16, 1], strides = [1, 1]} : vector<16x32xf32> to vector<16x1xf32>
    %538 = vector.broadcast %537 : vector<16x1xf32> to vector<16x64xf32>
    %539 = vector.broadcast %264 : vector<1x64xf32> to vector<16x64xf32>
    %540 = arith.cmpf oeq, %538, %539 : vector<16x64xf32>
    %541 = vector.extract_strided_slice %216 {offsets = [0, 9], sizes = [16, 1], strides = [1, 1]} : vector<16x32xf32> to vector<16x1xf32>
    %cst_129 = arith.constant 0.000000e+00 : f32
    %542 = vector.shape_cast %541 : vector<16x1xf32> to vector<16x1xf32>
    %543 = vector.broadcast %542 : vector<16x1xf32> to vector<16x64xf32>
    %544 = vector.broadcast %cst_129 : f32 to vector<16x64xf32>
    %545 = arith.select %540, %543, %544 : vector<16x64xi1>, vector<16x64xf32>
    %546 = arith.addf %518, %545 : vector<16x64xf32>
    %547 = vector.extract_strided_slice %222 {offsets = [0, 9], sizes = [16, 1], strides = [1, 1]} : vector<16x32xf32> to vector<16x1xf32>
    %cst_130 = arith.constant 0.000000e+00 : f32
    %548 = vector.shape_cast %547 : vector<16x1xf32> to vector<16x1xf32>
    %549 = vector.broadcast %548 : vector<16x1xf32> to vector<16x64xf32>
    %550 = vector.broadcast %cst_130 : f32 to vector<16x64xf32>
    %551 = arith.select %540, %549, %550 : vector<16x64xi1>, vector<16x64xf32>
    %552 = arith.addf %524, %551 : vector<16x64xf32>
    %553 = vector.extract_strided_slice %228 {offsets = [0, 9], sizes = [16, 1], strides = [1, 1]} : vector<16x32xf32> to vector<16x1xf32>
    %cst_131 = arith.constant 0.000000e+00 : f32
    %554 = vector.shape_cast %553 : vector<16x1xf32> to vector<16x1xf32>
    %555 = vector.broadcast %554 : vector<16x1xf32> to vector<16x64xf32>
    %556 = vector.broadcast %cst_131 : f32 to vector<16x64xf32>
    %557 = arith.select %540, %555, %556 : vector<16x64xi1>, vector<16x64xf32>
    %558 = arith.addf %530, %557 : vector<16x64xf32>
    %559 = vector.extract_strided_slice %232 {offsets = [0, 9], sizes = [16, 1], strides = [1, 1]} : vector<16x32xf32> to vector<16x1xf32>
    %cst_132 = arith.constant 0.000000e+00 : f32
    %560 = vector.shape_cast %559 : vector<16x1xf32> to vector<16x1xf32>
    %561 = vector.broadcast %560 : vector<16x1xf32> to vector<16x64xf32>
    %562 = vector.broadcast %cst_132 : f32 to vector<16x64xf32>
    %563 = arith.select %540, %561, %562 : vector<16x64xi1>, vector<16x64xf32>
    %564 = arith.addf %536, %563 : vector<16x64xf32>
    %565 = vector.extract_strided_slice %238 {offsets = [0, 10], sizes = [16, 1], strides = [1, 1]} : vector<16x32xf32> to vector<16x1xf32>
    %566 = vector.broadcast %565 : vector<16x1xf32> to vector<16x64xf32>
    %567 = vector.broadcast %264 : vector<1x64xf32> to vector<16x64xf32>
    %568 = arith.cmpf oeq, %566, %567 : vector<16x64xf32>
    %569 = vector.extract_strided_slice %216 {offsets = [0, 10], sizes = [16, 1], strides = [1, 1]} : vector<16x32xf32> to vector<16x1xf32>
    %cst_133 = arith.constant 0.000000e+00 : f32
    %570 = vector.shape_cast %569 : vector<16x1xf32> to vector<16x1xf32>
    %571 = vector.broadcast %570 : vector<16x1xf32> to vector<16x64xf32>
    %572 = vector.broadcast %cst_133 : f32 to vector<16x64xf32>
    %573 = arith.select %568, %571, %572 : vector<16x64xi1>, vector<16x64xf32>
    %574 = arith.addf %546, %573 : vector<16x64xf32>
    %575 = vector.extract_strided_slice %222 {offsets = [0, 10], sizes = [16, 1], strides = [1, 1]} : vector<16x32xf32> to vector<16x1xf32>
    %cst_134 = arith.constant 0.000000e+00 : f32
    %576 = vector.shape_cast %575 : vector<16x1xf32> to vector<16x1xf32>
    %577 = vector.broadcast %576 : vector<16x1xf32> to vector<16x64xf32>
    %578 = vector.broadcast %cst_134 : f32 to vector<16x64xf32>
    %579 = arith.select %568, %577, %578 : vector<16x64xi1>, vector<16x64xf32>
    %580 = arith.addf %552, %579 : vector<16x64xf32>
    %581 = vector.extract_strided_slice %228 {offsets = [0, 10], sizes = [16, 1], strides = [1, 1]} : vector<16x32xf32> to vector<16x1xf32>
    %cst_135 = arith.constant 0.000000e+00 : f32
    %582 = vector.shape_cast %581 : vector<16x1xf32> to vector<16x1xf32>
    %583 = vector.broadcast %582 : vector<16x1xf32> to vector<16x64xf32>
    %584 = vector.broadcast %cst_135 : f32 to vector<16x64xf32>
    %585 = arith.select %568, %583, %584 : vector<16x64xi1>, vector<16x64xf32>
    %586 = arith.addf %558, %585 : vector<16x64xf32>
    %587 = vector.extract_strided_slice %232 {offsets = [0, 10], sizes = [16, 1], strides = [1, 1]} : vector<16x32xf32> to vector<16x1xf32>
    %cst_136 = arith.constant 0.000000e+00 : f32
    %588 = vector.shape_cast %587 : vector<16x1xf32> to vector<16x1xf32>
    %589 = vector.broadcast %588 : vector<16x1xf32> to vector<16x64xf32>
    %590 = vector.broadcast %cst_136 : f32 to vector<16x64xf32>
    %591 = arith.select %568, %589, %590 : vector<16x64xi1>, vector<16x64xf32>
    %592 = arith.addf %564, %591 : vector<16x64xf32>
    %593 = vector.extract_strided_slice %238 {offsets = [0, 11], sizes = [16, 1], strides = [1, 1]} : vector<16x32xf32> to vector<16x1xf32>
    %594 = vector.broadcast %593 : vector<16x1xf32> to vector<16x64xf32>
    %595 = vector.broadcast %264 : vector<1x64xf32> to vector<16x64xf32>
    %596 = arith.cmpf oeq, %594, %595 : vector<16x64xf32>
    %597 = vector.extract_strided_slice %216 {offsets = [0, 11], sizes = [16, 1], strides = [1, 1]} : vector<16x32xf32> to vector<16x1xf32>
    %cst_137 = arith.constant 0.000000e+00 : f32
    %598 = vector.shape_cast %597 : vector<16x1xf32> to vector<16x1xf32>
    %599 = vector.broadcast %598 : vector<16x1xf32> to vector<16x64xf32>
    %600 = vector.broadcast %cst_137 : f32 to vector<16x64xf32>
    %601 = arith.select %596, %599, %600 : vector<16x64xi1>, vector<16x64xf32>
    %602 = arith.addf %574, %601 : vector<16x64xf32>
    %603 = vector.extract_strided_slice %222 {offsets = [0, 11], sizes = [16, 1], strides = [1, 1]} : vector<16x32xf32> to vector<16x1xf32>
    %cst_138 = arith.constant 0.000000e+00 : f32
    %604 = vector.shape_cast %603 : vector<16x1xf32> to vector<16x1xf32>
    %605 = vector.broadcast %604 : vector<16x1xf32> to vector<16x64xf32>
    %606 = vector.broadcast %cst_138 : f32 to vector<16x64xf32>
    %607 = arith.select %596, %605, %606 : vector<16x64xi1>, vector<16x64xf32>
    %608 = arith.addf %580, %607 : vector<16x64xf32>
    %609 = vector.extract_strided_slice %228 {offsets = [0, 11], sizes = [16, 1], strides = [1, 1]} : vector<16x32xf32> to vector<16x1xf32>
    %cst_139 = arith.constant 0.000000e+00 : f32
    %610 = vector.shape_cast %609 : vector<16x1xf32> to vector<16x1xf32>
    %611 = vector.broadcast %610 : vector<16x1xf32> to vector<16x64xf32>
    %612 = vector.broadcast %cst_139 : f32 to vector<16x64xf32>
    %613 = arith.select %596, %611, %612 : vector<16x64xi1>, vector<16x64xf32>
    %614 = arith.addf %586, %613 : vector<16x64xf32>
    %615 = vector.extract_strided_slice %232 {offsets = [0, 11], sizes = [16, 1], strides = [1, 1]} : vector<16x32xf32> to vector<16x1xf32>
    %cst_140 = arith.constant 0.000000e+00 : f32
    %616 = vector.shape_cast %615 : vector<16x1xf32> to vector<16x1xf32>
    %617 = vector.broadcast %616 : vector<16x1xf32> to vector<16x64xf32>
    %618 = vector.broadcast %cst_140 : f32 to vector<16x64xf32>
    %619 = arith.select %596, %617, %618 : vector<16x64xi1>, vector<16x64xf32>
    %620 = arith.addf %592, %619 : vector<16x64xf32>
    %621 = vector.extract_strided_slice %238 {offsets = [0, 12], sizes = [16, 1], strides = [1, 1]} : vector<16x32xf32> to vector<16x1xf32>
    %622 = vector.broadcast %621 : vector<16x1xf32> to vector<16x64xf32>
    %623 = vector.broadcast %264 : vector<1x64xf32> to vector<16x64xf32>
    %624 = arith.cmpf oeq, %622, %623 : vector<16x64xf32>
    %625 = vector.extract_strided_slice %216 {offsets = [0, 12], sizes = [16, 1], strides = [1, 1]} : vector<16x32xf32> to vector<16x1xf32>
    %cst_141 = arith.constant 0.000000e+00 : f32
    %626 = vector.shape_cast %625 : vector<16x1xf32> to vector<16x1xf32>
    %627 = vector.broadcast %626 : vector<16x1xf32> to vector<16x64xf32>
    %628 = vector.broadcast %cst_141 : f32 to vector<16x64xf32>
    %629 = arith.select %624, %627, %628 : vector<16x64xi1>, vector<16x64xf32>
    %630 = arith.addf %602, %629 : vector<16x64xf32>
    %631 = vector.extract_strided_slice %222 {offsets = [0, 12], sizes = [16, 1], strides = [1, 1]} : vector<16x32xf32> to vector<16x1xf32>
    %cst_142 = arith.constant 0.000000e+00 : f32
    %632 = vector.shape_cast %631 : vector<16x1xf32> to vector<16x1xf32>
    %633 = vector.broadcast %632 : vector<16x1xf32> to vector<16x64xf32>
    %634 = vector.broadcast %cst_142 : f32 to vector<16x64xf32>
    %635 = arith.select %624, %633, %634 : vector<16x64xi1>, vector<16x64xf32>
    %636 = arith.addf %608, %635 : vector<16x64xf32>
    %637 = vector.extract_strided_slice %228 {offsets = [0, 12], sizes = [16, 1], strides = [1, 1]} : vector<16x32xf32> to vector<16x1xf32>
    %cst_143 = arith.constant 0.000000e+00 : f32
    %638 = vector.shape_cast %637 : vector<16x1xf32> to vector<16x1xf32>
    %639 = vector.broadcast %638 : vector<16x1xf32> to vector<16x64xf32>
    %640 = vector.broadcast %cst_143 : f32 to vector<16x64xf32>
    %641 = arith.select %624, %639, %640 : vector<16x64xi1>, vector<16x64xf32>
    %642 = arith.addf %614, %641 : vector<16x64xf32>
    %643 = vector.extract_strided_slice %232 {offsets = [0, 12], sizes = [16, 1], strides = [1, 1]} : vector<16x32xf32> to vector<16x1xf32>
    %cst_144 = arith.constant 0.000000e+00 : f32
    %644 = vector.shape_cast %643 : vector<16x1xf32> to vector<16x1xf32>
    %645 = vector.broadcast %644 : vector<16x1xf32> to vector<16x64xf32>
    %646 = vector.broadcast %cst_144 : f32 to vector<16x64xf32>
    %647 = arith.select %624, %645, %646 : vector<16x64xi1>, vector<16x64xf32>
    %648 = arith.addf %620, %647 : vector<16x64xf32>
    %649 = vector.extract_strided_slice %238 {offsets = [0, 13], sizes = [16, 1], strides = [1, 1]} : vector<16x32xf32> to vector<16x1xf32>
    %650 = vector.broadcast %649 : vector<16x1xf32> to vector<16x64xf32>
    %651 = vector.broadcast %264 : vector<1x64xf32> to vector<16x64xf32>
    %652 = arith.cmpf oeq, %650, %651 : vector<16x64xf32>
    %653 = vector.extract_strided_slice %216 {offsets = [0, 13], sizes = [16, 1], strides = [1, 1]} : vector<16x32xf32> to vector<16x1xf32>
    %cst_145 = arith.constant 0.000000e+00 : f32
    %654 = vector.shape_cast %653 : vector<16x1xf32> to vector<16x1xf32>
    %655 = vector.broadcast %654 : vector<16x1xf32> to vector<16x64xf32>
    %656 = vector.broadcast %cst_145 : f32 to vector<16x64xf32>
    %657 = arith.select %652, %655, %656 : vector<16x64xi1>, vector<16x64xf32>
    %658 = arith.addf %630, %657 : vector<16x64xf32>
    %659 = vector.extract_strided_slice %222 {offsets = [0, 13], sizes = [16, 1], strides = [1, 1]} : vector<16x32xf32> to vector<16x1xf32>
    %cst_146 = arith.constant 0.000000e+00 : f32
    %660 = vector.shape_cast %659 : vector<16x1xf32> to vector<16x1xf32>
    %661 = vector.broadcast %660 : vector<16x1xf32> to vector<16x64xf32>
    %662 = vector.broadcast %cst_146 : f32 to vector<16x64xf32>
    %663 = arith.select %652, %661, %662 : vector<16x64xi1>, vector<16x64xf32>
    %664 = arith.addf %636, %663 : vector<16x64xf32>
    %665 = vector.extract_strided_slice %228 {offsets = [0, 13], sizes = [16, 1], strides = [1, 1]} : vector<16x32xf32> to vector<16x1xf32>
    %cst_147 = arith.constant 0.000000e+00 : f32
    %666 = vector.shape_cast %665 : vector<16x1xf32> to vector<16x1xf32>
    %667 = vector.broadcast %666 : vector<16x1xf32> to vector<16x64xf32>
    %668 = vector.broadcast %cst_147 : f32 to vector<16x64xf32>
    %669 = arith.select %652, %667, %668 : vector<16x64xi1>, vector<16x64xf32>
    %670 = arith.addf %642, %669 : vector<16x64xf32>
    %671 = vector.extract_strided_slice %232 {offsets = [0, 13], sizes = [16, 1], strides = [1, 1]} : vector<16x32xf32> to vector<16x1xf32>
    %cst_148 = arith.constant 0.000000e+00 : f32
    %672 = vector.shape_cast %671 : vector<16x1xf32> to vector<16x1xf32>
    %673 = vector.broadcast %672 : vector<16x1xf32> to vector<16x64xf32>
    %674 = vector.broadcast %cst_148 : f32 to vector<16x64xf32>
    %675 = arith.select %652, %673, %674 : vector<16x64xi1>, vector<16x64xf32>
    %676 = arith.addf %648, %675 : vector<16x64xf32>
    %677 = vector.extract_strided_slice %238 {offsets = [0, 14], sizes = [16, 1], strides = [1, 1]} : vector<16x32xf32> to vector<16x1xf32>
    %678 = vector.broadcast %677 : vector<16x1xf32> to vector<16x64xf32>
    %679 = vector.broadcast %264 : vector<1x64xf32> to vector<16x64xf32>
    %680 = arith.cmpf oeq, %678, %679 : vector<16x64xf32>
    %681 = vector.extract_strided_slice %216 {offsets = [0, 14], sizes = [16, 1], strides = [1, 1]} : vector<16x32xf32> to vector<16x1xf32>
    %cst_149 = arith.constant 0.000000e+00 : f32
    %682 = vector.shape_cast %681 : vector<16x1xf32> to vector<16x1xf32>
    %683 = vector.broadcast %682 : vector<16x1xf32> to vector<16x64xf32>
    %684 = vector.broadcast %cst_149 : f32 to vector<16x64xf32>
    %685 = arith.select %680, %683, %684 : vector<16x64xi1>, vector<16x64xf32>
    %686 = arith.addf %658, %685 : vector<16x64xf32>
    %687 = vector.extract_strided_slice %222 {offsets = [0, 14], sizes = [16, 1], strides = [1, 1]} : vector<16x32xf32> to vector<16x1xf32>
    %cst_150 = arith.constant 0.000000e+00 : f32
    %688 = vector.shape_cast %687 : vector<16x1xf32> to vector<16x1xf32>
    %689 = vector.broadcast %688 : vector<16x1xf32> to vector<16x64xf32>
    %690 = vector.broadcast %cst_150 : f32 to vector<16x64xf32>
    %691 = arith.select %680, %689, %690 : vector<16x64xi1>, vector<16x64xf32>
    %692 = arith.addf %664, %691 : vector<16x64xf32>
    %693 = vector.extract_strided_slice %228 {offsets = [0, 14], sizes = [16, 1], strides = [1, 1]} : vector<16x32xf32> to vector<16x1xf32>
    %cst_151 = arith.constant 0.000000e+00 : f32
    %694 = vector.shape_cast %693 : vector<16x1xf32> to vector<16x1xf32>
    %695 = vector.broadcast %694 : vector<16x1xf32> to vector<16x64xf32>
    %696 = vector.broadcast %cst_151 : f32 to vector<16x64xf32>
    %697 = arith.select %680, %695, %696 : vector<16x64xi1>, vector<16x64xf32>
    %698 = arith.addf %670, %697 : vector<16x64xf32>
    %699 = vector.extract_strided_slice %232 {offsets = [0, 14], sizes = [16, 1], strides = [1, 1]} : vector<16x32xf32> to vector<16x1xf32>
    %cst_152 = arith.constant 0.000000e+00 : f32
    %700 = vector.shape_cast %699 : vector<16x1xf32> to vector<16x1xf32>
    %701 = vector.broadcast %700 : vector<16x1xf32> to vector<16x64xf32>
    %702 = vector.broadcast %cst_152 : f32 to vector<16x64xf32>
    %703 = arith.select %680, %701, %702 : vector<16x64xi1>, vector<16x64xf32>
    %704 = arith.addf %676, %703 : vector<16x64xf32>
    %705 = vector.extract_strided_slice %238 {offsets = [0, 15], sizes = [16, 1], strides = [1, 1]} : vector<16x32xf32> to vector<16x1xf32>
    %706 = vector.broadcast %705 : vector<16x1xf32> to vector<16x64xf32>
    %707 = vector.broadcast %264 : vector<1x64xf32> to vector<16x64xf32>
    %708 = arith.cmpf oeq, %706, %707 : vector<16x64xf32>
    %709 = vector.extract_strided_slice %216 {offsets = [0, 15], sizes = [16, 1], strides = [1, 1]} : vector<16x32xf32> to vector<16x1xf32>
    %cst_153 = arith.constant 0.000000e+00 : f32
    %710 = vector.shape_cast %709 : vector<16x1xf32> to vector<16x1xf32>
    %711 = vector.broadcast %710 : vector<16x1xf32> to vector<16x64xf32>
    %712 = vector.broadcast %cst_153 : f32 to vector<16x64xf32>
    %713 = arith.select %708, %711, %712 : vector<16x64xi1>, vector<16x64xf32>
    %714 = arith.addf %686, %713 : vector<16x64xf32>
    %715 = vector.extract_strided_slice %222 {offsets = [0, 15], sizes = [16, 1], strides = [1, 1]} : vector<16x32xf32> to vector<16x1xf32>
    %cst_154 = arith.constant 0.000000e+00 : f32
    %716 = vector.shape_cast %715 : vector<16x1xf32> to vector<16x1xf32>
    %717 = vector.broadcast %716 : vector<16x1xf32> to vector<16x64xf32>
    %718 = vector.broadcast %cst_154 : f32 to vector<16x64xf32>
    %719 = arith.select %708, %717, %718 : vector<16x64xi1>, vector<16x64xf32>
    %720 = arith.addf %692, %719 : vector<16x64xf32>
    %721 = vector.extract_strided_slice %228 {offsets = [0, 15], sizes = [16, 1], strides = [1, 1]} : vector<16x32xf32> to vector<16x1xf32>
    %cst_155 = arith.constant 0.000000e+00 : f32
    %722 = vector.shape_cast %721 : vector<16x1xf32> to vector<16x1xf32>
    %723 = vector.broadcast %722 : vector<16x1xf32> to vector<16x64xf32>
    %724 = vector.broadcast %cst_155 : f32 to vector<16x64xf32>
    %725 = arith.select %708, %723, %724 : vector<16x64xi1>, vector<16x64xf32>
    %726 = arith.addf %698, %725 : vector<16x64xf32>
    %727 = vector.extract_strided_slice %232 {offsets = [0, 15], sizes = [16, 1], strides = [1, 1]} : vector<16x32xf32> to vector<16x1xf32>
    %cst_156 = arith.constant 0.000000e+00 : f32
    %728 = vector.shape_cast %727 : vector<16x1xf32> to vector<16x1xf32>
    %729 = vector.broadcast %728 : vector<16x1xf32> to vector<16x64xf32>
    %730 = vector.broadcast %cst_156 : f32 to vector<16x64xf32>
    %731 = arith.select %708, %729, %730 : vector<16x64xi1>, vector<16x64xf32>
    %732 = arith.addf %704, %731 : vector<16x64xf32>
    %733 = vector.extract_strided_slice %720 {offsets = [0, 63], sizes = [16, 1], strides = [1, 1]} : vector<16x64xf32> to vector<16x1xf32>
    %734 = vector.extract_strided_slice %720 {offsets = [0, 0], sizes = [16, 63], strides = [1, 1]} : vector<16x64xf32> to vector<16x63xf32>
    %735 = tpu.concatenate %733, %734 in 1 : vector<16x1xf32>, vector<16x63xf32> -> vector<16x64xf32>
    %736 = arith.addf %714, %735 : vector<16x64xf32>
    %737 = vector.extract_strided_slice %726 {offsets = [0, 60], sizes = [16, 4], strides = [1, 1]} : vector<16x64xf32> to vector<16x4xf32>
    %738 = vector.extract_strided_slice %726 {offsets = [0, 0], sizes = [16, 60], strides = [1, 1]} : vector<16x64xf32> to vector<16x60xf32>
    %739 = tpu.concatenate %737, %738 in 1 : vector<16x4xf32>, vector<16x60xf32> -> vector<16x64xf32>
    %740 = arith.addf %736, %739 : vector<16x64xf32>
    %741 = vector.extract_strided_slice %732 {offsets = [0, 59], sizes = [16, 5], strides = [1, 1]} : vector<16x64xf32> to vector<16x5xf32>
    %742 = vector.extract_strided_slice %732 {offsets = [0, 0], sizes = [16, 59], strides = [1, 1]} : vector<16x64xf32> to vector<16x59xf32>
    %743 = tpu.concatenate %741, %742 in 1 : vector<16x5xf32>, vector<16x59xf32> -> vector<16x64xf32>
    %744 = arith.addf %740, %743 : vector<16x64xf32>
    %cst_157 = arith.constant 0.000000e+00 : f32
    %745 = vector.broadcast %cst_157 : f32 to vector<16x64xf32>
    %cst_158 = arith.constant 0.000000e+00 : f32
    %746 = vector.broadcast %cst_158 : f32 to vector<16x64xf32>
    %cst_159 = arith.constant 0.000000e+00 : f32
    %747 = vector.broadcast %cst_159 : f32 to vector<16x64xf32>
    %cst_160 = arith.constant 0.000000e+00 : f32
    %748 = vector.broadcast %cst_160 : f32 to vector<16x64xf32>
    %749 = vector.extract_strided_slice %238 {offsets = [0, 16], sizes = [16, 1], strides = [1, 1]} : vector<16x32xf32> to vector<16x1xf32>
    %750 = vector.broadcast %749 : vector<16x1xf32> to vector<16x64xf32>
    %751 = vector.broadcast %264 : vector<1x64xf32> to vector<16x64xf32>
    %752 = arith.cmpf oeq, %750, %751 : vector<16x64xf32>
    %753 = vector.extract_strided_slice %216 {offsets = [0, 16], sizes = [16, 1], strides = [1, 1]} : vector<16x32xf32> to vector<16x1xf32>
    %cst_161 = arith.constant 0.000000e+00 : f32
    %754 = vector.shape_cast %753 : vector<16x1xf32> to vector<16x1xf32>
    %755 = vector.broadcast %754 : vector<16x1xf32> to vector<16x64xf32>
    %756 = vector.broadcast %cst_161 : f32 to vector<16x64xf32>
    %757 = arith.select %752, %755, %756 : vector<16x64xi1>, vector<16x64xf32>
    %758 = arith.addf %745, %757 : vector<16x64xf32>
    %759 = vector.extract_strided_slice %222 {offsets = [0, 16], sizes = [16, 1], strides = [1, 1]} : vector<16x32xf32> to vector<16x1xf32>
    %cst_162 = arith.constant 0.000000e+00 : f32
    %760 = vector.shape_cast %759 : vector<16x1xf32> to vector<16x1xf32>
    %761 = vector.broadcast %760 : vector<16x1xf32> to vector<16x64xf32>
    %762 = vector.broadcast %cst_162 : f32 to vector<16x64xf32>
    %763 = arith.select %752, %761, %762 : vector<16x64xi1>, vector<16x64xf32>
    %764 = arith.addf %746, %763 : vector<16x64xf32>
    %765 = vector.extract_strided_slice %228 {offsets = [0, 16], sizes = [16, 1], strides = [1, 1]} : vector<16x32xf32> to vector<16x1xf32>
    %cst_163 = arith.constant 0.000000e+00 : f32
    %766 = vector.shape_cast %765 : vector<16x1xf32> to vector<16x1xf32>
    %767 = vector.broadcast %766 : vector<16x1xf32> to vector<16x64xf32>
    %768 = vector.broadcast %cst_163 : f32 to vector<16x64xf32>
    %769 = arith.select %752, %767, %768 : vector<16x64xi1>, vector<16x64xf32>
    %770 = arith.addf %747, %769 : vector<16x64xf32>
    %771 = vector.extract_strided_slice %232 {offsets = [0, 16], sizes = [16, 1], strides = [1, 1]} : vector<16x32xf32> to vector<16x1xf32>
    %cst_164 = arith.constant 0.000000e+00 : f32
    %772 = vector.shape_cast %771 : vector<16x1xf32> to vector<16x1xf32>
    %773 = vector.broadcast %772 : vector<16x1xf32> to vector<16x64xf32>
    %774 = vector.broadcast %cst_164 : f32 to vector<16x64xf32>
    %775 = arith.select %752, %773, %774 : vector<16x64xi1>, vector<16x64xf32>
    %776 = arith.addf %748, %775 : vector<16x64xf32>
    %777 = vector.extract_strided_slice %238 {offsets = [0, 17], sizes = [16, 1], strides = [1, 1]} : vector<16x32xf32> to vector<16x1xf32>
    %778 = vector.broadcast %777 : vector<16x1xf32> to vector<16x64xf32>
    %779 = vector.broadcast %264 : vector<1x64xf32> to vector<16x64xf32>
    %780 = arith.cmpf oeq, %778, %779 : vector<16x64xf32>
    %781 = vector.extract_strided_slice %216 {offsets = [0, 17], sizes = [16, 1], strides = [1, 1]} : vector<16x32xf32> to vector<16x1xf32>
    %cst_165 = arith.constant 0.000000e+00 : f32
    %782 = vector.shape_cast %781 : vector<16x1xf32> to vector<16x1xf32>
    %783 = vector.broadcast %782 : vector<16x1xf32> to vector<16x64xf32>
    %784 = vector.broadcast %cst_165 : f32 to vector<16x64xf32>
    %785 = arith.select %780, %783, %784 : vector<16x64xi1>, vector<16x64xf32>
    %786 = arith.addf %758, %785 : vector<16x64xf32>
    %787 = vector.extract_strided_slice %222 {offsets = [0, 17], sizes = [16, 1], strides = [1, 1]} : vector<16x32xf32> to vector<16x1xf32>
    %cst_166 = arith.constant 0.000000e+00 : f32
    %788 = vector.shape_cast %787 : vector<16x1xf32> to vector<16x1xf32>
    %789 = vector.broadcast %788 : vector<16x1xf32> to vector<16x64xf32>
    %790 = vector.broadcast %cst_166 : f32 to vector<16x64xf32>
    %791 = arith.select %780, %789, %790 : vector<16x64xi1>, vector<16x64xf32>
    %792 = arith.addf %764, %791 : vector<16x64xf32>
    %793 = vector.extract_strided_slice %228 {offsets = [0, 17], sizes = [16, 1], strides = [1, 1]} : vector<16x32xf32> to vector<16x1xf32>
    %cst_167 = arith.constant 0.000000e+00 : f32
    %794 = vector.shape_cast %793 : vector<16x1xf32> to vector<16x1xf32>
    %795 = vector.broadcast %794 : vector<16x1xf32> to vector<16x64xf32>
    %796 = vector.broadcast %cst_167 : f32 to vector<16x64xf32>
    %797 = arith.select %780, %795, %796 : vector<16x64xi1>, vector<16x64xf32>
    %798 = arith.addf %770, %797 : vector<16x64xf32>
    %799 = vector.extract_strided_slice %232 {offsets = [0, 17], sizes = [16, 1], strides = [1, 1]} : vector<16x32xf32> to vector<16x1xf32>
    %cst_168 = arith.constant 0.000000e+00 : f32
    %800 = vector.shape_cast %799 : vector<16x1xf32> to vector<16x1xf32>
    %801 = vector.broadcast %800 : vector<16x1xf32> to vector<16x64xf32>
    %802 = vector.broadcast %cst_168 : f32 to vector<16x64xf32>
    %803 = arith.select %780, %801, %802 : vector<16x64xi1>, vector<16x64xf32>
    %804 = arith.addf %776, %803 : vector<16x64xf32>
    %805 = vector.extract_strided_slice %238 {offsets = [0, 18], sizes = [16, 1], strides = [1, 1]} : vector<16x32xf32> to vector<16x1xf32>
    %806 = vector.broadcast %805 : vector<16x1xf32> to vector<16x64xf32>
    %807 = vector.broadcast %264 : vector<1x64xf32> to vector<16x64xf32>
    %808 = arith.cmpf oeq, %806, %807 : vector<16x64xf32>
    %809 = vector.extract_strided_slice %216 {offsets = [0, 18], sizes = [16, 1], strides = [1, 1]} : vector<16x32xf32> to vector<16x1xf32>
    %cst_169 = arith.constant 0.000000e+00 : f32
    %810 = vector.shape_cast %809 : vector<16x1xf32> to vector<16x1xf32>
    %811 = vector.broadcast %810 : vector<16x1xf32> to vector<16x64xf32>
    %812 = vector.broadcast %cst_169 : f32 to vector<16x64xf32>
    %813 = arith.select %808, %811, %812 : vector<16x64xi1>, vector<16x64xf32>
    %814 = arith.addf %786, %813 : vector<16x64xf32>
    %815 = vector.extract_strided_slice %222 {offsets = [0, 18], sizes = [16, 1], strides = [1, 1]} : vector<16x32xf32> to vector<16x1xf32>
    %cst_170 = arith.constant 0.000000e+00 : f32
    %816 = vector.shape_cast %815 : vector<16x1xf32> to vector<16x1xf32>
    %817 = vector.broadcast %816 : vector<16x1xf32> to vector<16x64xf32>
    %818 = vector.broadcast %cst_170 : f32 to vector<16x64xf32>
    %819 = arith.select %808, %817, %818 : vector<16x64xi1>, vector<16x64xf32>
    %820 = arith.addf %792, %819 : vector<16x64xf32>
    %821 = vector.extract_strided_slice %228 {offsets = [0, 18], sizes = [16, 1], strides = [1, 1]} : vector<16x32xf32> to vector<16x1xf32>
    %cst_171 = arith.constant 0.000000e+00 : f32
    %822 = vector.shape_cast %821 : vector<16x1xf32> to vector<16x1xf32>
    %823 = vector.broadcast %822 : vector<16x1xf32> to vector<16x64xf32>
    %824 = vector.broadcast %cst_171 : f32 to vector<16x64xf32>
    %825 = arith.select %808, %823, %824 : vector<16x64xi1>, vector<16x64xf32>
    %826 = arith.addf %798, %825 : vector<16x64xf32>
    %827 = vector.extract_strided_slice %232 {offsets = [0, 18], sizes = [16, 1], strides = [1, 1]} : vector<16x32xf32> to vector<16x1xf32>
    %cst_172 = arith.constant 0.000000e+00 : f32
    %828 = vector.shape_cast %827 : vector<16x1xf32> to vector<16x1xf32>
    %829 = vector.broadcast %828 : vector<16x1xf32> to vector<16x64xf32>
    %830 = vector.broadcast %cst_172 : f32 to vector<16x64xf32>
    %831 = arith.select %808, %829, %830 : vector<16x64xi1>, vector<16x64xf32>
    %832 = arith.addf %804, %831 : vector<16x64xf32>
    %833 = vector.extract_strided_slice %238 {offsets = [0, 19], sizes = [16, 1], strides = [1, 1]} : vector<16x32xf32> to vector<16x1xf32>
    %834 = vector.broadcast %833 : vector<16x1xf32> to vector<16x64xf32>
    %835 = vector.broadcast %264 : vector<1x64xf32> to vector<16x64xf32>
    %836 = arith.cmpf oeq, %834, %835 : vector<16x64xf32>
    %837 = vector.extract_strided_slice %216 {offsets = [0, 19], sizes = [16, 1], strides = [1, 1]} : vector<16x32xf32> to vector<16x1xf32>
    %cst_173 = arith.constant 0.000000e+00 : f32
    %838 = vector.shape_cast %837 : vector<16x1xf32> to vector<16x1xf32>
    %839 = vector.broadcast %838 : vector<16x1xf32> to vector<16x64xf32>
    %840 = vector.broadcast %cst_173 : f32 to vector<16x64xf32>
    %841 = arith.select %836, %839, %840 : vector<16x64xi1>, vector<16x64xf32>
    %842 = arith.addf %814, %841 : vector<16x64xf32>
    %843 = vector.extract_strided_slice %222 {offsets = [0, 19], sizes = [16, 1], strides = [1, 1]} : vector<16x32xf32> to vector<16x1xf32>
    %cst_174 = arith.constant 0.000000e+00 : f32
    %844 = vector.shape_cast %843 : vector<16x1xf32> to vector<16x1xf32>
    %845 = vector.broadcast %844 : vector<16x1xf32> to vector<16x64xf32>
    %846 = vector.broadcast %cst_174 : f32 to vector<16x64xf32>
    %847 = arith.select %836, %845, %846 : vector<16x64xi1>, vector<16x64xf32>
    %848 = arith.addf %820, %847 : vector<16x64xf32>
    %849 = vector.extract_strided_slice %228 {offsets = [0, 19], sizes = [16, 1], strides = [1, 1]} : vector<16x32xf32> to vector<16x1xf32>
    %cst_175 = arith.constant 0.000000e+00 : f32
    %850 = vector.shape_cast %849 : vector<16x1xf32> to vector<16x1xf32>
    %851 = vector.broadcast %850 : vector<16x1xf32> to vector<16x64xf32>
    %852 = vector.broadcast %cst_175 : f32 to vector<16x64xf32>
    %853 = arith.select %836, %851, %852 : vector<16x64xi1>, vector<16x64xf32>
    %854 = arith.addf %826, %853 : vector<16x64xf32>
    %855 = vector.extract_strided_slice %232 {offsets = [0, 19], sizes = [16, 1], strides = [1, 1]} : vector<16x32xf32> to vector<16x1xf32>
    %cst_176 = arith.constant 0.000000e+00 : f32
    %856 = vector.shape_cast %855 : vector<16x1xf32> to vector<16x1xf32>
    %857 = vector.broadcast %856 : vector<16x1xf32> to vector<16x64xf32>
    %858 = vector.broadcast %cst_176 : f32 to vector<16x64xf32>
    %859 = arith.select %836, %857, %858 : vector<16x64xi1>, vector<16x64xf32>
    %860 = arith.addf %832, %859 : vector<16x64xf32>
    %861 = vector.extract_strided_slice %238 {offsets = [0, 20], sizes = [16, 1], strides = [1, 1]} : vector<16x32xf32> to vector<16x1xf32>
    %862 = vector.broadcast %861 : vector<16x1xf32> to vector<16x64xf32>
    %863 = vector.broadcast %264 : vector<1x64xf32> to vector<16x64xf32>
    %864 = arith.cmpf oeq, %862, %863 : vector<16x64xf32>
    %865 = vector.extract_strided_slice %216 {offsets = [0, 20], sizes = [16, 1], strides = [1, 1]} : vector<16x32xf32> to vector<16x1xf32>
    %cst_177 = arith.constant 0.000000e+00 : f32
    %866 = vector.shape_cast %865 : vector<16x1xf32> to vector<16x1xf32>
    %867 = vector.broadcast %866 : vector<16x1xf32> to vector<16x64xf32>
    %868 = vector.broadcast %cst_177 : f32 to vector<16x64xf32>
    %869 = arith.select %864, %867, %868 : vector<16x64xi1>, vector<16x64xf32>
    %870 = arith.addf %842, %869 : vector<16x64xf32>
    %871 = vector.extract_strided_slice %222 {offsets = [0, 20], sizes = [16, 1], strides = [1, 1]} : vector<16x32xf32> to vector<16x1xf32>
    %cst_178 = arith.constant 0.000000e+00 : f32
    %872 = vector.shape_cast %871 : vector<16x1xf32> to vector<16x1xf32>
    %873 = vector.broadcast %872 : vector<16x1xf32> to vector<16x64xf32>
    %874 = vector.broadcast %cst_178 : f32 to vector<16x64xf32>
    %875 = arith.select %864, %873, %874 : vector<16x64xi1>, vector<16x64xf32>
    %876 = arith.addf %848, %875 : vector<16x64xf32>
    %877 = vector.extract_strided_slice %228 {offsets = [0, 20], sizes = [16, 1], strides = [1, 1]} : vector<16x32xf32> to vector<16x1xf32>
    %cst_179 = arith.constant 0.000000e+00 : f32
    %878 = vector.shape_cast %877 : vector<16x1xf32> to vector<16x1xf32>
    %879 = vector.broadcast %878 : vector<16x1xf32> to vector<16x64xf32>
    %880 = vector.broadcast %cst_179 : f32 to vector<16x64xf32>
    %881 = arith.select %864, %879, %880 : vector<16x64xi1>, vector<16x64xf32>
    %882 = arith.addf %854, %881 : vector<16x64xf32>
    %883 = vector.extract_strided_slice %232 {offsets = [0, 20], sizes = [16, 1], strides = [1, 1]} : vector<16x32xf32> to vector<16x1xf32>
    %cst_180 = arith.constant 0.000000e+00 : f32
    %884 = vector.shape_cast %883 : vector<16x1xf32> to vector<16x1xf32>
    %885 = vector.broadcast %884 : vector<16x1xf32> to vector<16x64xf32>
    %886 = vector.broadcast %cst_180 : f32 to vector<16x64xf32>
    %887 = arith.select %864, %885, %886 : vector<16x64xi1>, vector<16x64xf32>
    %888 = arith.addf %860, %887 : vector<16x64xf32>
    %889 = vector.extract_strided_slice %238 {offsets = [0, 21], sizes = [16, 1], strides = [1, 1]} : vector<16x32xf32> to vector<16x1xf32>
    %890 = vector.broadcast %889 : vector<16x1xf32> to vector<16x64xf32>
    %891 = vector.broadcast %264 : vector<1x64xf32> to vector<16x64xf32>
    %892 = arith.cmpf oeq, %890, %891 : vector<16x64xf32>
    %893 = vector.extract_strided_slice %216 {offsets = [0, 21], sizes = [16, 1], strides = [1, 1]} : vector<16x32xf32> to vector<16x1xf32>
    %cst_181 = arith.constant 0.000000e+00 : f32
    %894 = vector.shape_cast %893 : vector<16x1xf32> to vector<16x1xf32>
    %895 = vector.broadcast %894 : vector<16x1xf32> to vector<16x64xf32>
    %896 = vector.broadcast %cst_181 : f32 to vector<16x64xf32>
    %897 = arith.select %892, %895, %896 : vector<16x64xi1>, vector<16x64xf32>
    %898 = arith.addf %870, %897 : vector<16x64xf32>
    %899 = vector.extract_strided_slice %222 {offsets = [0, 21], sizes = [16, 1], strides = [1, 1]} : vector<16x32xf32> to vector<16x1xf32>
    %cst_182 = arith.constant 0.000000e+00 : f32
    %900 = vector.shape_cast %899 : vector<16x1xf32> to vector<16x1xf32>
    %901 = vector.broadcast %900 : vector<16x1xf32> to vector<16x64xf32>
    %902 = vector.broadcast %cst_182 : f32 to vector<16x64xf32>
    %903 = arith.select %892, %901, %902 : vector<16x64xi1>, vector<16x64xf32>
    %904 = arith.addf %876, %903 : vector<16x64xf32>
    %905 = vector.extract_strided_slice %228 {offsets = [0, 21], sizes = [16, 1], strides = [1, 1]} : vector<16x32xf32> to vector<16x1xf32>
    %cst_183 = arith.constant 0.000000e+00 : f32
    %906 = vector.shape_cast %905 : vector<16x1xf32> to vector<16x1xf32>
    %907 = vector.broadcast %906 : vector<16x1xf32> to vector<16x64xf32>
    %908 = vector.broadcast %cst_183 : f32 to vector<16x64xf32>
    %909 = arith.select %892, %907, %908 : vector<16x64xi1>, vector<16x64xf32>
    %910 = arith.addf %882, %909 : vector<16x64xf32>
    %911 = vector.extract_strided_slice %232 {offsets = [0, 21], sizes = [16, 1], strides = [1, 1]} : vector<16x32xf32> to vector<16x1xf32>
    %cst_184 = arith.constant 0.000000e+00 : f32
    %912 = vector.shape_cast %911 : vector<16x1xf32> to vector<16x1xf32>
    %913 = vector.broadcast %912 : vector<16x1xf32> to vector<16x64xf32>
    %914 = vector.broadcast %cst_184 : f32 to vector<16x64xf32>
    %915 = arith.select %892, %913, %914 : vector<16x64xi1>, vector<16x64xf32>
    %916 = arith.addf %888, %915 : vector<16x64xf32>
    %917 = vector.extract_strided_slice %238 {offsets = [0, 22], sizes = [16, 1], strides = [1, 1]} : vector<16x32xf32> to vector<16x1xf32>
    %918 = vector.broadcast %917 : vector<16x1xf32> to vector<16x64xf32>
    %919 = vector.broadcast %264 : vector<1x64xf32> to vector<16x64xf32>
    %920 = arith.cmpf oeq, %918, %919 : vector<16x64xf32>
    %921 = vector.extract_strided_slice %216 {offsets = [0, 22], sizes = [16, 1], strides = [1, 1]} : vector<16x32xf32> to vector<16x1xf32>
    %cst_185 = arith.constant 0.000000e+00 : f32
    %922 = vector.shape_cast %921 : vector<16x1xf32> to vector<16x1xf32>
    %923 = vector.broadcast %922 : vector<16x1xf32> to vector<16x64xf32>
    %924 = vector.broadcast %cst_185 : f32 to vector<16x64xf32>
    %925 = arith.select %920, %923, %924 : vector<16x64xi1>, vector<16x64xf32>
    %926 = arith.addf %898, %925 : vector<16x64xf32>
    %927 = vector.extract_strided_slice %222 {offsets = [0, 22], sizes = [16, 1], strides = [1, 1]} : vector<16x32xf32> to vector<16x1xf32>
    %cst_186 = arith.constant 0.000000e+00 : f32
    %928 = vector.shape_cast %927 : vector<16x1xf32> to vector<16x1xf32>
    %929 = vector.broadcast %928 : vector<16x1xf32> to vector<16x64xf32>
    %930 = vector.broadcast %cst_186 : f32 to vector<16x64xf32>
    %931 = arith.select %920, %929, %930 : vector<16x64xi1>, vector<16x64xf32>
    %932 = arith.addf %904, %931 : vector<16x64xf32>
    %933 = vector.extract_strided_slice %228 {offsets = [0, 22], sizes = [16, 1], strides = [1, 1]} : vector<16x32xf32> to vector<16x1xf32>
    %cst_187 = arith.constant 0.000000e+00 : f32
    %934 = vector.shape_cast %933 : vector<16x1xf32> to vector<16x1xf32>
    %935 = vector.broadcast %934 : vector<16x1xf32> to vector<16x64xf32>
    %936 = vector.broadcast %cst_187 : f32 to vector<16x64xf32>
    %937 = arith.select %920, %935, %936 : vector<16x64xi1>, vector<16x64xf32>
    %938 = arith.addf %910, %937 : vector<16x64xf32>
    %939 = vector.extract_strided_slice %232 {offsets = [0, 22], sizes = [16, 1], strides = [1, 1]} : vector<16x32xf32> to vector<16x1xf32>
    %cst_188 = arith.constant 0.000000e+00 : f32
    %940 = vector.shape_cast %939 : vector<16x1xf32> to vector<16x1xf32>
    %941 = vector.broadcast %940 : vector<16x1xf32> to vector<16x64xf32>
    %942 = vector.broadcast %cst_188 : f32 to vector<16x64xf32>
    %943 = arith.select %920, %941, %942 : vector<16x64xi1>, vector<16x64xf32>
    %944 = arith.addf %916, %943 : vector<16x64xf32>
    %945 = vector.extract_strided_slice %238 {offsets = [0, 23], sizes = [16, 1], strides = [1, 1]} : vector<16x32xf32> to vector<16x1xf32>
    %946 = vector.broadcast %945 : vector<16x1xf32> to vector<16x64xf32>
    %947 = vector.broadcast %264 : vector<1x64xf32> to vector<16x64xf32>
    %948 = arith.cmpf oeq, %946, %947 : vector<16x64xf32>
    %949 = vector.extract_strided_slice %216 {offsets = [0, 23], sizes = [16, 1], strides = [1, 1]} : vector<16x32xf32> to vector<16x1xf32>
    %cst_189 = arith.constant 0.000000e+00 : f32
    %950 = vector.shape_cast %949 : vector<16x1xf32> to vector<16x1xf32>
    %951 = vector.broadcast %950 : vector<16x1xf32> to vector<16x64xf32>
    %952 = vector.broadcast %cst_189 : f32 to vector<16x64xf32>
    %953 = arith.select %948, %951, %952 : vector<16x64xi1>, vector<16x64xf32>
    %954 = arith.addf %926, %953 : vector<16x64xf32>
    %955 = vector.extract_strided_slice %222 {offsets = [0, 23], sizes = [16, 1], strides = [1, 1]} : vector<16x32xf32> to vector<16x1xf32>
    %cst_190 = arith.constant 0.000000e+00 : f32
    %956 = vector.shape_cast %955 : vector<16x1xf32> to vector<16x1xf32>
    %957 = vector.broadcast %956 : vector<16x1xf32> to vector<16x64xf32>
    %958 = vector.broadcast %cst_190 : f32 to vector<16x64xf32>
    %959 = arith.select %948, %957, %958 : vector<16x64xi1>, vector<16x64xf32>
    %960 = arith.addf %932, %959 : vector<16x64xf32>
    %961 = vector.extract_strided_slice %228 {offsets = [0, 23], sizes = [16, 1], strides = [1, 1]} : vector<16x32xf32> to vector<16x1xf32>
    %cst_191 = arith.constant 0.000000e+00 : f32
    %962 = vector.shape_cast %961 : vector<16x1xf32> to vector<16x1xf32>
    %963 = vector.broadcast %962 : vector<16x1xf32> to vector<16x64xf32>
    %964 = vector.broadcast %cst_191 : f32 to vector<16x64xf32>
    %965 = arith.select %948, %963, %964 : vector<16x64xi1>, vector<16x64xf32>
    %966 = arith.addf %938, %965 : vector<16x64xf32>
    %967 = vector.extract_strided_slice %232 {offsets = [0, 23], sizes = [16, 1], strides = [1, 1]} : vector<16x32xf32> to vector<16x1xf32>
    %cst_192 = arith.constant 0.000000e+00 : f32
    %968 = vector.shape_cast %967 : vector<16x1xf32> to vector<16x1xf32>
    %969 = vector.broadcast %968 : vector<16x1xf32> to vector<16x64xf32>
    %970 = vector.broadcast %cst_192 : f32 to vector<16x64xf32>
    %971 = arith.select %948, %969, %970 : vector<16x64xi1>, vector<16x64xf32>
    %972 = arith.addf %944, %971 : vector<16x64xf32>
    %973 = vector.extract_strided_slice %960 {offsets = [0, 63], sizes = [16, 1], strides = [1, 1]} : vector<16x64xf32> to vector<16x1xf32>
    %974 = vector.extract_strided_slice %960 {offsets = [0, 0], sizes = [16, 63], strides = [1, 1]} : vector<16x64xf32> to vector<16x63xf32>
    %975 = tpu.concatenate %973, %974 in 1 : vector<16x1xf32>, vector<16x63xf32> -> vector<16x64xf32>
    %976 = arith.addf %954, %975 : vector<16x64xf32>
    %977 = vector.extract_strided_slice %966 {offsets = [0, 60], sizes = [16, 4], strides = [1, 1]} : vector<16x64xf32> to vector<16x4xf32>
    %978 = vector.extract_strided_slice %966 {offsets = [0, 0], sizes = [16, 60], strides = [1, 1]} : vector<16x64xf32> to vector<16x60xf32>
    %979 = tpu.concatenate %977, %978 in 1 : vector<16x4xf32>, vector<16x60xf32> -> vector<16x64xf32>
    %980 = arith.addf %976, %979 : vector<16x64xf32>
    %981 = vector.extract_strided_slice %972 {offsets = [0, 59], sizes = [16, 5], strides = [1, 1]} : vector<16x64xf32> to vector<16x5xf32>
    %982 = vector.extract_strided_slice %972 {offsets = [0, 0], sizes = [16, 59], strides = [1, 1]} : vector<16x64xf32> to vector<16x59xf32>
    %983 = tpu.concatenate %981, %982 in 1 : vector<16x5xf32>, vector<16x59xf32> -> vector<16x64xf32>
    %984 = arith.addf %980, %983 : vector<16x64xf32>
    %cst_193 = arith.constant 0.000000e+00 : f32
    %985 = vector.broadcast %cst_193 : f32 to vector<16x64xf32>
    %cst_194 = arith.constant 0.000000e+00 : f32
    %986 = vector.broadcast %cst_194 : f32 to vector<16x64xf32>
    %cst_195 = arith.constant 0.000000e+00 : f32
    %987 = vector.broadcast %cst_195 : f32 to vector<16x64xf32>
    %cst_196 = arith.constant 0.000000e+00 : f32
    %988 = vector.broadcast %cst_196 : f32 to vector<16x64xf32>
    %989 = vector.extract_strided_slice %238 {offsets = [0, 24], sizes = [16, 1], strides = [1, 1]} : vector<16x32xf32> to vector<16x1xf32>
    %990 = vector.broadcast %989 : vector<16x1xf32> to vector<16x64xf32>
    %991 = vector.broadcast %264 : vector<1x64xf32> to vector<16x64xf32>
    %992 = arith.cmpf oeq, %990, %991 : vector<16x64xf32>
    %993 = vector.extract_strided_slice %216 {offsets = [0, 24], sizes = [16, 1], strides = [1, 1]} : vector<16x32xf32> to vector<16x1xf32>
    %cst_197 = arith.constant 0.000000e+00 : f32
    %994 = vector.shape_cast %993 : vector<16x1xf32> to vector<16x1xf32>
    %995 = vector.broadcast %994 : vector<16x1xf32> to vector<16x64xf32>
    %996 = vector.broadcast %cst_197 : f32 to vector<16x64xf32>
    %997 = arith.select %992, %995, %996 : vector<16x64xi1>, vector<16x64xf32>
    %998 = arith.addf %985, %997 : vector<16x64xf32>
    %999 = vector.extract_strided_slice %222 {offsets = [0, 24], sizes = [16, 1], strides = [1, 1]} : vector<16x32xf32> to vector<16x1xf32>
    %cst_198 = arith.constant 0.000000e+00 : f32
    %1000 = vector.shape_cast %999 : vector<16x1xf32> to vector<16x1xf32>
    %1001 = vector.broadcast %1000 : vector<16x1xf32> to vector<16x64xf32>
    %1002 = vector.broadcast %cst_198 : f32 to vector<16x64xf32>
    %1003 = arith.select %992, %1001, %1002 : vector<16x64xi1>, vector<16x64xf32>
    %1004 = arith.addf %986, %1003 : vector<16x64xf32>
    %1005 = vector.extract_strided_slice %228 {offsets = [0, 24], sizes = [16, 1], strides = [1, 1]} : vector<16x32xf32> to vector<16x1xf32>
    %cst_199 = arith.constant 0.000000e+00 : f32
    %1006 = vector.shape_cast %1005 : vector<16x1xf32> to vector<16x1xf32>
    %1007 = vector.broadcast %1006 : vector<16x1xf32> to vector<16x64xf32>
    %1008 = vector.broadcast %cst_199 : f32 to vector<16x64xf32>
    %1009 = arith.select %992, %1007, %1008 : vector<16x64xi1>, vector<16x64xf32>
    %1010 = arith.addf %987, %1009 : vector<16x64xf32>
    %1011 = vector.extract_strided_slice %232 {offsets = [0, 24], sizes = [16, 1], strides = [1, 1]} : vector<16x32xf32> to vector<16x1xf32>
    %cst_200 = arith.constant 0.000000e+00 : f32
    %1012 = vector.shape_cast %1011 : vector<16x1xf32> to vector<16x1xf32>
    %1013 = vector.broadcast %1012 : vector<16x1xf32> to vector<16x64xf32>
    %1014 = vector.broadcast %cst_200 : f32 to vector<16x64xf32>
    %1015 = arith.select %992, %1013, %1014 : vector<16x64xi1>, vector<16x64xf32>
    %1016 = arith.addf %988, %1015 : vector<16x64xf32>
    %1017 = vector.extract_strided_slice %238 {offsets = [0, 25], sizes = [16, 1], strides = [1, 1]} : vector<16x32xf32> to vector<16x1xf32>
    %1018 = vector.broadcast %1017 : vector<16x1xf32> to vector<16x64xf32>
    %1019 = vector.broadcast %264 : vector<1x64xf32> to vector<16x64xf32>
    %1020 = arith.cmpf oeq, %1018, %1019 : vector<16x64xf32>
    %1021 = vector.extract_strided_slice %216 {offsets = [0, 25], sizes = [16, 1], strides = [1, 1]} : vector<16x32xf32> to vector<16x1xf32>
    %cst_201 = arith.constant 0.000000e+00 : f32
    %1022 = vector.shape_cast %1021 : vector<16x1xf32> to vector<16x1xf32>
    %1023 = vector.broadcast %1022 : vector<16x1xf32> to vector<16x64xf32>
    %1024 = vector.broadcast %cst_201 : f32 to vector<16x64xf32>
    %1025 = arith.select %1020, %1023, %1024 : vector<16x64xi1>, vector<16x64xf32>
    %1026 = arith.addf %998, %1025 : vector<16x64xf32>
    %1027 = vector.extract_strided_slice %222 {offsets = [0, 25], sizes = [16, 1], strides = [1, 1]} : vector<16x32xf32> to vector<16x1xf32>
    %cst_202 = arith.constant 0.000000e+00 : f32
    %1028 = vector.shape_cast %1027 : vector<16x1xf32> to vector<16x1xf32>
    %1029 = vector.broadcast %1028 : vector<16x1xf32> to vector<16x64xf32>
    %1030 = vector.broadcast %cst_202 : f32 to vector<16x64xf32>
    %1031 = arith.select %1020, %1029, %1030 : vector<16x64xi1>, vector<16x64xf32>
    %1032 = arith.addf %1004, %1031 : vector<16x64xf32>
    %1033 = vector.extract_strided_slice %228 {offsets = [0, 25], sizes = [16, 1], strides = [1, 1]} : vector<16x32xf32> to vector<16x1xf32>
    %cst_203 = arith.constant 0.000000e+00 : f32
    %1034 = vector.shape_cast %1033 : vector<16x1xf32> to vector<16x1xf32>
    %1035 = vector.broadcast %1034 : vector<16x1xf32> to vector<16x64xf32>
    %1036 = vector.broadcast %cst_203 : f32 to vector<16x64xf32>
    %1037 = arith.select %1020, %1035, %1036 : vector<16x64xi1>, vector<16x64xf32>
    %1038 = arith.addf %1010, %1037 : vector<16x64xf32>
    %1039 = vector.extract_strided_slice %232 {offsets = [0, 25], sizes = [16, 1], strides = [1, 1]} : vector<16x32xf32> to vector<16x1xf32>
    %cst_204 = arith.constant 0.000000e+00 : f32
    %1040 = vector.shape_cast %1039 : vector<16x1xf32> to vector<16x1xf32>
    %1041 = vector.broadcast %1040 : vector<16x1xf32> to vector<16x64xf32>
    %1042 = vector.broadcast %cst_204 : f32 to vector<16x64xf32>
    %1043 = arith.select %1020, %1041, %1042 : vector<16x64xi1>, vector<16x64xf32>
    %1044 = arith.addf %1016, %1043 : vector<16x64xf32>
    %1045 = vector.extract_strided_slice %238 {offsets = [0, 26], sizes = [16, 1], strides = [1, 1]} : vector<16x32xf32> to vector<16x1xf32>
    %1046 = vector.broadcast %1045 : vector<16x1xf32> to vector<16x64xf32>
    %1047 = vector.broadcast %264 : vector<1x64xf32> to vector<16x64xf32>
    %1048 = arith.cmpf oeq, %1046, %1047 : vector<16x64xf32>
    %1049 = vector.extract_strided_slice %216 {offsets = [0, 26], sizes = [16, 1], strides = [1, 1]} : vector<16x32xf32> to vector<16x1xf32>
    %cst_205 = arith.constant 0.000000e+00 : f32
    %1050 = vector.shape_cast %1049 : vector<16x1xf32> to vector<16x1xf32>
    %1051 = vector.broadcast %1050 : vector<16x1xf32> to vector<16x64xf32>
    %1052 = vector.broadcast %cst_205 : f32 to vector<16x64xf32>
    %1053 = arith.select %1048, %1051, %1052 : vector<16x64xi1>, vector<16x64xf32>
    %1054 = arith.addf %1026, %1053 : vector<16x64xf32>
    %1055 = vector.extract_strided_slice %222 {offsets = [0, 26], sizes = [16, 1], strides = [1, 1]} : vector<16x32xf32> to vector<16x1xf32>
    %cst_206 = arith.constant 0.000000e+00 : f32
    %1056 = vector.shape_cast %1055 : vector<16x1xf32> to vector<16x1xf32>
    %1057 = vector.broadcast %1056 : vector<16x1xf32> to vector<16x64xf32>
    %1058 = vector.broadcast %cst_206 : f32 to vector<16x64xf32>
    %1059 = arith.select %1048, %1057, %1058 : vector<16x64xi1>, vector<16x64xf32>
    %1060 = arith.addf %1032, %1059 : vector<16x64xf32>
    %1061 = vector.extract_strided_slice %228 {offsets = [0, 26], sizes = [16, 1], strides = [1, 1]} : vector<16x32xf32> to vector<16x1xf32>
    %cst_207 = arith.constant 0.000000e+00 : f32
    %1062 = vector.shape_cast %1061 : vector<16x1xf32> to vector<16x1xf32>
    %1063 = vector.broadcast %1062 : vector<16x1xf32> to vector<16x64xf32>
    %1064 = vector.broadcast %cst_207 : f32 to vector<16x64xf32>
    %1065 = arith.select %1048, %1063, %1064 : vector<16x64xi1>, vector<16x64xf32>
    %1066 = arith.addf %1038, %1065 : vector<16x64xf32>
    %1067 = vector.extract_strided_slice %232 {offsets = [0, 26], sizes = [16, 1], strides = [1, 1]} : vector<16x32xf32> to vector<16x1xf32>
    %cst_208 = arith.constant 0.000000e+00 : f32
    %1068 = vector.shape_cast %1067 : vector<16x1xf32> to vector<16x1xf32>
    %1069 = vector.broadcast %1068 : vector<16x1xf32> to vector<16x64xf32>
    %1070 = vector.broadcast %cst_208 : f32 to vector<16x64xf32>
    %1071 = arith.select %1048, %1069, %1070 : vector<16x64xi1>, vector<16x64xf32>
    %1072 = arith.addf %1044, %1071 : vector<16x64xf32>
    %1073 = vector.extract_strided_slice %238 {offsets = [0, 27], sizes = [16, 1], strides = [1, 1]} : vector<16x32xf32> to vector<16x1xf32>
    %1074 = vector.broadcast %1073 : vector<16x1xf32> to vector<16x64xf32>
    %1075 = vector.broadcast %264 : vector<1x64xf32> to vector<16x64xf32>
    %1076 = arith.cmpf oeq, %1074, %1075 : vector<16x64xf32>
    %1077 = vector.extract_strided_slice %216 {offsets = [0, 27], sizes = [16, 1], strides = [1, 1]} : vector<16x32xf32> to vector<16x1xf32>
    %cst_209 = arith.constant 0.000000e+00 : f32
    %1078 = vector.shape_cast %1077 : vector<16x1xf32> to vector<16x1xf32>
    %1079 = vector.broadcast %1078 : vector<16x1xf32> to vector<16x64xf32>
    %1080 = vector.broadcast %cst_209 : f32 to vector<16x64xf32>
    %1081 = arith.select %1076, %1079, %1080 : vector<16x64xi1>, vector<16x64xf32>
    %1082 = arith.addf %1054, %1081 : vector<16x64xf32>
    %1083 = vector.extract_strided_slice %222 {offsets = [0, 27], sizes = [16, 1], strides = [1, 1]} : vector<16x32xf32> to vector<16x1xf32>
    %cst_210 = arith.constant 0.000000e+00 : f32
    %1084 = vector.shape_cast %1083 : vector<16x1xf32> to vector<16x1xf32>
    %1085 = vector.broadcast %1084 : vector<16x1xf32> to vector<16x64xf32>
    %1086 = vector.broadcast %cst_210 : f32 to vector<16x64xf32>
    %1087 = arith.select %1076, %1085, %1086 : vector<16x64xi1>, vector<16x64xf32>
    %1088 = arith.addf %1060, %1087 : vector<16x64xf32>
    %1089 = vector.extract_strided_slice %228 {offsets = [0, 27], sizes = [16, 1], strides = [1, 1]} : vector<16x32xf32> to vector<16x1xf32>
    %cst_211 = arith.constant 0.000000e+00 : f32
    %1090 = vector.shape_cast %1089 : vector<16x1xf32> to vector<16x1xf32>
    %1091 = vector.broadcast %1090 : vector<16x1xf32> to vector<16x64xf32>
    %1092 = vector.broadcast %cst_211 : f32 to vector<16x64xf32>
    %1093 = arith.select %1076, %1091, %1092 : vector<16x64xi1>, vector<16x64xf32>
    %1094 = arith.addf %1066, %1093 : vector<16x64xf32>
    %1095 = vector.extract_strided_slice %232 {offsets = [0, 27], sizes = [16, 1], strides = [1, 1]} : vector<16x32xf32> to vector<16x1xf32>
    %cst_212 = arith.constant 0.000000e+00 : f32
    %1096 = vector.shape_cast %1095 : vector<16x1xf32> to vector<16x1xf32>
    %1097 = vector.broadcast %1096 : vector<16x1xf32> to vector<16x64xf32>
    %1098 = vector.broadcast %cst_212 : f32 to vector<16x64xf32>
    %1099 = arith.select %1076, %1097, %1098 : vector<16x64xi1>, vector<16x64xf32>
    %1100 = arith.addf %1072, %1099 : vector<16x64xf32>
    %1101 = vector.extract_strided_slice %238 {offsets = [0, 28], sizes = [16, 1], strides = [1, 1]} : vector<16x32xf32> to vector<16x1xf32>
    %1102 = vector.broadcast %1101 : vector<16x1xf32> to vector<16x64xf32>
    %1103 = vector.broadcast %264 : vector<1x64xf32> to vector<16x64xf32>
    %1104 = arith.cmpf oeq, %1102, %1103 : vector<16x64xf32>
    %1105 = vector.extract_strided_slice %216 {offsets = [0, 28], sizes = [16, 1], strides = [1, 1]} : vector<16x32xf32> to vector<16x1xf32>
    %cst_213 = arith.constant 0.000000e+00 : f32
    %1106 = vector.shape_cast %1105 : vector<16x1xf32> to vector<16x1xf32>
    %1107 = vector.broadcast %1106 : vector<16x1xf32> to vector<16x64xf32>
    %1108 = vector.broadcast %cst_213 : f32 to vector<16x64xf32>
    %1109 = arith.select %1104, %1107, %1108 : vector<16x64xi1>, vector<16x64xf32>
    %1110 = arith.addf %1082, %1109 : vector<16x64xf32>
    %1111 = vector.extract_strided_slice %222 {offsets = [0, 28], sizes = [16, 1], strides = [1, 1]} : vector<16x32xf32> to vector<16x1xf32>
    %cst_214 = arith.constant 0.000000e+00 : f32
    %1112 = vector.shape_cast %1111 : vector<16x1xf32> to vector<16x1xf32>
    %1113 = vector.broadcast %1112 : vector<16x1xf32> to vector<16x64xf32>
    %1114 = vector.broadcast %cst_214 : f32 to vector<16x64xf32>
    %1115 = arith.select %1104, %1113, %1114 : vector<16x64xi1>, vector<16x64xf32>
    %1116 = arith.addf %1088, %1115 : vector<16x64xf32>
    %1117 = vector.extract_strided_slice %228 {offsets = [0, 28], sizes = [16, 1], strides = [1, 1]} : vector<16x32xf32> to vector<16x1xf32>
    %cst_215 = arith.constant 0.000000e+00 : f32
    %1118 = vector.shape_cast %1117 : vector<16x1xf32> to vector<16x1xf32>
    %1119 = vector.broadcast %1118 : vector<16x1xf32> to vector<16x64xf32>
    %1120 = vector.broadcast %cst_215 : f32 to vector<16x64xf32>
    %1121 = arith.select %1104, %1119, %1120 : vector<16x64xi1>, vector<16x64xf32>
    %1122 = arith.addf %1094, %1121 : vector<16x64xf32>
    %1123 = vector.extract_strided_slice %232 {offsets = [0, 28], sizes = [16, 1], strides = [1, 1]} : vector<16x32xf32> to vector<16x1xf32>
    %cst_216 = arith.constant 0.000000e+00 : f32
    %1124 = vector.shape_cast %1123 : vector<16x1xf32> to vector<16x1xf32>
    %1125 = vector.broadcast %1124 : vector<16x1xf32> to vector<16x64xf32>
    %1126 = vector.broadcast %cst_216 : f32 to vector<16x64xf32>
    %1127 = arith.select %1104, %1125, %1126 : vector<16x64xi1>, vector<16x64xf32>
    %1128 = arith.addf %1100, %1127 : vector<16x64xf32>
    %1129 = vector.extract_strided_slice %238 {offsets = [0, 29], sizes = [16, 1], strides = [1, 1]} : vector<16x32xf32> to vector<16x1xf32>
    %1130 = vector.broadcast %1129 : vector<16x1xf32> to vector<16x64xf32>
    %1131 = vector.broadcast %264 : vector<1x64xf32> to vector<16x64xf32>
    %1132 = arith.cmpf oeq, %1130, %1131 : vector<16x64xf32>
    %1133 = vector.extract_strided_slice %216 {offsets = [0, 29], sizes = [16, 1], strides = [1, 1]} : vector<16x32xf32> to vector<16x1xf32>
    %cst_217 = arith.constant 0.000000e+00 : f32
    %1134 = vector.shape_cast %1133 : vector<16x1xf32> to vector<16x1xf32>
    %1135 = vector.broadcast %1134 : vector<16x1xf32> to vector<16x64xf32>
    %1136 = vector.broadcast %cst_217 : f32 to vector<16x64xf32>
    %1137 = arith.select %1132, %1135, %1136 : vector<16x64xi1>, vector<16x64xf32>
    %1138 = arith.addf %1110, %1137 : vector<16x64xf32>
    %1139 = vector.extract_strided_slice %222 {offsets = [0, 29], sizes = [16, 1], strides = [1, 1]} : vector<16x32xf32> to vector<16x1xf32>
    %cst_218 = arith.constant 0.000000e+00 : f32
    %1140 = vector.shape_cast %1139 : vector<16x1xf32> to vector<16x1xf32>
    %1141 = vector.broadcast %1140 : vector<16x1xf32> to vector<16x64xf32>
    %1142 = vector.broadcast %cst_218 : f32 to vector<16x64xf32>
    %1143 = arith.select %1132, %1141, %1142 : vector<16x64xi1>, vector<16x64xf32>
    %1144 = arith.addf %1116, %1143 : vector<16x64xf32>
    %1145 = vector.extract_strided_slice %228 {offsets = [0, 29], sizes = [16, 1], strides = [1, 1]} : vector<16x32xf32> to vector<16x1xf32>
    %cst_219 = arith.constant 0.000000e+00 : f32
    %1146 = vector.shape_cast %1145 : vector<16x1xf32> to vector<16x1xf32>
    %1147 = vector.broadcast %1146 : vector<16x1xf32> to vector<16x64xf32>
    %1148 = vector.broadcast %cst_219 : f32 to vector<16x64xf32>
    %1149 = arith.select %1132, %1147, %1148 : vector<16x64xi1>, vector<16x64xf32>
    %1150 = arith.addf %1122, %1149 : vector<16x64xf32>
    %1151 = vector.extract_strided_slice %232 {offsets = [0, 29], sizes = [16, 1], strides = [1, 1]} : vector<16x32xf32> to vector<16x1xf32>
    %cst_220 = arith.constant 0.000000e+00 : f32
    %1152 = vector.shape_cast %1151 : vector<16x1xf32> to vector<16x1xf32>
    %1153 = vector.broadcast %1152 : vector<16x1xf32> to vector<16x64xf32>
    %1154 = vector.broadcast %cst_220 : f32 to vector<16x64xf32>
    %1155 = arith.select %1132, %1153, %1154 : vector<16x64xi1>, vector<16x64xf32>
    %1156 = arith.addf %1128, %1155 : vector<16x64xf32>
    %1157 = vector.extract_strided_slice %238 {offsets = [0, 30], sizes = [16, 1], strides = [1, 1]} : vector<16x32xf32> to vector<16x1xf32>
    %1158 = vector.broadcast %1157 : vector<16x1xf32> to vector<16x64xf32>
    %1159 = vector.broadcast %264 : vector<1x64xf32> to vector<16x64xf32>
    %1160 = arith.cmpf oeq, %1158, %1159 : vector<16x64xf32>
    %1161 = vector.extract_strided_slice %216 {offsets = [0, 30], sizes = [16, 1], strides = [1, 1]} : vector<16x32xf32> to vector<16x1xf32>
    %cst_221 = arith.constant 0.000000e+00 : f32
    %1162 = vector.shape_cast %1161 : vector<16x1xf32> to vector<16x1xf32>
    %1163 = vector.broadcast %1162 : vector<16x1xf32> to vector<16x64xf32>
    %1164 = vector.broadcast %cst_221 : f32 to vector<16x64xf32>
    %1165 = arith.select %1160, %1163, %1164 : vector<16x64xi1>, vector<16x64xf32>
    %1166 = arith.addf %1138, %1165 : vector<16x64xf32>
    %1167 = vector.extract_strided_slice %222 {offsets = [0, 30], sizes = [16, 1], strides = [1, 1]} : vector<16x32xf32> to vector<16x1xf32>
    %cst_222 = arith.constant 0.000000e+00 : f32
    %1168 = vector.shape_cast %1167 : vector<16x1xf32> to vector<16x1xf32>
    %1169 = vector.broadcast %1168 : vector<16x1xf32> to vector<16x64xf32>
    %1170 = vector.broadcast %cst_222 : f32 to vector<16x64xf32>
    %1171 = arith.select %1160, %1169, %1170 : vector<16x64xi1>, vector<16x64xf32>
    %1172 = arith.addf %1144, %1171 : vector<16x64xf32>
    %1173 = vector.extract_strided_slice %228 {offsets = [0, 30], sizes = [16, 1], strides = [1, 1]} : vector<16x32xf32> to vector<16x1xf32>
    %cst_223 = arith.constant 0.000000e+00 : f32
    %1174 = vector.shape_cast %1173 : vector<16x1xf32> to vector<16x1xf32>
    %1175 = vector.broadcast %1174 : vector<16x1xf32> to vector<16x64xf32>
    %1176 = vector.broadcast %cst_223 : f32 to vector<16x64xf32>
    %1177 = arith.select %1160, %1175, %1176 : vector<16x64xi1>, vector<16x64xf32>
    %1178 = arith.addf %1150, %1177 : vector<16x64xf32>
    %1179 = vector.extract_strided_slice %232 {offsets = [0, 30], sizes = [16, 1], strides = [1, 1]} : vector<16x32xf32> to vector<16x1xf32>
    %cst_224 = arith.constant 0.000000e+00 : f32
    %1180 = vector.shape_cast %1179 : vector<16x1xf32> to vector<16x1xf32>
    %1181 = vector.broadcast %1180 : vector<16x1xf32> to vector<16x64xf32>
    %1182 = vector.broadcast %cst_224 : f32 to vector<16x64xf32>
    %1183 = arith.select %1160, %1181, %1182 : vector<16x64xi1>, vector<16x64xf32>
    %1184 = arith.addf %1156, %1183 : vector<16x64xf32>
    %1185 = vector.extract_strided_slice %238 {offsets = [0, 31], sizes = [16, 1], strides = [1, 1]} : vector<16x32xf32> to vector<16x1xf32>
    %1186 = vector.broadcast %1185 : vector<16x1xf32> to vector<16x64xf32>
    %1187 = vector.broadcast %264 : vector<1x64xf32> to vector<16x64xf32>
    %1188 = arith.cmpf oeq, %1186, %1187 : vector<16x64xf32>
    %1189 = vector.extract_strided_slice %216 {offsets = [0, 31], sizes = [16, 1], strides = [1, 1]} : vector<16x32xf32> to vector<16x1xf32>
    %cst_225 = arith.constant 0.000000e+00 : f32
    %1190 = vector.shape_cast %1189 : vector<16x1xf32> to vector<16x1xf32>
    %1191 = vector.broadcast %1190 : vector<16x1xf32> to vector<16x64xf32>
    %1192 = vector.broadcast %cst_225 : f32 to vector<16x64xf32>
    %1193 = arith.select %1188, %1191, %1192 : vector<16x64xi1>, vector<16x64xf32>
    %1194 = arith.addf %1166, %1193 : vector<16x64xf32>
    %1195 = vector.extract_strided_slice %222 {offsets = [0, 31], sizes = [16, 1], strides = [1, 1]} : vector<16x32xf32> to vector<16x1xf32>
    %cst_226 = arith.constant 0.000000e+00 : f32
    %1196 = vector.shape_cast %1195 : vector<16x1xf32> to vector<16x1xf32>
    %1197 = vector.broadcast %1196 : vector<16x1xf32> to vector<16x64xf32>
    %1198 = vector.broadcast %cst_226 : f32 to vector<16x64xf32>
    %1199 = arith.select %1188, %1197, %1198 : vector<16x64xi1>, vector<16x64xf32>
    %1200 = arith.addf %1172, %1199 : vector<16x64xf32>
    %1201 = vector.extract_strided_slice %228 {offsets = [0, 31], sizes = [16, 1], strides = [1, 1]} : vector<16x32xf32> to vector<16x1xf32>
    %cst_227 = arith.constant 0.000000e+00 : f32
    %1202 = vector.shape_cast %1201 : vector<16x1xf32> to vector<16x1xf32>
    %1203 = vector.broadcast %1202 : vector<16x1xf32> to vector<16x64xf32>
    %1204 = vector.broadcast %cst_227 : f32 to vector<16x64xf32>
    %1205 = arith.select %1188, %1203, %1204 : vector<16x64xi1>, vector<16x64xf32>
    %1206 = arith.addf %1178, %1205 : vector<16x64xf32>
    %1207 = vector.extract_strided_slice %232 {offsets = [0, 31], sizes = [16, 1], strides = [1, 1]} : vector<16x32xf32> to vector<16x1xf32>
    %cst_228 = arith.constant 0.000000e+00 : f32
    %1208 = vector.shape_cast %1207 : vector<16x1xf32> to vector<16x1xf32>
    %1209 = vector.broadcast %1208 : vector<16x1xf32> to vector<16x64xf32>
    %1210 = vector.broadcast %cst_228 : f32 to vector<16x64xf32>
    %1211 = arith.select %1188, %1209, %1210 : vector<16x64xi1>, vector<16x64xf32>
    %1212 = arith.addf %1184, %1211 : vector<16x64xf32>
    %1213 = vector.extract_strided_slice %1200 {offsets = [0, 63], sizes = [16, 1], strides = [1, 1]} : vector<16x64xf32> to vector<16x1xf32>
    %1214 = vector.extract_strided_slice %1200 {offsets = [0, 0], sizes = [16, 63], strides = [1, 1]} : vector<16x64xf32> to vector<16x63xf32>
    %1215 = tpu.concatenate %1213, %1214 in 1 : vector<16x1xf32>, vector<16x63xf32> -> vector<16x64xf32>
    %1216 = arith.addf %1194, %1215 : vector<16x64xf32>
    %1217 = vector.extract_strided_slice %1206 {offsets = [0, 60], sizes = [16, 4], strides = [1, 1]} : vector<16x64xf32> to vector<16x4xf32>
    %1218 = vector.extract_strided_slice %1206 {offsets = [0, 0], sizes = [16, 60], strides = [1, 1]} : vector<16x64xf32> to vector<16x60xf32>
    %1219 = tpu.concatenate %1217, %1218 in 1 : vector<16x4xf32>, vector<16x60xf32> -> vector<16x64xf32>
    %1220 = arith.addf %1216, %1219 : vector<16x64xf32>
    %1221 = vector.extract_strided_slice %1212 {offsets = [0, 59], sizes = [16, 5], strides = [1, 1]} : vector<16x64xf32> to vector<16x5xf32>
    %1222 = vector.extract_strided_slice %1212 {offsets = [0, 0], sizes = [16, 59], strides = [1, 1]} : vector<16x64xf32> to vector<16x59xf32>
    %1223 = tpu.concatenate %1221, %1222 in 1 : vector<16x5xf32>, vector<16x59xf32> -> vector<16x64xf32>
    %1224 = arith.addf %1220, %1223 : vector<16x64xf32>
    %1225 = tpu.concatenate %504, %744, %984, %1224 in 1 : vector<16x64xf32>, vector<16x64xf32>, vector<16x64xf32>, vector<16x64xf32> -> vector<16x256xf32>
    %cst_229 = arith.constant dense<0.000000e+00> : vector<16x32xf32>
    %1226 = tpu.matmul %1225, %262, %cst_229 {dimension_numbers = #tpu.dot_dimension_numbers<[1], [0], [0], [1], [0, 0, 1, 1], [], []>, precision = #tpu.contract_precision<fp32>} : vector<16x256xf32>, vector<256x32xf32>, vector<16x32xf32> -> vector<16x32xf32>
    %c256 = arith.constant 256 : index
    %c0_230 = arith.constant 0 : index
    %1227 = vector.load %arg3[%c256, %c0_230] : memref<456x64xf32, #tpu.memory_space<vmem>>, vector<32x32xf32>
    %cst_231 = arith.constant dense<0.000000e+00> : vector<16x32xf32>
    %1228 = tpu.matmul %1226, %1227, %cst_231 {dimension_numbers = #tpu.dot_dimension_numbers<[1], [0], [0], [1], [0, 0, 1, 1], [], []>, precision = #tpu.contract_precision<fp32>} : vector<16x32xf32>, vector<32x32xf32>, vector<16x32xf32> -> vector<16x32xf32>
    %c444 = arith.constant 444 : index
    %c0_232 = arith.constant 0 : index
    %1229 = vector.load %arg3[%c444, %c0_232] : memref<456x64xf32, #tpu.memory_space<vmem>>, vector<1x32xf32>
    %1230 = vector.broadcast %1229 : vector<1x32xf32> to vector<16x32xf32>
    %1231 = arith.addf %1228, %1230 : vector<16x32xf32>
    %1232 = arith.addf %125, %1231 : vector<16x32xf32>
    %c449 = arith.constant 449 : index
    %c0_233 = arith.constant 0 : index
    %1233 = vector.load %arg3[%c449, %c0_233] : memref<456x64xf32, #tpu.memory_space<vmem>>, vector<1x32xf32>
    %c450 = arith.constant 450 : index
    %c0_234 = arith.constant 0 : index
    %1234 = vector.load %arg3[%c450, %c0_234] : memref<456x64xf32, #tpu.memory_space<vmem>>, vector<1x32xf32>
    %cst_235 = arith.constant dense<0.000000e+00> : vector<16xf32>
    %1235 = vector.multi_reduction <add>, %1232, %cst_235 [1] : vector<16x32xf32> to vector<16xf32>
    %1236 = vector.shape_cast %1235 : vector<16xf32> to vector<16x1xf32>
    %cst_236 = arith.constant 3.200000e+01 : f32
    %1237 = vector.broadcast %cst_236 : f32 to vector<16x1xf32>
    %1238 = arith.divf %1236, %1237 : vector<16x1xf32>
    %1239 = vector.broadcast %1238 : vector<16x1xf32> to vector<16x32xf32>
    %1240 = arith.subf %1232, %1239 : vector<16x32xf32>
    %1241 = arith.mulf %1240, %1240 : vector<16x32xf32>
    %cst_237 = arith.constant dense<0.000000e+00> : vector<16xf32>
    %1242 = vector.multi_reduction <add>, %1241, %cst_237 [1] : vector<16x32xf32> to vector<16xf32>
    %1243 = vector.shape_cast %1242 : vector<16xf32> to vector<16x1xf32>
    %cst_238 = arith.constant 3.200000e+01 : f32
    %1244 = vector.broadcast %cst_238 : f32 to vector<16x1xf32>
    %1245 = arith.divf %1243, %1244 : vector<16x1xf32>
    %cst_239 = arith.constant 9.99999974E-6 : f32
    %1246 = vector.broadcast %cst_239 : f32 to vector<16x1xf32>
    %1247 = arith.addf %1245, %1246 : vector<16x1xf32>
    %1248 = math.rsqrt %1247 : vector<16x1xf32>
    %1249 = vector.broadcast %1248 : vector<16x1xf32> to vector<16x32xf32>
    %1250 = arith.mulf %1240, %1249 : vector<16x32xf32>
    %1251 = vector.broadcast %1233 : vector<1x32xf32> to vector<16x32xf32>
    %1252 = arith.mulf %1250, %1251 : vector<16x32xf32>
    %1253 = vector.broadcast %1234 : vector<1x32xf32> to vector<16x32xf32>
    %1254 = arith.addf %1252, %1253 : vector<16x32xf32>
    %c288 = arith.constant 288 : index
    %c0_240 = arith.constant 0 : index
    %1255 = vector.load %arg3[%c288, %c0_240] : memref<456x64xf32, #tpu.memory_space<vmem>>, vector<32x64xf32>
    %cst_241 = arith.constant dense<0.000000e+00> : vector<16x64xf32>
    %1256 = tpu.matmul %1254, %1255, %cst_241 {dimension_numbers = #tpu.dot_dimension_numbers<[1], [0], [0], [1], [0, 0, 1, 1], [], []>, precision = #tpu.contract_precision<fp32>} : vector<16x32xf32>, vector<32x64xf32>, vector<16x64xf32> -> vector<16x64xf32>
    %c445 = arith.constant 445 : index
    %c0_242 = arith.constant 0 : index
    %1257 = vector.load %arg3[%c445, %c0_242] : memref<456x64xf32, #tpu.memory_space<vmem>>, vector<1x64xf32>
    %1258 = vector.broadcast %1257 : vector<1x64xf32> to vector<16x64xf32>
    %1259 = arith.addf %1256, %1258 : vector<16x64xf32>
    %cst_243 = arith.constant 0.000000e+00 : f32
    %1260 = vector.broadcast %cst_243 : f32 to vector<16x64xf32>
    %1261 = arith.maximumf %1259, %1260 : vector<16x64xf32>
    %c320 = arith.constant 320 : index
    %c0_244 = arith.constant 0 : index
    %1262 = vector.load %arg3[%c320, %c0_244] : memref<456x64xf32, #tpu.memory_space<vmem>>, vector<64x32xf32>
    %cst_245 = arith.constant dense<0.000000e+00> : vector<16x32xf32>
    %1263 = tpu.matmul %1261, %1262, %cst_245 {dimension_numbers = #tpu.dot_dimension_numbers<[1], [0], [0], [1], [0, 0, 1, 1], [], []>, precision = #tpu.contract_precision<fp32>} : vector<16x64xf32>, vector<64x32xf32>, vector<16x32xf32> -> vector<16x32xf32>
    %c446 = arith.constant 446 : index
    %c0_246 = arith.constant 0 : index
    %1264 = vector.load %arg3[%c446, %c0_246] : memref<456x64xf32, #tpu.memory_space<vmem>>, vector<1x32xf32>
    %1265 = vector.broadcast %1264 : vector<1x32xf32> to vector<16x32xf32>
    %1266 = arith.addf %1263, %1265 : vector<16x32xf32>
    %1267 = arith.addf %1254, %1266 : vector<16x32xf32>
    %c451 = arith.constant 451 : index
    %c0_247 = arith.constant 0 : index
    %1268 = vector.load %arg3[%c451, %c0_247] : memref<456x64xf32, #tpu.memory_space<vmem>>, vector<1x32xf32>
    %c452 = arith.constant 452 : index
    %c0_248 = arith.constant 0 : index
    %1269 = vector.load %arg3[%c452, %c0_248] : memref<456x64xf32, #tpu.memory_space<vmem>>, vector<1x32xf32>
    %cst_249 = arith.constant dense<0.000000e+00> : vector<16xf32>
    %1270 = vector.multi_reduction <add>, %1267, %cst_249 [1] : vector<16x32xf32> to vector<16xf32>
    %1271 = vector.shape_cast %1270 : vector<16xf32> to vector<16x1xf32>
    %cst_250 = arith.constant 3.200000e+01 : f32
    %1272 = vector.broadcast %cst_250 : f32 to vector<16x1xf32>
    %1273 = arith.divf %1271, %1272 : vector<16x1xf32>
    %1274 = vector.broadcast %1273 : vector<16x1xf32> to vector<16x32xf32>
    %1275 = arith.subf %1267, %1274 : vector<16x32xf32>
    %1276 = arith.mulf %1275, %1275 : vector<16x32xf32>
    %cst_251 = arith.constant dense<0.000000e+00> : vector<16xf32>
    %1277 = vector.multi_reduction <add>, %1276, %cst_251 [1] : vector<16x32xf32> to vector<16xf32>
    %1278 = vector.shape_cast %1277 : vector<16xf32> to vector<16x1xf32>
    %cst_252 = arith.constant 3.200000e+01 : f32
    %1279 = vector.broadcast %cst_252 : f32 to vector<16x1xf32>
    %1280 = arith.divf %1278, %1279 : vector<16x1xf32>
    %cst_253 = arith.constant 9.99999974E-6 : f32
    %1281 = vector.broadcast %cst_253 : f32 to vector<16x1xf32>
    %1282 = arith.addf %1280, %1281 : vector<16x1xf32>
    %1283 = math.rsqrt %1282 : vector<16x1xf32>
    %1284 = vector.broadcast %1283 : vector<16x1xf32> to vector<16x32xf32>
    %1285 = arith.mulf %1275, %1284 : vector<16x32xf32>
    %1286 = vector.broadcast %1268 : vector<1x32xf32> to vector<16x32xf32>
    %1287 = arith.mulf %1285, %1286 : vector<16x32xf32>
    %1288 = vector.broadcast %1269 : vector<1x32xf32> to vector<16x32xf32>
    %1289 = arith.addf %1287, %1288 : vector<16x32xf32>
    %c0_254 = arith.constant 0 : index
    %c0_255 = arith.constant 0 : index
    %1290 = vector.load %arg4[%c0_254, %c0_255] : memref<16x32xf32, #tpu.memory_space<vmem>>, vector<16x32xf32>
    tpu.vector_store %arg4[%c0_254, %c0_255], %1289 {strides = array<i32>} : memref<16x32xf32, #tpu.memory_space<vmem>>, vector<16x32xf32>,
    return
  }
  func.func @transform_0(%arg0: i32) -> (i32, i32) {
    %c0_i32 = arith.constant 0 : i32
    %c0_i32_0 = arith.constant 0 : i32
    %c0_i32_1 = arith.constant 0 : i32
    return %c0_i32, %c0_i32_0 : i32, i32
  }
  func.func @transform_1(%arg0: i32) -> (i32, i32) {
    %c0_i32 = arith.constant 0 : i32
    %c0_i32_0 = arith.constant 0 : i32
    %c0_i32_1 = arith.constant 0 : i32
    return %c0_i32, %c0_i32_0 : i32, i32
  }
  func.func @transform_2(%arg0: i32) -> (i32, i32) {
    %c0_i32 = arith.constant 0 : i32
    %c0_i32_0 = arith.constant 0 : i32
    %c0_i32_1 = arith.constant 0 : i32
    return %c0_i32, %c0_i32_0 : i32, i32
  }
  func.func @transform_3(%arg0: i32) -> (i32, i32) {
    %c0_i32 = arith.constant 0 : i32
    %c0_i32_0 = arith.constant 0 : i32
    %c0_i32_1 = arith.constant 0 : i32
    return %c0_i32, %c0_i32_0 : i32, i32
  }
}

</mosaic_0001>

<llo_original>
// kernel: decoder_layer_forward.1
$region0: #{decoder_layer_forward.1}
  #allocation0 [shape = 'u32[]', space=smem, size = 0x4, offset = 0x4, fixed_abs, tag = 'smem constant byte address 0x4 - core index']
  #allocation1 [shape = 'u32[72,128]{1,0:T(1,128)}', space=vmem, size = 0x9000, scoped, tag = 'internal scratch']
  %s0 = inlined_call_operand.vmem [shape: f32[112,32], index: 0, kind: input, shape index: {}]
  %s1 = inlined_call_operand.vmem [shape: f32[48,32], index: 1, kind: input, shape index: {}]
  %s2 = inlined_call_operand.vmem [shape: f32[456,64], index: 2, kind: input, shape index: {}]
  %s3 = inlined_call_operand.hbm [shape: f32[16,32], index: 3, kind: output, shape index: {}]
  %s4 = sld [smem:[#allocation0]]
  $region22: #{decoder_layer_forward.1} parent=0
    _
  %s6 = ssub.s32 1, %s4
  %s7 = scalar_select 0, %s6, %s4
  $region1: #{decoder_layer_forward.1} parent=0
    #allocation2 [shape = 'u8[8192]{0}', space=vmem, size = 0x2000, scoped, tag = 'output window, operand 0, single buffered']
    #allocation3 [shape = 's32[1]{0}', space=sflag, size = 0x4, scoped, tag = 'scoped memory for decoder_layer_forward.1']
    %8 = vsyncpa [#allocation3], 0
    // Predicated region
    $region2: #{decoder_layer_forward.1} parent=1 // pred_check
      _
    $region3: #{decoder_layer_forward.1} parent=1 // pred_check_branch
      %10 = sbr.rel (0) target = $region5
    $region4: #{decoder_layer_forward.1} parent=1 // pred_region
      _
    $region5: #{decoder_layer_forward.1} parent=1 // pred_fallthru
      _
    // Predicated region
    $region6: #{decoder_layer_forward.1} parent=1 // pred_check
      _
    $region7: #{decoder_layer_forward.1} parent=1 // pred_check_branch
      %12 = sbr.rel (0) target = $region9
    $region8: #{decoder_layer_forward.1} parent=1 // pred_region
      _
    $region9: #{decoder_layer_forward.1} parent=1 // pred_fallthru
      _
    // Predicated region
    $region10: #{decoder_layer_forward.1} parent=1 // pred_check
      _
    $region11: #{decoder_layer_forward.1} parent=1 // pred_check_branch
      %14 = sbr.rel (0) target = $region13
    $region12: #{decoder_layer_forward.1} parent=1 // pred_region
      _
    $region13: #{decoder_layer_forward.1} parent=1 // pred_fallthru
      _
    %v15 = vld [vmem:[%s0] sm:$0xff]
    %v16 = vld [vmem:[%s0 + $0x8] sm:$0xff]
    %v17 = vld [vmem:[%s0 + $0x10] sm:$0xff]
    %v18 = vld [vmem:[%s0 + $0x18] sm:$0xff]
    %v19 = vld [vmem:[%s0 + $0x20] sm:$0xff]
    %v20 = vld [vmem:[%s0 + $0x28] sm:$0xff]
    %v21 = vld [vmem:[%s0 + $0x30] sm:$0xff]
    %v22 = vld [vmem:[%s0 + $0x38] sm:$0xff]
    %v23 = vld [vmem:[%s0 + $0x40] sm:$0xff]
    %v24 = vld [vmem:[%s0 + $0x48] sm:$0xff]
    %v25 = vld [vmem:[%s0 + $0x50] sm:$0xff]
    %v26 = vld [vmem:[%s0 + $0x58] sm:$0xff]
    %v27 = vld [vmem:[%s0 + $0x60] sm:$0xff]
    %v28 = vld [vmem:[%s0 + $0x68] sm:$0xff]
    %v29 = vld [vmem:[%s2 + $0x1b0] sm:$0xf]
    %v30 = vadd.f32 %v15, %v17
    %v31 = vadd.f32 %v16, %v18
    %v32 = vld [vmem:[%s2] sm:$0xff]
    %v33 = vld [vmem:[%s2 + $0x8] sm:$0xff]
    %v34 = vld [vmem:[%s2 + $0x10] sm:$0xff]
    %v35 = vld [vmem:[%s2 + $0x18] sm:$0xff]
    %v36 = vld [vmem:[%s2 + $0x1b4] sm:$0x1]
    %v37 = vperm.slane %v36, 0
    %vm38 = vcmask 261120
    %v40 = vsel %vm38, %v30, 0
    %v43 = vsel %vm38, %v31, 0
    %45 = vmatpush.msra.mxu0 0.0
    %46 = vmatpush.msra.mxu0 0.0
    %47 = vmatpush.msra.mxu0 0.0
    %48 = vmatpush.msra.mxu0 0.0
    %49 = vmatpush.msra.mxu0 0.0
    %50 = vmatpush.msra.mxu0 0.0
    %51 = vmatpush.msra.mxu0 0.0
    %52 = vmatpush.msra.mxu0 0.0
    %53 = vmatpush.msra.mxu0 0.0
    %54 = vmatpush.msra.mxu0 0.0
    %55 = vmatpush.msra.mxu0 0.0
    %56 = vmatpush.msra.mxu0 0.0
    %v57 = vand.u32 %v35, 4294901760
    %58 = vmatpush.msra.mxu0 %v57
    %v59 = vand.u32 %v34, 4294901760
    %60 = vmatpush.msra.mxu0 %v59
    %v61 = vand.u32 %v33, 4294901760
    %62 = vmatpush.msra.mxu0 %v61
    %v63 = vand.u32 %v32, 4294901760
    %64 = vmatpush.msra.mxu0 %v63
    %v65 = vand.u32 %v40, 4294901760
    %v66 = vsub.f32 %v40, %v65
    %v67 = vand.u32 %v66, 4294901760
    %v68 = vsub.f32 %v66, %v67
    %v69 = vand.u32 %v68, 4294901760
    %70 = vmatmul.f32.gmra.mxu0 %v69
    %v71 = vpop.f32.mrf.mxu0
    %v72 = vadd.f32 %v37, %v71
    %v73 = vand.u32 %v43, 4294901760
    %v74 = vsub.f32 %v43, %v73
    %v75 = vand.u32 %v74, 4294901760
    %v76 = vsub.f32 %v74, %v75
    %v77 = vand.u32 %v76, 4294901760
    %78 = vmatmul.f32.gmra.mxu0 %v77
    %v79 = vpop.f32.mrf.mxu0
    %v80 = vadd.f32 %v37, %v79
    %81 = vdwg.mxu0
    %82 = vmatpush.msra.mxu0 0.0
    %83 = vmatpush.msra.mxu0 0.0
    %84 = vmatpush.msra.mxu0 0.0
    %85 = vmatpush.msra.mxu0 0.0
    %86 = vmatpush.msra.mxu0 0.0
    %87 = vmatpush.msra.mxu0 0.0
    %88 = vmatpush.msra.mxu0 0.0
    %89 = vmatpush.msra.mxu0 0.0
    %90 = vmatpush.msra.mxu0 0.0
    %91 = vmatpush.msra.mxu0 0.0
    %92 = vmatpush.msra.mxu0 0.0
    %93 = vmatpush.msra.mxu0 0.0
    %v94 = vand.u32 %v35, 4294901760
    %v95 = vsub.f32 %v35, %v94
    %v96 = vand.u32 %v95, 4294901760
    %v97 = vsub.f32 %v95, %v96
    %v98 = vand.u32 %v97, 4294901760
    %99 = vmatpush.msra.mxu0 %v98
    %v100 = vand.u32 %v34, 4294901760
    %v101 = vsub.f32 %v34, %v100
    %v102 = vand.u32 %v101, 4294901760
    %v103 = vsub.f32 %v101, %v102
    %v104 = vand.u32 %v103, 4294901760
    %105 = vmatpush.msra.mxu0 %v104
    %v106 = vand.u32 %v33, 4294901760
    %v107 = vsub.f32 %v33, %v106
    %v108 = vand.u32 %v107, 4294901760
    %v109 = vsub.f32 %v107, %v108
    %v110 = vand.u32 %v109, 4294901760
    %111 = vmatpush.msra.mxu0 %v110
    %v112 = vand.u32 %v32, 4294901760
    %v113 = vsub.f32 %v32, %v112
    %v114 = vand.u32 %v113, 4294901760
    %v115 = vsub.f32 %v113, %v114
    %v116 = vand.u32 %v115, 4294901760
    %117 = vmatpush.msra.mxu0 %v116
    %v118 = vand.u32 %v40, 4294901760
    %119 = vmatmul.f32.gmra.mxu0 %v118
    %v120 = vpop.f32.mrf.mxu0
    %v121 = vadd.f32 %v72, %v120
    %v122 = vand.u32 %v43, 4294901760
    %123 = vmatmul.f32.gmra.mxu0 %v122
    %v124 = vpop.f32.mrf.mxu0
    %v125 = vadd.f32 %v80, %v124
    %126 = vdwg.mxu0
    %127 = vmatpush.msra.mxu0 0.0
    %128 = vmatpush.msra.mxu0 0.0
    %129 = vmatpush.msra.mxu0 0.0
    %130 = vmatpush.msra.mxu0 0.0
    %131 = vmatpush.msra.mxu0 0.0
    %132 = vmatpush.msra.mxu0 0.0
    %133 = vmatpush.msra.mxu0 0.0
    %134 = vmatpush.msra.mxu0 0.0
    %135 = vmatpush.msra.mxu0 0.0
    %136 = vmatpush.msra.mxu0 0.0
    %137 = vmatpush.msra.mxu0 0.0
    %138 = vmatpush.msra.mxu0 0.0
    %v139 = vand.u32 %v35, 4294901760
    %v140 = vsub.f32 %v35, %v139
    %141 = vmatpush.msra.mxu0 %v140
    %v142 = vand.u32 %v34, 4294901760
    %v143 = vsub.f32 %v34, %v142
    %144 = vmatpush.msra.mxu0 %v143
    %v145 = vand.u32 %v33, 4294901760
    %v146 = vsub.f32 %v33, %v145
    %147 = vmatpush.msra.mxu0 %v146
    %v148 = vand.u32 %v32, 4294901760
    %v149 = vsub.f32 %v32, %v148
    %150 = vmatpush.msra.mxu0 %v149
    %v151 = vand.u32 %v40, 4294901760
    %v152 = vsub.f32 %v40, %v151
    %153 = vmatmul.f32.gmra.mxu0 %v152
    %v154 = vpop.f32.mrf.mxu0
    %v155 = vadd.f32 %v121, %v154
    %v156 = vand.u32 %v43, 4294901760
    %v157 = vsub.f32 %v43, %v156
    %158 = vmatmul.f32.gmra.mxu0 %v157
    %v159 = vpop.f32.mrf.mxu0
    %v160 = vadd.f32 %v125, %v159
    %161 = vdwg.mxu0
    %162 = vmatpush.msra.mxu0 0.0
    %163 = vmatpush.msra.mxu0 0.0
    %164 = vmatpush.msra.mxu0 0.0
    %165 = vmatpush.msra.mxu0 0.0
    %166 = vmatpush.msra.mxu0 0.0
    %167 = vmatpush.msra.mxu0 0.0
    %168 = vmatpush.msra.mxu0 0.0
    %169 = vmatpush.msra.mxu0 0.0
    %170 = vmatpush.msra.mxu0 0.0
    %171 = vmatpush.msra.mxu0 0.0
    %172 = vmatpush.msra.mxu0 0.0
    %173 = vmatpush.msra.mxu0 0.0
    %v174 = vand.u32 %v35, 4294901760
    %175 = vmatpush.msra.mxu0 %v174
    %v176 = vand.u32 %v34, 4294901760
    %177 = vmatpush.msra.mxu0 %v176
    %v178 = vand.u32 %v33, 4294901760
    %179 = vmatpush.msra.mxu0 %v178
    %v180 = vand.u32 %v32, 4294901760
    %181 = vmatpush.msra.mxu0 %v180
    %v182 = vand.u32 %v40, 4294901760
    %v183 = vsub.f32 %v40, %v182
    %v184 = vand.u32 %v183, 4294901760
    %185 = vmatmul.f32.gmra.mxu0 %v184
    %v186 = vpop.f32.mrf.mxu0
    %v187 = vadd.f32 %v155, %v186
    %v188 = vand.u32 %v43, 4294901760
    %v189 = vsub.f32 %v43, %v188
    %v190 = vand.u32 %v189, 4294901760
    %191 = vmatmul.f32.gmra.mxu0 %v190
    %v192 = vpop.f32.mrf.mxu0
    %v193 = vadd.f32 %v160, %v192
    %194 = vdwg.mxu0
    %195 = vmatpush.msra.mxu0 0.0
    %196 = vmatpush.msra.mxu0 0.0
    %197 = vmatpush.msra.mxu0 0.0
    %198 = vmatpush.msra.mxu0 0.0
    %199 = vmatpush.msra.mxu0 0.0
    %200 = vmatpush.msra.mxu0 0.0
    %201 = vmatpush.msra.mxu0 0.0
    %202 = vmatpush.msra.mxu0 0.0
    %203 = vmatpush.msra.mxu0 0.0
    %204 = vmatpush.msra.mxu0 0.0
    %205 = vmatpush.msra.mxu0 0.0
    %206 = vmatpush.msra.mxu0 0.0
    %v207 = vand.u32 %v35, 4294901760
    %v208 = vsub.f32 %v35, %v207
    %v209 = vand.u32 %v208, 4294901760
    %210 = vmatpush.msra.mxu0 %v209
    %v211 = vand.u32 %v34, 4294901760
    %v212 = vsub.f32 %v34, %v211
    %v213 = vand.u32 %v212, 4294901760
    %214 = vmatpush.msra.mxu0 %v213
    %v215 = vand.u32 %v33, 4294901760
    %v216 = vsub.f32 %v33, %v215
    %v217 = vand.u32 %v216, 4294901760
    %218 = vmatpush.msra.mxu0 %v217
    %v219 = vand.u32 %v32, 4294901760
    %v220 = vsub.f32 %v32, %v219
    %v221 = vand.u32 %v220, 4294901760
    %222 = vmatpush.msra.mxu0 %v221
    %v223 = vand.u32 %v40, 4294901760
    %224 = vmatmul.f32.gmra.mxu0 %v223
    %v225 = vpop.f32.mrf.mxu0
    %v226 = vadd.f32 %v187, %v225
    %v227 = vand.u32 %v43, 4294901760
    %228 = vmatmul.f32.gmra.mxu0 %v227
    %v229 = vpop.f32.mrf.mxu0
    %v230 = vadd.f32 %v193, %v229
    %231 = vdwg.mxu0
    %232 = vmatpush.msra.mxu0 0.0
    %233 = vmatpush.msra.mxu0 0.0
    %234 = vmatpush.msra.mxu0 0.0
    %235 = vmatpush.msra.mxu0 0.0
    %236 = vmatpush.msra.mxu0 0.0
    %237 = vmatpush.msra.mxu0 0.0
    %238 = vmatpush.msra.mxu0 0.0
    %239 = vmatpush.msra.mxu0 0.0
    %240 = vmatpush.msra.mxu0 0.0
    %241 = vmatpush.msra.mxu0 0.0
    %242 = vmatpush.msra.mxu0 0.0
    %243 = vmatpush.msra.mxu0 0.0
    %v244 = vand.u32 %v35, 4294901760
    %245 = vmatpush.msra.mxu0 %v244
    %v246 = vand.u32 %v34, 4294901760
    %247 = vmatpush.msra.mxu0 %v246
    %v248 = vand.u32 %v33, 4294901760
    %249 = vmatpush.msra.mxu0 %v248
    %v250 = vand.u32 %v32, 4294901760
    %251 = vmatpush.msra.mxu0 %v250
    %v252 = vand.u32 %v40, 4294901760
    %253 = vmatmul.f32.gmra.mxu0 %v252
    %v254 = vpop.f32.mrf.mxu0
    %v255 = vadd.f32 %v226, %v254
    %v256 = vand.u32 %v43, 4294901760
    %257 = vmatmul.f32.gmra.mxu0 %v256
    %v258 = vpop.f32.mrf.mxu0
    %v259 = vadd.f32 %v230, %v258
    %260 = vdwg.mxu0
    %v261 = vld [vmem:[%s2 + $0x20] sm:$0xff]
    %v262 = vld [vmem:[%s2 + $0x28] sm:$0xff]
    %v263 = vld [vmem:[%s2 + $0x30] sm:$0xff]
    %v264 = vld [vmem:[%s2 + $0x38] sm:$0xff]
    %v265 = vld [vmem:[%s2 + $0x1b5] sm:$0x1]
    %v266 = vperm.slane %v265, 0
    %267 = vmatpush.msra.mxu0 0.0
    %268 = vmatpush.msra.mxu0 0.0
    %269 = vmatpush.msra.mxu0 0.0
    %270 = vmatpush.msra.mxu0 0.0
    %271 = vmatpush.msra.mxu0 0.0
    %272 = vmatpush.msra.mxu0 0.0
    %273 = vmatpush.msra.mxu0 0.0
    %274 = vmatpush.msra.mxu0 0.0
    %275 = vmatpush.msra.mxu0 0.0
    %276 = vmatpush.msra.mxu0 0.0
    %277 = vmatpush.msra.mxu0 0.0
    %278 = vmatpush.msra.mxu0 0.0
    %v279 = vand.u32 %v264, 4294901760
    %280 = vmatpush.msra.mxu0 %v279
    %v281 = vand.u32 %v263, 4294901760
    %282 = vmatpush.msra.mxu0 %v281
    %v283 = vand.u32 %v262, 4294901760
    %284 = vmatpush.msra.mxu0 %v283
    %v285 = vand.u32 %v261, 4294901760
    %286 = vmatpush.msra.mxu0 %v285
    %v287 = vand.u32 %v40, 4294901760
    %v288 = vsub.f32 %v40, %v287
    %v289 = vand.u32 %v288, 4294901760
    %v290 = vsub.f32 %v288, %v289
    %v291 = vand.u32 %v290, 4294901760
    %292 = vmatmul.f32.gmra.mxu0 %v291
    %v293 = vpop.f32.mrf.mxu0
    %v294 = vadd.f32 %v266, %v293
    %v295 = vand.u32 %v43, 4294901760
    %v296 = vsub.f32 %v43, %v295
    %v297 = vand.u32 %v296, 4294901760
    %v298 = vsub.f32 %v296, %v297
    %v299 = vand.u32 %v298, 4294901760
    %300 = vmatmul.f32.gmra.mxu0 %v299
    %v301 = vpop.f32.mrf.mxu0
    %v302 = vadd.f32 %v266, %v301
    %303 = vdwg.mxu0
    %304 = vmatpush.msra.mxu0 0.0
    %305 = vmatpush.msra.mxu0 0.0
    %306 = vmatpush.msra.mxu0 0.0
    %307 = vmatpush.msra.mxu0 0.0
    %308 = vmatpush.msra.mxu0 0.0
    %309 = vmatpush.msra.mxu0 0.0
    %310 = vmatpush.msra.mxu0 0.0
    %311 = vmatpush.msra.mxu0 0.0
    %312 = vmatpush.msra.mxu0 0.0
    %313 = vmatpush.msra.mxu0 0.0
    %314 = vmatpush.msra.mxu0 0.0
    %315 = vmatpush.msra.mxu0 0.0
    %v316 = vand.u32 %v264, 4294901760
    %v317 = vsub.f32 %v264, %v316
    %v318 = vand.u32 %v317, 4294901760
    %v319 = vsub.f32 %v317, %v318
    %v320 = vand.u32 %v319, 4294901760
    %321 = vmatpush.msra.mxu0 %v320
    %v322 = vand.u32 %v263, 4294901760
    %v323 = vsub.f32 %v263, %v322
    %v324 = vand.u32 %v323, 4294901760
    %v325 = vsub.f32 %v323, %v324
    %v326 = vand.u32 %v325, 4294901760
    %327 = vmatpush.msra.mxu0 %v326
    %v328 = vand.u32 %v262, 4294901760
    %v329 = vsub.f32 %v262, %v328
    %v330 = vand.u32 %v329, 4294901760
    %v331 = vsub.f32 %v329, %v330
    %v332 = vand.u32 %v331, 4294901760
    %333 = vmatpush.msra.mxu0 %v332
    %v334 = vand.u32 %v261, 4294901760
    %v335 = vsub.f32 %v261, %v334
    %v336 = vand.u32 %v335, 4294901760
    %v337 = vsub.f32 %v335, %v336
    %v338 = vand.u32 %v337, 4294901760
    %339 = vmatpush.msra.mxu0 %v338
    %v340 = vand.u32 %v40, 4294901760
    %341 = vmatmul.f32.gmra.mxu0 %v340
    %v342 = vpop.f32.mrf.mxu0
    %v343 = vadd.f32 %v294, %v342
    %v344 = vand.u32 %v43, 4294901760
    %345 = vmatmul.f32.gmra.mxu0 %v344
    %v346 = vpop.f32.mrf.mxu0
    %v347 = vadd.f32 %v302, %v346
    %348 = vdwg.mxu0
    %349 = vmatpush.msra.mxu0 0.0
    %350 = vmatpush.msra.mxu0 0.0
    %351 = vmatpush.msra.mxu0 0.0
    %352 = vmatpush.msra.mxu0 0.0
    %353 = vmatpush.msra.mxu0 0.0
    %354 = vmatpush.msra.mxu0 0.0
    %355 = vmatpush.msra.mxu0 0.0
    %356 = vmatpush.msra.mxu0 0.0
    %357 = vmatpush.msra.mxu0 0.0
    %358 = vmatpush.msra.mxu0 0.0
    %359 = vmatpush.msra.mxu0 0.0
    %360 = vmatpush.msra.mxu0 0.0
    %v361 = vand.u32 %v264, 4294901760
    %v362 = vsub.f32 %v264, %v361
    %363 = vmatpush.msra.mxu0 %v362
    %v364 = vand.u32 %v263, 4294901760
    %v365 = vsub.f32 %v263, %v364
    %366 = vmatpush.msra.mxu0 %v365
    %v367 = vand.u32 %v262, 4294901760
    %v368 = vsub.f32 %v262, %v367
    %369 = vmatpush.msra.mxu0 %v368
    %v370 = vand.u32 %v261, 4294901760
    %v371 = vsub.f32 %v261, %v370
    %372 = vmatpush.msra.mxu0 %v371
    %v373 = vand.u32 %v40, 4294901760
    %v374 = vsub.f32 %v40, %v373
    %375 = vmatmul.f32.gmra.mxu0 %v374
    %v376 = vpop.f32.mrf.mxu0
    %v377 = vadd.f32 %v343, %v376
    %v378 = vand.u32 %v43, 4294901760
    %v379 = vsub.f32 %v43, %v378
    %380 = vmatmul.f32.gmra.mxu0 %v379
    %v381 = vpop.f32.mrf.mxu0
    %v382 = vadd.f32 %v347, %v381
    %383 = vdwg.mxu0
    %384 = vmatpush.msra.mxu0 0.0
    %385 = vmatpush.msra.mxu0 0.0
    %386 = vmatpush.msra.mxu0 0.0
    %387 = vmatpush.msra.mxu0 0.0
    %388 = vmatpush.msra.mxu0 0.0
    %389 = vmatpush.msra.mxu0 0.0
    %390 = vmatpush.msra.mxu0 0.0
    %391 = vmatpush.msra.mxu0 0.0
    %392 = vmatpush.msra.mxu0 0.0
    %393 = vmatpush.msra.mxu0 0.0
    %394 = vmatpush.msra.mxu0 0.0
    %395 = vmatpush.msra.mxu0 0.0
    %v396 = vand.u32 %v264, 4294901760
    %397 = vmatpush.msra.mxu0 %v396
    %v398 = vand.u32 %v263, 4294901760
    %399 = vmatpush.msra.mxu0 %v398
    %v400 = vand.u32 %v262, 4294901760
    %401 = vmatpush.msra.mxu0 %v400
    %v402 = vand.u32 %v261, 4294901760
    %403 = vmatpush.msra.mxu0 %v402
    %v404 = vand.u32 %v40, 4294901760
    %v405 = vsub.f32 %v40, %v404
    %v406 = vand.u32 %v405, 4294901760
    %407 = vmatmul.f32.gmra.mxu0 %v406
    %v408 = vpop.f32.mrf.mxu0
    %v409 = vadd.f32 %v377, %v408
    %v410 = vand.u32 %v43, 4294901760
    %v411 = vsub.f32 %v43, %v410
    %v412 = vand.u32 %v411, 4294901760
    %413 = vmatmul.f32.gmra.mxu0 %v412
    %v414 = vpop.f32.mrf.mxu0
    %v415 = vadd.f32 %v382, %v414
    %416 = vdwg.mxu0
    %417 = vmatpush.msra.mxu0 0.0
    %418 = vmatpush.msra.mxu0 0.0
    %419 = vmatpush.msra.mxu0 0.0
    %420 = vmatpush.msra.mxu0 0.0
    %421 = vmatpush.msra.mxu0 0.0
    %422 = vmatpush.msra.mxu0 0.0
    %423 = vmatpush.msra.mxu0 0.0
    %424 = vmatpush.msra.mxu0 0.0
    %425 = vmatpush.msra.mxu0 0.0
    %426 = vmatpush.msra.mxu0 0.0
    %427 = vmatpush.msra.mxu0 0.0
    %428 = vmatpush.msra.mxu0 0.0
    %v429 = vand.u32 %v264, 4294901760
    %v430 = vsub.f32 %v264, %v429
    %v431 = vand.u32 %v430, 4294901760
    %432 = vmatpush.msra.mxu0 %v431
    %v433 = vand.u32 %v263, 4294901760
    %v434 = vsub.f32 %v263, %v433
    %v435 = vand.u32 %v434, 4294901760
    %436 = vmatpush.msra.mxu0 %v435
    %v437 = vand.u32 %v262, 4294901760
    %v438 = vsub.f32 %v262, %v437
    %v439 = vand.u32 %v438, 4294901760
    %440 = vmatpush.msra.mxu0 %v439
    %v441 = vand.u32 %v261, 4294901760
    %v442 = vsub.f32 %v261, %v441
    %v443 = vand.u32 %v442, 4294901760
    %444 = vmatpush.msra.mxu0 %v443
    %v445 = vand.u32 %v40, 4294901760
    %446 = vmatmul.f32.gmra.mxu0 %v445
    %v447 = vpop.f32.mrf.mxu0
    %v448 = vadd.f32 %v409, %v447
    %v449 = vand.u32 %v43, 4294901760
    %450 = vmatmul.f32.gmra.mxu0 %v449
    %v451 = vpop.f32.mrf.mxu0
    %v452 = vadd.f32 %v415, %v451
    %453 = vdwg.mxu0
    %454 = vmatpush.msra.mxu0 0.0
    %455 = vmatpush.msra.mxu0 0.0
    %456 = vmatpush.msra.mxu0 0.0
    %457 = vmatpush.msra.mxu0 0.0
    %458 = vmatpush.msra.mxu0 0.0
    %459 = vmatpush.msra.mxu0 0.0
    %460 = vmatpush.msra.mxu0 0.0
    %461 = vmatpush.msra.mxu0 0.0
    %462 = vmatpush.msra.mxu0 0.0
    %463 = vmatpush.msra.mxu0 0.0
    %464 = vmatpush.msra.mxu0 0.0
    %465 = vmatpush.msra.mxu0 0.0
    %v466 = vand.u32 %v264, 4294901760
    %467 = vmatpush.msra.mxu0 %v466
    %v468 = vand.u32 %v263, 4294901760
    %469 = vmatpush.msra.mxu0 %v468
    %v470 = vand.u32 %v262, 4294901760
    %471 = vmatpush.msra.mxu0 %v470
    %v472 = vand.u32 %v261, 4294901760
    %473 = vmatpush.msra.mxu0 %v472
    %v474 = vand.u32 %v40, 4294901760
    %475 = vmatmul.f32.gmra.mxu0 %v474
    %v476 = vpop.f32.mrf.mxu0
    %v477 = vadd.f32 %v448, %v476
    %v478 = vand.u32 %v43, 4294901760
    %479 = vmatmul.f32.gmra.mxu0 %v478
    %v480 = vpop.f32.mrf.mxu0
    %v481 = vadd.f32 %v452, %v480
    %482 = vdwg.mxu0
    %v483 = vld [vmem:[%s2 + $0x40] sm:$0xff]
    %v484 = vld [vmem:[%s2 + $0x48] sm:$0xff]
    %v485 = vld [vmem:[%s2 + $0x50] sm:$0xff]
    %v486 = vld [vmem:[%s2 + $0x58] sm:$0xff]
    %v487 = vld [vmem:[%s2 + $0x1b6] sm:$0x1]
    %v488 = vperm.slane %v487, 0
    %v490 = vsel %vm38, %v15, 0
    %v493 = vsel %vm38, %v16, 0
    %495 = vmatpush.msra.mxu0 0.0
    %496 = vmatpush.msra.mxu0 0.0
    %497 = vmatpush.msra.mxu0 0.0
    %498 = vmatpush.msra.mxu0 0.0
    %499 = vmatpush.msra.mxu0 0.0
    %500 = vmatpush.msra.mxu0 0.0
    %501 = vmatpush.msra.mxu0 0.0
    %502 = vmatpush.msra.mxu0 0.0
    %503 = vmatpush.msra.mxu0 0.0
    %504 = vmatpush.msra.mxu0 0.0
    %505 = vmatpush.msra.mxu0 0.0
    %506 = vmatpush.msra.mxu0 0.0
    %v507 = vand.u32 %v486, 4294901760
    %508 = vmatpush.msra.mxu0 %v507
    %v509 = vand.u32 %v485, 4294901760
    %510 = vmatpush.msra.mxu0 %v509
    %v511 = vand.u32 %v484, 4294901760
    %512 = vmatpush.msra.mxu0 %v511
    %v513 = vand.u32 %v483, 4294901760
    %514 = vmatpush.msra.mxu0 %v513
    %v515 = vand.u32 %v490, 4294901760
    %v516 = vsub.f32 %v490, %v515
    %v517 = vand.u32 %v516, 4294901760
    %v518 = vsub.f32 %v516, %v517
    %v519 = vand.u32 %v518, 4294901760
    %520 = vmatmul.f32.gmra.mxu0 %v519
    %v521 = vpop.f32.mrf.mxu0
    %v522 = vadd.f32 %v488, %v521
    %v523 = vand.u32 %v493, 4294901760
    %v524 = vsub.f32 %v493, %v523
    %v525 = vand.u32 %v524, 4294901760
    %v526 = vsub.f32 %v524, %v525
    %v527 = vand.u32 %v526, 4294901760
    %528 = vmatmul.f32.gmra.mxu0 %v527
    %v529 = vpop.f32.mrf.mxu0
    %v530 = vadd.f32 %v488, %v529
    %531 = vdwg.mxu0
    %532 = vmatpush.msra.mxu0 0.0
    %533 = vmatpush.msra.mxu0 0.0
    %534 = vmatpush.msra.mxu0 0.0
    %535 = vmatpush.msra.mxu0 0.0
    %536 = vmatpush.msra.mxu0 0.0
    %537 = vmatpush.msra.mxu0 0.0
    %538 = vmatpush.msra.mxu0 0.0
    %539 = vmatpush.msra.mxu0 0.0
    %540 = vmatpush.msra.mxu0 0.0
    %541 = vmatpush.msra.mxu0 0.0
    %542 = vmatpush.msra.mxu0 0.0
    %543 = vmatpush.msra.mxu0 0.0
    %v544 = vand.u32 %v486, 4294901760
    %v545 = vsub.f32 %v486, %v544
    %v546 = vand.u32 %v545, 4294901760
    %v547 = vsub.f32 %v545, %v546
    %v548 = vand.u32 %v547, 4294901760
    %549 = vmatpush.msra.mxu0 %v548
    %v550 = vand.u32 %v485, 4294901760
    %v551 = vsub.f32 %v485, %v550
    %v552 = vand.u32 %v551, 4294901760
    %v553 = vsub.f32 %v551, %v552
    %v554 = vand.u32 %v553, 4294901760
    %555 = vmatpush.msra.mxu0 %v554
    %v556 = vand.u32 %v484, 4294901760
    %v557 = vsub.f32 %v484, %v556
    %v558 = vand.u32 %v557, 4294901760
    %v559 = vsub.f32 %v557, %v558
    %v560 = vand.u32 %v559, 4294901760
    %561 = vmatpush.msra.mxu0 %v560
    %v562 = vand.u32 %v483, 4294901760
    %v563 = vsub.f32 %v483, %v562
    %v564 = vand.u32 %v563, 4294901760
    %v565 = vsub.f32 %v563, %v564
    %v566 = vand.u32 %v565, 4294901760
    %567 = vmatpush.msra.mxu0 %v566
    %v568 = vand.u32 %v490, 4294901760
    %569 = vmatmul.f32.gmra.mxu0 %v568
    %v570 = vpop.f32.mrf.mxu0
    %v571 = vadd.f32 %v522, %v570
    %v572 = vand.u32 %v493, 4294901760
    %573 = vmatmul.f32.gmra.mxu0 %v572
    %v574 = vpop.f32.mrf.mxu0
    %v575 = vadd.f32 %v530, %v574
    %576 = vdwg.mxu0
    %577 = vmatpush.msra.mxu0 0.0
    %578 = vmatpush.msra.mxu0 0.0
    %579 = vmatpush.msra.mxu0 0.0
    %580 = vmatpush.msra.mxu0 0.0
    %581 = vmatpush.msra.mxu0 0.0
    %582 = vmatpush.msra.mxu0 0.0
    %583 = vmatpush.msra.mxu0 0.0
    %584 = vmatpush.msra.mxu0 0.0
    %585 = vmatpush.msra.mxu0 0.0
    %586 = vmatpush.msra.mxu0 0.0
    %587 = vmatpush.msra.mxu0 0.0
    %588 = vmatpush.msra.mxu0 0.0
    %v589 = vand.u32 %v486, 4294901760
    %v590 = vsub.f32 %v486, %v589
    %591 = vmatpush.msra.mxu0 %v590
    %v592 = vand.u32 %v485, 4294901760
    %v593 = vsub.f32 %v485, %v592
    %594 = vmatpush.msra.mxu0 %v593
    %v595 = vand.u32 %v484, 4294901760
    %v596 = vsub.f32 %v484, %v595
    %597 = vmatpush.msra.mxu0 %v596
    %v598 = vand.u32 %v483, 4294901760
    %v599 = vsub.f32 %v483, %v598
    %600 = vmatpush.msra.mxu0 %v599
    %v601 = vand.u32 %v490, 4294901760
    %v602 = vsub.f32 %v490, %v601
    %603 = vmatmul.f32.gmra.mxu0 %v602
    %v604 = vpop.f32.mrf.mxu0
    %v605 = vadd.f32 %v571, %v604
    %v606 = vand.u32 %v493, 4294901760
    %v607 = vsub.f32 %v493, %v606
    %608 = vmatmul.f32.gmra.mxu0 %v607
    %v609 = vpop.f32.mrf.mxu0
    %v610 = vadd.f32 %v575, %v609
    %611 = vdwg.mxu0
    %612 = vmatpush.msra.mxu0 0.0
    %613 = vmatpush.msra.mxu0 0.0
    %614 = vmatpush.msra.mxu0 0.0
    %615 = vmatpush.msra.mxu0 0.0
    %616 = vmatpush.msra.mxu0 0.0
    %617 = vmatpush.msra.mxu0 0.0
    %618 = vmatpush.msra.mxu0 0.0
    %619 = vmatpush.msra.mxu0 0.0
    %620 = vmatpush.msra.mxu0 0.0
    %621 = vmatpush.msra.mxu0 0.0
    %622 = vmatpush.msra.mxu0 0.0
    %623 = vmatpush.msra.mxu0 0.0
    %v624 = vand.u32 %v486, 4294901760
    %625 = vmatpush.msra.mxu0 %v624
    %v626 = vand.u32 %v485, 4294901760
    %627 = vmatpush.msra.mxu0 %v626
    %v628 = vand.u32 %v484, 4294901760
    %629 = vmatpush.msra.mxu0 %v628
    %v630 = vand.u32 %v483, 4294901760
    %631 = vmatpush.msra.mxu0 %v630
    %v632 = vand.u32 %v490, 4294901760
    %v633 = vsub.f32 %v490, %v632
    %v634 = vand.u32 %v633, 4294901760
    %635 = vmatmul.f32.gmra.mxu0 %v634
    %v636 = vpop.f32.mrf.mxu0
    %v637 = vadd.f32 %v605, %v636
    %v638 = vand.u32 %v493, 4294901760
    %v639 = vsub.f32 %v493, %v638
    %v640 = vand.u32 %v639, 4294901760
    %641 = vmatmul.f32.gmra.mxu0 %v640
    %v642 = vpop.f32.mrf.mxu0
    %v643 = vadd.f32 %v610, %v642
    %644 = vdwg.mxu0
    %645 = vmatpush.msra.mxu0 0.0
    %646 = vmatpush.msra.mxu0 0.0
    %647 = vmatpush.msra.mxu0 0.0
    %648 = vmatpush.msra.mxu0 0.0
    %649 = vmatpush.msra.mxu0 0.0
    %650 = vmatpush.msra.mxu0 0.0
    %651 = vmatpush.msra.mxu0 0.0
    %652 = vmatpush.msra.mxu0 0.0
    %653 = vmatpush.msra.mxu0 0.0
    %654 = vmatpush.msra.mxu0 0.0
    %655 = vmatpush.msra.mxu0 0.0
    %656 = vmatpush.msra.mxu0 0.0
    %v657 = vand.u32 %v486, 4294901760
    %v658 = vsub.f32 %v486, %v657
    %v659 = vand.u32 %v658, 4294901760
    %660 = vmatpush.msra.mxu0 %v659
    %v661 = vand.u32 %v485, 4294901760
    %v662 = vsub.f32 %v485, %v661
    %v663 = vand.u32 %v662, 4294901760
    %664 = vmatpush.msra.mxu0 %v663
    %v665 = vand.u32 %v484, 4294901760
    %v666 = vsub.f32 %v484, %v665
    %v667 = vand.u32 %v666, 4294901760
    %668 = vmatpush.msra.mxu0 %v667
    %v669 = vand.u32 %v483, 4294901760
    %v670 = vsub.f32 %v483, %v669
    %v671 = vand.u32 %v670, 4294901760
    %672 = vmatpush.msra.mxu0 %v671
    %v673 = vand.u32 %v490, 4294901760
    %674 = vmatmul.f32.gmra.mxu0 %v673
    %v675 = vpop.f32.mrf.mxu0
    %v676 = vadd.f32 %v637, %v675
    %v677 = vand.u32 %v493, 4294901760
    %678 = vmatmul.f32.gmra.mxu0 %v677
    %v679 = vpop.f32.mrf.mxu0
    %v680 = vadd.f32 %v643, %v679
    %681 = vdwg.mxu0
    %682 = vmatpush.msra.mxu0 0.0
    %683 = vmatpush.msra.mxu0 0.0
    %684 = vmatpush.msra.mxu0 0.0
    %685 = vmatpush.msra.mxu0 0.0
    %686 = vmatpush.msra.mxu0 0.0
    %687 = vmatpush.msra.mxu0 0.0
    %688 = vmatpush.msra.mxu0 0.0
    %689 = vmatpush.msra.mxu0 0.0
    %690 = vmatpush.msra.mxu0 0.0
    %691 = vmatpush.msra.mxu0 0.0
    %692 = vmatpush.msra.mxu0 0.0
    %693 = vmatpush.msra.mxu0 0.0
    %v694 = vand.u32 %v486, 4294901760
    %695 = vmatpush.msra.mxu0 %v694
    %v696 = vand.u32 %v485, 4294901760
    %697 = vmatpush.msra.mxu0 %v696
    %v698 = vand.u32 %v484, 4294901760
    %699 = vmatpush.msra.mxu0 %v698
    %v700 = vand.u32 %v483, 4294901760
    %701 = vmatpush.msra.mxu0 %v700
    %v702 = vand.u32 %v490, 4294901760
    %703 = vmatmul.f32.gmra.mxu0 %v702
    %v704 = vpop.f32.mrf.mxu0
    %v705 = vadd.f32 %v676, %v704
    %v706 = vand.u32 %v493, 4294901760
    %707 = vmatmul.f32.gmra.mxu0 %v706
    %v708 = vpop.f32.mrf.mxu0
    %v709 = vadd.f32 %v680, %v708
    %710 = vdwg.mxu0
    %v711 = vld [vmem:[%s2 + $0x1a0] sm:$0xff]
    %v712 = vld [vmem:[%s2 + $0x1a8] sm:$0xff]
    %vm713 = vcmask 64512
    %v715 = vsel %vm713, %v255, 0
    %v718 = vsel %vm713, %v259, 0
    %v721 = vsel %vm713, %v477, 0
    %v724 = vsel %vm713, %v481, 0
    %726 = vmatpush.xpose.msra.mxu0 0.0
    %727 = vmatpush.xpose.msra.mxu0 0.0
    %728 = vmatpush.xpose.msra.mxu0 0.0
    %729 = vmatpush.xpose.msra.mxu0 0.0
    %730 = vmatpush.xpose.msra.mxu0 0.0
    %731 = vmatpush.xpose.msra.mxu0 0.0
    %732 = vmatpush.xpose.msra.mxu0 0.0
    %733 = vmatpush.xpose.msra.mxu0 0.0
    %734 = vmatpush.xpose.msra.mxu0 0.0
    %735 = vmatpush.xpose.msra.mxu0 0.0
    %736 = vmatpush.xpose.msra.mxu0 0.0
    %737 = vmatpush.xpose.msra.mxu0 0.0
    %738 = vmatpush.xpose.msra.mxu0 0.0
    %739 = vmatpush.xpose.msra.mxu0 0.0
    %v740 = vand.u32 %v724, 4294901760
    %741 = vmatpush.xpose.msra.mxu0 %v740
    %v742 = vand.u32 %v721, 4294901760
    %743 = vmatpush.xpose.msra.mxu0 %v742
    %v744 = vand.u32 %v715, 4294901760
    %v745 = vsub.f32 %v715, %v744
    %v746 = vand.u32 %v745, 4294901760
    %v747 = vsub.f32 %v745, %v746
    %v748 = vand.u32 %v747, 4294901760
    %749 = vmatmul.f32.gmra.mxu0 %v748
    %v750 = vpop.f32.mrf.mxu0
    %v751 = vadd.f32 %v711, %v750
    %v752 = vand.u32 %v718, 4294901760
    %v753 = vsub.f32 %v718, %v752
    %v754 = vand.u32 %v753, 4294901760
    %v755 = vsub.f32 %v753, %v754
    %v756 = vand.u32 %v755, 4294901760
    %757 = vmatmul.f32.gmra.mxu0 %v756
    %v758 = vpop.f32.mrf.mxu0
    %v759 = vadd.f32 %v712, %v758
    %760 = vdwg.mxu0
    %761 = vmatpush.xpose.msra.mxu0 0.0
    %762 = vmatpush.xpose.msra.mxu0 0.0
    %763 = vmatpush.xpose.msra.mxu0 0.0
    %764 = vmatpush.xpose.msra.mxu0 0.0
    %765 = vmatpush.xpose.msra.mxu0 0.0
    %766 = vmatpush.xpose.msra.mxu0 0.0
    %767 = vmatpush.xpose.msra.mxu0 0.0
    %768 = vmatpush.xpose.msra.mxu0 0.0
    %769 = vmatpush.xpose.msra.mxu0 0.0
    %770 = vmatpush.xpose.msra.mxu0 0.0
    %771 = vmatpush.xpose.msra.mxu0 0.0
    %772 = vmatpush.xpose.msra.mxu0 0.0
    %773 = vmatpush.xpose.msra.mxu0 0.0
    %774 = vmatpush.xpose.msra.mxu0 0.0
    %v775 = vand.u32 %v724, 4294901760
    %v776 = vsub.f32 %v724, %v775
    %v777 = vand.u32 %v776, 4294901760
    %v778 = vsub.f32 %v776, %v777
    %v779 = vand.u32 %v778, 4294901760
    %780 = vmatpush.xpose.msra.mxu0 %v779
    %v781 = vand.u32 %v721, 4294901760
    %v782 = vsub.f32 %v721, %v781
    %v783 = vand.u32 %v782, 4294901760
    %v784 = vsub.f32 %v782, %v783
    %v785 = vand.u32 %v784, 4294901760
    %786 = vmatpush.xpose.msra.mxu0 %v785
    %v787 = vand.u32 %v715, 4294901760
    %788 = vmatmul.f32.gmra.mxu0 %v787
    %v789 = vpop.f32.mrf.mxu0
    %v790 = vadd.f32 %v751, %v789
    %v791 = vand.u32 %v718, 4294901760
    %792 = vmatmul.f32.gmra.mxu0 %v791
    %v793 = vpop.f32.mrf.mxu0
    %v794 = vadd.f32 %v759, %v793
    %795 = vdwg.mxu0
    %796 = vmatpush.xpose.msra.mxu0 0.0
    %797 = vmatpush.xpose.msra.mxu0 0.0
    %798 = vmatpush.xpose.msra.mxu0 0.0
    %799 = vmatpush.xpose.msra.mxu0 0.0
    %800 = vmatpush.xpose.msra.mxu0 0.0
    %801 = vmatpush.xpose.msra.mxu0 0.0
    %802 = vmatpush.xpose.msra.mxu0 0.0
    %803 = vmatpush.xpose.msra.mxu0 0.0
    %804 = vmatpush.xpose.msra.mxu0 0.0
    %805 = vmatpush.xpose.msra.mxu0 0.0
    %806 = vmatpush.xpose.msra.mxu0 0.0
    %807 = vmatpush.xpose.msra.mxu0 0.0
    %808 = vmatpush.xpose.msra.mxu0 0.0
    %809 = vmatpush.xpose.msra.mxu0 0.0
    %v810 = vand.u32 %v724, 4294901760
    %v811 = vsub.f32 %v724, %v810
    %812 = vmatpush.xpose.msra.mxu0 %v811
    %v813 = vand.u32 %v721, 4294901760
    %v814 = vsub.f32 %v721, %v813
    %815 = vmatpush.xpose.msra.mxu0 %v814
    %v816 = vand.u32 %v715, 4294901760
    %v817 = vsub.f32 %v715, %v816
    %818 = vmatmul.f32.gmra.mxu0 %v817
    %v819 = vpop.f32.mrf.mxu0
    %v820 = vadd.f32 %v790, %v819
    %v821 = vand.u32 %v718, 4294901760
    %v822 = vsub.f32 %v718, %v821
    %823 = vmatmul.f32.gmra.mxu0 %v822
    %v824 = vpop.f32.mrf.mxu0
    %v825 = vadd.f32 %v794, %v824
    %826 = vdwg.mxu0
    %827 = vmatpush.xpose.msra.mxu0 0.0
    %828 = vmatpush.xpose.msra.mxu0 0.0
    %829 = vmatpush.xpose.msra.mxu0 0.0
    %830 = vmatpush.xpose.msra.mxu0 0.0
    %831 = vmatpush.xpose.msra.mxu0 0.0
    %832 = vmatpush.xpose.msra.mxu0 0.0
    %833 = vmatpush.xpose.msra.mxu0 0.0
    %834 = vmatpush.xpose.msra.mxu0 0.0
    %835 = vmatpush.xpose.msra.mxu0 0.0
    %836 = vmatpush.xpose.msra.mxu0 0.0
    %837 = vmatpush.xpose.msra.mxu0 0.0
    %838 = vmatpush.xpose.msra.mxu0 0.0
    %839 = vmatpush.xpose.msra.mxu0 0.0
    %840 = vmatpush.xpose.msra.mxu0 0.0
    %v841 = vand.u32 %v724, 4294901760
    %842 = vmatpush.xpose.msra.mxu0 %v841
    %v843 = vand.u32 %v721, 4294901760
    %844 = vmatpush.xpose.msra.mxu0 %v843
    %v845 = vand.u32 %v715, 4294901760
    %v846 = vsub.f32 %v715, %v845
    %v847 = vand.u32 %v846, 4294901760
    %848 = vmatmul.f32.gmra.mxu0 %v847
    %v849 = vpop.f32.mrf.mxu0
    %v850 = vadd.f32 %v820, %v849
    %v851 = vand.u32 %v718, 4294901760
    %v852 = vsub.f32 %v718, %v851
    %v853 = vand.u32 %v852, 4294901760
    %854 = vmatmul.f32.gmra.mxu0 %v853
    %v855 = vpop.f32.mrf.mxu0
    %v856 = vadd.f32 %v825, %v855
    %857 = vdwg.mxu0
    %858 = vmatpush.xpose.msra.mxu0 0.0
    %859 = vmatpush.xpose.msra.mxu0 0.0
    %860 = vmatpush.xpose.msra.mxu0 0.0
    %861 = vmatpush.xpose.msra.mxu0 0.0
    %862 = vmatpush.xpose.msra.mxu0 0.0
    %863 = vmatpush.xpose.msra.mxu0 0.0
    %864 = vmatpush.xpose.msra.mxu0 0.0
    %865 = vmatpush.xpose.msra.mxu0 0.0
    %866 = vmatpush.xpose.msra.mxu0 0.0
    %867 = vmatpush.xpose.msra.mxu0 0.0
    %868 = vmatpush.xpose.msra.mxu0 0.0
    %869 = vmatpush.xpose.msra.mxu0 0.0
    %870 = vmatpush.xpose.msra.mxu0 0.0
    %871 = vmatpush.xpose.msra.mxu0 0.0
    %v872 = vand.u32 %v724, 4294901760
    %v873 = vsub.f32 %v724, %v872
    %v874 = vand.u32 %v873, 4294901760
    %875 = vmatpush.xpose.msra.mxu0 %v874
    %v876 = vand.u32 %v721, 4294901760
    %v877 = vsub.f32 %v721, %v876
    %v878 = vand.u32 %v877, 4294901760
    %879 = vmatpush.xpose.msra.mxu0 %v878
    %v880 = vand.u32 %v715, 4294901760
    %881 = vmatmul.f32.gmra.mxu0 %v880
    %v882 = vpop.f32.mrf.mxu0
    %v883 = vadd.f32 %v850, %v882
    %v884 = vand.u32 %v718, 4294901760
    %885 = vmatmul.f32.gmra.mxu0 %v884
    %v886 = vpop.f32.mrf.mxu0
    %v887 = vadd.f32 %v856, %v886
    %888 = vdwg.mxu0
    %889 = vmatpush.xpose.msra.mxu0 0.0
    %890 = vmatpush.xpose.msra.mxu0 0.0
    %891 = vmatpush.xpose.msra.mxu0 0.0
    %892 = vmatpush.xpose.msra.mxu0 0.0
    %893 = vmatpush.xpose.msra.mxu0 0.0
    %894 = vmatpush.xpose.msra.mxu0 0.0
    %895 = vmatpush.xpose.msra.mxu0 0.0
    %896 = vmatpush.xpose.msra.mxu0 0.0
    %897 = vmatpush.xpose.msra.mxu0 0.0
    %898 = vmatpush.xpose.msra.mxu0 0.0
    %899 = vmatpush.xpose.msra.mxu0 0.0
    %900 = vmatpush.xpose.msra.mxu0 0.0
    %901 = vmatpush.xpose.msra.mxu0 0.0
    %902 = vmatpush.xpose.msra.mxu0 0.0
    %v903 = vand.u32 %v724, 4294901760
    %904 = vmatpush.xpose.msra.mxu0 %v903
    %v905 = vand.u32 %v721, 4294901760
    %906 = vmatpush.xpose.msra.mxu0 %v905
    %v907 = vand.u32 %v715, 4294901760
    %908 = vmatmul.f32.gmra.mxu0 %v907
    %v909 = vpop.f32.mrf.mxu0
    %v910 = vadd.f32 %v883, %v909
    %v911 = vand.u32 %v718, 4294901760
    %912 = vmatmul.f32.gmra.mxu0 %v911
    %v913 = vpop.f32.mrf.mxu0
    %v914 = vadd.f32 %v887, %v913
    %915 = vdwg.mxu0
    %vm916 = vcmask 130048
    %v917 = vsel %vm916, %v910, -inf
    %918 = vmax.xlane.f32.xlu0 %v917
    %v919 = vpop.xlane.xlu0 %918
    %v920 = vsel %vm916, %v914, -inf
    %921 = vmax.xlane.f32.xlu0 %v920
    %v922 = vpop.xlane.xlu0 %921
    %v923 = vsub.f32 %v910, %v919
    %v924 = vsub.f32 %v914, %v922
    %v925 = vmul.f32 %v923, 1.442695
    %v926 = vpow.pop %v925
    %v927 = vmul.f32 %v924, 1.442695
    %v928 = vpow.pop %v927
    %v929 = vsel %vm916, %v926, 0.0
    %930 = vadd.xlane.f32.xlu0 %v929
    %v931 = vpop.xlane.xlu0 %930
    %v932 = vsel %vm916, %v928, 0.0
    %933 = vadd.xlane.f32.xlu0 %v932
    %v934 = vpop.xlane.xlu0 %933
    %v935 = vrcp.pop %v931
    %v936 = vmul.f32 %v931, %v935
    %v937 = vsub.f32 1.0, %v936
    %v938 = vmul.f32 %v935, %v937
    %v939 = vadd.f32 %v935, %v938
    %vm940 = vweird.f32 %v931
    %vm941 = vweird.f32 %v935
    %vm942 = vmor %vm940, %vm941
    %v943 = vsel %vm942, %v935, %v939
    %v944 = vand.u32 2147483647, %v931
    %vm945 = vcmp.eq.f32.partialorder %v944, 8.507059e+37
    %v946 = vand.u32 %v931, 2147483648
    %v947 = vor.u32 1.1754944e-38, %v946
    %v948 = vsel %vm945, %v947, %v943
    %v949 = vmul.f32 %v926, %v948
    %v950 = vrcp.pop %v934
    %v951 = vmul.f32 %v934, %v950
    %v952 = vsub.f32 1.0, %v951
    %v953 = vmul.f32 %v950, %v952
    %v954 = vadd.f32 %v950, %v953
    %vm955 = vweird.f32 %v934
    %vm956 = vweird.f32 %v950
    %vm957 = vmor %vm955, %vm956
    %v958 = vsel %vm957, %v950, %v954
    %v959 = vand.u32 2147483647, %v934
    %vm960 = vcmp.eq.f32.partialorder %v959, 8.507059e+37
    %v961 = vand.u32 %v934, 2147483648
    %v962 = vor.u32 1.1754944e-38, %v961
    %v963 = vsel %vm960, %v962, %v958
    %v964 = vmul.f32 %v928, %v963
    %v965 = vperm.slane %v29, 0
    %v966 = vmul.f32 %v705, %v965
    %v967 = vmul.f32 %v709, %v965
    %968 = vrot.lane.b32.xlu0 %v255, 120
    %v969 = vpop.permute.xlu0 %968
    %970 = vrot.lane.b32.xlu0 %v259, 120
    %v971 = vpop.permute.xlu0 %970
    %972 = vrot.lane.b32.xlu0 %v477, 120
    %v973 = vpop.permute.xlu0 %972
    %974 = vrot.lane.b32.xlu0 %v481, 120
    %v975 = vpop.permute.xlu0 %974
    %v976 = vsel %vm713, %v969, 0
    %v978 = vsel %vm713, %v971, 0
    %v980 = vsel %vm713, %v973, 0
    %v982 = vsel %vm713, %v975, 0
    %984 = vmatpush.xpose.msra.mxu0 0.0
    %985 = vmatpush.xpose.msra.mxu0 0.0
    %986 = vmatpush.xpose.msra.mxu0 0.0
    %987 = vmatpush.xpose.msra.mxu0 0.0
    %988 = vmatpush.xpose.msra.mxu0 0.0
    %989 = vmatpush.xpose.msra.mxu0 0.0
    %990 = vmatpush.xpose.msra.mxu0 0.0
    %991 = vmatpush.xpose.msra.mxu0 0.0
    %992 = vmatpush.xpose.msra.mxu0 0.0
    %993 = vmatpush.xpose.msra.mxu0 0.0
    %994 = vmatpush.xpose.msra.mxu0 0.0
    %995 = vmatpush.xpose.msra.mxu0 0.0
    %996 = vmatpush.xpose.msra.mxu0 0.0
    %997 = vmatpush.xpose.msra.mxu0 0.0
    %v998 = vand.u32 %v982, 4294901760
    %999 = vmatpush.xpose.msra.mxu0 %v998
    %v1000 = vand.u32 %v980, 4294901760
    %1001 = vmatpush.xpose.msra.mxu0 %v1000
    %v1002 = vand.u32 %v976, 4294901760
    %v1003 = vsub.f32 %v976, %v1002
    %v1004 = vand.u32 %v1003, 4294901760
    %v1005 = vsub.f32 %v1003, %v1004
    %v1006 = vand.u32 %v1005, 4294901760
    %1007 = vmatmul.f32.gmra.mxu0 %v1006
    %v1008 = vpop.f32.mrf.mxu0
    %v1009 = vadd.f32 %v711, %v1008
    %v1010 = vand.u32 %v978, 4294901760
    %v1011 = vsub.f32 %v978, %v1010
    %v1012 = vand.u32 %v1011, 4294901760
    %v1013 = vsub.f32 %v1011, %v1012
    %v1014 = vand.u32 %v1013, 4294901760
    %1015 = vmatmul.f32.gmra.mxu0 %v1014
    %v1016 = vpop.f32.mrf.mxu0
    %v1017 = vadd.f32 %v712, %v1016
    %1018 = vdwg.mxu0
    %1019 = vmatpush.xpose.msra.mxu0 0.0
    %1020 = vmatpush.xpose.msra.mxu0 0.0
    %1021 = vmatpush.xpose.msra.mxu0 0.0
    %1022 = vmatpush.xpose.msra.mxu0 0.0
    %1023 = vmatpush.xpose.msra.mxu0 0.0
    %1024 = vmatpush.xpose.msra.mxu0 0.0
    %1025 = vmatpush.xpose.msra.mxu0 0.0
    %1026 = vmatpush.xpose.msra.mxu0 0.0
    %1027 = vmatpush.xpose.msra.mxu0 0.0
    %1028 = vmatpush.xpose.msra.mxu0 0.0
    %1029 = vmatpush.xpose.msra.mxu0 0.0
    %1030 = vmatpush.xpose.msra.mxu0 0.0
    %1031 = vmatpush.xpose.msra.mxu0 0.0
    %1032 = vmatpush.xpose.msra.mxu0 0.0
    %v1033 = vand.u32 %v982, 4294901760
    %v1034 = vsub.f32 %v982, %v1033
    %v1035 = vand.u32 %v1034, 4294901760
    %v1036 = vsub.f32 %v1034, %v1035
    %v1037 = vand.u32 %v1036, 4294901760
    %1038 = vmatpush.xpose.msra.mxu0 %v1037
    %v1039 = vand.u32 %v980, 4294901760
    %v1040 = vsub.f32 %v980, %v1039
    %v1041 = vand.u32 %v1040, 4294901760
    %v1042 = vsub.f32 %v1040, %v1041
    %v1043 = vand.u32 %v1042, 4294901760
    %1044 = vmatpush.xpose.msra.mxu0 %v1043
    %v1045 = vand.u32 %v976, 4294901760
    %1046 = vmatmul.f32.gmra.mxu0 %v1045
    %v1047 = vpop.f32.mrf.mxu0
    %v1048 = vadd.f32 %v1009, %v1047
    %v1049 = vand.u32 %v978, 4294901760
    %1050 = vmatmul.f32.gmra.mxu0 %v1049
    %v1051 = vpop.f32.mrf.mxu0
    %v1052 = vadd.f32 %v1017, %v1051
    %1053 = vdwg.mxu0
    %1054 = vmatpush.xpose.msra.mxu0 0.0
    %1055 = vmatpush.xpose.msra.mxu0 0.0
    %1056 = vmatpush.xpose.msra.mxu0 0.0
    %1057 = vmatpush.xpose.msra.mxu0 0.0
    %1058 = vmatpush.xpose.msra.mxu0 0.0
    %1059 = vmatpush.xpose.msra.mxu0 0.0
    %1060 = vmatpush.xpose.msra.mxu0 0.0
    %1061 = vmatpush.xpose.msra.mxu0 0.0
    %1062 = vmatpush.xpose.msra.mxu0 0.0
    %1063 = vmatpush.xpose.msra.mxu0 0.0
    %1064 = vmatpush.xpose.msra.mxu0 0.0
    %1065 = vmatpush.xpose.msra.mxu0 0.0
    %1066 = vmatpush.xpose.msra.mxu0 0.0
    %1067 = vmatpush.xpose.msra.mxu0 0.0
    %v1068 = vand.u32 %v982, 4294901760
    %v1069 = vsub.f32 %v982, %v1068
    %1070 = vmatpush.xpose.msra.mxu0 %v1069
    %v1071 = vand.u32 %v980, 4294901760
    %v1072 = vsub.f32 %v980, %v1071
    %1073 = vmatpush.xpose.msra.mxu0 %v1072
    %v1074 = vand.u32 %v976, 4294901760
    %v1075 = vsub.f32 %v976, %v1074
    %1076 = vmatmul.f32.gmra.mxu0 %v1075
    %v1077 = vpop.f32.mrf.mxu0
    %v1078 = vadd.f32 %v1048, %v1077
    %v1079 = vand.u32 %v978, 4294901760
    %v1080 = vsub.f32 %v978, %v1079
    %1081 = vmatmul.f32.gmra.mxu0 %v1080
    %v1082 = vpop.f32.mrf.mxu0
    %v1083 = vadd.f32 %v1052, %v1082
    %1084 = vdwg.mxu0
    %1085 = vmatpush.xpose.msra.mxu0 0.0
    %1086 = vmatpush.xpose.msra.mxu0 0.0
    %1087 = vmatpush.xpose.msra.mxu0 0.0
    %1088 = vmatpush.xpose.msra.mxu0 0.0
    %1089 = vmatpush.xpose.msra.mxu0 0.0
    %1090 = vmatpush.xpose.msra.mxu0 0.0
    %1091 = vmatpush.xpose.msra.mxu0 0.0
    %1092 = vmatpush.xpose.msra.mxu0 0.0
    %1093 = vmatpush.xpose.msra.mxu0 0.0
    %1094 = vmatpush.xpose.msra.mxu0 0.0
    %1095 = vmatpush.xpose.msra.mxu0 0.0
    %1096 = vmatpush.xpose.msra.mxu0 0.0
    %1097 = vmatpush.xpose.msra.mxu0 0.0
    %1098 = vmatpush.xpose.msra.mxu0 0.0
    %v1099 = vand.u32 %v982, 4294901760
    %1100 = vmatpush.xpose.msra.mxu0 %v1099
    %v1101 = vand.u32 %v980, 4294901760
    %1102 = vmatpush.xpose.msra.mxu0 %v1101
    %v1103 = vand.u32 %v976, 4294901760
    %v1104 = vsub.f32 %v976, %v1103
    %v1105 = vand.u32 %v1104, 4294901760
    %1106 = vmatmul.f32.gmra.mxu0 %v1105
    %v1107 = vpop.f32.mrf.mxu0
    %v1108 = vadd.f32 %v1078, %v1107
    %v1109 = vand.u32 %v978, 4294901760
    %v1110 = vsub.f32 %v978, %v1109
    %v1111 = vand.u32 %v1110, 4294901760
    %1112 = vmatmul.f32.gmra.mxu0 %v1111
    %v1113 = vpop.f32.mrf.mxu0
    %v1114 = vadd.f32 %v1083, %v1113
    %1115 = vdwg.mxu0
    %1116 = vmatpush.xpose.msra.mxu0 0.0
    %1117 = vmatpush.xpose.msra.mxu0 0.0
    %1118 = vmatpush.xpose.msra.mxu0 0.0
    %1119 = vmatpush.xpose.msra.mxu0 0.0
    %1120 = vmatpush.xpose.msra.mxu0 0.0
    %1121 = vmatpush.xpose.msra.mxu0 0.0
    %1122 = vmatpush.xpose.msra.mxu0 0.0
    %1123 = vmatpush.xpose.msra.mxu0 0.0
    %1124 = vmatpush.xpose.msra.mxu0 0.0
    %1125 = vmatpush.xpose.msra.mxu0 0.0
    %1126 = vmatpush.xpose.msra.mxu0 0.0
    %1127 = vmatpush.xpose.msra.mxu0 0.0
    %1128 = vmatpush.xpose.msra.mxu0 0.0
    %1129 = vmatpush.xpose.msra.mxu0 0.0
    %v1130 = vand.u32 %v982, 4294901760
    %v1131 = vsub.f32 %v982, %v1130
    %v1132 = vand.u32 %v1131, 4294901760
    %1133 = vmatpush.xpose.msra.mxu0 %v1132
    %v1134 = vand.u32 %v980, 4294901760
    %v1135 = vsub.f32 %v980, %v1134
    %v1136 = vand.u32 %v1135, 4294901760
    %1137 = vmatpush.xpose.msra.mxu0 %v1136
    %v1138 = vand.u32 %v976, 4294901760
    %1139 = vmatmul.f32.gmra.mxu0 %v1138
    %v1140 = vpop.f32.mrf.mxu0
    %v1141 = vadd.f32 %v1108, %v1140
    %v1142 = vand.u32 %v978, 4294901760
    %1143 = vmatmul.f32.gmra.mxu0 %v1142
    %v1144 = vpop.f32.mrf.mxu0
    %v1145 = vadd.f32 %v1114, %v1144
    %1146 = vdwg.mxu0
    %1147 = vmatpush.xpose.msra.mxu0 0.0
    %1148 = vmatpush.xpose.msra.mxu0 0.0
    %1149 = vmatpush.xpose.msra.mxu0 0.0
    %1150 = vmatpush.xpose.msra.mxu0 0.0
    %1151 = vmatpush.xpose.msra.mxu0 0.0
    %1152 = vmatpush.xpose.msra.mxu0 0.0
    %1153 = vmatpush.xpose.msra.mxu0 0.0
    %1154 = vmatpush.xpose.msra.mxu0 0.0
    %1155 = vmatpush.xpose.msra.mxu0 0.0
    %1156 = vmatpush.xpose.msra.mxu0 0.0
    %1157 = vmatpush.xpose.msra.mxu0 0.0
    %1158 = vmatpush.xpose.msra.mxu0 0.0
    %1159 = vmatpush.xpose.msra.mxu0 0.0
    %1160 = vmatpush.xpose.msra.mxu0 0.0
    %v1161 = vand.u32 %v982, 4294901760
    %1162 = vmatpush.xpose.msra.mxu0 %v1161
    %v1163 = vand.u32 %v980, 4294901760
    %1164 = vmatpush.xpose.msra.mxu0 %v1163
    %v1165 = vand.u32 %v976, 4294901760
    %1166 = vmatmul.f32.gmra.mxu0 %v1165
    %v1167 = vpop.f32.mrf.mxu0
    %v1168 = vadd.f32 %v1141, %v1167
    %v1169 = vand.u32 %v978, 4294901760
    %1170 = vmatmul.f32.gmra.mxu0 %v1169
    %v1171 = vpop.f32.mrf.mxu0
    %v1172 = vadd.f32 %v1145, %v1171
    %1173 = vdwg.mxu0
    %v1174 = vsel %vm916, %v1168, -inf
    %1175 = vmax.xlane.f32.xlu0 %v1174
    %v1176 = vpop.xlane.xlu0 %1175
    %v1177 = vsel %vm916, %v1172, -inf
    %1178 = vmax.xlane.f32.xlu0 %v1177
    %v1179 = vpop.xlane.xlu0 %1178
    %v1180 = vsub.f32 %v1168, %v1176
    %v1181 = vsub.f32 %v1172, %v1179
    %v1182 = vmul.f32 %v1180, 1.442695
    %v1183 = vpow.pop %v1182
    %v1184 = vmul.f32 %v1181, 1.442695
    %v1185 = vpow.pop %v1184
    %v1186 = vsel %vm916, %v1183, 0.0
    %1187 = vadd.xlane.f32.xlu0 %v1186
    %v1188 = vpop.xlane.xlu0 %1187
    %v1189 = vsel %vm916, %v1185, 0.0
    %1190 = vadd.xlane.f32.xlu0 %v1189
    %v1191 = vpop.xlane.xlu0 %1190
    %v1192 = vrcp.pop %v1188
    %v1193 = vmul.f32 %v1188, %v1192
    %v1194 = vsub.f32 1.0, %v1193
    %v1195 = vmul.f32 %v1192, %v1194
    %v1196 = vadd.f32 %v1192, %v1195
    %vm1197 = vweird.f32 %v1188
    %vm1198 = vweird.f32 %v1192
    %vm1199 = vmor %vm1197, %vm1198
    %v1200 = vsel %vm1199, %v1192, %v1196
    %v1201 = vand.u32 2147483647, %v1188
    %vm1202 = vcmp.eq.f32.partialorder %v1201, 8.507059e+37
    %v1203 = vand.u32 %v1188, 2147483648
    %v1204 = vor.u32 1.1754944e-38, %v1203
    %v1205 = vsel %vm1202, %v1204, %v1200
    %v1206 = vmul.f32 %v1183, %v1205
    %v1207 = vrcp.pop %v1191
    %v1208 = vmul.f32 %v1191, %v1207
    %v1209 = vsub.f32 1.0, %v1208
    %v1210 = vmul.f32 %v1207, %v1209
    %v1211 = vadd.f32 %v1207, %v1210
    %vm1212 = vweird.f32 %v1191
    %vm1213 = vweird.f32 %v1207
    %vm1214 = vmor %vm1212, %vm1213
    %v1215 = vsel %vm1214, %v1207, %v1211
    %v1216 = vand.u32 2147483647, %v1191
    %vm1217 = vcmp.eq.f32.partialorder %v1216, 8.507059e+37
    %v1218 = vand.u32 %v1191, 2147483648
    %v1219 = vor.u32 1.1754944e-38, %v1218
    %v1220 = vsel %vm1217, %v1219, %v1215
    %v1221 = vmul.f32 %v1185, %v1220
    %v1222 = vperm.slane %v29, 1
    %v1223 = vmul.f32 %v705, %v1222
    %v1224 = vmul.f32 %v709, %v1222
    %v1226 = vsel %vm916, %v1206, 0
    %v1229 = vsel %vm916, %v1221, 0
    %1231 = vmatpush.msra.mxu0 0.0
    %1232 = vmatpush.msra.mxu0 0.0
    %1233 = vmatpush.msra.mxu0 0.0
    %1234 = vmatpush.msra.mxu0 0.0
    %1235 = vmatpush.msra.mxu0 0.0
    %1236 = vmatpush.msra.mxu0 0.0
    %1237 = vmatpush.msra.mxu0 0.0
    %1238 = vmatpush.msra.mxu0 0.0
    %1239 = vmatpush.msra.mxu0 0.0
    %1240 = vmatpush.msra.mxu0 0.0
    %1241 = vmatpush.msra.mxu0 0.0
    %1242 = vmatpush.msra.mxu0 0.0
    %1243 = vmatpush.msra.mxu0 0.0
    %1244 = vmatpush.msra.mxu0 0.0
    %v1245 = vand.u32 %v1224, 4294901760
    %1246 = vmatpush.msra.mxu0 %v1245
    %v1247 = vand.u32 %v1223, 4294901760
    %1248 = vmatpush.msra.mxu0 %v1247
    %v1249 = vand.u32 %v1226, 4294901760
    %v1250 = vsub.f32 %v1226, %v1249
    %v1251 = vand.u32 %v1250, 4294901760
    %v1252 = vsub.f32 %v1250, %v1251
    %v1253 = vand.u32 %v1252, 4294901760
    %1254 = vmatmul.f32.gmra.mxu0 %v1253
    %v1255 = vpop.f32.mrf.mxu0
    %v1256 = vadd.f32 0.0, %v1255
    %v1257 = vand.u32 %v1229, 4294901760
    %v1258 = vsub.f32 %v1229, %v1257
    %v1259 = vand.u32 %v1258, 4294901760
    %v1260 = vsub.f32 %v1258, %v1259
    %v1261 = vand.u32 %v1260, 4294901760
    %1262 = vmatmul.f32.gmra.mxu0 %v1261
    %v1263 = vpop.f32.mrf.mxu0
    %v1264 = vadd.f32 0.0, %v1263
    %1265 = vdwg.mxu0
    %1266 = vmatpush.msra.mxu0 0.0
    %1267 = vmatpush.msra.mxu0 0.0
    %1268 = vmatpush.msra.mxu0 0.0
    %1269 = vmatpush.msra.mxu0 0.0
    %1270 = vmatpush.msra.mxu0 0.0
    %1271 = vmatpush.msra.mxu0 0.0
    %1272 = vmatpush.msra.mxu0 0.0
    %1273 = vmatpush.msra.mxu0 0.0
    %1274 = vmatpush.msra.mxu0 0.0
    %1275 = vmatpush.msra.mxu0 0.0
    %1276 = vmatpush.msra.mxu0 0.0
    %1277 = vmatpush.msra.mxu0 0.0
    %1278 = vmatpush.msra.mxu0 0.0
    %1279 = vmatpush.msra.mxu0 0.0
    %v1280 = vand.u32 %v1224, 4294901760
    %v1281 = vsub.f32 %v1224, %v1280
    %v1282 = vand.u32 %v1281, 4294901760
    %v1283 = vsub.f32 %v1281, %v1282
    %v1284 = vand.u32 %v1283, 4294901760
    %1285 = vmatpush.msra.mxu0 %v1284
    %v1286 = vand.u32 %v1223, 4294901760
    %v1287 = vsub.f32 %v1223, %v1286
    %v1288 = vand.u32 %v1287, 4294901760
    %v1289 = vsub.f32 %v1287, %v1288
    %v1290 = vand.u32 %v1289, 4294901760
    %1291 = vmatpush.msra.mxu0 %v1290
    %v1292 = vand.u32 %v1226, 4294901760
    %1293 = vmatmul.f32.gmra.mxu0 %v1292
    %v1294 = vpop.f32.mrf.mxu0
    %v1295 = vadd.f32 %v1256, %v1294
    %v1296 = vand.u32 %v1229, 4294901760
    %1297 = vmatmul.f32.gmra.mxu0 %v1296
    %v1298 = vpop.f32.mrf.mxu0
    %v1299 = vadd.f32 %v1264, %v1298
    %1300 = vdwg.mxu0
    %1301 = vmatpush.msra.mxu0 0.0
    %1302 = vmatpush.msra.mxu0 0.0
    %1303 = vmatpush.msra.mxu0 0.0
    %1304 = vmatpush.msra.mxu0 0.0
    %1305 = vmatpush.msra.mxu0 0.0
    %1306 = vmatpush.msra.mxu0 0.0
    %1307 = vmatpush.msra.mxu0 0.0
    %1308 = vmatpush.msra.mxu0 0.0
    %1309 = vmatpush.msra.mxu0 0.0
    %1310 = vmatpush.msra.mxu0 0.0
    %1311 = vmatpush.msra.mxu0 0.0
    %1312 = vmatpush.msra.mxu0 0.0
    %1313 = vmatpush.msra.mxu0 0.0
    %1314 = vmatpush.msra.mxu0 0.0
    %v1315 = vand.u32 %v1224, 4294901760
    %v1316 = vsub.f32 %v1224, %v1315
    %1317 = vmatpush.msra.mxu0 %v1316
    %v1318 = vand.u32 %v1223, 4294901760
    %v1319 = vsub.f32 %v1223, %v1318
    %1320 = vmatpush.msra.mxu0 %v1319
    %v1321 = vand.u32 %v1226, 4294901760
    %v1322 = vsub.f32 %v1226, %v1321
    %1323 = vmatmul.f32.gmra.mxu0 %v1322
    %v1324 = vpop.f32.mrf.mxu0
    %v1325 = vadd.f32 %v1295, %v1324
    %v1326 = vand.u32 %v1229, 4294901760
    %v1327 = vsub.f32 %v1229, %v1326
    %1328 = vmatmul.f32.gmra.mxu0 %v1327
    %v1329 = vpop.f32.mrf.mxu0
    %v1330 = vadd.f32 %v1299, %v1329
    %1331 = vdwg.mxu0
    %1332 = vmatpush.msra.mxu0 0.0
    %1333 = vmatpush.msra.mxu0 0.0
    %1334 = vmatpush.msra.mxu0 0.0
    %1335 = vmatpush.msra.mxu0 0.0
    %1336 = vmatpush.msra.mxu0 0.0
    %1337 = vmatpush.msra.mxu0 0.0
    %1338 = vmatpush.msra.mxu0 0.0
    %1339 = vmatpush.msra.mxu0 0.0
    %1340 = vmatpush.msra.mxu0 0.0
    %1341 = vmatpush.msra.mxu0 0.0
    %1342 = vmatpush.msra.mxu0 0.0
    %1343 = vmatpush.msra.mxu0 0.0
    %1344 = vmatpush.msra.mxu0 0.0
    %1345 = vmatpush.msra.mxu0 0.0
    %v1346 = vand.u32 %v1224, 4294901760
    %1347 = vmatpush.msra.mxu0 %v1346
    %v1348 = vand.u32 %v1223, 4294901760
    %1349 = vmatpush.msra.mxu0 %v1348
    %v1350 = vand.u32 %v1226, 4294901760
    %v1351 = vsub.f32 %v1226, %v1350
    %v1352 = vand.u32 %v1351, 4294901760
    %1353 = vmatmul.f32.gmra.mxu0 %v1352
    %v1354 = vpop.f32.mrf.mxu0
    %v1355 = vadd.f32 %v1325, %v1354
    %v1356 = vand.u32 %v1229, 4294901760
    %v1357 = vsub.f32 %v1229, %v1356
    %v1358 = vand.u32 %v1357, 4294901760
    %1359 = vmatmul.f32.gmra.mxu0 %v1358
    %v1360 = vpop.f32.mrf.mxu0
    %v1361 = vadd.f32 %v1330, %v1360
    %1362 = vdwg.mxu0
    %1363 = vmatpush.msra.mxu0 0.0
    %1364 = vmatpush.msra.mxu0 0.0
    %1365 = vmatpush.msra.mxu0 0.0
    %1366 = vmatpush.msra.mxu0 0.0
    %1367 = vmatpush.msra.mxu0 0.0
    %1368 = vmatpush.msra.mxu0 0.0
    %1369 = vmatpush.msra.mxu0 0.0
    %1370 = vmatpush.msra.mxu0 0.0
    %1371 = vmatpush.msra.mxu0 0.0
    %1372 = vmatpush.msra.mxu0 0.0
    %1373 = vmatpush.msra.mxu0 0.0
    %1374 = vmatpush.msra.mxu0 0.0
    %1375 = vmatpush.msra.mxu0 0.0
    %1376 = vmatpush.msra.mxu0 0.0
    %v1377 = vand.u32 %v1224, 4294901760
    %v1378 = vsub.f32 %v1224, %v1377
    %v1379 = vand.u32 %v1378, 4294901760
    %1380 = vmatpush.msra.mxu0 %v1379
    %v1381 = vand.u32 %v1223, 4294901760
    %v1382 = vsub.f32 %v1223, %v1381
    %v1383 = vand.u32 %v1382, 4294901760
    %1384 = vmatpush.msra.mxu0 %v1383
    %v1385 = vand.u32 %v1226, 4294901760
    %1386 = vmatmul.f32.gmra.mxu0 %v1385
    %v1387 = vpop.f32.mrf.mxu0
    %v1388 = vadd.f32 %v1355, %v1387
    %v1389 = vand.u32 %v1229, 4294901760
    %1390 = vmatmul.f32.gmra.mxu0 %v1389
    %v1391 = vpop.f32.mrf.mxu0
    %v1392 = vadd.f32 %v1361, %v1391
    %1393 = vdwg.mxu0
    %1394 = vmatpush.msra.mxu0 0.0
    %1395 = vmatpush.msra.mxu0 0.0
    %1396 = vmatpush.msra.mxu0 0.0
    %1397 = vmatpush.msra.mxu0 0.0
    %1398 = vmatpush.msra.mxu0 0.0
    %1399 = vmatpush.msra.mxu0 0.0
    %1400 = vmatpush.msra.mxu0 0.0
    %1401 = vmatpush.msra.mxu0 0.0
    %1402 = vmatpush.msra.mxu0 0.0
    %1403 = vmatpush.msra.mxu0 0.0
    %1404 = vmatpush.msra.mxu0 0.0
    %1405 = vmatpush.msra.mxu0 0.0
    %1406 = vmatpush.msra.mxu0 0.0
    %1407 = vmatpush.msra.mxu0 0.0
    %v1408 = vand.u32 %v1224, 4294901760
    %1409 = vmatpush.msra.mxu0 %v1408
    %v1410 = vand.u32 %v1223, 4294901760
    %1411 = vmatpush.msra.mxu0 %v1410
    %v1412 = vand.u32 %v1226, 4294901760
    %1413 = vmatmul.f32.gmra.mxu0 %v1412
    %v1414 = vpop.f32.mrf.mxu0
    %v1415 = vadd.f32 %v1388, %v1414
    %v1416 = vand.u32 %v1229, 4294901760
    %1417 = vmatmul.f32.gmra.mxu0 %v1416
    %v1418 = vpop.f32.mrf.mxu0
    %v1419 = vadd.f32 %v1392, %v1418
    %1420 = vdwg.mxu0
    %v1422 = vsel %vm916, %v949, 0
    %v1425 = vsel %vm916, %v964, 0
    %1427 = vmatpush.msra.mxu0 0.0
    %1428 = vmatpush.msra.mxu0 0.0
    %1429 = vmatpush.msra.mxu0 0.0
    %1430 = vmatpush.msra.mxu0 0.0
    %1431 = vmatpush.msra.mxu0 0.0
    %1432 = vmatpush.msra.mxu0 0.0
    %1433 = vmatpush.msra.mxu0 0.0
    %1434 = vmatpush.msra.mxu0 0.0
    %1435 = vmatpush.msra.mxu0 0.0
    %1436 = vmatpush.msra.mxu0 0.0
    %1437 = vmatpush.msra.mxu0 0.0
    %1438 = vmatpush.msra.mxu0 0.0
    %1439 = vmatpush.msra.mxu0 0.0
    %1440 = vmatpush.msra.mxu0 0.0
    %v1441 = vand.u32 %v967, 4294901760
    %1442 = vmatpush.msra.mxu0 %v1441
    %v1443 = vand.u32 %v966, 4294901760
    %1444 = vmatpush.msra.mxu0 %v1443
    %v1445 = vand.u32 %v1422, 4294901760
    %v1446 = vsub.f32 %v1422, %v1445
    %v1447 = vand.u32 %v1446, 4294901760
    %v1448 = vsub.f32 %v1446, %v1447
    %v1449 = vand.u32 %v1448, 4294901760
    %1450 = vmatmul.f32.gmra.mxu0 %v1449
    %v1451 = vpop.f32.mrf.mxu0
    %v1452 = vadd.f32 %v1415, %v1451
    %v1453 = vand.u32 %v1425, 4294901760
    %v1454 = vsub.f32 %v1425, %v1453
    %v1455 = vand.u32 %v1454, 4294901760
    %v1456 = vsub.f32 %v1454, %v1455
    %v1457 = vand.u32 %v1456, 4294901760
    %1458 = vmatmul.f32.gmra.mxu0 %v1457
    %v1459 = vpop.f32.mrf.mxu0
    %v1460 = vadd.f32 %v1419, %v1459
    %1461 = vdwg.mxu0
    %1462 = vmatpush.msra.mxu0 0.0
    %1463 = vmatpush.msra.mxu0 0.0
    %1464 = vmatpush.msra.mxu0 0.0
    %1465 = vmatpush.msra.mxu0 0.0
    %1466 = vmatpush.msra.mxu0 0.0
    %1467 = vmatpush.msra.mxu0 0.0
    %1468 = vmatpush.msra.mxu0 0.0
    %1469 = vmatpush.msra.mxu0 0.0
    %1470 = vmatpush.msra.mxu0 0.0
    %1471 = vmatpush.msra.mxu0 0.0
    %1472 = vmatpush.msra.mxu0 0.0
    %1473 = vmatpush.msra.mxu0 0.0
    %1474 = vmatpush.msra.mxu0 0.0
    %1475 = vmatpush.msra.mxu0 0.0
    %v1476 = vand.u32 %v967, 4294901760
    %v1477 = vsub.f32 %v967, %v1476
    %v1478 = vand.u32 %v1477, 4294901760
    %v1479 = vsub.f32 %v1477, %v1478
    %v1480 = vand.u32 %v1479, 4294901760
    %1481 = vmatpush.msra.mxu0 %v1480
    %v1482 = vand.u32 %v966, 4294901760
    %v1483 = vsub.f32 %v966, %v1482
    %v1484 = vand.u32 %v1483, 4294901760
    %v1485 = vsub.f32 %v1483, %v1484
    %v1486 = vand.u32 %v1485, 4294901760
    %1487 = vmatpush.msra.mxu0 %v1486
    %v1488 = vand.u32 %v1422, 4294901760
    %1489 = vmatmul.f32.gmra.mxu0 %v1488
    %v1490 = vpop.f32.mrf.mxu0
    %v1491 = vadd.f32 %v1452, %v1490
    %v1492 = vand.u32 %v1425, 4294901760
    %1493 = vmatmul.f32.gmra.mxu0 %v1492
    %v1494 = vpop.f32.mrf.mxu0
    %v1495 = vadd.f32 %v1460, %v1494
    %1496 = vdwg.mxu0
    %1497 = vmatpush.msra.mxu0 0.0
    %1498 = vmatpush.msra.mxu0 0.0
    %1499 = vmatpush.msra.mxu0 0.0
    %1500 = vmatpush.msra.mxu0 0.0
    %1501 = vmatpush.msra.mxu0 0.0
    %1502 = vmatpush.msra.mxu0 0.0
    %1503 = vmatpush.msra.mxu0 0.0
    %1504 = vmatpush.msra.mxu0 0.0
    %1505 = vmatpush.msra.mxu0 0.0
    %1506 = vmatpush.msra.mxu0 0.0
    %1507 = vmatpush.msra.mxu0 0.0
    %1508 = vmatpush.msra.mxu0 0.0
    %1509 = vmatpush.msra.mxu0 0.0
    %1510 = vmatpush.msra.mxu0 0.0
    %v1511 = vand.u32 %v967, 4294901760
    %v1512 = vsub.f32 %v967, %v1511
    %1513 = vmatpush.msra.mxu0 %v1512
    %v1514 = vand.u32 %v966, 4294901760
    %v1515 = vsub.f32 %v966, %v1514
    %1516 = vmatpush.msra.mxu0 %v1515
    %v1517 = vand.u32 %v1422, 4294901760
    %v1518 = vsub.f32 %v1422, %v1517
    %1519 = vmatmul.f32.gmra.mxu0 %v1518
    %v1520 = vpop.f32.mrf.mxu0
    %v1521 = vadd.f32 %v1491, %v1520
    %v1522 = vand.u32 %v1425, 4294901760
    %v1523 = vsub.f32 %v1425, %v1522
    %1524 = vmatmul.f32.gmra.mxu0 %v1523
    %v1525 = vpop.f32.mrf.mxu0
    %v1526 = vadd.f32 %v1495, %v1525
    %1527 = vdwg.mxu0
    %1528 = vmatpush.msra.mxu0 0.0
    %1529 = vmatpush.msra.mxu0 0.0
    %1530 = vmatpush.msra.mxu0 0.0
    %1531 = vmatpush.msra.mxu0 0.0
    %1532 = vmatpush.msra.mxu0 0.0
    %1533 = vmatpush.msra.mxu0 0.0
    %1534 = vmatpush.msra.mxu0 0.0
    %1535 = vmatpush.msra.mxu0 0.0
    %1536 = vmatpush.msra.mxu0 0.0
    %1537 = vmatpush.msra.mxu0 0.0
    %1538 = vmatpush.msra.mxu0 0.0
    %1539 = vmatpush.msra.mxu0 0.0
    %1540 = vmatpush.msra.mxu0 0.0
    %1541 = vmatpush.msra.mxu0 0.0
    %v1542 = vand.u32 %v967, 4294901760
    %1543 = vmatpush.msra.mxu0 %v1542
    %v1544 = vand.u32 %v966, 4294901760
    %1545 = vmatpush.msra.mxu0 %v1544
    %v1546 = vand.u32 %v1422, 4294901760
    %v1547 = vsub.f32 %v1422, %v1546
    %v1548 = vand.u32 %v1547, 4294901760
    %1549 = vmatmul.f32.gmra.mxu0 %v1548
    %v1550 = vpop.f32.mrf.mxu0
    %v1551 = vadd.f32 %v1521, %v1550
    %v1552 = vand.u32 %v1425, 4294901760
    %v1553 = vsub.f32 %v1425, %v1552
    %v1554 = vand.u32 %v1553, 4294901760
    %1555 = vmatmul.f32.gmra.mxu0 %v1554
    %v1556 = vpop.f32.mrf.mxu0
    %v1557 = vadd.f32 %v1526, %v1556
    %1558 = vdwg.mxu0
    %1559 = vmatpush.msra.mxu0 0.0
    %1560 = vmatpush.msra.mxu0 0.0
    %1561 = vmatpush.msra.mxu0 0.0
    %1562 = vmatpush.msra.mxu0 0.0
    %1563 = vmatpush.msra.mxu0 0.0
    %1564 = vmatpush.msra.mxu0 0.0
    %1565 = vmatpush.msra.mxu0 0.0
    %1566 = vmatpush.msra.mxu0 0.0
    %1567 = vmatpush.msra.mxu0 0.0
    %1568 = vmatpush.msra.mxu0 0.0
    %1569 = vmatpush.msra.mxu0 0.0
    %1570 = vmatpush.msra.mxu0 0.0
    %1571 = vmatpush.msra.mxu0 0.0
    %1572 = vmatpush.msra.mxu0 0.0
    %v1573 = vand.u32 %v967, 4294901760
    %v1574 = vsub.f32 %v967, %v1573
    %v1575 = vand.u32 %v1574, 4294901760
    %1576 = vmatpush.msra.mxu0 %v1575
    %v1577 = vand.u32 %v966, 4294901760
    %v1578 = vsub.f32 %v966, %v1577
    %v1579 = vand.u32 %v1578, 4294901760
    %1580 = vmatpush.msra.mxu0 %v1579
    %v1581 = vand.u32 %v1422, 4294901760
    %1582 = vmatmul.f32.gmra.mxu0 %v1581
    %v1583 = vpop.f32.mrf.mxu0
    %v1584 = vadd.f32 %v1551, %v1583
    %v1585 = vand.u32 %v1425, 4294901760
    %1586 = vmatmul.f32.gmra.mxu0 %v1585
    %v1587 = vpop.f32.mrf.mxu0
    %v1588 = vadd.f32 %v1557, %v1587
    %1589 = vdwg.mxu0
    %1590 = vmatpush.msra.mxu0 0.0
    %1591 = vmatpush.msra.mxu0 0.0
    %1592 = vmatpush.msra.mxu0 0.0
    %1593 = vmatpush.msra.mxu0 0.0
    %1594 = vmatpush.msra.mxu0 0.0
    %1595 = vmatpush.msra.mxu0 0.0
    %1596 = vmatpush.msra.mxu0 0.0
    %1597 = vmatpush.msra.mxu0 0.0
    %1598 = vmatpush.msra.mxu0 0.0
    %1599 = vmatpush.msra.mxu0 0.0
    %1600 = vmatpush.msra.mxu0 0.0
    %1601 = vmatpush.msra.mxu0 0.0
    %1602 = vmatpush.msra.mxu0 0.0
    %1603 = vmatpush.msra.mxu0 0.0
    %v1604 = vand.u32 %v967, 4294901760
    %1605 = vmatpush.msra.mxu0 %v1604
    %v1606 = vand.u32 %v966, 4294901760
    %1607 = vmatpush.msra.mxu0 %v1606
    %v1608 = vand.u32 %v1422, 4294901760
    %1609 = vmatmul.f32.gmra.mxu0 %v1608
    %v1610 = vpop.f32.mrf.mxu0
    %v1611 = vadd.f32 %v1584, %v1610
    %v1612 = vand.u32 %v1425, 4294901760
    %1613 = vmatmul.f32.gmra.mxu0 %v1612
    %v1614 = vpop.f32.mrf.mxu0
    %v1615 = vadd.f32 %v1588, %v1614
    %1616 = vdwg.mxu0
    %1617 = vrot.lane.b32.xlu0 %v255, 112
    %v1618 = vpop.permute.xlu0 %1617
    %1619 = vrot.lane.b32.xlu0 %v259, 112
    %v1620 = vpop.permute.xlu0 %1619
    %1621 = vrot.lane.b32.xlu0 %v477, 112
    %v1622 = vpop.permute.xlu0 %1621
    %1623 = vrot.lane.b32.xlu0 %v481, 112
    %v1624 = vpop.permute.xlu0 %1623
    %v1625 = vsel %vm713, %v1618, 0
    %v1627 = vsel %vm713, %v1620, 0
    %v1629 = vsel %vm713, %v1622, 0
    %v1631 = vsel %vm713, %v1624, 0
    %1633 = vmatpush.xpose.msra.mxu0 0.0
    %1634 = vmatpush.xpose.msra.mxu0 0.0
    %1635 = vmatpush.xpose.msra.mxu0 0.0
    %1636 = vmatpush.xpose.msra.mxu0 0.0
    %1637 = vmatpush.xpose.msra.mxu0 0.0
    %1638 = vmatpush.xpose.msra.mxu0 0.0
    %1639 = vmatpush.xpose.msra.mxu0 0.0
    %1640 = vmatpush.xpose.msra.mxu0 0.0
    %1641 = vmatpush.xpose.msra.mxu0 0.0
    %1642 = vmatpush.xpose.msra.mxu0 0.0
    %1643 = vmatpush.xpose.msra.mxu0 0.0
    %1644 = vmatpush.xpose.msra.mxu0 0.0
    %1645 = vmatpush.xpose.msra.mxu0 0.0
    %1646 = vmatpush.xpose.msra.mxu0 0.0
    %v1647 = vand.u32 %v1631, 4294901760
    %1648 = vmatpush.xpose.msra.mxu0 %v1647
    %v1649 = vand.u32 %v1629, 4294901760
    %1650 = vmatpush.xpose.msra.mxu0 %v1649
    %v1651 = vand.u32 %v1625, 4294901760
    %v1652 = vsub.f32 %v1625, %v1651
    %v1653 = vand.u32 %v1652, 4294901760
    %v1654 = vsub.f32 %v1652, %v1653
    %v1655 = vand.u32 %v1654, 4294901760
    %1656 = vmatmul.f32.gmra.mxu0 %v1655
    %v1657 = vpop.f32.mrf.mxu0
    %v1658 = vadd.f32 %v711, %v1657
    %v1659 = vand.u32 %v1627, 4294901760
    %v1660 = vsub.f32 %v1627, %v1659
    %v1661 = vand.u32 %v1660, 4294901760
    %v1662 = vsub.f32 %v1660, %v1661
    %v1663 = vand.u32 %v1662, 4294901760
    %1664 = vmatmul.f32.gmra.mxu0 %v1663
    %v1665 = vpop.f32.mrf.mxu0
    %v1666 = vadd.f32 %v712, %v1665
    %1667 = vdwg.mxu0
    %1668 = vmatpush.xpose.msra.mxu0 0.0
    %1669 = vmatpush.xpose.msra.mxu0 0.0
    %1670 = vmatpush.xpose.msra.mxu0 0.0
    %1671 = vmatpush.xpose.msra.mxu0 0.0
    %1672 = vmatpush.xpose.msra.mxu0 0.0
    %1673 = vmatpush.xpose.msra.mxu0 0.0
    %1674 = vmatpush.xpose.msra.mxu0 0.0
    %1675 = vmatpush.xpose.msra.mxu0 0.0
    %1676 = vmatpush.xpose.msra.mxu0 0.0
    %1677 = vmatpush.xpose.msra.mxu0 0.0
    %1678 = vmatpush.xpose.msra.mxu0 0.0
    %1679 = vmatpush.xpose.msra.mxu0 0.0
    %1680 = vmatpush.xpose.msra.mxu0 0.0
    %1681 = vmatpush.xpose.msra.mxu0 0.0
    %v1682 = vand.u32 %v1631, 4294901760
    %v1683 = vsub.f32 %v1631, %v1682
    %v1684 = vand.u32 %v1683, 4294901760
    %v1685 = vsub.f32 %v1683, %v1684
    %v1686 = vand.u32 %v1685, 4294901760
    %1687 = vmatpush.xpose.msra.mxu0 %v1686
    %v1688 = vand.u32 %v1629, 4294901760
    %v1689 = vsub.f32 %v1629, %v1688
    %v1690 = vand.u32 %v1689, 4294901760
    %v1691 = vsub.f32 %v1689, %v1690
    %v1692 = vand.u32 %v1691, 4294901760
    %1693 = vmatpush.xpose.msra.mxu0 %v1692
    %v1694 = vand.u32 %v1625, 4294901760
    %1695 = vmatmul.f32.gmra.mxu0 %v1694
    %v1696 = vpop.f32.mrf.mxu0
    %v1697 = vadd.f32 %v1658, %v1696
    %v1698 = vand.u32 %v1627, 4294901760
    %1699 = vmatmul.f32.gmra.mxu0 %v1698
    %v1700 = vpop.f32.mrf.mxu0
    %v1701 = vadd.f32 %v1666, %v1700
    %1702 = vdwg.mxu0
    %1703 = vmatpush.xpose.msra.mxu0 0.0
    %1704 = vmatpush.xpose.msra.mxu0 0.0
    %1705 = vmatpush.xpose.msra.mxu0 0.0
    %1706 = vmatpush.xpose.msra.mxu0 0.0
    %1707 = vmatpush.xpose.msra.mxu0 0.0
    %1708 = vmatpush.xpose.msra.mxu0 0.0
    %1709 = vmatpush.xpose.msra.mxu0 0.0
    %1710 = vmatpush.xpose.msra.mxu0 0.0
    %1711 = vmatpush.xpose.msra.mxu0 0.0
    %1712 = vmatpush.xpose.msra.mxu0 0.0
    %1713 = vmatpush.xpose.msra.mxu0 0.0
    %1714 = vmatpush.xpose.msra.mxu0 0.0
    %1715 = vmatpush.xpose.msra.mxu0 0.0
    %1716 = vmatpush.xpose.msra.mxu0 0.0
    %v1717 = vand.u32 %v1631, 4294901760
    %v1718 = vsub.f32 %v1631, %v1717
    %1719 = vmatpush.xpose.msra.mxu0 %v1718
    %v1720 = vand.u32 %v1629, 4294901760
    %v1721 = vsub.f32 %v1629, %v1720
    %1722 = vmatpush.xpose.msra.mxu0 %v1721
    %v1723 = vand.u32 %v1625, 4294901760
    %v1724 = vsub.f32 %v1625, %v1723
    %1725 = vmatmul.f32.gmra.mxu0 %v1724
    %v1726 = vpop.f32.mrf.mxu0
    %v1727 = vadd.f32 %v1697, %v1726
    %v1728 = vand.u32 %v1627, 4294901760
    %v1729 = vsub.f32 %v1627, %v1728
    %1730 = vmatmul.f32.gmra.mxu0 %v1729
    %v1731 = vpop.f32.mrf.mxu0
    %v1732 = vadd.f32 %v1701, %v1731
    %1733 = vdwg.mxu0
    %1734 = vmatpush.xpose.msra.mxu0 0.0
    %1735 = vmatpush.xpose.msra.mxu0 0.0
    %1736 = vmatpush.xpose.msra.mxu0 0.0
    %1737 = vmatpush.xpose.msra.mxu0 0.0
    %1738 = vmatpush.xpose.msra.mxu0 0.0
    %1739 = vmatpush.xpose.msra.mxu0 0.0
    %1740 = vmatpush.xpose.msra.mxu0 0.0
    %1741 = vmatpush.xpose.msra.mxu0 0.0
    %1742 = vmatpush.xpose.msra.mxu0 0.0
    %1743 = vmatpush.xpose.msra.mxu0 0.0
    %1744 = vmatpush.xpose.msra.mxu0 0.0
    %1745 = vmatpush.xpose.msra.mxu0 0.0
    %1746 = vmatpush.xpose.msra.mxu0 0.0
    %1747 = vmatpush.xpose.msra.mxu0 0.0
    %v1748 = vand.u32 %v1631, 4294901760
    %1749 = vmatpush.xpose.msra.mxu0 %v1748
    %v1750 = vand.u32 %v1629, 4294901760
    %1751 = vmatpush.xpose.msra.mxu0 %v1750
    %v1752 = vand.u32 %v1625, 4294901760
    %v1753 = vsub.f32 %v1625, %v1752
    %v1754 = vand.u32 %v1753, 4294901760
    %1755 = vmatmul.f32.gmra.mxu0 %v1754
    %v1756 = vpop.f32.mrf.mxu0
    %v1757 = vadd.f32 %v1727, %v1756
    %v1758 = vand.u32 %v1627, 4294901760
    %v1759 = vsub.f32 %v1627, %v1758
    %v1760 = vand.u32 %v1759, 4294901760
    %1761 = vmatmul.f32.gmra.mxu0 %v1760
    %v1762 = vpop.f32.mrf.mxu0
    %v1763 = vadd.f32 %v1732, %v1762
    %1764 = vdwg.mxu0
    %1765 = vmatpush.xpose.msra.mxu0 0.0
    %1766 = vmatpush.xpose.msra.mxu0 0.0
    %1767 = vmatpush.xpose.msra.mxu0 0.0
    %1768 = vmatpush.xpose.msra.mxu0 0.0
    %1769 = vmatpush.xpose.msra.mxu0 0.0
    %1770 = vmatpush.xpose.msra.mxu0 0.0
    %1771 = vmatpush.xpose.msra.mxu0 0.0
    %1772 = vmatpush.xpose.msra.mxu0 0.0
    %1773 = vmatpush.xpose.msra.mxu0 0.0
    %1774 = vmatpush.xpose.msra.mxu0 0.0
    %1775 = vmatpush.xpose.msra.mxu0 0.0
    %1776 = vmatpush.xpose.msra.mxu0 0.0
    %1777 = vmatpush.xpose.msra.mxu0 0.0
    %1778 = vmatpush.xpose.msra.mxu0 0.0
    %v1779 = vand.u32 %v1631, 4294901760
    %v1780 = vsub.f32 %v1631, %v1779
    %v1781 = vand.u32 %v1780, 4294901760
    %1782 = vmatpush.xpose.msra.mxu0 %v1781
    %v1783 = vand.u32 %v1629, 4294901760
    %v1784 = vsub.f32 %v1629, %v1783
    %v1785 = vand.u32 %v1784, 4294901760
    %1786 = vmatpush.xpose.msra.mxu0 %v1785
    %v1787 = vand.u32 %v1625, 4294901760
    %1788 = vmatmul.f32.gmra.mxu0 %v1787
    %v1789 = vpop.f32.mrf.mxu0
    %v1790 = vadd.f32 %v1757, %v1789
    %v1791 = vand.u32 %v1627, 4294901760
    %1792 = vmatmul.f32.gmra.mxu0 %v1791
    %v1793 = vpop.f32.mrf.mxu0
    %v1794 = vadd.f32 %v1763, %v1793
    %1795 = vdwg.mxu0
    %1796 = vmatpush.xpose.msra.mxu0 0.0
    %1797 = vmatpush.xpose.msra.mxu0 0.0
    %1798 = vmatpush.xpose.msra.mxu0 0.0
    %1799 = vmatpush.xpose.msra.mxu0 0.0
    %1800 = vmatpush.xpose.msra.mxu0 0.0
    %1801 = vmatpush.xpose.msra.mxu0 0.0
    %1802 = vmatpush.xpose.msra.mxu0 0.0
    %1803 = vmatpush.xpose.msra.mxu0 0.0
    %1804 = vmatpush.xpose.msra.mxu0 0.0
    %1805 = vmatpush.xpose.msra.mxu0 0.0
    %1806 = vmatpush.xpose.msra.mxu0 0.0
    %1807 = vmatpush.xpose.msra.mxu0 0.0
    %1808 = vmatpush.xpose.msra.mxu0 0.0
    %1809 = vmatpush.xpose.msra.mxu0 0.0
    %v1810 = vand.u32 %v1631, 4294901760
    %1811 = vmatpush.xpose.msra.mxu0 %v1810
    %v1812 = vand.u32 %v1629, 4294901760
    %1813 = vmatpush.xpose.msra.mxu0 %v1812
    %v1814 = vand.u32 %v1625, 4294901760
    %1815 = vmatmul.f32.gmra.mxu0 %v1814
    %v1816 = vpop.f32.mrf.mxu0
    %v1817 = vadd.f32 %v1790, %v1816
    %v1818 = vand.u32 %v1627, 4294901760
    %1819 = vmatmul.f32.gmra.mxu0 %v1818
    %v1820 = vpop.f32.mrf.mxu0
    %v1821 = vadd.f32 %v1794, %v1820
    %1822 = vdwg.mxu0
    %v1823 = vsel %vm916, %v1817, -inf
    %1824 = vmax.xlane.f32.xlu0 %v1823
    %v1825 = vpop.xlane.xlu0 %1824
    %v1826 = vsel %vm916, %v1821, -inf
    %1827 = vmax.xlane.f32.xlu0 %v1826
    %v1828 = vpop.xlane.xlu0 %1827
    %v1829 = vsub.f32 %v1817, %v1825
    %v1830 = vsub.f32 %v1821, %v1828
    %v1831 = vmul.f32 %v1829, 1.442695
    %v1832 = vpow.pop %v1831
    %v1833 = vmul.f32 %v1830, 1.442695
    %v1834 = vpow.pop %v1833
    %v1835 = vsel %vm916, %v1832, 0.0
    %1836 = vadd.xlane.f32.xlu0 %v1835
    %v1837 = vpop.xlane.xlu0 %1836
    %v1838 = vsel %vm916, %v1834, 0.0
    %1839 = vadd.xlane.f32.xlu0 %v1838
    %v1840 = vpop.xlane.xlu0 %1839
    %v1841 = vrcp.pop %v1837
    %v1842 = vmul.f32 %v1837, %v1841
    %v1843 = vsub.f32 1.0, %v1842
    %v1844 = vmul.f32 %v1841, %v1843
    %v1845 = vadd.f32 %v1841, %v1844
    %vm1846 = vweird.f32 %v1837
    %vm1847 = vweird.f32 %v1841
    %vm1848 = vmor %vm1846, %vm1847
    %v1849 = vsel %vm1848, %v1841, %v1845
    %v1850 = vand.u32 2147483647, %v1837
    %vm1851 = vcmp.eq.f32.partialorder %v1850, 8.507059e+37
    %v1852 = vand.u32 %v1837, 2147483648
    %v1853 = vor.u32 1.1754944e-38, %v1852
    %v1854 = vsel %vm1851, %v1853, %v1849
    %v1855 = vmul.f32 %v1832, %v1854
    %v1856 = vrcp.pop %v1840
    %v1857 = vmul.f32 %v1840, %v1856
    %v1858 = vsub.f32 1.0, %v1857
    %v1859 = vmul.f32 %v1856, %v1858
    %v1860 = vadd.f32 %v1856, %v1859
    %vm1861 = vweird.f32 %v1840
    %vm1862 = vweird.f32 %v1856
    %vm1863 = vmor %vm1861, %vm1862
    %v1864 = vsel %vm1863, %v1856, %v1860
    %v1865 = vand.u32 2147483647, %v1840
    %vm1866 = vcmp.eq.f32.partialorder %v1865, 8.507059e+37
    %v1867 = vand.u32 %v1840, 2147483648
    %v1868 = vor.u32 1.1754944e-38, %v1867
    %v1869 = vsel %vm1866, %v1868, %v1864
    %v1870 = vmul.f32 %v1834, %v1869
    %v1871 = vperm.slane %v29, 2
    %v1872 = vmul.f32 %v705, %v1871
    %v1873 = vmul.f32 %v709, %v1871
    %v1875 = vsel %vm916, %v1855, 0
    %v1878 = vsel %vm916, %v1870, 0
    %1880 = vmatpush.msra.mxu0 0.0
    %1881 = vmatpush.msra.mxu0 0.0
    %1882 = vmatpush.msra.mxu0 0.0
    %1883 = vmatpush.msra.mxu0 0.0
    %1884 = vmatpush.msra.mxu0 0.0
    %1885 = vmatpush.msra.mxu0 0.0
    %1886 = vmatpush.msra.mxu0 0.0
    %1887 = vmatpush.msra.mxu0 0.0
    %1888 = vmatpush.msra.mxu0 0.0
    %1889 = vmatpush.msra.mxu0 0.0
    %1890 = vmatpush.msra.mxu0 0.0
    %1891 = vmatpush.msra.mxu0 0.0
    %1892 = vmatpush.msra.mxu0 0.0
    %1893 = vmatpush.msra.mxu0 0.0
    %v1894 = vand.u32 %v1873, 4294901760
    %1895 = vmatpush.msra.mxu0 %v1894
    %v1896 = vand.u32 %v1872, 4294901760
    %1897 = vmatpush.msra.mxu0 %v1896
    %v1898 = vand.u32 %v1875, 4294901760
    %v1899 = vsub.f32 %v1875, %v1898
    %v1900 = vand.u32 %v1899, 4294901760
    %v1901 = vsub.f32 %v1899, %v1900
    %v1902 = vand.u32 %v1901, 4294901760
    %1903 = vmatmul.f32.gmra.mxu0 %v1902
    %v1904 = vpop.f32.mrf.mxu0
    %v1905 = vadd.f32 0.0, %v1904
    %v1906 = vand.u32 %v1878, 4294901760
    %v1907 = vsub.f32 %v1878, %v1906
    %v1908 = vand.u32 %v1907, 4294901760
    %v1909 = vsub.f32 %v1907, %v1908
    %v1910 = vand.u32 %v1909, 4294901760
    %1911 = vmatmul.f32.gmra.mxu0 %v1910
    %v1912 = vpop.f32.mrf.mxu0
    %v1913 = vadd.f32 0.0, %v1912
    %1914 = vdwg.mxu0
    %1915 = vmatpush.msra.mxu0 0.0
    %1916 = vmatpush.msra.mxu0 0.0
    %1917 = vmatpush.msra.mxu0 0.0
    %1918 = vmatpush.msra.mxu0 0.0
    %1919 = vmatpush.msra.mxu0 0.0
    %1920 = vmatpush.msra.mxu0 0.0
    %1921 = vmatpush.msra.mxu0 0.0
    %1922 = vmatpush.msra.mxu0 0.0
    %1923 = vmatpush.msra.mxu0 0.0
    %1924 = vmatpush.msra.mxu0 0.0
    %1925 = vmatpush.msra.mxu0 0.0
    %1926 = vmatpush.msra.mxu0 0.0
    %1927 = vmatpush.msra.mxu0 0.0
    %1928 = vmatpush.msra.mxu0 0.0
    %v1929 = vand.u32 %v1873, 4294901760
    %v1930 = vsub.f32 %v1873, %v1929
    %v1931 = vand.u32 %v1930, 4294901760
    %v1932 = vsub.f32 %v1930, %v1931
    %v1933 = vand.u32 %v1932, 4294901760
    %1934 = vmatpush.msra.mxu0 %v1933
    %v1935 = vand.u32 %v1872, 4294901760
    %v1936 = vsub.f32 %v1872, %v1935
    %v1937 = vand.u32 %v1936, 4294901760
    %v1938 = vsub.f32 %v1936, %v1937
    %v1939 = vand.u32 %v1938, 4294901760
    %1940 = vmatpush.msra.mxu0 %v1939
    %v1941 = vand.u32 %v1875, 4294901760
    %1942 = vmatmul.f32.gmra.mxu0 %v1941
    %v1943 = vpop.f32.mrf.mxu0
    %v1944 = vadd.f32 %v1905, %v1943
    %v1945 = vand.u32 %v1878, 4294901760
    %1946 = vmatmul.f32.gmra.mxu0 %v1945
    %v1947 = vpop.f32.mrf.mxu0
    %v1948 = vadd.f32 %v1913, %v1947
    %1949 = vdwg.mxu0
    %1950 = vmatpush.msra.mxu0 0.0
    %1951 = vmatpush.msra.mxu0 0.0
    %1952 = vmatpush.msra.mxu0 0.0
    %1953 = vmatpush.msra.mxu0 0.0
    %1954 = vmatpush.msra.mxu0 0.0
    %1955 = vmatpush.msra.mxu0 0.0
    %1956 = vmatpush.msra.mxu0 0.0
    %1957 = vmatpush.msra.mxu0 0.0
    %1958 = vmatpush.msra.mxu0 0.0
    %1959 = vmatpush.msra.mxu0 0.0
    %1960 = vmatpush.msra.mxu0 0.0
    %1961 = vmatpush.msra.mxu0 0.0
    %1962 = vmatpush.msra.mxu0 0.0
    %1963 = vmatpush.msra.mxu0 0.0
    %v1964 = vand.u32 %v1873, 4294901760
    %v1965 = vsub.f32 %v1873, %v1964
    %1966 = vmatpush.msra.mxu0 %v1965
    %v1967 = vand.u32 %v1872, 4294901760
    %v1968 = vsub.f32 %v1872, %v1967
    %1969 = vmatpush.msra.mxu0 %v1968
    %v1970 = vand.u32 %v1875, 4294901760
    %v1971 = vsub.f32 %v1875, %v1970
    %1972 = vmatmul.f32.gmra.mxu0 %v1971
    %v1973 = vpop.f32.mrf.mxu0
    %v1974 = vadd.f32 %v1944, %v1973
    %v1975 = vand.u32 %v1878, 4294901760
    %v1976 = vsub.f32 %v1878, %v1975
    %1977 = vmatmul.f32.gmra.mxu0 %v1976
    %v1978 = vpop.f32.mrf.mxu0
    %v1979 = vadd.f32 %v1948, %v1978
    %1980 = vdwg.mxu0
    %1981 = vmatpush.msra.mxu0 0.0
    %1982 = vmatpush.msra.mxu0 0.0
    %1983 = vmatpush.msra.mxu0 0.0
    %1984 = vmatpush.msra.mxu0 0.0
    %1985 = vmatpush.msra.mxu0 0.0
    %1986 = vmatpush.msra.mxu0 0.0
    %1987 = vmatpush.msra.mxu0 0.0
    %1988 = vmatpush.msra.mxu0 0.0
    %1989 = vmatpush.msra.mxu0 0.0
    %1990 = vmatpush.msra.mxu0 0.0
    %1991 = vmatpush.msra.mxu0 0.0
    %1992 = vmatpush.msra.mxu0 0.0
    %1993 = vmatpush.msra.mxu0 0.0
    %1994 = vmatpush.msra.mxu0 0.0
    %v1995 = vand.u32 %v1873, 4294901760
    %1996 = vmatpush.msra.mxu0 %v1995
    %v1997 = vand.u32 %v1872, 4294901760
    %1998 = vmatpush.msra.mxu0 %v1997
    %v1999 = vand.u32 %v1875, 4294901760
    %v2000 = vsub.f32 %v1875, %v1999
    %v2001 = vand.u32 %v2000, 4294901760
    %2002 = vmatmul.f32.gmra.mxu0 %v2001
    %v2003 = vpop.f32.mrf.mxu0
    %v2004 = vadd.f32 %v1974, %v2003
    %v2005 = vand.u32 %v1878, 4294901760
    %v2006 = vsub.f32 %v1878, %v2005
    %v2007 = vand.u32 %v2006, 4294901760
    %2008 = vmatmul.f32.gmra.mxu0 %v2007
    %v2009 = vpop.f32.mrf.mxu0
    %v2010 = vadd.f32 %v1979, %v2009
    %2011 = vdwg.mxu0
    %2012 = vmatpush.msra.mxu0 0.0
    %2013 = vmatpush.msra.mxu0 0.0
    %2014 = vmatpush.msra.mxu0 0.0
    %2015 = vmatpush.msra.mxu0 0.0
    %2016 = vmatpush.msra.mxu0 0.0
    %2017 = vmatpush.msra.mxu0 0.0
    %2018 = vmatpush.msra.mxu0 0.0
    %2019 = vmatpush.msra.mxu0 0.0
    %2020 = vmatpush.msra.mxu0 0.0
    %2021 = vmatpush.msra.mxu0 0.0
    %2022 = vmatpush.msra.mxu0 0.0
    %2023 = vmatpush.msra.mxu0 0.0
    %2024 = vmatpush.msra.mxu0 0.0
    %2025 = vmatpush.msra.mxu0 0.0
    %v2026 = vand.u32 %v1873, 4294901760
    %v2027 = vsub.f32 %v1873, %v2026
    %v2028 = vand.u32 %v2027, 4294901760
    %2029 = vmatpush.msra.mxu0 %v2028
    %v2030 = vand.u32 %v1872, 4294901760
    %v2031 = vsub.f32 %v1872, %v2030
    %v2032 = vand.u32 %v2031, 4294901760
    %2033 = vmatpush.msra.mxu0 %v2032
    %v2034 = vand.u32 %v1875, 4294901760
    %2035 = vmatmul.f32.gmra.mxu0 %v2034
    %v2036 = vpop.f32.mrf.mxu0
    %v2037 = vadd.f32 %v2004, %v2036
    %v2038 = vand.u32 %v1878, 4294901760
    %2039 = vmatmul.f32.gmra.mxu0 %v2038
    %v2040 = vpop.f32.mrf.mxu0
    %v2041 = vadd.f32 %v2010, %v2040
    %2042 = vdwg.mxu0
    %2043 = vmatpush.msra.mxu0 0.0
    %2044 = vmatpush.msra.mxu0 0.0
    %2045 = vmatpush.msra.mxu0 0.0
    %2046 = vmatpush.msra.mxu0 0.0
    %2047 = vmatpush.msra.mxu0 0.0
    %2048 = vmatpush.msra.mxu0 0.0
    %2049 = vmatpush.msra.mxu0 0.0
    %2050 = vmatpush.msra.mxu0 0.0
    %2051 = vmatpush.msra.mxu0 0.0
    %2052 = vmatpush.msra.mxu0 0.0
    %2053 = vmatpush.msra.mxu0 0.0
    %2054 = vmatpush.msra.mxu0 0.0
    %2055 = vmatpush.msra.mxu0 0.0
    %2056 = vmatpush.msra.mxu0 0.0
    %v2057 = vand.u32 %v1873, 4294901760
    %2058 = vmatpush.msra.mxu0 %v2057
    %v2059 = vand.u32 %v1872, 4294901760
    %2060 = vmatpush.msra.mxu0 %v2059
    %v2061 = vand.u32 %v1875, 4294901760
    %2062 = vmatmul.f32.gmra.mxu0 %v2061
    %v2063 = vpop.f32.mrf.mxu0
    %v2064 = vadd.f32 %v2037, %v2063
    %v2065 = vand.u32 %v1878, 4294901760
    %2066 = vmatmul.f32.gmra.mxu0 %v2065
    %v2067 = vpop.f32.mrf.mxu0
    %v2068 = vadd.f32 %v2041, %v2067
    %2069 = vdwg.mxu0
    %v2070 = vadd.f32 %v1611, %v2064
    %v2071 = vadd.f32 %v1615, %v2068
    %2072 = vrot.lane.b32.xlu0 %v255, 104
    %v2073 = vpop.permute.xlu0 %2072
    %2074 = vrot.lane.b32.xlu0 %v259, 104
    %v2075 = vpop.permute.xlu0 %2074
    %2076 = vrot.lane.b32.xlu0 %v477, 104
    %v2077 = vpop.permute.xlu0 %2076
    %2078 = vrot.lane.b32.xlu0 %v481, 104
    %v2079 = vpop.permute.xlu0 %2078
    %v2080 = vsel %vm713, %v2073, 0
    %v2082 = vsel %vm713, %v2075, 0
    %v2084 = vsel %vm713, %v2077, 0
    %v2086 = vsel %vm713, %v2079, 0
    %2088 = vmatpush.xpose.msra.mxu0 0.0
    %2089 = vmatpush.xpose.msra.mxu0 0.0
    %2090 = vmatpush.xpose.msra.mxu0 0.0
    %2091 = vmatpush.xpose.msra.mxu0 0.0
    %2092 = vmatpush.xpose.msra.mxu0 0.0
    %2093 = vmatpush.xpose.msra.mxu0 0.0
    %2094 = vmatpush.xpose.msra.mxu0 0.0
    %2095 = vmatpush.xpose.msra.mxu0 0.0
    %2096 = vmatpush.xpose.msra.mxu0 0.0
    %2097 = vmatpush.xpose.msra.mxu0 0.0
    %2098 = vmatpush.xpose.msra.mxu0 0.0
    %2099 = vmatpush.xpose.msra.mxu0 0.0
    %2100 = vmatpush.xpose.msra.mxu0 0.0
    %2101 = vmatpush.xpose.msra.mxu0 0.0
    %v2102 = vand.u32 %v2086, 4294901760
    %2103 = vmatpush.xpose.msra.mxu0 %v2102
    %v2104 = vand.u32 %v2084, 4294901760
    %2105 = vmatpush.xpose.msra.mxu0 %v2104
    %v2106 = vand.u32 %v2080, 4294901760
    %v2107 = vsub.f32 %v2080, %v2106
    %v2108 = vand.u32 %v2107, 4294901760
    %v2109 = vsub.f32 %v2107, %v2108
    %v2110 = vand.u32 %v2109, 4294901760
    %2111 = vmatmul.f32.gmra.mxu0 %v2110
    %v2112 = vpop.f32.mrf.mxu0
    %v2113 = vadd.f32 %v711, %v2112
    %v2114 = vand.u32 %v2082, 4294901760
    %v2115 = vsub.f32 %v2082, %v2114
    %v2116 = vand.u32 %v2115, 4294901760
    %v2117 = vsub.f32 %v2115, %v2116
    %v2118 = vand.u32 %v2117, 4294901760
    %2119 = vmatmul.f32.gmra.mxu0 %v2118
    %v2120 = vpop.f32.mrf.mxu0
    %v2121 = vadd.f32 %v712, %v2120
    %2122 = vdwg.mxu0
    %2123 = vmatpush.xpose.msra.mxu0 0.0
    %2124 = vmatpush.xpose.msra.mxu0 0.0
    %2125 = vmatpush.xpose.msra.mxu0 0.0
    %2126 = vmatpush.xpose.msra.mxu0 0.0
    %2127 = vmatpush.xpose.msra.mxu0 0.0
    %2128 = vmatpush.xpose.msra.mxu0 0.0
    %2129 = vmatpush.xpose.msra.mxu0 0.0
    %2130 = vmatpush.xpose.msra.mxu0 0.0
    %2131 = vmatpush.xpose.msra.mxu0 0.0
    %2132 = vmatpush.xpose.msra.mxu0 0.0
    %2133 = vmatpush.xpose.msra.mxu0 0.0
    %2134 = vmatpush.xpose.msra.mxu0 0.0
    %2135 = vmatpush.xpose.msra.mxu0 0.0
    %2136 = vmatpush.xpose.msra.mxu0 0.0
    %v2137 = vand.u32 %v2086, 4294901760
    %v2138 = vsub.f32 %v2086, %v2137
    %v2139 = vand.u32 %v2138, 4294901760
    %v2140 = vsub.f32 %v2138, %v2139
    %v2141 = vand.u32 %v2140, 4294901760
    %2142 = vmatpush.xpose.msra.mxu0 %v2141
    %v2143 = vand.u32 %v2084, 4294901760
    %v2144 = vsub.f32 %v2084, %v2143
    %v2145 = vand.u32 %v2144, 4294901760
    %v2146 = vsub.f32 %v2144, %v2145
    %v2147 = vand.u32 %v2146, 4294901760
    %2148 = vmatpush.xpose.msra.mxu0 %v2147
    %v2149 = vand.u32 %v2080, 4294901760
    %2150 = vmatmul.f32.gmra.mxu0 %v2149
    %v2151 = vpop.f32.mrf.mxu0
    %v2152 = vadd.f32 %v2113, %v2151
    %v2153 = vand.u32 %v2082, 4294901760
    %2154 = vmatmul.f32.gmra.mxu0 %v2153
    %v2155 = vpop.f32.mrf.mxu0
    %v2156 = vadd.f32 %v2121, %v2155
    %2157 = vdwg.mxu0
    %2158 = vmatpush.xpose.msra.mxu0 0.0
    %2159 = vmatpush.xpose.msra.mxu0 0.0
    %2160 = vmatpush.xpose.msra.mxu0 0.0
    %2161 = vmatpush.xpose.msra.mxu0 0.0
    %2162 = vmatpush.xpose.msra.mxu0 0.0
    %2163 = vmatpush.xpose.msra.mxu0 0.0
    %2164 = vmatpush.xpose.msra.mxu0 0.0
    %2165 = vmatpush.xpose.msra.mxu0 0.0
    %2166 = vmatpush.xpose.msra.mxu0 0.0
    %2167 = vmatpush.xpose.msra.mxu0 0.0
    %2168 = vmatpush.xpose.msra.mxu0 0.0
    %2169 = vmatpush.xpose.msra.mxu0 0.0
    %2170 = vmatpush.xpose.msra.mxu0 0.0
    %2171 = vmatpush.xpose.msra.mxu0 0.0
    %v2172 = vand.u32 %v2086, 4294901760
    %v2173 = vsub.f32 %v2086, %v2172
    %2174 = vmatpush.xpose.msra.mxu0 %v2173
    %v2175 = vand.u32 %v2084, 4294901760
    %v2176 = vsub.f32 %v2084, %v2175
    %2177 = vmatpush.xpose.msra.mxu0 %v2176
    %v2178 = vand.u32 %v2080, 4294901760
    %v2179 = vsub.f32 %v2080, %v2178
    %2180 = vmatmul.f32.gmra.mxu0 %v2179
    %v2181 = vpop.f32.mrf.mxu0
    %v2182 = vadd.f32 %v2152, %v2181
    %v2183 = vand.u32 %v2082, 4294901760
    %v2184 = vsub.f32 %v2082, %v2183
    %2185 = vmatmul.f32.gmra.mxu0 %v2184
    %v2186 = vpop.f32.mrf.mxu0
    %v2187 = vadd.f32 %v2156, %v2186
    %2188 = vdwg.mxu0
    %2189 = vmatpush.xpose.msra.mxu0 0.0
    %2190 = vmatpush.xpose.msra.mxu0 0.0
    %2191 = vmatpush.xpose.msra.mxu0 0.0
    %2192 = vmatpush.xpose.msra.mxu0 0.0
    %2193 = vmatpush.xpose.msra.mxu0 0.0
    %2194 = vmatpush.xpose.msra.mxu0 0.0
    %2195 = vmatpush.xpose.msra.mxu0 0.0
    %2196 = vmatpush.xpose.msra.mxu0 0.0
    %2197 = vmatpush.xpose.msra.mxu0 0.0
    %2198 = vmatpush.xpose.msra.mxu0 0.0
    %2199 = vmatpush.xpose.msra.mxu0 0.0
    %2200 = vmatpush.xpose.msra.mxu0 0.0
    %2201 = vmatpush.xpose.msra.mxu0 0.0
    %2202 = vmatpush.xpose.msra.mxu0 0.0
    %v2203 = vand.u32 %v2086, 4294901760
    %2204 = vmatpush.xpose.msra.mxu0 %v2203
    %v2205 = vand.u32 %v2084, 4294901760
    %2206 = vmatpush.xpose.msra.mxu0 %v2205
    %v2207 = vand.u32 %v2080, 4294901760
    %v2208 = vsub.f32 %v2080, %v2207
    %v2209 = vand.u32 %v2208, 4294901760
    %2210 = vmatmul.f32.gmra.mxu0 %v2209
    %v2211 = vpop.f32.mrf.mxu0
    %v2212 = vadd.f32 %v2182, %v2211
    %v2213 = vand.u32 %v2082, 4294901760
    %v2214 = vsub.f32 %v2082, %v2213
    %v2215 = vand.u32 %v2214, 4294901760
    %2216 = vmatmul.f32.gmra.mxu0 %v2215
    %v2217 = vpop.f32.mrf.mxu0
    %v2218 = vadd.f32 %v2187, %v2217
    %2219 = vdwg.mxu0
    %2220 = vmatpush.xpose.msra.mxu0 0.0
    %2221 = vmatpush.xpose.msra.mxu0 0.0
    %2222 = vmatpush.xpose.msra.mxu0 0.0
    %2223 = vmatpush.xpose.msra.mxu0 0.0
    %2224 = vmatpush.xpose.msra.mxu0 0.0
    %2225 = vmatpush.xpose.msra.mxu0 0.0
    %2226 = vmatpush.xpose.msra.mxu0 0.0
    %2227 = vmatpush.xpose.msra.mxu0 0.0
    %2228 = vmatpush.xpose.msra.mxu0 0.0
    %2229 = vmatpush.xpose.msra.mxu0 0.0
    %2230 = vmatpush.xpose.msra.mxu0 0.0
    %2231 = vmatpush.xpose.msra.mxu0 0.0
    %2232 = vmatpush.xpose.msra.mxu0 0.0
    %2233 = vmatpush.xpose.msra.mxu0 0.0
    %v2234 = vand.u32 %v2086, 4294901760
    %v2235 = vsub.f32 %v2086, %v2234
    %v2236 = vand.u32 %v2235, 4294901760
    %2237 = vmatpush.xpose.msra.mxu0 %v2236
    %v2238 = vand.u32 %v2084, 4294901760
    %v2239 = vsub.f32 %v2084, %v2238
    %v2240 = vand.u32 %v2239, 4294901760
    %2241 = vmatpush.xpose.msra.mxu0 %v2240
    %v2242 = vand.u32 %v2080, 4294901760
    %2243 = vmatmul.f32.gmra.mxu0 %v2242
    %v2244 = vpop.f32.mrf.mxu0
    %v2245 = vadd.f32 %v2212, %v2244
    %v2246 = vand.u32 %v2082, 4294901760
    %2247 = vmatmul.f32.gmra.mxu0 %v2246
    %v2248 = vpop.f32.mrf.mxu0
    %v2249 = vadd.f32 %v2218, %v2248
    %2250 = vdwg.mxu0
    %2251 = vmatpush.xpose.msra.mxu0 0.0
    %2252 = vmatpush.xpose.msra.mxu0 0.0
    %2253 = vmatpush.xpose.msra.mxu0 0.0
    %2254 = vmatpush.xpose.msra.mxu0 0.0
    %2255 = vmatpush.xpose.msra.mxu0 0.0
    %2256 = vmatpush.xpose.msra.mxu0 0.0
    %2257 = vmatpush.xpose.msra.mxu0 0.0
    %2258 = vmatpush.xpose.msra.mxu0 0.0
    %2259 = vmatpush.xpose.msra.mxu0 0.0
    %2260 = vmatpush.xpose.msra.mxu0 0.0
    %2261 = vmatpush.xpose.msra.mxu0 0.0
    %2262 = vmatpush.xpose.msra.mxu0 0.0
    %2263 = vmatpush.xpose.msra.mxu0 0.0
    %2264 = vmatpush.xpose.msra.mxu0 0.0
    %v2265 = vand.u32 %v2086, 4294901760
    %2266 = vmatpush.xpose.msra.mxu0 %v2265
    %v2267 = vand.u32 %v2084, 4294901760
    %2268 = vmatpush.xpose.msra.mxu0 %v2267
    %v2269 = vand.u32 %v2080, 4294901760
    %2270 = vmatmul.f32.gmra.mxu0 %v2269
    %v2271 = vpop.f32.mrf.mxu0
    %v2272 = vadd.f32 %v2245, %v2271
    %v2273 = vand.u32 %v2082, 4294901760
    %2274 = vmatmul.f32.gmra.mxu0 %v2273
    %v2275 = vpop.f32.mrf.mxu0
    %v2276 = vadd.f32 %v2249, %v2275
    %2277 = vdwg.mxu0
    %v2278 = vsel %vm916, %v2272, -inf
    %2279 = vmax.xlane.f32.xlu0 %v2278
    %v2280 = vpop.xlane.xlu0 %2279
    %v2281 = vsel %vm916, %v2276, -inf
    %2282 = vmax.xlane.f32.xlu0 %v2281
    %v2283 = vpop.xlane.xlu0 %2282
    %v2284 = vsub.f32 %v2272, %v2280
    %v2285 = vsub.f32 %v2276, %v2283
    %v2286 = vmul.f32 %v2284, 1.442695
    %v2287 = vpow.pop %v2286
    %v2288 = vmul.f32 %v2285, 1.442695
    %v2289 = vpow.pop %v2288
    %v2290 = vsel %vm916, %v2287, 0.0
    %2291 = vadd.xlane.f32.xlu0 %v2290
    %v2292 = vpop.xlane.xlu0 %2291
    %v2293 = vsel %vm916, %v2289, 0.0
    %2294 = vadd.xlane.f32.xlu0 %v2293
    %v2295 = vpop.xlane.xlu0 %2294
    %v2296 = vrcp.pop %v2292
    %v2297 = vmul.f32 %v2292, %v2296
    %v2298 = vsub.f32 1.0, %v2297
    %v2299 = vmul.f32 %v2296, %v2298
    %v2300 = vadd.f32 %v2296, %v2299
    %vm2301 = vweird.f32 %v2292
    %vm2302 = vweird.f32 %v2296
    %vm2303 = vmor %vm2301, %vm2302
    %v2304 = vsel %vm2303, %v2296, %v2300
    %v2305 = vand.u32 2147483647, %v2292
    %vm2306 = vcmp.eq.f32.partialorder %v2305, 8.507059e+37
    %v2307 = vand.u32 %v2292, 2147483648
    %v2308 = vor.u32 1.1754944e-38, %v2307
    %v2309 = vsel %vm2306, %v2308, %v2304
    %v2310 = vmul.f32 %v2287, %v2309
    %v2311 = vrcp.pop %v2295
    %v2312 = vmul.f32 %v2295, %v2311
    %v2313 = vsub.f32 1.0, %v2312
    %v2314 = vmul.f32 %v2311, %v2313
    %v2315 = vadd.f32 %v2311, %v2314
    %vm2316 = vweird.f32 %v2295
    %vm2317 = vweird.f32 %v2311
    %vm2318 = vmor %vm2316, %vm2317
    %v2319 = vsel %vm2318, %v2311, %v2315
    %v2320 = vand.u32 2147483647, %v2295
    %vm2321 = vcmp.eq.f32.partialorder %v2320, 8.507059e+37
    %v2322 = vand.u32 %v2295, 2147483648
    %v2323 = vor.u32 1.1754944e-38, %v2322
    %v2324 = vsel %vm2321, %v2323, %v2319
    %v2325 = vmul.f32 %v2289, %v2324
    %v2326 = vperm.slane %v29, 3
    %v2327 = vmul.f32 %v705, %v2326
    %v2328 = vmul.f32 %v709, %v2326
    %v2330 = vsel %vm916, %v2310, 0
    %v2333 = vsel %vm916, %v2325, 0
    %2335 = vmatpush.msra.mxu0 0.0
    %2336 = vmatpush.msra.mxu0 0.0
    %2337 = vmatpush.msra.mxu0 0.0
    %2338 = vmatpush.msra.mxu0 0.0
    %2339 = vmatpush.msra.mxu0 0.0
    %2340 = vmatpush.msra.mxu0 0.0
    %2341 = vmatpush.msra.mxu0 0.0
    %2342 = vmatpush.msra.mxu0 0.0
    %2343 = vmatpush.msra.mxu0 0.0
    %2344 = vmatpush.msra.mxu0 0.0
    %2345 = vmatpush.msra.mxu0 0.0
    %2346 = vmatpush.msra.mxu0 0.0
    %2347 = vmatpush.msra.mxu0 0.0
    %2348 = vmatpush.msra.mxu0 0.0
    %v2349 = vand.u32 %v2328, 4294901760
    %2350 = vmatpush.msra.mxu0 %v2349
    %v2351 = vand.u32 %v2327, 4294901760
    %2352 = vmatpush.msra.mxu0 %v2351
    %v2353 = vand.u32 %v2330, 4294901760
    %v2354 = vsub.f32 %v2330, %v2353
    %v2355 = vand.u32 %v2354, 4294901760
    %v2356 = vsub.f32 %v2354, %v2355
    %v2357 = vand.u32 %v2356, 4294901760
    %2358 = vmatmul.f32.gmra.mxu0 %v2357
    %v2359 = vpop.f32.mrf.mxu0
    %v2360 = vadd.f32 0.0, %v2359
    %v2361 = vand.u32 %v2333, 4294901760
    %v2362 = vsub.f32 %v2333, %v2361
    %v2363 = vand.u32 %v2362, 4294901760
    %v2364 = vsub.f32 %v2362, %v2363
    %v2365 = vand.u32 %v2364, 4294901760
    %2366 = vmatmul.f32.gmra.mxu0 %v2365
    %v2367 = vpop.f32.mrf.mxu0
    %v2368 = vadd.f32 0.0, %v2367
    %2369 = vdwg.mxu0
    %2370 = vmatpush.msra.mxu0 0.0
    %2371 = vmatpush.msra.mxu0 0.0
    %2372 = vmatpush.msra.mxu0 0.0
    %2373 = vmatpush.msra.mxu0 0.0
    %2374 = vmatpush.msra.mxu0 0.0
    %2375 = vmatpush.msra.mxu0 0.0
    %2376 = vmatpush.msra.mxu0 0.0
    %2377 = vmatpush.msra.mxu0 0.0
    %2378 = vmatpush.msra.mxu0 0.0
    %2379 = vmatpush.msra.mxu0 0.0
    %2380 = vmatpush.msra.mxu0 0.0
    %2381 = vmatpush.msra.mxu0 0.0
    %2382 = vmatpush.msra.mxu0 0.0
    %2383 = vmatpush.msra.mxu0 0.0
    %v2384 = vand.u32 %v2328, 4294901760
    %v2385 = vsub.f32 %v2328, %v2384
    %v2386 = vand.u32 %v2385, 4294901760
    %v2387 = vsub.f32 %v2385, %v2386
    %v2388 = vand.u32 %v2387, 4294901760
    %2389 = vmatpush.msra.mxu0 %v2388
    %v2390 = vand.u32 %v2327, 4294901760
    %v2391 = vsub.f32 %v2327, %v2390
    %v2392 = vand.u32 %v2391, 4294901760
    %v2393 = vsub.f32 %v2391, %v2392
    %v2394 = vand.u32 %v2393, 4294901760
    %2395 = vmatpush.msra.mxu0 %v2394
    %v2396 = vand.u32 %v2330, 4294901760
    %2397 = vmatmul.f32.gmra.mxu0 %v2396
    %v2398 = vpop.f32.mrf.mxu0
    %v2399 = vadd.f32 %v2360, %v2398
    %v2400 = vand.u32 %v2333, 4294901760
    %2401 = vmatmul.f32.gmra.mxu0 %v2400
    %v2402 = vpop.f32.mrf.mxu0
    %v2403 = vadd.f32 %v2368, %v2402
    %2404 = vdwg.mxu0
    %2405 = vmatpush.msra.mxu0 0.0
    %2406 = vmatpush.msra.mxu0 0.0
    %2407 = vmatpush.msra.mxu0 0.0
    %2408 = vmatpush.msra.mxu0 0.0
    %2409 = vmatpush.msra.mxu0 0.0
    %2410 = vmatpush.msra.mxu0 0.0
    %2411 = vmatpush.msra.mxu0 0.0
    %2412 = vmatpush.msra.mxu0 0.0
    %2413 = vmatpush.msra.mxu0 0.0
    %2414 = vmatpush.msra.mxu0 0.0
    %2415 = vmatpush.msra.mxu0 0.0
    %2416 = vmatpush.msra.mxu0 0.0
    %2417 = vmatpush.msra.mxu0 0.0
    %2418 = vmatpush.msra.mxu0 0.0
    %v2419 = vand.u32 %v2328, 4294901760
    %v2420 = vsub.f32 %v2328, %v2419
    %2421 = vmatpush.msra.mxu0 %v2420
    %v2422 = vand.u32 %v2327, 4294901760
    %v2423 = vsub.f32 %v2327, %v2422
    %2424 = vmatpush.msra.mxu0 %v2423
    %v2425 = vand.u32 %v2330, 4294901760
    %v2426 = vsub.f32 %v2330, %v2425
    %2427 = vmatmul.f32.gmra.mxu0 %v2426
    %v2428 = vpop.f32.mrf.mxu0
    %v2429 = vadd.f32 %v2399, %v2428
    %v2430 = vand.u32 %v2333, 4294901760
    %v2431 = vsub.f32 %v2333, %v2430
    %2432 = vmatmul.f32.gmra.mxu0 %v2431
    %v2433 = vpop.f32.mrf.mxu0
    %v2434 = vadd.f32 %v2403, %v2433
    %2435 = vdwg.mxu0
    %2436 = vmatpush.msra.mxu0 0.0
    %2437 = vmatpush.msra.mxu0 0.0
    %2438 = vmatpush.msra.mxu0 0.0
    %2439 = vmatpush.msra.mxu0 0.0
    %2440 = vmatpush.msra.mxu0 0.0
    %2441 = vmatpush.msra.mxu0 0.0
    %2442 = vmatpush.msra.mxu0 0.0
    %2443 = vmatpush.msra.mxu0 0.0
    %2444 = vmatpush.msra.mxu0 0.0
    %2445 = vmatpush.msra.mxu0 0.0
    %2446 = vmatpush.msra.mxu0 0.0
    %2447 = vmatpush.msra.mxu0 0.0
    %2448 = vmatpush.msra.mxu0 0.0
    %2449 = vmatpush.msra.mxu0 0.0
    %v2450 = vand.u32 %v2328, 4294901760
    %2451 = vmatpush.msra.mxu0 %v2450
    %v2452 = vand.u32 %v2327, 4294901760
    %2453 = vmatpush.msra.mxu0 %v2452
    %v2454 = vand.u32 %v2330, 4294901760
    %v2455 = vsub.f32 %v2330, %v2454
    %v2456 = vand.u32 %v2455, 4294901760
    %2457 = vmatmul.f32.gmra.mxu0 %v2456
    %v2458 = vpop.f32.mrf.mxu0
    %v2459 = vadd.f32 %v2429, %v2458
    %v2460 = vand.u32 %v2333, 4294901760
    %v2461 = vsub.f32 %v2333, %v2460
    %v2462 = vand.u32 %v2461, 4294901760
    %2463 = vmatmul.f32.gmra.mxu0 %v2462
    %v2464 = vpop.f32.mrf.mxu0
    %v2465 = vadd.f32 %v2434, %v2464
    %2466 = vdwg.mxu0
    %2467 = vmatpush.msra.mxu0 0.0
    %2468 = vmatpush.msra.mxu0 0.0
    %2469 = vmatpush.msra.mxu0 0.0
    %2470 = vmatpush.msra.mxu0 0.0
    %2471 = vmatpush.msra.mxu0 0.0
    %2472 = vmatpush.msra.mxu0 0.0
    %2473 = vmatpush.msra.mxu0 0.0
    %2474 = vmatpush.msra.mxu0 0.0
    %2475 = vmatpush.msra.mxu0 0.0
    %2476 = vmatpush.msra.mxu0 0.0
    %2477 = vmatpush.msra.mxu0 0.0
    %2478 = vmatpush.msra.mxu0 0.0
    %2479 = vmatpush.msra.mxu0 0.0
    %2480 = vmatpush.msra.mxu0 0.0
    %v2481 = vand.u32 %v2328, 4294901760
    %v2482 = vsub.f32 %v2328, %v2481
    %v2483 = vand.u32 %v2482, 4294901760
    %2484 = vmatpush.msra.mxu0 %v2483
    %v2485 = vand.u32 %v2327, 4294901760
    %v2486 = vsub.f32 %v2327, %v2485
    %v2487 = vand.u32 %v2486, 4294901760
    %2488 = vmatpush.msra.mxu0 %v2487
    %v2489 = vand.u32 %v2330, 4294901760
    %2490 = vmatmul.f32.gmra.mxu0 %v2489
    %v2491 = vpop.f32.mrf.mxu0
    %v2492 = vadd.f32 %v2459, %v2491
    %v2493 = vand.u32 %v2333, 4294901760
    %2494 = vmatmul.f32.gmra.mxu0 %v2493
    %v2495 = vpop.f32.mrf.mxu0
    %v2496 = vadd.f32 %v2465, %v2495
    %2497 = vdwg.mxu0
    %2498 = vmatpush.msra.mxu0 0.0
    %2499 = vmatpush.msra.mxu0 0.0
    %2500 = vmatpush.msra.mxu0 0.0
    %2501 = vmatpush.msra.mxu0 0.0
    %2502 = vmatpush.msra.mxu0 0.0
    %2503 = vmatpush.msra.mxu0 0.0
    %2504 = vmatpush.msra.mxu0 0.0
    %2505 = vmatpush.msra.mxu0 0.0
    %2506 = vmatpush.msra.mxu0 0.0
    %2507 = vmatpush.msra.mxu0 0.0
    %2508 = vmatpush.msra.mxu0 0.0
    %2509 = vmatpush.msra.mxu0 0.0
    %2510 = vmatpush.msra.mxu0 0.0
    %2511 = vmatpush.msra.mxu0 0.0
    %v2512 = vand.u32 %v2328, 4294901760
    %2513 = vmatpush.msra.mxu0 %v2512
    %v2514 = vand.u32 %v2327, 4294901760
    %2515 = vmatpush.msra.mxu0 %v2514
    %v2516 = vand.u32 %v2330, 4294901760
    %2517 = vmatmul.f32.gmra.mxu0 %v2516
    %v2518 = vpop.f32.mrf.mxu0
    %v2519 = vadd.f32 %v2492, %v2518
    %v2520 = vand.u32 %v2333, 4294901760
    %2521 = vmatmul.f32.gmra.mxu0 %v2520
    %v2522 = vpop.f32.mrf.mxu0
    %v2523 = vadd.f32 %v2496, %v2522
    %2524 = vdwg.mxu0
    %v2525 = vadd.f32 %v2070, %v2519
    %v2526 = vadd.f32 %v2071, %v2523
    %v2527 = vld [vmem:[%s2 + $0x60] sm:$0xff]
    %v2528 = vld [vmem:[%s2 + $0x68] sm:$0xff]
    %v2529 = vld [vmem:[%s2 + $0x70] sm:$0xff]
    %v2530 = vld [vmem:[%s2 + $0x78] sm:$0xff]
    %v2531 = vld [vmem:[%s2 + $0x1b7] sm:$0x1]
    %v2532 = vperm.slane %v2531, 0
    %v2534 = vsel %vm38, %v2525, 0
    %v2537 = vsel %vm38, %v2526, 0
    %2539 = vmatpush.msra.mxu0 0.0
    %2540 = vmatpush.msra.mxu0 0.0
    %2541 = vmatpush.msra.mxu0 0.0
    %2542 = vmatpush.msra.mxu0 0.0
    %2543 = vmatpush.msra.mxu0 0.0
    %2544 = vmatpush.msra.mxu0 0.0
    %2545 = vmatpush.msra.mxu0 0.0
    %2546 = vmatpush.msra.mxu0 0.0
    %2547 = vmatpush.msra.mxu0 0.0
    %2548 = vmatpush.msra.mxu0 0.0
    %2549 = vmatpush.msra.mxu0 0.0
    %2550 = vmatpush.msra.mxu0 0.0
    %v2551 = vand.u32 %v2530, 4294901760
    %2552 = vmatpush.msra.mxu0 %v2551
    %v2553 = vand.u32 %v2529, 4294901760
    %2554 = vmatpush.msra.mxu0 %v2553
    %v2555 = vand.u32 %v2528, 4294901760
    %2556 = vmatpush.msra.mxu0 %v2555
    %v2557 = vand.u32 %v2527, 4294901760
    %2558 = vmatpush.msra.mxu0 %v2557
    %v2559 = vand.u32 %v2534, 4294901760
    %v2560 = vsub.f32 %v2534, %v2559
    %v2561 = vand.u32 %v2560, 4294901760
    %v2562 = vsub.f32 %v2560, %v2561
    %v2563 = vand.u32 %v2562, 4294901760
    %2564 = vmatmul.f32.gmra.mxu0 %v2563
    %v2565 = vpop.f32.mrf.mxu0
    %v2566 = vadd.f32 %v2532, %v2565
    %v2567 = vand.u32 %v2537, 4294901760
    %v2568 = vsub.f32 %v2537, %v2567
    %v2569 = vand.u32 %v2568, 4294901760
    %v2570 = vsub.f32 %v2568, %v2569
    %v2571 = vand.u32 %v2570, 4294901760
    %2572 = vmatmul.f32.gmra.mxu0 %v2571
    %v2573 = vpop.f32.mrf.mxu0
    %v2574 = vadd.f32 %v2532, %v2573
    %2575 = vdwg.mxu0
    %2576 = vmatpush.msra.mxu0 0.0
    %2577 = vmatpush.msra.mxu0 0.0
    %2578 = vmatpush.msra.mxu0 0.0
    %2579 = vmatpush.msra.mxu0 0.0
    %2580 = vmatpush.msra.mxu0 0.0
    %2581 = vmatpush.msra.mxu0 0.0
    %2582 = vmatpush.msra.mxu0 0.0
    %2583 = vmatpush.msra.mxu0 0.0
    %2584 = vmatpush.msra.mxu0 0.0
    %2585 = vmatpush.msra.mxu0 0.0
    %2586 = vmatpush.msra.mxu0 0.0
    %2587 = vmatpush.msra.mxu0 0.0
    %v2588 = vand.u32 %v2530, 4294901760
    %v2589 = vsub.f32 %v2530, %v2588
    %v2590 = vand.u32 %v2589, 4294901760
    %v2591 = vsub.f32 %v2589, %v2590
    %v2592 = vand.u32 %v2591, 4294901760
    %2593 = vmatpush.msra.mxu0 %v2592
    %v2594 = vand.u32 %v2529, 4294901760
    %v2595 = vsub.f32 %v2529, %v2594
    %v2596 = vand.u32 %v2595, 4294901760
    %v2597 = vsub.f32 %v2595, %v2596
    %v2598 = vand.u32 %v2597, 4294901760
    %2599 = vmatpush.msra.mxu0 %v2598
    %v2600 = vand.u32 %v2528, 4294901760
    %v2601 = vsub.f32 %v2528, %v2600
    %v2602 = vand.u32 %v2601, 4294901760
    %v2603 = vsub.f32 %v2601, %v2602
    %v2604 = vand.u32 %v2603, 4294901760
    %2605 = vmatpush.msra.mxu0 %v2604
    %v2606 = vand.u32 %v2527, 4294901760
    %v2607 = vsub.f32 %v2527, %v2606
    %v2608 = vand.u32 %v2607, 4294901760
    %v2609 = vsub.f32 %v2607, %v2608
    %v2610 = vand.u32 %v2609, 4294901760
    %2611 = vmatpush.msra.mxu0 %v2610
    %v2612 = vand.u32 %v2534, 4294901760
    %2613 = vmatmul.f32.gmra.mxu0 %v2612
    %v2614 = vpop.f32.mrf.mxu0
    %v2615 = vadd.f32 %v2566, %v2614
    %v2616 = vand.u32 %v2537, 4294901760
    %2617 = vmatmul.f32.gmra.mxu0 %v2616
    %v2618 = vpop.f32.mrf.mxu0
    %v2619 = vadd.f32 %v2574, %v2618
    %2620 = vdwg.mxu0
    %2621 = vmatpush.msra.mxu0 0.0
    %2622 = vmatpush.msra.mxu0 0.0
    %2623 = vmatpush.msra.mxu0 0.0
    %2624 = vmatpush.msra.mxu0 0.0
    %2625 = vmatpush.msra.mxu0 0.0
    %2626 = vmatpush.msra.mxu0 0.0
    %2627 = vmatpush.msra.mxu0 0.0
    %2628 = vmatpush.msra.mxu0 0.0
    %2629 = vmatpush.msra.mxu0 0.0
    %2630 = vmatpush.msra.mxu0 0.0
    %2631 = vmatpush.msra.mxu0 0.0
    %2632 = vmatpush.msra.mxu0 0.0
    %v2633 = vand.u32 %v2530, 4294901760
    %v2634 = vsub.f32 %v2530, %v2633
    %2635 = vmatpush.msra.mxu0 %v2634
    %v2636 = vand.u32 %v2529, 4294901760
    %v2637 = vsub.f32 %v2529, %v2636
    %2638 = vmatpush.msra.mxu0 %v2637
    %v2639 = vand.u32 %v2528, 4294901760
    %v2640 = vsub.f32 %v2528, %v2639
    %2641 = vmatpush.msra.mxu0 %v2640
    %v2642 = vand.u32 %v2527, 4294901760
    %v2643 = vsub.f32 %v2527, %v2642
    %2644 = vmatpush.msra.mxu0 %v2643
    %v2645 = vand.u32 %v2534, 4294901760
    %v2646 = vsub.f32 %v2534, %v2645
    %2647 = vmatmul.f32.gmra.mxu0 %v2646
    %v2648 = vpop.f32.mrf.mxu0
    %v2649 = vadd.f32 %v2615, %v2648
    %v2650 = vand.u32 %v2537, 4294901760
    %v2651 = vsub.f32 %v2537, %v2650
    %2652 = vmatmul.f32.gmra.mxu0 %v2651
    %v2653 = vpop.f32.mrf.mxu0
    %v2654 = vadd.f32 %v2619, %v2653
    %2655 = vdwg.mxu0
    %2656 = vmatpush.msra.mxu0 0.0
    %2657 = vmatpush.msra.mxu0 0.0
    %2658 = vmatpush.msra.mxu0 0.0
    %2659 = vmatpush.msra.mxu0 0.0
    %2660 = vmatpush.msra.mxu0 0.0
    %2661 = vmatpush.msra.mxu0 0.0
    %2662 = vmatpush.msra.mxu0 0.0
    %2663 = vmatpush.msra.mxu0 0.0
    %2664 = vmatpush.msra.mxu0 0.0
    %2665 = vmatpush.msra.mxu0 0.0
    %2666 = vmatpush.msra.mxu0 0.0
    %2667 = vmatpush.msra.mxu0 0.0
    %v2668 = vand.u32 %v2530, 4294901760
    %2669 = vmatpush.msra.mxu0 %v2668
    %v2670 = vand.u32 %v2529, 4294901760
    %2671 = vmatpush.msra.mxu0 %v2670
    %v2672 = vand.u32 %v2528, 4294901760
    %2673 = vmatpush.msra.mxu0 %v2672
    %v2674 = vand.u32 %v2527, 4294901760
    %2675 = vmatpush.msra.mxu0 %v2674
    %v2676 = vand.u32 %v2534, 4294901760
    %v2677 = vsub.f32 %v2534, %v2676
    %v2678 = vand.u32 %v2677, 4294901760
    %2679 = vmatmul.f32.gmra.mxu0 %v2678
    %v2680 = vpop.f32.mrf.mxu0
    %v2681 = vadd.f32 %v2649, %v2680
    %v2682 = vand.u32 %v2537, 4294901760
    %v2683 = vsub.f32 %v2537, %v2682
    %v2684 = vand.u32 %v2683, 4294901760
    %2685 = vmatmul.f32.gmra.mxu0 %v2684
    %v2686 = vpop.f32.mrf.mxu0
    %v2687 = vadd.f32 %v2654, %v2686
    %2688 = vdwg.mxu0
    %2689 = vmatpush.msra.mxu0 0.0
    %2690 = vmatpush.msra.mxu0 0.0
    %2691 = vmatpush.msra.mxu0 0.0
    %2692 = vmatpush.msra.mxu0 0.0
    %2693 = vmatpush.msra.mxu0 0.0
    %2694 = vmatpush.msra.mxu0 0.0
    %2695 = vmatpush.msra.mxu0 0.0
    %2696 = vmatpush.msra.mxu0 0.0
    %2697 = vmatpush.msra.mxu0 0.0
    %2698 = vmatpush.msra.mxu0 0.0
    %2699 = vmatpush.msra.mxu0 0.0
    %2700 = vmatpush.msra.mxu0 0.0
    %v2701 = vand.u32 %v2530, 4294901760
    %v2702 = vsub.f32 %v2530, %v2701
    %v2703 = vand.u32 %v2702, 4294901760
    %2704 = vmatpush.msra.mxu0 %v2703
    %v2705 = vand.u32 %v2529, 4294901760
    %v2706 = vsub.f32 %v2529, %v2705
    %v2707 = vand.u32 %v2706, 4294901760
    %2708 = vmatpush.msra.mxu0 %v2707
    %v2709 = vand.u32 %v2528, 4294901760
    %v2710 = vsub.f32 %v2528, %v2709
    %v2711 = vand.u32 %v2710, 4294901760
    %2712 = vmatpush.msra.mxu0 %v2711
    %v2713 = vand.u32 %v2527, 4294901760
    %v2714 = vsub.f32 %v2527, %v2713
    %v2715 = vand.u32 %v2714, 4294901760
    %2716 = vmatpush.msra.mxu0 %v2715
    %v2717 = vand.u32 %v2534, 4294901760
    %2718 = vmatmul.f32.gmra.mxu0 %v2717
    %v2719 = vpop.f32.mrf.mxu0
    %v2720 = vadd.f32 %v2681, %v2719
    %v2721 = vand.u32 %v2537, 4294901760
    %2722 = vmatmul.f32.gmra.mxu0 %v2721
    %v2723 = vpop.f32.mrf.mxu0
    %v2724 = vadd.f32 %v2687, %v2723
    %2725 = vdwg.mxu0
    %2726 = vmatpush.msra.mxu0 0.0
    %2727 = vmatpush.msra.mxu0 0.0
    %2728 = vmatpush.msra.mxu0 0.0
    %2729 = vmatpush.msra.mxu0 0.0
    %2730 = vmatpush.msra.mxu0 0.0
    %2731 = vmatpush.msra.mxu0 0.0
    %2732 = vmatpush.msra.mxu0 0.0
    %2733 = vmatpush.msra.mxu0 0.0
    %2734 = vmatpush.msra.mxu0 0.0
    %2735 = vmatpush.msra.mxu0 0.0
    %2736 = vmatpush.msra.mxu0 0.0
    %2737 = vmatpush.msra.mxu0 0.0
    %v2738 = vand.u32 %v2530, 4294901760
    %2739 = vmatpush.msra.mxu0 %v2738
    %v2740 = vand.u32 %v2529, 4294901760
    %2741 = vmatpush.msra.mxu0 %v2740
    %v2742 = vand.u32 %v2528, 4294901760
    %2743 = vmatpush.msra.mxu0 %v2742
    %v2744 = vand.u32 %v2527, 4294901760
    %2745 = vmatpush.msra.mxu0 %v2744
    %v2746 = vand.u32 %v2534, 4294901760
    %2747 = vmatmul.f32.gmra.mxu0 %v2746
    %v2748 = vpop.f32.mrf.mxu0
    %v2749 = vadd.f32 %v2720, %v2748
    %v2750 = vand.u32 %v2537, 4294901760
    %2751 = vmatmul.f32.gmra.mxu0 %v2750
    %v2752 = vpop.f32.mrf.mxu0
    %v2753 = vadd.f32 %v2724, %v2752
    %2754 = vdwg.mxu0
    %v2755 = vadd.f32 %v15, %v2749
    %v2756 = vadd.f32 %v16, %v2753
    %v2757 = vld [vmem:[%s2 + $0x1bf] sm:$0x1]
    %v2758 = vld [vmem:[%s2 + $0x1c0] sm:$0x1]
    %v2759 = vsel %vm38, %v2755, 0.0
    %2760 = vadd.xlane.f32.xlu0 %v2759
    %v2761 = vpop.xlane.xlu0 %2760
    %v2762 = vsel %vm38, %v2756, 0.0
    %2763 = vadd.xlane.f32.xlu0 %v2762
    %v2764 = vpop.xlane.xlu0 %2763
    %v2765 = vrcp.pop 32.0
    %v2766 = vmul.f32 32.0, %v2765
    %v2767 = vsub.f32 1.0, %v2766
    %v2768 = vmul.f32 %v2765, %v2767
    %v2769 = vadd.f32 %v2765, %v2768
    %vm2770 = vweird.f32 %v2765
    %v2771 = vsel %vm2770, %v2765, %v2769
    %v2772 = vmul.f32 %v2761, %v2771
    %v2773 = vmul.f32 %v2764, %v2771
    %v2774 = vsub.f32 %v2755, %v2772
    %v2775 = vsub.f32 %v2756, %v2773
    %v2776 = vmul.f32 %v2774, %v2774
    %v2777 = vmul.f32 %v2775, %v2775
    %v2778 = vsel %vm38, %v2776, 0.0
    %2779 = vadd.xlane.f32.xlu0 %v2778
    %v2780 = vpop.xlane.xlu0 %2779
    %v2781 = vsel %vm38, %v2777, 0.0
    %2782 = vadd.xlane.f32.xlu0 %v2781
    %v2783 = vpop.xlane.xlu0 %2782
    %v2784 = vmul.f32 %v2780, %v2771
    %v2785 = vmul.f32 %v2783, %v2771
    %v2786 = vadd.f32 %v2784, 1e-05
    %v2787 = vadd.f32 %v2785, 1e-05
    %v2788 = vrsqrt.pop %v2786
    %v2789 = vmul.f32 %v2788, %v2786
    %v2790 = vmul.f32 %v2789, %v2788
    %v2791 = vmul.f32 0.5, %v2790
    %v2792 = vsub.f32 1.5, %v2791
    %v2793 = vmul.f32 %v2788, %v2792
    %vm2794 = vweird.f32 %v2786
    %vm2795 = vweird.f32 %v2788
    %vm2796 = vmor %vm2794, %vm2795
    %v2797 = vsel %vm2796, %v2788, %v2793
    %v2798 = vrsqrt.pop %v2787
    %v2799 = vmul.f32 %v2798, %v2787
    %v2800 = vmul.f32 %v2799, %v2798
    %v2801 = vmul.f32 0.5, %v2800
    %v2802 = vsub.f32 1.5, %v2801
    %v2803 = vmul.f32 %v2798, %v2802
    %vm2804 = vweird.f32 %v2787
    %vm2805 = vweird.f32 %v2798
    %vm2806 = vmor %vm2804, %vm2805
    %v2807 = vsel %vm2806, %v2798, %v2803
    %v2808 = vmul.f32 %v2774, %v2797
    %v2809 = vmul.f32 %v2775, %v2807
    %v2810 = vperm.slane %v2757, 0
    %v2811 = vmul.f32 %v2808, %v2810
    %v2812 = vmul.f32 %v2809, %v2810
    %v2813 = vperm.slane %v2758, 0
    %v2814 = vadd.f32 %v2811, %v2813
    %v2815 = vadd.f32 %v2812, %v2813
    %v2816 = vadd.f32 %v2814, %v17
    %v2817 = vadd.f32 %v2815, %v18
    %v2818 = vld [vmem:[%s2 + $0x80] sm:$0xff]
    %v2819 = vld [vmem:[%s2 + $0x88] sm:$0xff]
    %v2820 = vld [vmem:[%s2 + $0x90] sm:$0xff]
    %v2821 = vld [vmem:[%s2 + $0x98] sm:$0xff]
    %v2822 = vld [vmem:[%s2 + $0x1b8] sm:$0x1]
    %v2823 = vperm.slane %v2822, 0
    %v2825 = vsel %vm38, %v2816, 0
    %v2828 = vsel %vm38, %v2817, 0
    %2830 = vmatpush.msra.mxu0 0.0
    %2831 = vmatpush.msra.mxu0 0.0
    %2832 = vmatpush.msra.mxu0 0.0
    %2833 = vmatpush.msra.mxu0 0.0
    %2834 = vmatpush.msra.mxu0 0.0
    %2835 = vmatpush.msra.mxu0 0.0
    %2836 = vmatpush.msra.mxu0 0.0
    %2837 = vmatpush.msra.mxu0 0.0
    %2838 = vmatpush.msra.mxu0 0.0
    %2839 = vmatpush.msra.mxu0 0.0
    %2840 = vmatpush.msra.mxu0 0.0
    %2841 = vmatpush.msra.mxu0 0.0
    %v2842 = vand.u32 %v2821, 4294901760
    %2843 = vmatpush.msra.mxu0 %v2842
    %v2844 = vand.u32 %v2820, 4294901760
    %2845 = vmatpush.msra.mxu0 %v2844
    %v2846 = vand.u32 %v2819, 4294901760
    %2847 = vmatpush.msra.mxu0 %v2846
    %v2848 = vand.u32 %v2818, 4294901760
    %2849 = vmatpush.msra.mxu0 %v2848
    %v2850 = vand.u32 %v2825, 4294901760
    %v2851 = vsub.f32 %v2825, %v2850
    %v2852 = vand.u32 %v2851, 4294901760
    %v2853 = vsub.f32 %v2851, %v2852
    %v2854 = vand.u32 %v2853, 4294901760
    %2855 = vmatmul.f32.gmra.mxu0 %v2854
    %v2856 = vpop.f32.mrf.mxu0
    %v2857 = vadd.f32 %v2823, %v2856
    %v2858 = vand.u32 %v2828, 4294901760
    %v2859 = vsub.f32 %v2828, %v2858
    %v2860 = vand.u32 %v2859, 4294901760
    %v2861 = vsub.f32 %v2859, %v2860
    %v2862 = vand.u32 %v2861, 4294901760
    %2863 = vmatmul.f32.gmra.mxu0 %v2862
    %v2864 = vpop.f32.mrf.mxu0
    %v2865 = vadd.f32 %v2823, %v2864
    %2866 = vdwg.mxu0
    %2867 = vmatpush.msra.mxu0 0.0
    %2868 = vmatpush.msra.mxu0 0.0
    %2869 = vmatpush.msra.mxu0 0.0
    %2870 = vmatpush.msra.mxu0 0.0
    %2871 = vmatpush.msra.mxu0 0.0
    %2872 = vmatpush.msra.mxu0 0.0
    %2873 = vmatpush.msra.mxu0 0.0
    %2874 = vmatpush.msra.mxu0 0.0
    %2875 = vmatpush.msra.mxu0 0.0
    %2876 = vmatpush.msra.mxu0 0.0
    %2877 = vmatpush.msra.mxu0 0.0
    %2878 = vmatpush.msra.mxu0 0.0
    %v2879 = vand.u32 %v2821, 4294901760
    %v2880 = vsub.f32 %v2821, %v2879
    %v2881 = vand.u32 %v2880, 4294901760
    %v2882 = vsub.f32 %v2880, %v2881
    %v2883 = vand.u32 %v2882, 4294901760
    %2884 = vmatpush.msra.mxu0 %v2883
    %v2885 = vand.u32 %v2820, 4294901760
    %v2886 = vsub.f32 %v2820, %v2885
    %v2887 = vand.u32 %v2886, 4294901760
    %v2888 = vsub.f32 %v2886, %v2887
    %v2889 = vand.u32 %v2888, 4294901760
    %2890 = vmatpush.msra.mxu0 %v2889
    %v2891 = vand.u32 %v2819, 4294901760
    %v2892 = vsub.f32 %v2819, %v2891
    %v2893 = vand.u32 %v2892, 4294901760
    %v2894 = vsub.f32 %v2892, %v2893
    %v2895 = vand.u32 %v2894, 4294901760
    %2896 = vmatpush.msra.mxu0 %v2895
    %v2897 = vand.u32 %v2818, 4294901760
    %v2898 = vsub.f32 %v2818, %v2897
    %v2899 = vand.u32 %v2898, 4294901760
    %v2900 = vsub.f32 %v2898, %v2899
    %v2901 = vand.u32 %v2900, 4294901760
    %2902 = vmatpush.msra.mxu0 %v2901
    %v2903 = vand.u32 %v2825, 4294901760
    %2904 = vmatmul.f32.gmra.mxu0 %v2903
    %v2905 = vpop.f32.mrf.mxu0
    %v2906 = vadd.f32 %v2857, %v2905
    %v2907 = vand.u32 %v2828, 4294901760
    %2908 = vmatmul.f32.gmra.mxu0 %v2907
    %v2909 = vpop.f32.mrf.mxu0
    %v2910 = vadd.f32 %v2865, %v2909
    %2911 = vdwg.mxu0
    %2912 = vmatpush.msra.mxu0 0.0
    %2913 = vmatpush.msra.mxu0 0.0
    %2914 = vmatpush.msra.mxu0 0.0
    %2915 = vmatpush.msra.mxu0 0.0
    %2916 = vmatpush.msra.mxu0 0.0
    %2917 = vmatpush.msra.mxu0 0.0
    %2918 = vmatpush.msra.mxu0 0.0
    %2919 = vmatpush.msra.mxu0 0.0
    %2920 = vmatpush.msra.mxu0 0.0
    %2921 = vmatpush.msra.mxu0 0.0
    %2922 = vmatpush.msra.mxu0 0.0
    %2923 = vmatpush.msra.mxu0 0.0
    %v2924 = vand.u32 %v2821, 4294901760
    %v2925 = vsub.f32 %v2821, %v2924
    %2926 = vmatpush.msra.mxu0 %v2925
    %v2927 = vand.u32 %v2820, 4294901760
    %v2928 = vsub.f32 %v2820, %v2927
    %2929 = vmatpush.msra.mxu0 %v2928
    %v2930 = vand.u32 %v2819, 4294901760
    %v2931 = vsub.f32 %v2819, %v2930
    %2932 = vmatpush.msra.mxu0 %v2931
    %v2933 = vand.u32 %v2818, 4294901760
    %v2934 = vsub.f32 %v2818, %v2933
    %2935 = vmatpush.msra.mxu0 %v2934
    %v2936 = vand.u32 %v2825, 4294901760
    %v2937 = vsub.f32 %v2825, %v2936
    %2938 = vmatmul.f32.gmra.mxu0 %v2937
    %v2939 = vpop.f32.mrf.mxu0
    %v2940 = vadd.f32 %v2906, %v2939
    %v2941 = vand.u32 %v2828, 4294901760
    %v2942 = vsub.f32 %v2828, %v2941
    %2943 = vmatmul.f32.gmra.mxu0 %v2942
    %v2944 = vpop.f32.mrf.mxu0
    %v2945 = vadd.f32 %v2910, %v2944
    %2946 = vdwg.mxu0
    %2947 = vmatpush.msra.mxu0 0.0
    %2948 = vmatpush.msra.mxu0 0.0
    %2949 = vmatpush.msra.mxu0 0.0
    %2950 = vmatpush.msra.mxu0 0.0
    %2951 = vmatpush.msra.mxu0 0.0
    %2952 = vmatpush.msra.mxu0 0.0
    %2953 = vmatpush.msra.mxu0 0.0
    %2954 = vmatpush.msra.mxu0 0.0
    %2955 = vmatpush.msra.mxu0 0.0
    %2956 = vmatpush.msra.mxu0 0.0
    %2957 = vmatpush.msra.mxu0 0.0
    %2958 = vmatpush.msra.mxu0 0.0
    %v2959 = vand.u32 %v2821, 4294901760
    %2960 = vmatpush.msra.mxu0 %v2959
    %v2961 = vand.u32 %v2820, 4294901760
    %2962 = vmatpush.msra.mxu0 %v2961
    %v2963 = vand.u32 %v2819, 4294901760
    %2964 = vmatpush.msra.mxu0 %v2963
    %v2965 = vand.u32 %v2818, 4294901760
    %2966 = vmatpush.msra.mxu0 %v2965
    %v2967 = vand.u32 %v2825, 4294901760
    %v2968 = vsub.f32 %v2825, %v2967
    %v2969 = vand.u32 %v2968, 4294901760
    %2970 = vmatmul.f32.gmra.mxu0 %v2969
    %v2971 = vpop.f32.mrf.mxu0
    %v2972 = vadd.f32 %v2940, %v2971
    %v2973 = vand.u32 %v2828, 4294901760
    %v2974 = vsub.f32 %v2828, %v2973
    %v2975 = vand.u32 %v2974, 4294901760
    %2976 = vmatmul.f32.gmra.mxu0 %v2975
    %v2977 = vpop.f32.mrf.mxu0
    %v2978 = vadd.f32 %v2945, %v2977
    %2979 = vdwg.mxu0
    %2980 = vmatpush.msra.mxu0 0.0
    %2981 = vmatpush.msra.mxu0 0.0
    %2982 = vmatpush.msra.mxu0 0.0
    %2983 = vmatpush.msra.mxu0 0.0
    %2984 = vmatpush.msra.mxu0 0.0
    %2985 = vmatpush.msra.mxu0 0.0
    %2986 = vmatpush.msra.mxu0 0.0
    %2987 = vmatpush.msra.mxu0 0.0
    %2988 = vmatpush.msra.mxu0 0.0
    %2989 = vmatpush.msra.mxu0 0.0
    %2990 = vmatpush.msra.mxu0 0.0
    %2991 = vmatpush.msra.mxu0 0.0
    %v2992 = vand.u32 %v2821, 4294901760
    %v2993 = vsub.f32 %v2821, %v2992
    %v2994 = vand.u32 %v2993, 4294901760
    %2995 = vmatpush.msra.mxu0 %v2994
    %v2996 = vand.u32 %v2820, 4294901760
    %v2997 = vsub.f32 %v2820, %v2996
    %v2998 = vand.u32 %v2997, 4294901760
    %2999 = vmatpush.msra.mxu0 %v2998
    %v3000 = vand.u32 %v2819, 4294901760
    %v3001 = vsub.f32 %v2819, %v3000
    %v3002 = vand.u32 %v3001, 4294901760
    %3003 = vmatpush.msra.mxu0 %v3002
    %v3004 = vand.u32 %v2818, 4294901760
    %v3005 = vsub.f32 %v2818, %v3004
    %v3006 = vand.u32 %v3005, 4294901760
    %3007 = vmatpush.msra.mxu0 %v3006
    %v3008 = vand.u32 %v2825, 4294901760
    %3009 = vmatmul.f32.gmra.mxu0 %v3008
    %v3010 = vpop.f32.mrf.mxu0
    %v3011 = vadd.f32 %v2972, %v3010
    %v3012 = vand.u32 %v2828, 4294901760
    %3013 = vmatmul.f32.gmra.mxu0 %v3012
    %v3014 = vpop.f32.mrf.mxu0
    %v3015 = vadd.f32 %v2978, %v3014
    %3016 = vdwg.mxu0
    %3017 = vmatpush.msra.mxu0 0.0
    %3018 = vmatpush.msra.mxu0 0.0
    %3019 = vmatpush.msra.mxu0 0.0
    %3020 = vmatpush.msra.mxu0 0.0
    %3021 = vmatpush.msra.mxu0 0.0
    %3022 = vmatpush.msra.mxu0 0.0
    %3023 = vmatpush.msra.mxu0 0.0
    %3024 = vmatpush.msra.mxu0 0.0
    %3025 = vmatpush.msra.mxu0 0.0
    %3026 = vmatpush.msra.mxu0 0.0
    %3027 = vmatpush.msra.mxu0 0.0
    %3028 = vmatpush.msra.mxu0 0.0
    %v3029 = vand.u32 %v2821, 4294901760
    %3030 = vmatpush.msra.mxu0 %v3029
    %v3031 = vand.u32 %v2820, 4294901760
    %3032 = vmatpush.msra.mxu0 %v3031
    %v3033 = vand.u32 %v2819, 4294901760
    %3034 = vmatpush.msra.mxu0 %v3033
    %v3035 = vand.u32 %v2818, 4294901760
    %3036 = vmatpush.msra.mxu0 %v3035
    %v3037 = vand.u32 %v2825, 4294901760
    %3038 = vmatmul.f32.gmra.mxu0 %v3037
    %v3039 = vpop.f32.mrf.mxu0
    %v3040 = vadd.f32 %v3011, %v3039
    %v3041 = vand.u32 %v2828, 4294901760
    %3042 = vmatmul.f32.gmra.mxu0 %v3041
    %v3043 = vpop.f32.mrf.mxu0
    %v3044 = vadd.f32 %v3015, %v3043
    %3045 = vdwg.mxu0
    %v3046 = vld [vmem:[%s2 + $0xa0] sm:$0xff]
    %v3047 = vld [vmem:[%s2 + $0xa8] sm:$0xff]
    %v3048 = vld [vmem:[%s2 + $0xb0] sm:$0xff]
    %v3049 = vld [vmem:[%s2 + $0xb8] sm:$0xff]
    %v3050 = vld [vmem:[%s2 + $0x1b9] sm:$0x1]
    %v3051 = vperm.slane %v3050, 0
    %3052 = vmatpush.msra.mxu0 0.0
    %3053 = vmatpush.msra.mxu0 0.0
    %3054 = vmatpush.msra.mxu0 0.0
    %3055 = vmatpush.msra.mxu0 0.0
    %3056 = vmatpush.msra.mxu0 0.0
    %3057 = vmatpush.msra.mxu0 0.0
    %3058 = vmatpush.msra.mxu0 0.0
    %3059 = vmatpush.msra.mxu0 0.0
    %3060 = vmatpush.msra.mxu0 0.0
    %3061 = vmatpush.msra.mxu0 0.0
    %3062 = vmatpush.msra.mxu0 0.0
    %3063 = vmatpush.msra.mxu0 0.0
    %v3064 = vand.u32 %v3049, 4294901760
    %3065 = vmatpush.msra.mxu0 %v3064
    %v3066 = vand.u32 %v3048, 4294901760
    %3067 = vmatpush.msra.mxu0 %v3066
    %v3068 = vand.u32 %v3047, 4294901760
    %3069 = vmatpush.msra.mxu0 %v3068
    %v3070 = vand.u32 %v3046, 4294901760
    %3071 = vmatpush.msra.mxu0 %v3070
    %v3072 = vand.u32 %v2825, 4294901760
    %v3073 = vsub.f32 %v2825, %v3072
    %v3074 = vand.u32 %v3073, 4294901760
    %v3075 = vsub.f32 %v3073, %v3074
    %v3076 = vand.u32 %v3075, 4294901760
    %3077 = vmatmul.f32.gmra.mxu0 %v3076
    %v3078 = vpop.f32.mrf.mxu0
    %v3079 = vadd.f32 %v3051, %v3078
    %v3080 = vand.u32 %v2828, 4294901760
    %v3081 = vsub.f32 %v2828, %v3080
    %v3082 = vand.u32 %v3081, 4294901760
    %v3083 = vsub.f32 %v3081, %v3082
    %v3084 = vand.u32 %v3083, 4294901760
    %3085 = vmatmul.f32.gmra.mxu0 %v3084
    %v3086 = vpop.f32.mrf.mxu0
    %v3087 = vadd.f32 %v3051, %v3086
    %3088 = vdwg.mxu0
    %3089 = vmatpush.msra.mxu0 0.0
    %3090 = vmatpush.msra.mxu0 0.0
    %3091 = vmatpush.msra.mxu0 0.0
    %3092 = vmatpush.msra.mxu0 0.0
    %3093 = vmatpush.msra.mxu0 0.0
    %3094 = vmatpush.msra.mxu0 0.0
    %3095 = vmatpush.msra.mxu0 0.0
    %3096 = vmatpush.msra.mxu0 0.0
    %3097 = vmatpush.msra.mxu0 0.0
    %3098 = vmatpush.msra.mxu0 0.0
    %3099 = vmatpush.msra.mxu0 0.0
    %3100 = vmatpush.msra.mxu0 0.0
    %v3101 = vand.u32 %v3049, 4294901760
    %v3102 = vsub.f32 %v3049, %v3101
    %v3103 = vand.u32 %v3102, 4294901760
    %v3104 = vsub.f32 %v3102, %v3103
    %v3105 = vand.u32 %v3104, 4294901760
    %3106 = vmatpush.msra.mxu0 %v3105
    %v3107 = vand.u32 %v3048, 4294901760
    %v3108 = vsub.f32 %v3048, %v3107
    %v3109 = vand.u32 %v3108, 4294901760
    %v3110 = vsub.f32 %v3108, %v3109
    %v3111 = vand.u32 %v3110, 4294901760
    %3112 = vmatpush.msra.mxu0 %v3111
    %v3113 = vand.u32 %v3047, 4294901760
    %v3114 = vsub.f32 %v3047, %v3113
    %v3115 = vand.u32 %v3114, 4294901760
    %v3116 = vsub.f32 %v3114, %v3115
    %v3117 = vand.u32 %v3116, 4294901760
    %3118 = vmatpush.msra.mxu0 %v3117
    %v3119 = vand.u32 %v3046, 4294901760
    %v3120 = vsub.f32 %v3046, %v3119
    %v3121 = vand.u32 %v3120, 4294901760
    %v3122 = vsub.f32 %v3120, %v3121
    %v3123 = vand.u32 %v3122, 4294901760
    %3124 = vmatpush.msra.mxu0 %v3123
    %v3125 = vand.u32 %v2825, 4294901760
    %3126 = vmatmul.f32.gmra.mxu0 %v3125
    %v3127 = vpop.f32.mrf.mxu0
    %v3128 = vadd.f32 %v3079, %v3127
    %v3129 = vand.u32 %v2828, 4294901760
    %3130 = vmatmul.f32.gmra.mxu0 %v3129
    %v3131 = vpop.f32.mrf.mxu0
    %v3132 = vadd.f32 %v3087, %v3131
    %3133 = vdwg.mxu0
    %3134 = vmatpush.msra.mxu0 0.0
    %3135 = vmatpush.msra.mxu0 0.0
    %3136 = vmatpush.msra.mxu0 0.0
    %3137 = vmatpush.msra.mxu0 0.0
    %3138 = vmatpush.msra.mxu0 0.0
    %3139 = vmatpush.msra.mxu0 0.0
    %3140 = vmatpush.msra.mxu0 0.0
    %3141 = vmatpush.msra.mxu0 0.0
    %3142 = vmatpush.msra.mxu0 0.0
    %3143 = vmatpush.msra.mxu0 0.0
    %3144 = vmatpush.msra.mxu0 0.0
    %3145 = vmatpush.msra.mxu0 0.0
    %v3146 = vand.u32 %v3049, 4294901760
    %v3147 = vsub.f32 %v3049, %v3146
    %3148 = vmatpush.msra.mxu0 %v3147
    %v3149 = vand.u32 %v3048, 4294901760
    %v3150 = vsub.f32 %v3048, %v3149
    %3151 = vmatpush.msra.mxu0 %v3150
    %v3152 = vand.u32 %v3047, 4294901760
    %v3153 = vsub.f32 %v3047, %v3152
    %3154 = vmatpush.msra.mxu0 %v3153
    %v3155 = vand.u32 %v3046, 4294901760
    %v3156 = vsub.f32 %v3046, %v3155
    %3157 = vmatpush.msra.mxu0 %v3156
    %v3158 = vand.u32 %v2825, 4294901760
    %v3159 = vsub.f32 %v2825, %v3158
    %3160 = vmatmul.f32.gmra.mxu0 %v3159
    %v3161 = vpop.f32.mrf.mxu0
    %v3162 = vadd.f32 %v3128, %v3161
    %v3163 = vand.u32 %v2828, 4294901760
    %v3164 = vsub.f32 %v2828, %v3163
    %3165 = vmatmul.f32.gmra.mxu0 %v3164
    %v3166 = vpop.f32.mrf.mxu0
    %v3167 = vadd.f32 %v3132, %v3166
    %3168 = vdwg.mxu0
    %3169 = vmatpush.msra.mxu0 0.0
    %3170 = vmatpush.msra.mxu0 0.0
    %3171 = vmatpush.msra.mxu0 0.0
    %3172 = vmatpush.msra.mxu0 0.0
    %3173 = vmatpush.msra.mxu0 0.0
    %3174 = vmatpush.msra.mxu0 0.0
    %3175 = vmatpush.msra.mxu0 0.0
    %3176 = vmatpush.msra.mxu0 0.0
    %3177 = vmatpush.msra.mxu0 0.0
    %3178 = vmatpush.msra.mxu0 0.0
    %3179 = vmatpush.msra.mxu0 0.0
    %3180 = vmatpush.msra.mxu0 0.0
    %v3181 = vand.u32 %v3049, 4294901760
    %3182 = vmatpush.msra.mxu0 %v3181
    %v3183 = vand.u32 %v3048, 4294901760
    %3184 = vmatpush.msra.mxu0 %v3183
    %v3185 = vand.u32 %v3047, 4294901760
    %3186 = vmatpush.msra.mxu0 %v3185
    %v3187 = vand.u32 %v3046, 4294901760
    %3188 = vmatpush.msra.mxu0 %v3187
    %v3189 = vand.u32 %v2825, 4294901760
    %v3190 = vsub.f32 %v2825, %v3189
    %v3191 = vand.u32 %v3190, 4294901760
    %3192 = vmatmul.f32.gmra.mxu0 %v3191
    %v3193 = vpop.f32.mrf.mxu0
    %v3194 = vadd.f32 %v3162, %v3193
    %v3195 = vand.u32 %v2828, 4294901760
    %v3196 = vsub.f32 %v2828, %v3195
    %v3197 = vand.u32 %v3196, 4294901760
    %3198 = vmatmul.f32.gmra.mxu0 %v3197
    %v3199 = vpop.f32.mrf.mxu0
    %v3200 = vadd.f32 %v3167, %v3199
    %3201 = vdwg.mxu0
    %3202 = vmatpush.msra.mxu0 0.0
    %3203 = vmatpush.msra.mxu0 0.0
    %3204 = vmatpush.msra.mxu0 0.0
    %3205 = vmatpush.msra.mxu0 0.0
    %3206 = vmatpush.msra.mxu0 0.0
    %3207 = vmatpush.msra.mxu0 0.0
    %3208 = vmatpush.msra.mxu0 0.0
    %3209 = vmatpush.msra.mxu0 0.0
    %3210 = vmatpush.msra.mxu0 0.0
    %3211 = vmatpush.msra.mxu0 0.0
    %3212 = vmatpush.msra.mxu0 0.0
    %3213 = vmatpush.msra.mxu0 0.0
    %v3214 = vand.u32 %v3049, 4294901760
    %v3215 = vsub.f32 %v3049, %v3214
    %v3216 = vand.u32 %v3215, 4294901760
    %3217 = vmatpush.msra.mxu0 %v3216
    %v3218 = vand.u32 %v3048, 4294901760
    %v3219 = vsub.f32 %v3048, %v3218
    %v3220 = vand.u32 %v3219, 4294901760
    %3221 = vmatpush.msra.mxu0 %v3220
    %v3222 = vand.u32 %v3047, 4294901760
    %v3223 = vsub.f32 %v3047, %v3222
    %v3224 = vand.u32 %v3223, 4294901760
    %3225 = vmatpush.msra.mxu0 %v3224
    %v3226 = vand.u32 %v3046, 4294901760
    %v3227 = vsub.f32 %v3046, %v3226
    %v3228 = vand.u32 %v3227, 4294901760
    %3229 = vmatpush.msra.mxu0 %v3228
    %v3230 = vand.u32 %v2825, 4294901760
    %3231 = vmatmul.f32.gmra.mxu0 %v3230
    %v3232 = vpop.f32.mrf.mxu0
    %v3233 = vadd.f32 %v3194, %v3232
    %v3234 = vand.u32 %v2828, 4294901760
    %3235 = vmatmul.f32.gmra.mxu0 %v3234
    %v3236 = vpop.f32.mrf.mxu0
    %v3237 = vadd.f32 %v3200, %v3236
    %3238 = vdwg.mxu0
    %3239 = vmatpush.msra.mxu0 0.0
    %3240 = vmatpush.msra.mxu0 0.0
    %3241 = vmatpush.msra.mxu0 0.0
    %3242 = vmatpush.msra.mxu0 0.0
    %3243 = vmatpush.msra.mxu0 0.0
    %3244 = vmatpush.msra.mxu0 0.0
    %3245 = vmatpush.msra.mxu0 0.0
    %3246 = vmatpush.msra.mxu0 0.0
    %3247 = vmatpush.msra.mxu0 0.0
    %3248 = vmatpush.msra.mxu0 0.0
    %3249 = vmatpush.msra.mxu0 0.0
    %3250 = vmatpush.msra.mxu0 0.0
    %v3251 = vand.u32 %v3049, 4294901760
    %3252 = vmatpush.msra.mxu0 %v3251
    %v3253 = vand.u32 %v3048, 4294901760
    %3254 = vmatpush.msra.mxu0 %v3253
    %v3255 = vand.u32 %v3047, 4294901760
    %3256 = vmatpush.msra.mxu0 %v3255
    %v3257 = vand.u32 %v3046, 4294901760
    %3258 = vmatpush.msra.mxu0 %v3257
    %v3259 = vand.u32 %v2825, 4294901760
    %3260 = vmatmul.f32.gmra.mxu0 %v3259
    %v3261 = vpop.f32.mrf.mxu0
    %v3262 = vadd.f32 %v3233, %v3261
    %v3263 = vand.u32 %v2828, 4294901760
    %3264 = vmatmul.f32.gmra.mxu0 %v3263
    %v3265 = vpop.f32.mrf.mxu0
    %v3266 = vadd.f32 %v3237, %v3265
    %3267 = vdwg.mxu0
    %v3268 = vld [vmem:[%s2 + $0xc0] sm:$0xff]
    %v3269 = vld [vmem:[%s2 + $0xc8] sm:$0xff]
    %v3270 = vld [vmem:[%s2 + $0xd0] sm:$0xff]
    %v3271 = vld [vmem:[%s2 + $0xd8] sm:$0xff]
    %v3272 = vld [vmem:[%s2 + $0x1ba] sm:$0x1]
    %v3273 = vperm.slane %v3272, 0
    %3274 = vmatpush.msra.mxu0 0.0
    %3275 = vmatpush.msra.mxu0 0.0
    %3276 = vmatpush.msra.mxu0 0.0
    %3277 = vmatpush.msra.mxu0 0.0
    %3278 = vmatpush.msra.mxu0 0.0
    %3279 = vmatpush.msra.mxu0 0.0
    %3280 = vmatpush.msra.mxu0 0.0
    %3281 = vmatpush.msra.mxu0 0.0
    %3282 = vmatpush.msra.mxu0 0.0
    %3283 = vmatpush.msra.mxu0 0.0
    %3284 = vmatpush.msra.mxu0 0.0
    %3285 = vmatpush.msra.mxu0 0.0
    %v3286 = vand.u32 %v3271, 4294901760
    %3287 = vmatpush.msra.mxu0 %v3286
    %v3288 = vand.u32 %v3270, 4294901760
    %3289 = vmatpush.msra.mxu0 %v3288
    %v3290 = vand.u32 %v3269, 4294901760
    %3291 = vmatpush.msra.mxu0 %v3290
    %v3292 = vand.u32 %v3268, 4294901760
    %3293 = vmatpush.msra.mxu0 %v3292
    %v3294 = vand.u32 %v2825, 4294901760
    %v3295 = vsub.f32 %v2825, %v3294
    %v3296 = vand.u32 %v3295, 4294901760
    %v3297 = vsub.f32 %v3295, %v3296
    %v3298 = vand.u32 %v3297, 4294901760
    %3299 = vmatmul.f32.gmra.mxu0 %v3298
    %v3300 = vpop.f32.mrf.mxu0
    %v3301 = vadd.f32 %v3273, %v3300
    %v3302 = vand.u32 %v2828, 4294901760
    %v3303 = vsub.f32 %v2828, %v3302
    %v3304 = vand.u32 %v3303, 4294901760
    %v3305 = vsub.f32 %v3303, %v3304
    %v3306 = vand.u32 %v3305, 4294901760
    %3307 = vmatmul.f32.gmra.mxu0 %v3306
    %v3308 = vpop.f32.mrf.mxu0
    %v3309 = vadd.f32 %v3273, %v3308
    %3310 = vdwg.mxu0
    %3311 = vmatpush.msra.mxu0 0.0
    %3312 = vmatpush.msra.mxu0 0.0
    %3313 = vmatpush.msra.mxu0 0.0
    %3314 = vmatpush.msra.mxu0 0.0
    %3315 = vmatpush.msra.mxu0 0.0
    %3316 = vmatpush.msra.mxu0 0.0
    %3317 = vmatpush.msra.mxu0 0.0
    %3318 = vmatpush.msra.mxu0 0.0
    %3319 = vmatpush.msra.mxu0 0.0
    %3320 = vmatpush.msra.mxu0 0.0
    %3321 = vmatpush.msra.mxu0 0.0
    %3322 = vmatpush.msra.mxu0 0.0
    %v3323 = vand.u32 %v3271, 4294901760
    %v3324 = vsub.f32 %v3271, %v3323
    %v3325 = vand.u32 %v3324, 4294901760
    %v3326 = vsub.f32 %v3324, %v3325
    %v3327 = vand.u32 %v3326, 4294901760
    %3328 = vmatpush.msra.mxu0 %v3327
    %v3329 = vand.u32 %v3270, 4294901760
    %v3330 = vsub.f32 %v3270, %v3329
    %v3331 = vand.u32 %v3330, 4294901760
    %v3332 = vsub.f32 %v3330, %v3331
    %v3333 = vand.u32 %v3332, 4294901760
    %3334 = vmatpush.msra.mxu0 %v3333
    %v3335 = vand.u32 %v3269, 4294901760
    %v3336 = vsub.f32 %v3269, %v3335
    %v3337 = vand.u32 %v3336, 4294901760
    %v3338 = vsub.f32 %v3336, %v3337
    %v3339 = vand.u32 %v3338, 4294901760
    %3340 = vmatpush.msra.mxu0 %v3339
    %v3341 = vand.u32 %v3268, 4294901760
    %v3342 = vsub.f32 %v3268, %v3341
    %v3343 = vand.u32 %v3342, 4294901760
    %v3344 = vsub.f32 %v3342, %v3343
    %v3345 = vand.u32 %v3344, 4294901760
    %3346 = vmatpush.msra.mxu0 %v3345
    %v3347 = vand.u32 %v2825, 4294901760
    %3348 = vmatmul.f32.gmra.mxu0 %v3347
    %v3349 = vpop.f32.mrf.mxu0
    %v3350 = vadd.f32 %v3301, %v3349
    %v3351 = vand.u32 %v2828, 4294901760
    %3352 = vmatmul.f32.gmra.mxu0 %v3351
    %v3353 = vpop.f32.mrf.mxu0
    %v3354 = vadd.f32 %v3309, %v3353
    %3355 = vdwg.mxu0
    %3356 = vmatpush.msra.mxu0 0.0
    %3357 = vmatpush.msra.mxu0 0.0
    %3358 = vmatpush.msra.mxu0 0.0
    %3359 = vmatpush.msra.mxu0 0.0
    %3360 = vmatpush.msra.mxu0 0.0
    %3361 = vmatpush.msra.mxu0 0.0
    %3362 = vmatpush.msra.mxu0 0.0
    %3363 = vmatpush.msra.mxu0 0.0
    %3364 = vmatpush.msra.mxu0 0.0
    %3365 = vmatpush.msra.mxu0 0.0
    %3366 = vmatpush.msra.mxu0 0.0
    %3367 = vmatpush.msra.mxu0 0.0
    %v3368 = vand.u32 %v3271, 4294901760
    %v3369 = vsub.f32 %v3271, %v3368
    %3370 = vmatpush.msra.mxu0 %v3369
    %v3371 = vand.u32 %v3270, 4294901760
    %v3372 = vsub.f32 %v3270, %v3371
    %3373 = vmatpush.msra.mxu0 %v3372
    %v3374 = vand.u32 %v3269, 4294901760
    %v3375 = vsub.f32 %v3269, %v3374
    %3376 = vmatpush.msra.mxu0 %v3375
    %v3377 = vand.u32 %v3268, 4294901760
    %v3378 = vsub.f32 %v3268, %v3377
    %3379 = vmatpush.msra.mxu0 %v3378
    %v3380 = vand.u32 %v2825, 4294901760
    %v3381 = vsub.f32 %v2825, %v3380
    %3382 = vmatmul.f32.gmra.mxu0 %v3381
    %v3383 = vpop.f32.mrf.mxu0
    %v3384 = vadd.f32 %v3350, %v3383
    %v3385 = vand.u32 %v2828, 4294901760
    %v3386 = vsub.f32 %v2828, %v3385
    %3387 = vmatmul.f32.gmra.mxu0 %v3386
    %v3388 = vpop.f32.mrf.mxu0
    %v3389 = vadd.f32 %v3354, %v3388
    %3390 = vdwg.mxu0
    %3391 = vmatpush.msra.mxu0 0.0
    %3392 = vmatpush.msra.mxu0 0.0
    %3393 = vmatpush.msra.mxu0 0.0
    %3394 = vmatpush.msra.mxu0 0.0
    %3395 = vmatpush.msra.mxu0 0.0
    %3396 = vmatpush.msra.mxu0 0.0
    %3397 = vmatpush.msra.mxu0 0.0
    %3398 = vmatpush.msra.mxu0 0.0
    %3399 = vmatpush.msra.mxu0 0.0
    %3400 = vmatpush.msra.mxu0 0.0
    %3401 = vmatpush.msra.mxu0 0.0
    %3402 = vmatpush.msra.mxu0 0.0
    %v3403 = vand.u32 %v3271, 4294901760
    %3404 = vmatpush.msra.mxu0 %v3403
    %v3405 = vand.u32 %v3270, 4294901760
    %3406 = vmatpush.msra.mxu0 %v3405
    %v3407 = vand.u32 %v3269, 4294901760
    %3408 = vmatpush.msra.mxu0 %v3407
    %v3409 = vand.u32 %v3268, 4294901760
    %3410 = vmatpush.msra.mxu0 %v3409
    %v3411 = vand.u32 %v2825, 4294901760
    %v3412 = vsub.f32 %v2825, %v3411
    %v3413 = vand.u32 %v3412, 4294901760
    %3414 = vmatmul.f32.gmra.mxu0 %v3413
    %v3415 = vpop.f32.mrf.mxu0
    %v3416 = vadd.f32 %v3384, %v3415
    %v3417 = vand.u32 %v2828, 4294901760
    %v3418 = vsub.f32 %v2828, %v3417
    %v3419 = vand.u32 %v3418, 4294901760
    %3420 = vmatmul.f32.gmra.mxu0 %v3419
    %v3421 = vpop.f32.mrf.mxu0
    %v3422 = vadd.f32 %v3389, %v3421
    %3423 = vdwg.mxu0
    %3424 = vmatpush.msra.mxu0 0.0
    %3425 = vmatpush.msra.mxu0 0.0
    %3426 = vmatpush.msra.mxu0 0.0
    %3427 = vmatpush.msra.mxu0 0.0
    %3428 = vmatpush.msra.mxu0 0.0
    %3429 = vmatpush.msra.mxu0 0.0
    %3430 = vmatpush.msra.mxu0 0.0
    %3431 = vmatpush.msra.mxu0 0.0
    %3432 = vmatpush.msra.mxu0 0.0
    %3433 = vmatpush.msra.mxu0 0.0
    %3434 = vmatpush.msra.mxu0 0.0
    %3435 = vmatpush.msra.mxu0 0.0
    %v3436 = vand.u32 %v3271, 4294901760
    %v3437 = vsub.f32 %v3271, %v3436
    %v3438 = vand.u32 %v3437, 4294901760
    %3439 = vmatpush.msra.mxu0 %v3438
    %v3440 = vand.u32 %v3270, 4294901760
    %v3441 = vsub.f32 %v3270, %v3440
    %v3442 = vand.u32 %v3441, 4294901760
    %3443 = vmatpush.msra.mxu0 %v3442
    %v3444 = vand.u32 %v3269, 4294901760
    %v3445 = vsub.f32 %v3269, %v3444
    %v3446 = vand.u32 %v3445, 4294901760
    %3447 = vmatpush.msra.mxu0 %v3446
    %v3448 = vand.u32 %v3268, 4294901760
    %v3449 = vsub.f32 %v3268, %v3448
    %v3450 = vand.u32 %v3449, 4294901760
    %3451 = vmatpush.msra.mxu0 %v3450
    %v3452 = vand.u32 %v2825, 4294901760
    %3453 = vmatmul.f32.gmra.mxu0 %v3452
    %v3454 = vpop.f32.mrf.mxu0
    %v3455 = vadd.f32 %v3416, %v3454
    %v3456 = vand.u32 %v2828, 4294901760
    %3457 = vmatmul.f32.gmra.mxu0 %v3456
    %v3458 = vpop.f32.mrf.mxu0
    %v3459 = vadd.f32 %v3422, %v3458
    %3460 = vdwg.mxu0
    %3461 = vmatpush.msra.mxu0 0.0
    %3462 = vmatpush.msra.mxu0 0.0
    %3463 = vmatpush.msra.mxu0 0.0
    %3464 = vmatpush.msra.mxu0 0.0
    %3465 = vmatpush.msra.mxu0 0.0
    %3466 = vmatpush.msra.mxu0 0.0
    %3467 = vmatpush.msra.mxu0 0.0
    %3468 = vmatpush.msra.mxu0 0.0
    %3469 = vmatpush.msra.mxu0 0.0
    %3470 = vmatpush.msra.mxu0 0.0
    %3471 = vmatpush.msra.mxu0 0.0
    %3472 = vmatpush.msra.mxu0 0.0
    %v3473 = vand.u32 %v3271, 4294901760
    %3474 = vmatpush.msra.mxu0 %v3473
    %v3475 = vand.u32 %v3270, 4294901760
    %3476 = vmatpush.msra.mxu0 %v3475
    %v3477 = vand.u32 %v3269, 4294901760
    %3478 = vmatpush.msra.mxu0 %v3477
    %v3479 = vand.u32 %v3268, 4294901760
    %3480 = vmatpush.msra.mxu0 %v3479
    %v3481 = vand.u32 %v2825, 4294901760
    %3482 = vmatmul.f32.gmra.mxu0 %v3481
    %v3483 = vpop.f32.mrf.mxu0
    %v3484 = vadd.f32 %v3455, %v3483
    %v3485 = vand.u32 %v2828, 4294901760
    %3486 = vmatmul.f32.gmra.mxu0 %v3485
    %v3487 = vpop.f32.mrf.mxu0
    %v3488 = vadd.f32 %v3459, %v3487
    %3489 = vdwg.mxu0
    %v3490 = vsel %vm38, %v3484, -inf
    %3491 = vmax.xlane.f32.xlu0 %v3490
    %v3492 = vpop.xlane.xlu0 %3491
    %v3493 = vsel %vm38, %v3488, -inf
    %3494 = vmax.xlane.f32.xlu0 %v3493
    %v3495 = vpop.xlane.xlu0 %3494
    %v3496 = vsub.f32 %v3484, %v3492
    %v3497 = vsub.f32 %v3488, %v3495
    %v3498 = vmul.f32 %v3496, 1.442695
    %v3499 = vpow.pop %v3498
    %v3500 = vmul.f32 %v3497, 1.442695
    %v3501 = vpow.pop %v3500
    %v3502 = vld [vmem:[%s2 + $0x180] sm:$0xff]
    %v3503 = vld [vmem:[%s2 + $0x188] sm:$0xff]
    %v3504 = vld [vmem:[%s2 + $0x190] sm:$0xff]
    %v3505 = vld [vmem:[%s2 + $0x198] sm:$0xff]
    %v3507 = vsel %vm38, %v3499, 0
    %v3510 = vsel %vm38, %v3501, 0
    %3512 = vmatpush.msra.mxu0 0.0
    %3513 = vmatpush.msra.mxu0 0.0
    %3514 = vmatpush.msra.mxu0 0.0
    %3515 = vmatpush.msra.mxu0 0.0
    %3516 = vmatpush.msra.mxu0 0.0
    %3517 = vmatpush.msra.mxu0 0.0
    %3518 = vmatpush.msra.mxu0 0.0
    %3519 = vmatpush.msra.mxu0 0.0
    %3520 = vmatpush.msra.mxu0 0.0
    %3521 = vmatpush.msra.mxu0 0.0
    %3522 = vmatpush.msra.mxu0 0.0
    %3523 = vmatpush.msra.mxu0 0.0
    %v3524 = vand.u32 %v3505, 4294901760
    %3525 = vmatpush.msra.mxu0 %v3524
    %v3526 = vand.u32 %v3504, 4294901760
    %3527 = vmatpush.msra.mxu0 %v3526
    %v3528 = vand.u32 %v3503, 4294901760
    %3529 = vmatpush.msra.mxu0 %v3528
    %v3530 = vand.u32 %v3502, 4294901760
    %3531 = vmatpush.msra.mxu0 %v3530
    %v3532 = vand.u32 %v3507, 4294901760
    %v3533 = vsub.f32 %v3507, %v3532
    %v3534 = vand.u32 %v3533, 4294901760
    %v3535 = vsub.f32 %v3533, %v3534
    %v3536 = vand.u32 %v3535, 4294901760
    %3537 = vmatmul.f32.gmra.mxu0 %v3536
    %v3538 = vpop.f32.mrf.mxu0
    %v3539 = vadd.f32 0.0, %v3538
    %v3540 = vand.u32 %v3510, 4294901760
    %v3541 = vsub.f32 %v3510, %v3540
    %v3542 = vand.u32 %v3541, 4294901760
    %v3543 = vsub.f32 %v3541, %v3542
    %v3544 = vand.u32 %v3543, 4294901760
    %3545 = vmatmul.f32.gmra.mxu0 %v3544
    %v3546 = vpop.f32.mrf.mxu0
    %v3547 = vadd.f32 0.0, %v3546
    %3548 = vdwg.mxu0
    %3549 = vmatpush.msra.mxu0 0.0
    %3550 = vmatpush.msra.mxu0 0.0
    %3551 = vmatpush.msra.mxu0 0.0
    %3552 = vmatpush.msra.mxu0 0.0
    %3553 = vmatpush.msra.mxu0 0.0
    %3554 = vmatpush.msra.mxu0 0.0
    %3555 = vmatpush.msra.mxu0 0.0
    %3556 = vmatpush.msra.mxu0 0.0
    %3557 = vmatpush.msra.mxu0 0.0
    %3558 = vmatpush.msra.mxu0 0.0
    %3559 = vmatpush.msra.mxu0 0.0
    %3560 = vmatpush.msra.mxu0 0.0
    %v3561 = vand.u32 %v3505, 4294901760
    %v3562 = vsub.f32 %v3505, %v3561
    %v3563 = vand.u32 %v3562, 4294901760
    %v3564 = vsub.f32 %v3562, %v3563
    %v3565 = vand.u32 %v3564, 4294901760
    %3566 = vmatpush.msra.mxu0 %v3565
    %v3567 = vand.u32 %v3504, 4294901760
    %v3568 = vsub.f32 %v3504, %v3567
    %v3569 = vand.u32 %v3568, 4294901760
    %v3570 = vsub.f32 %v3568, %v3569
    %v3571 = vand.u32 %v3570, 4294901760
    %3572 = vmatpush.msra.mxu0 %v3571
    %v3573 = vand.u32 %v3503, 4294901760
    %v3574 = vsub.f32 %v3503, %v3573
    %v3575 = vand.u32 %v3574, 4294901760
    %v3576 = vsub.f32 %v3574, %v3575
    %v3577 = vand.u32 %v3576, 4294901760
    %3578 = vmatpush.msra.mxu0 %v3577
    %v3579 = vand.u32 %v3502, 4294901760
    %v3580 = vsub.f32 %v3502, %v3579
    %v3581 = vand.u32 %v3580, 4294901760
    %v3582 = vsub.f32 %v3580, %v3581
    %v3583 = vand.u32 %v3582, 4294901760
    %3584 = vmatpush.msra.mxu0 %v3583
    %v3585 = vand.u32 %v3507, 4294901760
    %3586 = vmatmul.f32.gmra.mxu0 %v3585
    %v3587 = vpop.f32.mrf.mxu0
    %v3588 = vadd.f32 %v3539, %v3587
    %v3589 = vand.u32 %v3510, 4294901760
    %3590 = vmatmul.f32.gmra.mxu0 %v3589
    %v3591 = vpop.f32.mrf.mxu0
    %v3592 = vadd.f32 %v3547, %v3591
    %3593 = vdwg.mxu0
    %3594 = vmatpush.msra.mxu0 0.0
    %3595 = vmatpush.msra.mxu0 0.0
    %3596 = vmatpush.msra.mxu0 0.0
    %3597 = vmatpush.msra.mxu0 0.0
    %3598 = vmatpush.msra.mxu0 0.0
    %3599 = vmatpush.msra.mxu0 0.0
    %3600 = vmatpush.msra.mxu0 0.0
    %3601 = vmatpush.msra.mxu0 0.0
    %3602 = vmatpush.msra.mxu0 0.0
    %3603 = vmatpush.msra.mxu0 0.0
    %3604 = vmatpush.msra.mxu0 0.0
    %3605 = vmatpush.msra.mxu0 0.0
    %v3606 = vand.u32 %v3505, 4294901760
    %v3607 = vsub.f32 %v3505, %v3606
    %3608 = vmatpush.msra.mxu0 %v3607
    %v3609 = vand.u32 %v3504, 4294901760
    %v3610 = vsub.f32 %v3504, %v3609
    %3611 = vmatpush.msra.mxu0 %v3610
    %v3612 = vand.u32 %v3503, 4294901760
    %v3613 = vsub.f32 %v3503, %v3612
    %3614 = vmatpush.msra.mxu0 %v3613
    %v3615 = vand.u32 %v3502, 4294901760
    %v3616 = vsub.f32 %v3502, %v3615
    %3617 = vmatpush.msra.mxu0 %v3616
    %v3618 = vand.u32 %v3507, 4294901760
    %v3619 = vsub.f32 %v3507, %v3618
    %3620 = vmatmul.f32.gmra.mxu0 %v3619
    %v3621 = vpop.f32.mrf.mxu0
    %v3622 = vadd.f32 %v3588, %v3621
    %v3623 = vand.u32 %v3510, 4294901760
    %v3624 = vsub.f32 %v3510, %v3623
    %3625 = vmatmul.f32.gmra.mxu0 %v3624
    %v3626 = vpop.f32.mrf.mxu0
    %v3627 = vadd.f32 %v3592, %v3626
    %3628 = vdwg.mxu0
    %3629 = vmatpush.msra.mxu0 0.0
    %3630 = vmatpush.msra.mxu0 0.0
    %3631 = vmatpush.msra.mxu0 0.0
    %3632 = vmatpush.msra.mxu0 0.0
    %3633 = vmatpush.msra.mxu0 0.0
    %3634 = vmatpush.msra.mxu0 0.0
    %3635 = vmatpush.msra.mxu0 0.0
    %3636 = vmatpush.msra.mxu0 0.0
    %3637 = vmatpush.msra.mxu0 0.0
    %3638 = vmatpush.msra.mxu0 0.0
    %3639 = vmatpush.msra.mxu0 0.0
    %3640 = vmatpush.msra.mxu0 0.0
    %v3641 = vand.u32 %v3505, 4294901760
    %3642 = vmatpush.msra.mxu0 %v3641
    %v3643 = vand.u32 %v3504, 4294901760
    %3644 = vmatpush.msra.mxu0 %v3643
    %v3645 = vand.u32 %v3503, 4294901760
    %3646 = vmatpush.msra.mxu0 %v3645
    %v3647 = vand.u32 %v3502, 4294901760
    %3648 = vmatpush.msra.mxu0 %v3647
    %v3649 = vand.u32 %v3507, 4294901760
    %v3650 = vsub.f32 %v3507, %v3649
    %v3651 = vand.u32 %v3650, 4294901760
    %3652 = vmatmul.f32.gmra.mxu0 %v3651
    %v3653 = vpop.f32.mrf.mxu0
    %v3654 = vadd.f32 %v3622, %v3653
    %v3655 = vand.u32 %v3510, 4294901760
    %v3656 = vsub.f32 %v3510, %v3655
    %v3657 = vand.u32 %v3656, 4294901760
    %3658 = vmatmul.f32.gmra.mxu0 %v3657
    %v3659 = vpop.f32.mrf.mxu0
    %v3660 = vadd.f32 %v3627, %v3659
    %3661 = vdwg.mxu0
    %3662 = vmatpush.msra.mxu0 0.0
    %3663 = vmatpush.msra.mxu0 0.0
    %3664 = vmatpush.msra.mxu0 0.0
    %3665 = vmatpush.msra.mxu0 0.0
    %3666 = vmatpush.msra.mxu0 0.0
    %3667 = vmatpush.msra.mxu0 0.0
    %3668 = vmatpush.msra.mxu0 0.0
    %3669 = vmatpush.msra.mxu0 0.0
    %3670 = vmatpush.msra.mxu0 0.0
    %3671 = vmatpush.msra.mxu0 0.0
    %3672 = vmatpush.msra.mxu0 0.0
    %3673 = vmatpush.msra.mxu0 0.0
    %v3674 = vand.u32 %v3505, 4294901760
    %v3675 = vsub.f32 %v3505, %v3674
    %v3676 = vand.u32 %v3675, 4294901760
    %3677 = vmatpush.msra.mxu0 %v3676
    %v3678 = vand.u32 %v3504, 4294901760
    %v3679 = vsub.f32 %v3504, %v3678
    %v3680 = vand.u32 %v3679, 4294901760
    %3681 = vmatpush.msra.mxu0 %v3680
    %v3682 = vand.u32 %v3503, 4294901760
    %v3683 = vsub.f32 %v3503, %v3682
    %v3684 = vand.u32 %v3683, 4294901760
    %3685 = vmatpush.msra.mxu0 %v3684
    %v3686 = vand.u32 %v3502, 4294901760
    %v3687 = vsub.f32 %v3502, %v3686
    %v3688 = vand.u32 %v3687, 4294901760
    %3689 = vmatpush.msra.mxu0 %v3688
    %v3690 = vand.u32 %v3507, 4294901760
    %3691 = vmatmul.f32.gmra.mxu0 %v3690
    %v3692 = vpop.f32.mrf.mxu0
    %v3693 = vadd.f32 %v3654, %v3692
    %v3694 = vand.u32 %v3510, 4294901760
    %3695 = vmatmul.f32.gmra.mxu0 %v3694
    %v3696 = vpop.f32.mrf.mxu0
    %v3697 = vadd.f32 %v3660, %v3696
    %3698 = vdwg.mxu0
    %3699 = vmatpush.msra.mxu0 0.0
    %3700 = vmatpush.msra.mxu0 0.0
    %3701 = vmatpush.msra.mxu0 0.0
    %3702 = vmatpush.msra.mxu0 0.0
    %3703 = vmatpush.msra.mxu0 0.0
    %3704 = vmatpush.msra.mxu0 0.0
    %3705 = vmatpush.msra.mxu0 0.0
    %3706 = vmatpush.msra.mxu0 0.0
    %3707 = vmatpush.msra.mxu0 0.0
    %3708 = vmatpush.msra.mxu0 0.0
    %3709 = vmatpush.msra.mxu0 0.0
    %3710 = vmatpush.msra.mxu0 0.0
    %v3711 = vand.u32 %v3505, 4294901760
    %3712 = vmatpush.msra.mxu0 %v3711
    %v3713 = vand.u32 %v3504, 4294901760
    %3714 = vmatpush.msra.mxu0 %v3713
    %v3715 = vand.u32 %v3503, 4294901760
    %3716 = vmatpush.msra.mxu0 %v3715
    %v3717 = vand.u32 %v3502, 4294901760
    %3718 = vmatpush.msra.mxu0 %v3717
    %v3719 = vand.u32 %v3507, 4294901760
    %3720 = vmatmul.f32.gmra.mxu0 %v3719
    %v3721 = vpop.f32.mrf.mxu0
    %v3722 = vadd.f32 %v3693, %v3721
    %v3723 = vand.u32 %v3510, 4294901760
    %3724 = vmatmul.f32.gmra.mxu0 %v3723
    %v3725 = vpop.f32.mrf.mxu0
    %v3726 = vadd.f32 %v3697, %v3725
    %3727 = vdwg.mxu0
    %v3728 = vrcp.pop %v3722
    %v3729 = vmul.f32 %v3722, %v3728
    %v3730 = vsub.f32 1.0, %v3729
    %v3731 = vmul.f32 %v3728, %v3730
    %v3732 = vadd.f32 %v3728, %v3731
    %vm3733 = vweird.f32 %v3722
    %vm3734 = vweird.f32 %v3728
    %vm3735 = vmor %vm3733, %vm3734
    %v3736 = vsel %vm3735, %v3728, %v3732
    %v3737 = vand.u32 2147483647, %v3722
    %vm3738 = vcmp.eq.f32.partialorder %v3737, 8.507059e+37
    %v3739 = vand.u32 %v3722, 2147483648
    %v3740 = vor.u32 1.1754944e-38, %v3739
    %v3741 = vsel %vm3738, %v3740, %v3736
    %v3742 = vmul.f32 %v3499, %v3741
    %v3743 = vrcp.pop %v3726
    %v3744 = vmul.f32 %v3726, %v3743
    %v3745 = vsub.f32 1.0, %v3744
    %v3746 = vmul.f32 %v3743, %v3745
    %v3747 = vadd.f32 %v3743, %v3746
    %vm3748 = vweird.f32 %v3726
    %vm3749 = vweird.f32 %v3743
    %vm3750 = vmor %vm3748, %vm3749
    %v3751 = vsel %vm3750, %v3743, %v3747
    %v3752 = vand.u32 2147483647, %v3726
    %vm3753 = vcmp.eq.f32.partialorder %v3752, 8.507059e+37
    %v3754 = vand.u32 %v3726, 2147483648
    %v3755 = vor.u32 1.1754944e-38, %v3754
    %v3756 = vsel %vm3753, %v3755, %v3751
    %v3757 = vmul.f32 %v3501, %v3756
    %v3758 = vld [vmem:[%s2 + $0x1c5] sm:$0x1]
    %v3759 = vld [vmem:[%s2 + $0x1c6] sm:$0x1]
    %v3760 = vld [vmem:[%s2 + $0x1c7] sm:$0x1]
    %v3761 = vmul.f32 %v3040, 0.125
    %v3762 = vmul.f32 %v3044, 0.125
    %v3763 = vmul.f32 %v3761, %v23
    %v3764 = vmul.f32 %v3762, %v24
    %v3765 = vadd.f32 %v19, %v3763
    %v3766 = vadd.f32 %v20, %v3764
    %v3767 = vmul.f32 %v3262, 0.125
    %v3768 = vmul.f32 %v3266, 0.125
    %v3769 = vmul.f32 %v3767, %v25
    %v3770 = vmul.f32 %v3768, %v26
    %v3771 = vadd.f32 %v21, %v3769
    %v3772 = vadd.f32 %v22, %v3770
    %v3773 = vperm.slane %v3758, 0
    %v3774 = vmul.f32 %v3765, %v3773
    %v3775 = vmul.f32 %v3766, %v3773
    %v3776 = vsub.f32 %v3774, 0.5
    %v3777 = vsub.f32 %v3775, 0.5
    %v3778 = vperm.slane %v3759, 0
    %v3779 = vmul.f32 %v3771, %v3778
    %v3780 = vmul.f32 %v3772, %v3778
    %v3781 = vsub.f32 %v3779, 0.5
    %v3782 = vsub.f32 %v3780, 0.5
    %v3783 = vfloor.f32 %v3776
    %v3784 = vfloor.f32 %v3777
    %v3785 = vfloor.f32 %v3781
    %v3786 = vfloor.f32 %v3782
    %v3787 = vsub.f32 %v3776, %v3783
    %v3788 = vsub.f32 %v3777, %v3784
    %v3789 = vsub.f32 %v3781, %v3785
    %v3790 = vsub.f32 %v3782, %v3786
    %vm3791 = vcmp.ge.f32.partialorder %v3783, 0.0
    %vm3792 = vcmp.ge.f32.partialorder %v3784, 0.0
    %v3793 = vsub.f32 %v3758, 1.0
    %v3794 = vperm.slane %v3793, 0
    %vm3795 = vcmp.le.f32.partialorder %v3783, %v3794
    %vm3796 = vcmp.le.f32.partialorder %v3784, %v3794
    %vm3797 = vmand %vm3791, %vm3795
    %vm3798 = vmand %vm3792, %vm3796
    %v3799 = vsel %vm3797, 1, 0
    %v3800 = vsel %vm3798, 1, 0
    %v3801 = vcvt.s32.f32 %v3799
    %v3802 = vcvt.s32.f32 %v3800
    %vm3803 = vcmp.ge.f32.partialorder %v3783, -1.0
    %vm3804 = vcmp.ge.f32.partialorder %v3784, -1.0
    %v3805 = vsub.f32 %v3758, 2.0
    %v3806 = vperm.slane %v3805, 0
    %vm3807 = vcmp.le.f32.partialorder %v3783, %v3806
    %vm3808 = vcmp.le.f32.partialorder %v3784, %v3806
    %vm3809 = vmand %vm3803, %vm3807
    %vm3810 = vmand %vm3804, %vm3808
    %v3811 = vsel %vm3809, 1, 0
    %v3812 = vsel %vm3810, 1, 0
    %v3813 = vcvt.s32.f32 %v3811
    %v3814 = vcvt.s32.f32 %v3812
    %vm3815 = vcmp.ge.f32.partialorder %v3785, 0.0
    %vm3816 = vcmp.ge.f32.partialorder %v3786, 0.0
    %v3817 = vsub.f32 %v3759, 1.0
    %v3818 = vperm.slane %v3817, 0
    %vm3819 = vcmp.le.f32.partialorder %v3785, %v3818
    %vm3820 = vcmp.le.f32.partialorder %v3786, %v3818
    %vm3821 = vmand %vm3815, %vm3819
    %vm3822 = vmand %vm3816, %vm3820
    %v3823 = vsel %vm3821, 1, 0
    %v3824 = vsel %vm3822, 1, 0
    %v3825 = vcvt.s32.f32 %v3823
    %v3826 = vcvt.s32.f32 %v3824
    %vm3827 = vcmp.ge.f32.partialorder %v3785, -1.0
    %vm3828 = vcmp.ge.f32.partialorder %v3786, -1.0
    %v3829 = vsub.f32 %v3759, 2.0
    %v3830 = vperm.slane %v3829, 0
    %vm3831 = vcmp.le.f32.partialorder %v3785, %v3830
    %vm3832 = vcmp.le.f32.partialorder %v3786, %v3830
    %vm3833 = vmand %vm3827, %vm3831
    %vm3834 = vmand %vm3828, %vm3832
    %v3835 = vsel %vm3833, 1, 0
    %v3836 = vsel %vm3834, 1, 0
    %v3837 = vcvt.s32.f32 %v3835
    %v3838 = vcvt.s32.f32 %v3836
    %v3839 = vsub.f32 1.0, %v3787
    %v3840 = vsub.f32 1.0, %v3788
    %v3841 = vmul.f32 %v3742, %v3839
    %v3842 = vmul.f32 %v3757, %v3840
    %v3843 = vsub.f32 1.0, %v3789
    %v3844 = vsub.f32 1.0, %v3790
    %v3845 = vmul.f32 %v3841, %v3843
    %v3846 = vmul.f32 %v3842, %v3844
    %v3847 = vmul.f32 %v3845, %v3801
    %v3848 = vmul.f32 %v3846, %v3802
    %v3849 = vmul.f32 %v3847, %v3825
    %v3850 = vmul.f32 %v3848, %v3826
    %v3851 = vmul.f32 %v3742, %v3787
    %v3852 = vmul.f32 %v3757, %v3788
    %v3853 = vmul.f32 %v3851, %v3843
    %v3854 = vmul.f32 %v3852, %v3844
    %v3855 = vmul.f32 %v3853, %v3813
    %v3856 = vmul.f32 %v3854, %v3814
    %v3857 = vmul.f32 %v3855, %v3825
    %v3858 = vmul.f32 %v3856, %v3826
    %v3859 = vmul.f32 %v3841, %v3789
    %v3860 = vmul.f32 %v3842, %v3790
    %v3861 = vmul.f32 %v3859, %v3801
    %v3862 = vmul.f32 %v3860, %v3802
    %v3863 = vmul.f32 %v3861, %v3837
    %v3864 = vmul.f32 %v3862, %v3838
    %v3865 = vmul.f32 %v3851, %v3789
    %v3866 = vmul.f32 %v3852, %v3790
    %v3867 = vmul.f32 %v3865, %v3813
    %v3868 = vmul.f32 %v3866, %v3814
    %v3869 = vmul.f32 %v3867, %v3837
    %v3870 = vmul.f32 %v3868, %v3838
    %v3871 = vperm.slane %v3760, 0
    %v3872 = vadd.f32 %v3871, %v27
    %v3873 = vadd.f32 %v3871, %v28
    %v3874 = vmul.f32 %v3785, %v3773
    %v3875 = vmul.f32 %v3786, %v3773
    %v3876 = vadd.f32 %v3872, %v3874
    %v3877 = vadd.f32 %v3873, %v3875
    %v3878 = vadd.f32 %v3876, %v3783
    %v3879 = vadd.f32 %v3877, %v3784
    %v3880 = vld [vmem:[%s1] sm:$0xff]
    %v3881 = vld [vmem:[%s1 + $0x8] sm:$0xff]
    %v3882 = vld [vmem:[%s1 + $0x10] sm:$0xff]
    %v3883 = vld [vmem:[%s1 + $0x18] sm:$0xff]
    %v3884 = vld [vmem:[%s1 + $0x20] sm:$0xff]
    %v3885 = vld [vmem:[%s1 + $0x28] sm:$0xff]
    %v3886 = vld [vmem:[%s2 + $0xe0] sm:$0xff]
    %v3887 = vld [vmem:[%s2 + $0xe8] sm:$0xff]
    %v3888 = vld [vmem:[%s2 + $0xf0] sm:$0xff]
    %v3889 = vld [vmem:[%s2 + $0xf8] sm:$0xff]
    %v3890 = vld [vmem:[%s2 + $0x1bb] sm:$0x1]
    %v3891 = vperm.slane %v3890, 0
    %v3893 = vsel %vm38, %v3880, 0
    %v3896 = vsel %vm38, %v3881, 0
    %v3899 = vsel %vm38, %v3882, 0
    %v3902 = vsel %vm38, %v3883, 0
    %v3905 = vsel %vm38, %v3884, 0
    %v3908 = vsel %vm38, %v3885, 0
    %3910 = vmatpush.msra.mxu0 0.0
    %3911 = vmatpush.msra.mxu0 0.0
    %3912 = vmatpush.msra.mxu0 0.0
    %3913 = vmatpush.msra.mxu0 0.0
    %3914 = vmatpush.msra.mxu0 0.0
    %3915 = vmatpush.msra.mxu0 0.0
    %3916 = vmatpush.msra.mxu0 0.0
    %3917 = vmatpush.msra.mxu0 0.0
    %3918 = vmatpush.msra.mxu0 0.0
    %3919 = vmatpush.msra.mxu0 0.0
    %3920 = vmatpush.msra.mxu0 0.0
    %3921 = vmatpush.msra.mxu0 0.0
    %v3922 = vand.u32 %v3889, 4294901760
    %3923 = vmatpush.msra.mxu0 %v3922
    %v3924 = vand.u32 %v3888, 4294901760
    %3925 = vmatpush.msra.mxu0 %v3924
    %v3926 = vand.u32 %v3887, 4294901760
    %3927 = vmatpush.msra.mxu0 %v3926
    %v3928 = vand.u32 %v3886, 4294901760
    %3929 = vmatpush.msra.mxu0 %v3928
    %v3930 = vand.u32 %v3893, 4294901760
    %v3931 = vsub.f32 %v3893, %v3930
    %v3932 = vand.u32 %v3931, 4294901760
    %v3933 = vsub.f32 %v3931, %v3932
    %v3934 = vand.u32 %v3933, 4294901760
    %3935 = vmatmul.f32.gmra.mxu0 %v3934
    %v3936 = vpop.f32.mrf.mxu0
    %v3937 = vadd.f32 %v3891, %v3936
    %v3938 = vand.u32 %v3896, 4294901760
    %v3939 = vsub.f32 %v3896, %v3938
    %v3940 = vand.u32 %v3939, 4294901760
    %v3941 = vsub.f32 %v3939, %v3940
    %v3942 = vand.u32 %v3941, 4294901760
    %3943 = vmatmul.f32.gmra.mxu0 %v3942
    %v3944 = vpop.f32.mrf.mxu0
    %v3945 = vadd.f32 %v3891, %v3944
    %v3946 = vand.u32 %v3899, 4294901760
    %v3947 = vsub.f32 %v3899, %v3946
    %v3948 = vand.u32 %v3947, 4294901760
    %v3949 = vsub.f32 %v3947, %v3948
    %v3950 = vand.u32 %v3949, 4294901760
    %3951 = vmatmul.f32.gmra.mxu0 %v3950
    %v3952 = vpop.f32.mrf.mxu0
    %v3953 = vadd.f32 %v3891, %v3952
    %v3954 = vand.u32 %v3902, 4294901760
    %v3955 = vsub.f32 %v3902, %v3954
    %v3956 = vand.u32 %v3955, 4294901760
    %v3957 = vsub.f32 %v3955, %v3956
    %v3958 = vand.u32 %v3957, 4294901760
    %3959 = vmatmul.f32.gmra.mxu0 %v3958
    %v3960 = vpop.f32.mrf.mxu0
    %v3961 = vadd.f32 %v3891, %v3960
    %v3962 = vand.u32 %v3905, 4294901760
    %v3963 = vsub.f32 %v3905, %v3962
    %v3964 = vand.u32 %v3963, 4294901760
    %v3965 = vsub.f32 %v3963, %v3964
    %v3966 = vand.u32 %v3965, 4294901760
    %3967 = vmatmul.f32.gmra.mxu0 %v3966
    %v3968 = vpop.f32.mrf.mxu0
    %v3969 = vadd.f32 %v3891, %v3968
    %v3970 = vand.u32 %v3908, 4294901760
    %v3971 = vsub.f32 %v3908, %v3970
    %v3972 = vand.u32 %v3971, 4294901760
    %v3973 = vsub.f32 %v3971, %v3972
    %v3974 = vand.u32 %v3973, 4294901760
    %3975 = vmatmul.f32.gmra.mxu0 %v3974
    %v3976 = vpop.f32.mrf.mxu0
    %v3977 = vadd.f32 %v3891, %v3976
    %3978 = vdwg.mxu0
    %3979 = vmatpush.msra.mxu0 0.0
    %3980 = vmatpush.msra.mxu0 0.0
    %3981 = vmatpush.msra.mxu0 0.0
    %3982 = vmatpush.msra.mxu0 0.0
    %3983 = vmatpush.msra.mxu0 0.0
    %3984 = vmatpush.msra.mxu0 0.0
    %3985 = vmatpush.msra.mxu0 0.0
    %3986 = vmatpush.msra.mxu0 0.0
    %3987 = vmatpush.msra.mxu0 0.0
    %3988 = vmatpush.msra.mxu0 0.0
    %3989 = vmatpush.msra.mxu0 0.0
    %3990 = vmatpush.msra.mxu0 0.0
    %v3991 = vand.u32 %v3889, 4294901760
    %v3992 = vsub.f32 %v3889, %v3991
    %v3993 = vand.u32 %v3992, 4294901760
    %v3994 = vsub.f32 %v3992, %v3993
    %v3995 = vand.u32 %v3994, 4294901760
    %3996 = vmatpush.msra.mxu0 %v3995
    %v3997 = vand.u32 %v3888, 4294901760
    %v3998 = vsub.f32 %v3888, %v3997
    %v3999 = vand.u32 %v3998, 4294901760
    %v4000 = vsub.f32 %v3998, %v3999
    %v4001 = vand.u32 %v4000, 4294901760
    %4002 = vmatpush.msra.mxu0 %v4001
    %v4003 = vand.u32 %v3887, 4294901760
    %v4004 = vsub.f32 %v3887, %v4003
    %v4005 = vand.u32 %v4004, 4294901760
    %v4006 = vsub.f32 %v4004, %v4005
    %v4007 = vand.u32 %v4006, 4294901760
    %4008 = vmatpush.msra.mxu0 %v4007
    %v4009 = vand.u32 %v3886, 4294901760
    %v4010 = vsub.f32 %v3886, %v4009
    %v4011 = vand.u32 %v4010, 4294901760
    %v4012 = vsub.f32 %v4010, %v4011
    %v4013 = vand.u32 %v4012, 4294901760
    %4014 = vmatpush.msra.mxu0 %v4013
    %v4015 = vand.u32 %v3893, 4294901760
    %4016 = vmatmul.f32.gmra.mxu0 %v4015
    %v4017 = vpop.f32.mrf.mxu0
    %v4018 = vadd.f32 %v3937, %v4017
    %v4019 = vand.u32 %v3896, 4294901760
    %4020 = vmatmul.f32.gmra.mxu0 %v4019
    %v4021 = vpop.f32.mrf.mxu0
    %v4022 = vadd.f32 %v3945, %v4021
    %v4023 = vand.u32 %v3899, 4294901760
    %4024 = vmatmul.f32.gmra.mxu0 %v4023
    %v4025 = vpop.f32.mrf.mxu0
    %v4026 = vadd.f32 %v3953, %v4025
    %v4027 = vand.u32 %v3902, 4294901760
    %4028 = vmatmul.f32.gmra.mxu0 %v4027
    %v4029 = vpop.f32.mrf.mxu0
    %v4030 = vadd.f32 %v3961, %v4029
    %v4031 = vand.u32 %v3905, 4294901760
    %4032 = vmatmul.f32.gmra.mxu0 %v4031
    %v4033 = vpop.f32.mrf.mxu0
    %v4034 = vadd.f32 %v3969, %v4033
    %v4035 = vand.u32 %v3908, 4294901760
    %4036 = vmatmul.f32.gmra.mxu0 %v4035
    %v4037 = vpop.f32.mrf.mxu0
    %v4038 = vadd.f32 %v3977, %v4037
    %4039 = vdwg.mxu0
    %4040 = vmatpush.msra.mxu0 0.0
    %4041 = vmatpush.msra.mxu0 0.0
    %4042 = vmatpush.msra.mxu0 0.0
    %4043 = vmatpush.msra.mxu0 0.0
    %4044 = vmatpush.msra.mxu0 0.0
    %4045 = vmatpush.msra.mxu0 0.0
    %4046 = vmatpush.msra.mxu0 0.0
    %4047 = vmatpush.msra.mxu0 0.0
    %4048 = vmatpush.msra.mxu0 0.0
    %4049 = vmatpush.msra.mxu0 0.0
    %4050 = vmatpush.msra.mxu0 0.0
    %4051 = vmatpush.msra.mxu0 0.0
    %v4052 = vand.u32 %v3889, 4294901760
    %v4053 = vsub.f32 %v3889, %v4052
    %4054 = vmatpush.msra.mxu0 %v4053
    %v4055 = vand.u32 %v3888, 4294901760
    %v4056 = vsub.f32 %v3888, %v4055
    %4057 = vmatpush.msra.mxu0 %v4056
    %v4058 = vand.u32 %v3887, 4294901760
    %v4059 = vsub.f32 %v3887, %v4058
    %4060 = vmatpush.msra.mxu0 %v4059
    %v4061 = vand.u32 %v3886, 4294901760
    %v4062 = vsub.f32 %v3886, %v4061
    %4063 = vmatpush.msra.mxu0 %v4062
    %v4064 = vand.u32 %v3893, 4294901760
    %v4065 = vsub.f32 %v3893, %v4064
    %4066 = vmatmul.f32.gmra.mxu0 %v4065
    %v4067 = vpop.f32.mrf.mxu0
    %v4068 = vadd.f32 %v4018, %v4067
    %v4069 = vand.u32 %v3896, 4294901760
    %v4070 = vsub.f32 %v3896, %v4069
    %4071 = vmatmul.f32.gmra.mxu0 %v4070
    %v4072 = vpop.f32.mrf.mxu0
    %v4073 = vadd.f32 %v4022, %v4072
    %v4074 = vand.u32 %v3899, 4294901760
    %v4075 = vsub.f32 %v3899, %v4074
    %4076 = vmatmul.f32.gmra.mxu0 %v4075
    %v4077 = vpop.f32.mrf.mxu0
    %v4078 = vadd.f32 %v4026, %v4077
    %v4079 = vand.u32 %v3902, 4294901760
    %v4080 = vsub.f32 %v3902, %v4079
    %4081 = vmatmul.f32.gmra.mxu0 %v4080
    %v4082 = vpop.f32.mrf.mxu0
    %v4083 = vadd.f32 %v4030, %v4082
    %v4084 = vand.u32 %v3905, 4294901760
    %v4085 = vsub.f32 %v3905, %v4084
    %4086 = vmatmul.f32.gmra.mxu0 %v4085
    %v4087 = vpop.f32.mrf.mxu0
    %v4088 = vadd.f32 %v4034, %v4087
    %v4089 = vand.u32 %v3908, 4294901760
    %v4090 = vsub.f32 %v3908, %v4089
    %4091 = vmatmul.f32.gmra.mxu0 %v4090
    %v4092 = vpop.f32.mrf.mxu0
    %v4093 = vadd.f32 %v4038, %v4092
    %4094 = vdwg.mxu0
    %4095 = vmatpush.msra.mxu0 0.0
    %4096 = vmatpush.msra.mxu0 0.0
    %4097 = vmatpush.msra.mxu0 0.0
    %4098 = vmatpush.msra.mxu0 0.0
    %4099 = vmatpush.msra.mxu0 0.0
    %4100 = vmatpush.msra.mxu0 0.0
    %4101 = vmatpush.msra.mxu0 0.0
    %4102 = vmatpush.msra.mxu0 0.0
    %4103 = vmatpush.msra.mxu0 0.0
    %4104 = vmatpush.msra.mxu0 0.0
    %4105 = vmatpush.msra.mxu0 0.0
    %4106 = vmatpush.msra.mxu0 0.0
    %v4107 = vand.u32 %v3889, 4294901760
    %4108 = vmatpush.msra.mxu0 %v4107
    %v4109 = vand.u32 %v3888, 4294901760
    %4110 = vmatpush.msra.mxu0 %v4109
    %v4111 = vand.u32 %v3887, 4294901760
    %4112 = vmatpush.msra.mxu0 %v4111
    %v4113 = vand.u32 %v3886, 4294901760
    %4114 = vmatpush.msra.mxu0 %v4113
    %v4115 = vand.u32 %v3893, 4294901760
    %v4116 = vsub.f32 %v3893, %v4115
    %v4117 = vand.u32 %v4116, 4294901760
    %4118 = vmatmul.f32.gmra.mxu0 %v4117
    %v4119 = vpop.f32.mrf.mxu0
    %v4120 = vadd.f32 %v4068, %v4119
    %v4121 = vand.u32 %v3896, 4294901760
    %v4122 = vsub.f32 %v3896, %v4121
    %v4123 = vand.u32 %v4122, 4294901760
    %4124 = vmatmul.f32.gmra.mxu0 %v4123
    %v4125 = vpop.f32.mrf.mxu0
    %v4126 = vadd.f32 %v4073, %v4125
    %v4127 = vand.u32 %v3899, 4294901760
    %v4128 = vsub.f32 %v3899, %v4127
    %v4129 = vand.u32 %v4128, 4294901760
    %4130 = vmatmul.f32.gmra.mxu0 %v4129
    %v4131 = vpop.f32.mrf.mxu0
    %v4132 = vadd.f32 %v4078, %v4131
    %v4133 = vand.u32 %v3902, 4294901760
    %v4134 = vsub.f32 %v3902, %v4133
    %v4135 = vand.u32 %v4134, 4294901760
    %4136 = vmatmul.f32.gmra.mxu0 %v4135
    %v4137 = vpop.f32.mrf.mxu0
    %v4138 = vadd.f32 %v4083, %v4137
    %v4139 = vand.u32 %v3905, 4294901760
    %v4140 = vsub.f32 %v3905, %v4139
    %v4141 = vand.u32 %v4140, 4294901760
    %4142 = vmatmul.f32.gmra.mxu0 %v4141
    %v4143 = vpop.f32.mrf.mxu0
    %v4144 = vadd.f32 %v4088, %v4143
    %v4145 = vand.u32 %v3908, 4294901760
    %v4146 = vsub.f32 %v3908, %v4145
    %v4147 = vand.u32 %v4146, 4294901760
    %4148 = vmatmul.f32.gmra.mxu0 %v4147
    %v4149 = vpop.f32.mrf.mxu0
    %v4150 = vadd.f32 %v4093, %v4149
    %4151 = vdwg.mxu0
    %4152 = vmatpush.msra.mxu0 0.0
    %4153 = vmatpush.msra.mxu0 0.0
    %4154 = vmatpush.msra.mxu0 0.0
    %4155 = vmatpush.msra.mxu0 0.0
    %4156 = vmatpush.msra.mxu0 0.0
    %4157 = vmatpush.msra.mxu0 0.0
    %4158 = vmatpush.msra.mxu0 0.0
    %4159 = vmatpush.msra.mxu0 0.0
    %4160 = vmatpush.msra.mxu0 0.0
    %4161 = vmatpush.msra.mxu0 0.0
    %4162 = vmatpush.msra.mxu0 0.0
    %4163 = vmatpush.msra.mxu0 0.0
    %v4164 = vand.u32 %v3889, 4294901760
    %v4165 = vsub.f32 %v3889, %v4164
    %v4166 = vand.u32 %v4165, 4294901760
    %4167 = vmatpush.msra.mxu0 %v4166
    %v4168 = vand.u32 %v3888, 4294901760
    %v4169 = vsub.f32 %v3888, %v4168
    %v4170 = vand.u32 %v4169, 4294901760
    %4171 = vmatpush.msra.mxu0 %v4170
    %v4172 = vand.u32 %v3887, 4294901760
    %v4173 = vsub.f32 %v3887, %v4172
    %v4174 = vand.u32 %v4173, 4294901760
    %4175 = vmatpush.msra.mxu0 %v4174
    %v4176 = vand.u32 %v3886, 4294901760
    %v4177 = vsub.f32 %v3886, %v4176
    %v4178 = vand.u32 %v4177, 4294901760
    %4179 = vmatpush.msra.mxu0 %v4178
    %v4180 = vand.u32 %v3893, 4294901760
    %4181 = vmatmul.f32.gmra.mxu0 %v4180
    %v4182 = vpop.f32.mrf.mxu0
    %v4183 = vadd.f32 %v4120, %v4182
    %v4184 = vand.u32 %v3896, 4294901760
    %4185 = vmatmul.f32.gmra.mxu0 %v4184
    %v4186 = vpop.f32.mrf.mxu0
    %v4187 = vadd.f32 %v4126, %v4186
    %v4188 = vand.u32 %v3899, 4294901760
    %4189 = vmatmul.f32.gmra.mxu0 %v4188
    %v4190 = vpop.f32.mrf.mxu0
    %v4191 = vadd.f32 %v4132, %v4190
    %v4192 = vand.u32 %v3902, 4294901760
    %4193 = vmatmul.f32.gmra.mxu0 %v4192
    %v4194 = vpop.f32.mrf.mxu0
    %v4195 = vadd.f32 %v4138, %v4194
    %v4196 = vand.u32 %v3905, 4294901760
    %4197 = vmatmul.f32.gmra.mxu0 %v4196
    %v4198 = vpop.f32.mrf.mxu0
    %v4199 = vadd.f32 %v4144, %v4198
    %v4200 = vand.u32 %v3908, 4294901760
    %4201 = vmatmul.f32.gmra.mxu0 %v4200
    %v4202 = vpop.f32.mrf.mxu0
    %v4203 = vadd.f32 %v4150, %v4202
    %4204 = vdwg.mxu0
    %4205 = vmatpush.msra.mxu0 0.0
    %4206 = vmatpush.msra.mxu0 0.0
    %4207 = vmatpush.msra.mxu0 0.0
    %4208 = vmatpush.msra.mxu0 0.0
    %4209 = vmatpush.msra.mxu0 0.0
    %4210 = vmatpush.msra.mxu0 0.0
    %4211 = vmatpush.msra.mxu0 0.0
    %4212 = vmatpush.msra.mxu0 0.0
    %4213 = vmatpush.msra.mxu0 0.0
    %4214 = vmatpush.msra.mxu0 0.0
    %4215 = vmatpush.msra.mxu0 0.0
    %4216 = vmatpush.msra.mxu0 0.0
    %v4217 = vand.u32 %v3889, 4294901760
    %4218 = vmatpush.msra.mxu0 %v4217
    %v4219 = vand.u32 %v3888, 4294901760
    %4220 = vmatpush.msra.mxu0 %v4219
    %v4221 = vand.u32 %v3887, 4294901760
    %4222 = vmatpush.msra.mxu0 %v4221
    %v4223 = vand.u32 %v3886, 4294901760
    %4224 = vmatpush.msra.mxu0 %v4223
    %v4225 = vand.u32 %v3893, 4294901760
    %4226 = vmatmul.f32.gmra.mxu0 %v4225
    %v4227 = vpop.f32.mrf.mxu0
    %v4228 = vadd.f32 %v4183, %v4227
    %v4229 = vand.u32 %v3896, 4294901760
    %4230 = vmatmul.f32.gmra.mxu0 %v4229
    %v4231 = vpop.f32.mrf.mxu0
    %v4232 = vadd.f32 %v4187, %v4231
    %v4233 = vand.u32 %v3899, 4294901760
    %4234 = vmatmul.f32.gmra.mxu0 %v4233
    %v4235 = vpop.f32.mrf.mxu0
    %v4236 = vadd.f32 %v4191, %v4235
    %v4237 = vand.u32 %v3902, 4294901760
    %4238 = vmatmul.f32.gmra.mxu0 %v4237
    %v4239 = vpop.f32.mrf.mxu0
    %v4240 = vadd.f32 %v4195, %v4239
    %v4241 = vand.u32 %v3905, 4294901760
    %4242 = vmatmul.f32.gmra.mxu0 %v4241
    %v4243 = vpop.f32.mrf.mxu0
    %v4244 = vadd.f32 %v4199, %v4243
    %v4245 = vand.u32 %v3908, 4294901760
    %4246 = vmatmul.f32.gmra.mxu0 %v4245
    %v4247 = vpop.f32.mrf.mxu0
    %v4248 = vadd.f32 %v4203, %v4247
    %4249 = vdwg.mxu0
    %v4250 = vmul.f32 %v4228, %v965
    %v4251 = vmul.f32 %v4232, %v965
    %v4252 = vmul.f32 %v4236, %v965
    %v4253 = vmul.f32 %v4240, %v965
    %v4254 = vmul.f32 %v4244, %v965
    %v4255 = vmul.f32 %v4248, %v965
    %v4256 = vmul.f32 %v4228, %v1222
    %v4257 = vmul.f32 %v4232, %v1222
    %v4258 = vmul.f32 %v4236, %v1222
    %v4259 = vmul.f32 %v4240, %v1222
    %v4260 = vmul.f32 %v4244, %v1222
    %v4261 = vmul.f32 %v4248, %v1222
    %v4262 = vmul.f32 %v4228, %v1871
    %v4263 = vmul.f32 %v4232, %v1871
    %v4264 = vmul.f32 %v4236, %v1871
    %v4265 = vmul.f32 %v4240, %v1871
    %v4266 = vmul.f32 %v4244, %v1871
    %v4267 = vmul.f32 %v4248, %v1871
    %v4268 = vmul.f32 %v4228, %v2326
    %v4269 = vmul.f32 %v4232, %v2326
    %v4270 = vmul.f32 %v4236, %v2326
    %v4271 = vmul.f32 %v4240, %v2326
    %v4272 = vmul.f32 %v4244, %v2326
    %v4273 = vmul.f32 %v4248, %v2326
    %v4274 = vlaneseq
    %v4275 = vand.u32 %v4274, 127
    %v4276 = vcvt.s32.f32 %v4275
    %4278 = vset.pattern.permute.xlu0 0
    %4279 = vperm.xlu0 %4278, %v3878
    %v4280 = vpop.permute.xlu0 %4279
    %4283 = vset.pattern.permute.xlu0 0
    %4284 = vperm.xlu0 %4283, %v3879
    %v4285 = vpop.permute.xlu0 %4284
    %vm4287 = vcmp.eq.f32.partialorder %v4280, %v4276
    %vm4288 = vcmp.eq.f32.partialorder %v4285, %v4276
    %4290 = vset.pattern.permute.xlu0 0
    %4291 = vperm.xlu0 %4290, %v3849
    %v4292 = vpop.permute.xlu0 %4291
    %4295 = vset.pattern.permute.xlu0 0
    %4296 = vperm.xlu0 %4295, %v3850
    %v4297 = vpop.permute.xlu0 %4296
    %v4299 = vsel %vm4287, %v4292, 0.0
    %v4300 = vsel %vm4288, %v4297, 0.0
    %v4301 = vadd.f32 %v4299, 0.0
    %v4302 = vadd.f32 %v4300, 0.0
    %4304 = vset.pattern.permute.xlu0 0
    %4305 = vperm.xlu0 %4304, %v3857
    %v4306 = vpop.permute.xlu0 %4305
    %4309 = vset.pattern.permute.xlu0 0
    %4310 = vperm.xlu0 %4309, %v3858
    %v4311 = vpop.permute.xlu0 %4310
    %v4313 = vsel %vm4287, %v4306, 0.0
    %v4314 = vsel %vm4288, %v4311, 0.0
    %v4315 = vadd.f32 %v4313, 0.0
    %v4316 = vadd.f32 %v4314, 0.0
    %4318 = vset.pattern.permute.xlu0 0
    %4319 = vperm.xlu0 %4318, %v3863
    %v4320 = vpop.permute.xlu0 %4319
    %4323 = vset.pattern.permute.xlu0 0
    %4324 = vperm.xlu0 %4323, %v3864
    %v4325 = vpop.permute.xlu0 %4324
    %v4327 = vsel %vm4287, %v4320, 0.0
    %v4328 = vsel %vm4288, %v4325, 0.0
    %v4329 = vadd.f32 %v4327, 0.0
    %v4330 = vadd.f32 %v4328, 0.0
    %4332 = vset.pattern.permute.xlu0 0
    %4333 = vperm.xlu0 %4332, %v3869
    %v4334 = vpop.permute.xlu0 %4333
    %4337 = vset.pattern.permute.xlu0 0
    %4338 = vperm.xlu0 %4337, %v3870
    %v4339 = vpop.permute.xlu0 %4338
    %v4341 = vsel %vm4287, %v4334, 0.0
    %v4342 = vsel %vm4288, %v4339, 0.0
    %v4343 = vadd.f32 %v4341, 0.0
    %v4344 = vadd.f32 %v4342, 0.0
    %4345 = vset.pattern.permute.xlu0 1
    %4346 = vperm.xlu0 %4345, %v3878
    %v4347 = vpop.permute.xlu0 %4346
    %4349 = vset.pattern.permute.xlu0 1
    %4350 = vperm.xlu0 %4349, %v3879
    %v4351 = vpop.permute.xlu0 %4350
    %vm4353 = vcmp.eq.f32.partialorder %v4347, %v4276
    %vm4354 = vcmp.eq.f32.partialorder %v4351, %v4276
    %4355 = vset.pattern.permute.xlu0 1
    %4356 = vperm.xlu0 %4355, %v3849
    %v4357 = vpop.permute.xlu0 %4356
    %4359 = vset.pattern.permute.xlu0 1
    %4360 = vperm.xlu0 %4359, %v3850
    %v4361 = vpop.permute.xlu0 %4360
    %v4363 = vsel %vm4353, %v4357, 0.0
    %v4364 = vsel %vm4354, %v4361, 0.0
    %v4365 = vadd.f32 %v4301, %v4363
    %v4366 = vadd.f32 %v4302, %v4364
    %4367 = vset.pattern.permute.xlu0 1
    %4368 = vperm.xlu0 %4367, %v3857
    %v4369 = vpop.permute.xlu0 %4368
    %4371 = vset.pattern.permute.xlu0 1
    %4372 = vperm.xlu0 %4371, %v3858
    %v4373 = vpop.permute.xlu0 %4372
    %v4375 = vsel %vm4353, %v4369, 0.0
    %v4376 = vsel %vm4354, %v4373, 0.0
    %v4377 = vadd.f32 %v4315, %v4375
    %v4378 = vadd.f32 %v4316, %v4376
    %4379 = vset.pattern.permute.xlu0 1
    %4380 = vperm.xlu0 %4379, %v3863
    %v4381 = vpop.permute.xlu0 %4380
    %4383 = vset.pattern.permute.xlu0 1
    %4384 = vperm.xlu0 %4383, %v3864
    %v4385 = vpop.permute.xlu0 %4384
    %v4387 = vsel %vm4353, %v4381, 0.0
    %v4388 = vsel %vm4354, %v4385, 0.0
    %v4389 = vadd.f32 %v4329, %v4387
    %v4390 = vadd.f32 %v4330, %v4388
    %4391 = vset.pattern.permute.xlu0 1
    %4392 = vperm.xlu0 %4391, %v3869
    %v4393 = vpop.permute.xlu0 %4392
    %4395 = vset.pattern.permute.xlu0 1
    %4396 = vperm.xlu0 %4395, %v3870
    %v4397 = vpop.permute.xlu0 %4396
    %v4399 = vsel %vm4353, %v4393, 0.0
    %v4400 = vsel %vm4354, %v4397, 0.0
    %v4401 = vadd.f32 %v4343, %v4399
    %v4402 = vadd.f32 %v4344, %v4400
    %4403 = vset.pattern.permute.xlu0 2
    %4404 = vperm.xlu0 %4403, %v3878
    %v4405 = vpop.permute.xlu0 %4404
    %4407 = vset.pattern.permute.xlu0 2
    %4408 = vperm.xlu0 %4407, %v3879
    %v4409 = vpop.permute.xlu0 %4408
    %vm4411 = vcmp.eq.f32.partialorder %v4405, %v4276
    %vm4412 = vcmp.eq.f32.partialorder %v4409, %v4276
    %4413 = vset.pattern.permute.xlu0 2
    %4414 = vperm.xlu0 %4413, %v3849
    %v4415 = vpop.permute.xlu0 %4414
    %4417 = vset.pattern.permute.xlu0 2
    %4418 = vperm.xlu0 %4417, %v3850
    %v4419 = vpop.permute.xlu0 %4418
    %v4421 = vsel %vm4411, %v4415, 0.0
    %v4422 = vsel %vm4412, %v4419, 0.0
    %v4423 = vadd.f32 %v4365, %v4421
    %v4424 = vadd.f32 %v4366, %v4422
    %4425 = vset.pattern.permute.xlu0 2
    %4426 = vperm.xlu0 %4425, %v3857
    %v4427 = vpop.permute.xlu0 %4426
    %4429 = vset.pattern.permute.xlu0 2
    %4430 = vperm.xlu0 %4429, %v3858
    %v4431 = vpop.permute.xlu0 %4430
    %v4433 = vsel %vm4411, %v4427, 0.0
    %v4434 = vsel %vm4412, %v4431, 0.0
    %v4435 = vadd.f32 %v4377, %v4433
    %v4436 = vadd.f32 %v4378, %v4434
    %4437 = vset.pattern.permute.xlu0 2
    %4438 = vperm.xlu0 %4437, %v3863
    %v4439 = vpop.permute.xlu0 %4438
    %4441 = vset.pattern.permute.xlu0 2
    %4442 = vperm.xlu0 %4441, %v3864
    %v4443 = vpop.permute.xlu0 %4442
    %v4445 = vsel %vm4411, %v4439, 0.0
    %v4446 = vsel %vm4412, %v4443, 0.0
    %v4447 = vadd.f32 %v4389, %v4445
    %v4448 = vadd.f32 %v4390, %v4446
    %4449 = vset.pattern.permute.xlu0 2
    %4450 = vperm.xlu0 %4449, %v3869
    %v4451 = vpop.permute.xlu0 %4450
    %4453 = vset.pattern.permute.xlu0 2
    %4454 = vperm.xlu0 %4453, %v3870
    %v4455 = vpop.permute.xlu0 %4454
    %v4457 = vsel %vm4411, %v4451, 0.0
    %v4458 = vsel %vm4412, %v4455, 0.0
    %v4459 = vadd.f32 %v4401, %v4457
    %v4460 = vadd.f32 %v4402, %v4458
    %4461 = vset.pattern.permute.xlu0 3
    %4462 = vperm.xlu0 %4461, %v3878
    %v4463 = vpop.permute.xlu0 %4462
    %4465 = vset.pattern.permute.xlu0 3
    %4466 = vperm.xlu0 %4465, %v3879
    %v4467 = vpop.permute.xlu0 %4466
    %vm4469 = vcmp.eq.f32.partialorder %v4463, %v4276
    %vm4470 = vcmp.eq.f32.partialorder %v4467, %v4276
    %4471 = vset.pattern.permute.xlu0 3
    %4472 = vperm.xlu0 %4471, %v3849
    %v4473 = vpop.permute.xlu0 %4472
    %4475 = vset.pattern.permute.xlu0 3
    %4476 = vperm.xlu0 %4475, %v3850
    %v4477 = vpop.permute.xlu0 %4476
    %v4479 = vsel %vm4469, %v4473, 0.0
    %v4480 = vsel %vm4470, %v4477, 0.0
    %v4481 = vadd.f32 %v4423, %v4479
    %v4482 = vadd.f32 %v4424, %v4480
    %4483 = vset.pattern.permute.xlu0 3
    %4484 = vperm.xlu0 %4483, %v3857
    %v4485 = vpop.permute.xlu0 %4484
    %4487 = vset.pattern.permute.xlu0 3
    %4488 = vperm.xlu0 %4487, %v3858
    %v4489 = vpop.permute.xlu0 %4488
    %v4491 = vsel %vm4469, %v4485, 0.0
    %v4492 = vsel %vm4470, %v4489, 0.0
    %v4493 = vadd.f32 %v4435, %v4491
    %v4494 = vadd.f32 %v4436, %v4492
    %4495 = vset.pattern.permute.xlu0 3
    %4496 = vperm.xlu0 %4495, %v3863
    %v4497 = vpop.permute.xlu0 %4496
    %4499 = vset.pattern.permute.xlu0 3
    %4500 = vperm.xlu0 %4499, %v3864
    %v4501 = vpop.permute.xlu0 %4500
    %v4503 = vsel %vm4469, %v4497, 0.0
    %v4504 = vsel %vm4470, %v4501, 0.0
    %v4505 = vadd.f32 %v4447, %v4503
    %v4506 = vadd.f32 %v4448, %v4504
    %4507 = vset.pattern.permute.xlu0 3
    %4508 = vperm.xlu0 %4507, %v3869
    %v4509 = vpop.permute.xlu0 %4508
    %4511 = vset.pattern.permute.xlu0 3
    %4512 = vperm.xlu0 %4511, %v3870
    %v4513 = vpop.permute.xlu0 %4512
    %v4515 = vsel %vm4469, %v4509, 0.0
    %v4516 = vsel %vm4470, %v4513, 0.0
    %v4517 = vadd.f32 %v4459, %v4515
    %v4518 = vadd.f32 %v4460, %v4516
    %4519 = vset.pattern.permute.xlu0 4
    %4520 = vperm.xlu0 %4519, %v3878
    %v4521 = vpop.permute.xlu0 %4520
    %4523 = vset.pattern.permute.xlu0 4
    %4524 = vperm.xlu0 %4523, %v3879
    %v4525 = vpop.permute.xlu0 %4524
    %vm4527 = vcmp.eq.f32.partialorder %v4521, %v4276
    %vm4528 = vcmp.eq.f32.partialorder %v4525, %v4276
    %4529 = vset.pattern.permute.xlu0 4
    %4530 = vperm.xlu0 %4529, %v3849
    %v4531 = vpop.permute.xlu0 %4530
    %4533 = vset.pattern.permute.xlu0 4
    %4534 = vperm.xlu0 %4533, %v3850
    %v4535 = vpop.permute.xlu0 %4534
    %v4537 = vsel %vm4527, %v4531, 0.0
    %v4538 = vsel %vm4528, %v4535, 0.0
    %v4539 = vadd.f32 %v4481, %v4537
    %v4540 = vadd.f32 %v4482, %v4538
    %4541 = vset.pattern.permute.xlu0 4
    %4542 = vperm.xlu0 %4541, %v3857
    %v4543 = vpop.permute.xlu0 %4542
    %4545 = vset.pattern.permute.xlu0 4
    %4546 = vperm.xlu0 %4545, %v3858
    %v4547 = vpop.permute.xlu0 %4546
    %v4549 = vsel %vm4527, %v4543, 0.0
    %v4550 = vsel %vm4528, %v4547, 0.0
    %v4551 = vadd.f32 %v4493, %v4549
    %v4552 = vadd.f32 %v4494, %v4550
    %4553 = vset.pattern.permute.xlu0 4
    %4554 = vperm.xlu0 %4553, %v3863
    %v4555 = vpop.permute.xlu0 %4554
    %4557 = vset.pattern.permute.xlu0 4
    %4558 = vperm.xlu0 %4557, %v3864
    %v4559 = vpop.permute.xlu0 %4558
    %v4561 = vsel %vm4527, %v4555, 0.0
    %v4562 = vsel %vm4528, %v4559, 0.0
    %v4563 = vadd.f32 %v4505, %v4561
    %v4564 = vadd.f32 %v4506, %v4562
    %4565 = vset.pattern.permute.xlu0 4
    %4566 = vperm.xlu0 %4565, %v3869
    %v4567 = vpop.permute.xlu0 %4566
    %4569 = vset.pattern.permute.xlu0 4
    %4570 = vperm.xlu0 %4569, %v3870
    %v4571 = vpop.permute.xlu0 %4570
    %v4573 = vsel %vm4527, %v4567, 0.0
    %v4574 = vsel %vm4528, %v4571, 0.0
    %v4575 = vadd.f32 %v4517, %v4573
    %v4576 = vadd.f32 %v4518, %v4574
    %4577 = vset.pattern.permute.xlu0 5
    %4578 = vperm.xlu0 %4577, %v3878
    %v4579 = vpop.permute.xlu0 %4578
    %4581 = vset.pattern.permute.xlu0 5
    %4582 = vperm.xlu0 %4581, %v3879
    %v4583 = vpop.permute.xlu0 %4582
    %vm4585 = vcmp.eq.f32.partialorder %v4579, %v4276
    %vm4586 = vcmp.eq.f32.partialorder %v4583, %v4276
    %4587 = vset.pattern.permute.xlu0 5
    %4588 = vperm.xlu0 %4587, %v3849
    %v4589 = vpop.permute.xlu0 %4588
    %4591 = vset.pattern.permute.xlu0 5
    %4592 = vperm.xlu0 %4591, %v3850
    %v4593 = vpop.permute.xlu0 %4592
    %v4595 = vsel %vm4585, %v4589, 0.0
    %v4596 = vsel %vm4586, %v4593, 0.0
    %v4597 = vadd.f32 %v4539, %v4595
    %v4598 = vadd.f32 %v4540, %v4596
    %4599 = vset.pattern.permute.xlu0 5
    %4600 = vperm.xlu0 %4599, %v3857
    %v4601 = vpop.permute.xlu0 %4600
    %4603 = vset.pattern.permute.xlu0 5
    %4604 = vperm.xlu0 %4603, %v3858
    %v4605 = vpop.permute.xlu0 %4604
    %v4607 = vsel %vm4585, %v4601, 0.0
    %v4608 = vsel %vm4586, %v4605, 0.0
    %v4609 = vadd.f32 %v4551, %v4607
    %v4610 = vadd.f32 %v4552, %v4608
    %4611 = vset.pattern.permute.xlu0 5
    %4612 = vperm.xlu0 %4611, %v3863
    %v4613 = vpop.permute.xlu0 %4612
    %4615 = vset.pattern.permute.xlu0 5
    %4616 = vperm.xlu0 %4615, %v3864
    %v4617 = vpop.permute.xlu0 %4616
    %v4619 = vsel %vm4585, %v4613, 0.0
    %v4620 = vsel %vm4586, %v4617, 0.0
    %v4621 = vadd.f32 %v4563, %v4619
    %v4622 = vadd.f32 %v4564, %v4620
    %4623 = vset.pattern.permute.xlu0 5
    %4624 = vperm.xlu0 %4623, %v3869
    %v4625 = vpop.permute.xlu0 %4624
    %4627 = vset.pattern.permute.xlu0 5
    %4628 = vperm.xlu0 %4627, %v3870
    %v4629 = vpop.permute.xlu0 %4628
    %v4631 = vsel %vm4585, %v4625, 0.0
    %v4632 = vsel %vm4586, %v4629, 0.0
    %v4633 = vadd.f32 %v4575, %v4631
    %v4634 = vadd.f32 %v4576, %v4632
    %4635 = vset.pattern.permute.xlu0 6
    %4636 = vperm.xlu0 %4635, %v3878
    %v4637 = vpop.permute.xlu0 %4636
    %4639 = vset.pattern.permute.xlu0 6
    %4640 = vperm.xlu0 %4639, %v3879
    %v4641 = vpop.permute.xlu0 %4640
    %vm4643 = vcmp.eq.f32.partialorder %v4637, %v4276
    %vm4644 = vcmp.eq.f32.partialorder %v4641, %v4276
    %4645 = vset.pattern.permute.xlu0 6
    %4646 = vperm.xlu0 %4645, %v3849
    %v4647 = vpop.permute.xlu0 %4646
    %4649 = vset.pattern.permute.xlu0 6
    %4650 = vperm.xlu0 %4649, %v3850
    %v4651 = vpop.permute.xlu0 %4650
    %v4653 = vsel %vm4643, %v4647, 0.0
    %v4654 = vsel %vm4644, %v4651, 0.0
    %v4655 = vadd.f32 %v4597, %v4653
    %v4656 = vadd.f32 %v4598, %v4654
    %4657 = vset.pattern.permute.xlu0 6
    %4658 = vperm.xlu0 %4657, %v3857
    %v4659 = vpop.permute.xlu0 %4658
    %4661 = vset.pattern.permute.xlu0 6
    %4662 = vperm.xlu0 %4661, %v3858
    %v4663 = vpop.permute.xlu0 %4662
    %v4665 = vsel %vm4643, %v4659, 0.0
    %v4666 = vsel %vm4644, %v4663, 0.0
    %v4667 = vadd.f32 %v4609, %v4665
    %v4668 = vadd.f32 %v4610, %v4666
    %4669 = vset.pattern.permute.xlu0 6
    %4670 = vperm.xlu0 %4669, %v3863
    %v4671 = vpop.permute.xlu0 %4670
    %4673 = vset.pattern.permute.xlu0 6
    %4674 = vperm.xlu0 %4673, %v3864
    %v4675 = vpop.permute.xlu0 %4674
    %v4677 = vsel %vm4643, %v4671, 0.0
    %v4678 = vsel %vm4644, %v4675, 0.0
    %v4679 = vadd.f32 %v4621, %v4677
    %v4680 = vadd.f32 %v4622, %v4678
    %4681 = vset.pattern.permute.xlu0 6
    %4682 = vperm.xlu0 %4681, %v3869
    %v4683 = vpop.permute.xlu0 %4682
    %4685 = vset.pattern.permute.xlu0 6
    %4686 = vperm.xlu0 %4685, %v3870
    %v4687 = vpop.permute.xlu0 %4686
    %v4689 = vsel %vm4643, %v4683, 0.0
    %v4690 = vsel %vm4644, %v4687, 0.0
    %v4691 = vadd.f32 %v4633, %v4689
    %v4692 = vadd.f32 %v4634, %v4690
    %4693 = vset.pattern.permute.xlu0 7
    %4694 = vperm.xlu0 %4693, %v3878
    %v4695 = vpop.permute.xlu0 %4694
    %4697 = vset.pattern.permute.xlu0 7
    %4698 = vperm.xlu0 %4697, %v3879
    %v4699 = vpop.permute.xlu0 %4698
    %vm4701 = vcmp.eq.f32.partialorder %v4695, %v4276
    %vm4702 = vcmp.eq.f32.partialorder %v4699, %v4276
    %4703 = vset.pattern.permute.xlu0 7
    %4704 = vperm.xlu0 %4703, %v3849
    %v4705 = vpop.permute.xlu0 %4704
    %4707 = vset.pattern.permute.xlu0 7
    %4708 = vperm.xlu0 %4707, %v3850
    %v4709 = vpop.permute.xlu0 %4708
    %v4711 = vsel %vm4701, %v4705, 0.0
    %v4712 = vsel %vm4702, %v4709, 0.0
    %v4713 = vadd.f32 %v4655, %v4711
    %v4714 = vadd.f32 %v4656, %v4712
    %4715 = vset.pattern.permute.xlu0 7
    %4716 = vperm.xlu0 %4715, %v3857
    %v4717 = vpop.permute.xlu0 %4716
    %4719 = vset.pattern.permute.xlu0 7
    %4720 = vperm.xlu0 %4719, %v3858
    %v4721 = vpop.permute.xlu0 %4720
    %v4723 = vsel %vm4701, %v4717, 0.0
    %v4724 = vsel %vm4702, %v4721, 0.0
    %v4725 = vadd.f32 %v4667, %v4723
    %v4726 = vadd.f32 %v4668, %v4724
    %4727 = vset.pattern.permute.xlu0 7
    %4728 = vperm.xlu0 %4727, %v3863
    %v4729 = vpop.permute.xlu0 %4728
    %4731 = vset.pattern.permute.xlu0 7
    %4732 = vperm.xlu0 %4731, %v3864
    %v4733 = vpop.permute.xlu0 %4732
    %v4735 = vsel %vm4701, %v4729, 0.0
    %v4736 = vsel %vm4702, %v4733, 0.0
    %v4737 = vadd.f32 %v4679, %v4735
    %v4738 = vadd.f32 %v4680, %v4736
    %4739 = vset.pattern.permute.xlu0 7
    %4740 = vperm.xlu0 %4739, %v3869
    %v4741 = vpop.permute.xlu0 %4740
    %4743 = vset.pattern.permute.xlu0 7
    %4744 = vperm.xlu0 %4743, %v3870
    %v4745 = vpop.permute.xlu0 %4744
    %v4747 = vsel %vm4701, %v4741, 0.0
    %v4748 = vsel %vm4702, %v4745, 0.0
    %v4749 = vadd.f32 %v4691, %v4747
    %v4750 = vadd.f32 %v4692, %v4748
    %4753 = vrot.lane.b32.xlu0 %v4725, 65
    %v4754 = vpop.permute.xlu0 %4753
    %4755 = vrot.lane.b32.xlu0 %v4726, 65
    %v4756 = vpop.permute.xlu0 %4755
    %4759 = vrot.lane.b32.xlu0 %v4725, 1
    %v4760 = vpop.permute.xlu0 %4759
    %4761 = vrot.lane.b32.xlu0 %v4726, 1
    %v4762 = vpop.permute.xlu0 %4761
    %vm4765 = vcmask 7168
    %v4766 = vsel %vm4765, %v4754, %v4760
    %v4767 = vsel %vm4765, %v4756, %v4762
    %v4768 = vadd.f32 %v4713, %v4766
    %v4769 = vadd.f32 %v4714, %v4767
    %4772 = vrot.lane.b32.xlu0 %v4737, 68
    %v4773 = vpop.permute.xlu0 %4772
    %4774 = vrot.lane.b32.xlu0 %v4738, 68
    %v4775 = vpop.permute.xlu0 %4774
    %4778 = vrot.lane.b32.xlu0 %v4737, 4
    %v4779 = vpop.permute.xlu0 %4778
    %4780 = vrot.lane.b32.xlu0 %v4738, 4
    %v4781 = vpop.permute.xlu0 %4780
    %vm4784 = vcmask 31744
    %v4785 = vsel %vm4784, %v4773, %v4779
    %v4786 = vsel %vm4784, %v4775, %v4781
    %v4787 = vadd.f32 %v4768, %v4785
    %v4788 = vadd.f32 %v4769, %v4786
    %4791 = vrot.lane.b32.xlu0 %v4749, 69
    %v4792 = vpop.permute.xlu0 %4791
    %4793 = vrot.lane.b32.xlu0 %v4750, 69
    %v4794 = vpop.permute.xlu0 %4793
    %4797 = vrot.lane.b32.xlu0 %v4749, 5
    %v4798 = vpop.permute.xlu0 %4797
    %4799 = vrot.lane.b32.xlu0 %v4750, 5
    %v4800 = vpop.permute.xlu0 %4799
    %vm4803 = vcmask 39936
    %v4804 = vsel %vm4803, %v4792, %v4798
    %v4805 = vsel %vm4803, %v4794, %v4800
    %v4806 = vadd.f32 %v4787, %v4804
    %v4807 = vadd.f32 %v4788, %v4805
    %4808 = vset.pattern.permute.xlu0 8
    %4809 = vperm.xlu0 %4808, %v3878
    %v4810 = vpop.permute.xlu0 %4809
    %4812 = vset.pattern.permute.xlu0 8
    %4813 = vperm.xlu0 %4812, %v3879
    %v4814 = vpop.permute.xlu0 %4813
    %vm4816 = vcmp.eq.f32.partialorder %v4810, %v4276
    %vm4817 = vcmp.eq.f32.partialorder %v4814, %v4276
    %4818 = vset.pattern.permute.xlu0 8
    %4819 = vperm.xlu0 %4818, %v3849
    %v4820 = vpop.permute.xlu0 %4819
    %4822 = vset.pattern.permute.xlu0 8
    %4823 = vperm.xlu0 %4822, %v3850
    %v4824 = vpop.permute.xlu0 %4823
    %v4826 = vsel %vm4816, %v4820, 0.0
    %v4827 = vsel %vm4817, %v4824, 0.0
    %v4828 = vadd.f32 %v4826, 0.0
    %v4829 = vadd.f32 %v4827, 0.0
    %4830 = vset.pattern.permute.xlu0 8
    %4831 = vperm.xlu0 %4830, %v3857
    %v4832 = vpop.permute.xlu0 %4831
    %4834 = vset.pattern.permute.xlu0 8
    %4835 = vperm.xlu0 %4834, %v3858
    %v4836 = vpop.permute.xlu0 %4835
    %v4838 = vsel %vm4816, %v4832, 0.0
    %v4839 = vsel %vm4817, %v4836, 0.0
    %v4840 = vadd.f32 %v4838, 0.0
    %v4841 = vadd.f32 %v4839, 0.0
    %4842 = vset.pattern.permute.xlu0 8
    %4843 = vperm.xlu0 %4842, %v3863
    %v4844 = vpop.permute.xlu0 %4843
    %4846 = vset.pattern.permute.xlu0 8
    %4847 = vperm.xlu0 %4846, %v3864
    %v4848 = vpop.permute.xlu0 %4847
    %v4850 = vsel %vm4816, %v4844, 0.0
    %v4851 = vsel %vm4817, %v4848, 0.0
    %v4852 = vadd.f32 %v4850, 0.0
    %v4853 = vadd.f32 %v4851, 0.0
    %4854 = vset.pattern.permute.xlu0 8
    %4855 = vperm.xlu0 %4854, %v3869
    %v4856 = vpop.permute.xlu0 %4855
    %4858 = vset.pattern.permute.xlu0 8
    %4859 = vperm.xlu0 %4858, %v3870
    %v4860 = vpop.permute.xlu0 %4859
    %v4862 = vsel %vm4816, %v4856, 0.0
    %v4863 = vsel %vm4817, %v4860, 0.0
    %v4864 = vadd.f32 %v4862, 0.0
    %v4865 = vadd.f32 %v4863, 0.0
    %4866 = vset.pattern.permute.xlu0 9
    %4867 = vperm.xlu0 %4866, %v3878
    %v4868 = vpop.permute.xlu0 %4867
    %4870 = vset.pattern.permute.xlu0 9
    %4871 = vperm.xlu0 %4870, %v3879
    %v4872 = vpop.permute.xlu0 %4871
    %vm4874 = vcmp.eq.f32.partialorder %v4868, %v4276
    %vm4875 = vcmp.eq.f32.partialorder %v4872, %v4276
    %4876 = vset.pattern.permute.xlu0 9
    %4877 = vperm.xlu0 %4876, %v3849
    %v4878 = vpop.permute.xlu0 %4877
    %4880 = vset.pattern.permute.xlu0 9
    %4881 = vperm.xlu0 %4880, %v3850
    %v4882 = vpop.permute.xlu0 %4881
    %v4884 = vsel %vm4874, %v4878, 0.0
    %v4885 = vsel %vm4875, %v4882, 0.0
    %v4886 = vadd.f32 %v4828, %v4884
    %v4887 = vadd.f32 %v4829, %v4885
    %4888 = vset.pattern.permute.xlu0 9
    %4889 = vperm.xlu0 %4888, %v3857
    %v4890 = vpop.permute.xlu0 %4889
    %4892 = vset.pattern.permute.xlu0 9
    %4893 = vperm.xlu0 %4892, %v3858
    %v4894 = vpop.permute.xlu0 %4893
    %v4896 = vsel %vm4874, %v4890, 0.0
    %v4897 = vsel %vm4875, %v4894, 0.0
    %v4898 = vadd.f32 %v4840, %v4896
    %v4899 = vadd.f32 %v4841, %v4897
    %4900 = vset.pattern.permute.xlu0 9
    %4901 = vperm.xlu0 %4900, %v3863
    %v4902 = vpop.permute.xlu0 %4901
    %4904 = vset.pattern.permute.xlu0 9
    %4905 = vperm.xlu0 %4904, %v3864
    %v4906 = vpop.permute.xlu0 %4905
    %v4908 = vsel %vm4874, %v4902, 0.0
    %v4909 = vsel %vm4875, %v4906, 0.0
    %v4910 = vadd.f32 %v4852, %v4908
    %v4911 = vadd.f32 %v4853, %v4909
    %4912 = vset.pattern.permute.xlu0 9
    %4913 = vperm.xlu0 %4912, %v3869
    %v4914 = vpop.permute.xlu0 %4913
    %4916 = vset.pattern.permute.xlu0 9
    %4917 = vperm.xlu0 %4916, %v3870
    %v4918 = vpop.permute.xlu0 %4917
    %v4920 = vsel %vm4874, %v4914, 0.0
    %v4921 = vsel %vm4875, %v4918, 0.0
    %v4922 = vadd.f32 %v4864, %v4920
    %v4923 = vadd.f32 %v4865, %v4921
    %4924 = vset.pattern.permute.xlu0 10
    %4925 = vperm.xlu0 %4924, %v3878
    %v4926 = vpop.permute.xlu0 %4925
    %4928 = vset.pattern.permute.xlu0 10
    %4929 = vperm.xlu0 %4928, %v3879
    %v4930 = vpop.permute.xlu0 %4929
    %vm4932 = vcmp.eq.f32.partialorder %v4926, %v4276
    %vm4933 = vcmp.eq.f32.partialorder %v4930, %v4276
    %4934 = vset.pattern.permute.xlu0 10
    %4935 = vperm.xlu0 %4934, %v3849
    %v4936 = vpop.permute.xlu0 %4935
    %4938 = vset.pattern.permute.xlu0 10
    %4939 = vperm.xlu0 %4938, %v3850
    %v4940 = vpop.permute.xlu0 %4939
    %v4942 = vsel %vm4932, %v4936, 0.0
    %v4943 = vsel %vm4933, %v4940, 0.0
    %v4944 = vadd.f32 %v4886, %v4942
    %v4945 = vadd.f32 %v4887, %v4943
    %4946 = vset.pattern.permute.xlu0 10
    %4947 = vperm.xlu0 %4946, %v3857
    %v4948 = vpop.permute.xlu0 %4947
    %4950 = vset.pattern.permute.xlu0 10
    %4951 = vperm.xlu0 %4950, %v3858
    %v4952 = vpop.permute.xlu0 %4951
    %v4954 = vsel %vm4932, %v4948, 0.0
    %v4955 = vsel %vm4933, %v4952, 0.0
    %v4956 = vadd.f32 %v4898, %v4954
    %v4957 = vadd.f32 %v4899, %v4955
    %4958 = vset.pattern.permute.xlu0 10
    %4959 = vperm.xlu0 %4958, %v3863
    %v4960 = vpop.permute.xlu0 %4959
    %4962 = vset.pattern.permute.xlu0 10
    %4963 = vperm.xlu0 %4962, %v3864
    %v4964 = vpop.permute.xlu0 %4963
    %v4966 = vsel %vm4932, %v4960, 0.0
    %v4967 = vsel %vm4933, %v4964, 0.0
    %v4968 = vadd.f32 %v4910, %v4966
    %v4969 = vadd.f32 %v4911, %v4967
    %4970 = vset.pattern.permute.xlu0 10
    %4971 = vperm.xlu0 %4970, %v3869
    %v4972 = vpop.permute.xlu0 %4971
    %4974 = vset.pattern.permute.xlu0 10
    %4975 = vperm.xlu0 %4974, %v3870
    %v4976 = vpop.permute.xlu0 %4975
    %v4978 = vsel %vm4932, %v4972, 0.0
    %v4979 = vsel %vm4933, %v4976, 0.0
    %v4980 = vadd.f32 %v4922, %v4978
    %v4981 = vadd.f32 %v4923, %v4979
    %4982 = vset.pattern.permute.xlu0 11
    %4983 = vperm.xlu0 %4982, %v3878
    %v4984 = vpop.permute.xlu0 %4983
    %4986 = vset.pattern.permute.xlu0 11
    %4987 = vperm.xlu0 %4986, %v3879
    %v4988 = vpop.permute.xlu0 %4987
    %vm4990 = vcmp.eq.f32.partialorder %v4984, %v4276
    %vm4991 = vcmp.eq.f32.partialorder %v4988, %v4276
    %4992 = vset.pattern.permute.xlu0 11
    %4993 = vperm.xlu0 %4992, %v3849
    %v4994 = vpop.permute.xlu0 %4993
    %4996 = vset.pattern.permute.xlu0 11
    %4997 = vperm.xlu0 %4996, %v3850
    %v4998 = vpop.permute.xlu0 %4997
    %v5000 = vsel %vm4990, %v4994, 0.0
    %v5001 = vsel %vm4991, %v4998, 0.0
    %v5002 = vadd.f32 %v4944, %v5000
    %v5003 = vadd.f32 %v4945, %v5001
    %5004 = vset.pattern.permute.xlu0 11
    %5005 = vperm.xlu0 %5004, %v3857
    %v5006 = vpop.permute.xlu0 %5005
    %5008 = vset.pattern.permute.xlu0 11
    %5009 = vperm.xlu0 %5008, %v3858
    %v5010 = vpop.permute.xlu0 %5009
    %v5012 = vsel %vm4990, %v5006, 0.0
    %v5013 = vsel %vm4991, %v5010, 0.0
    %v5014 = vadd.f32 %v4956, %v5012
    %v5015 = vadd.f32 %v4957, %v5013
    %5016 = vset.pattern.permute.xlu0 11
    %5017 = vperm.xlu0 %5016, %v3863
    %v5018 = vpop.permute.xlu0 %5017
    %5020 = vset.pattern.permute.xlu0 11
    %5021 = vperm.xlu0 %5020, %v3864
    %v5022 = vpop.permute.xlu0 %5021
    %v5024 = vsel %vm4990, %v5018, 0.0
    %v5025 = vsel %vm4991, %v5022, 0.0
    %v5026 = vadd.f32 %v4968, %v5024
    %v5027 = vadd.f32 %v4969, %v5025
    %5028 = vset.pattern.permute.xlu0 11
    %5029 = vperm.xlu0 %5028, %v3869
    %v5030 = vpop.permute.xlu0 %5029
    %5032 = vset.pattern.permute.xlu0 11
    %5033 = vperm.xlu0 %5032, %v3870
    %v5034 = vpop.permute.xlu0 %5033
    %v5036 = vsel %vm4990, %v5030, 0.0
    %v5037 = vsel %vm4991, %v5034, 0.0
    %v5038 = vadd.f32 %v4980, %v5036
    %v5039 = vadd.f32 %v4981, %v5037
    %5040 = vset.pattern.permute.xlu0 12
    %5041 = vperm.xlu0 %5040, %v3878
    %v5042 = vpop.permute.xlu0 %5041
    %5044 = vset.pattern.permute.xlu0 12
    %5045 = vperm.xlu0 %5044, %v3879
    %v5046 = vpop.permute.xlu0 %5045
    %vm5048 = vcmp.eq.f32.partialorder %v5042, %v4276
    %vm5049 = vcmp.eq.f32.partialorder %v5046, %v4276
    %5050 = vset.pattern.permute.xlu0 12
    %5051 = vperm.xlu0 %5050, %v3849
    %v5052 = vpop.permute.xlu0 %5051
    %5054 = vset.pattern.permute.xlu0 12
    %5055 = vperm.xlu0 %5054, %v3850
    %v5056 = vpop.permute.xlu0 %5055
    %v5058 = vsel %vm5048, %v5052, 0.0
    %v5059 = vsel %vm5049, %v5056, 0.0
    %v5060 = vadd.f32 %v5002, %v5058
    %v5061 = vadd.f32 %v5003, %v5059
    %5062 = vset.pattern.permute.xlu0 12
    %5063 = vperm.xlu0 %5062, %v3857
    %v5064 = vpop.permute.xlu0 %5063
    %5066 = vset.pattern.permute.xlu0 12
    %5067 = vperm.xlu0 %5066, %v3858
    %v5068 = vpop.permute.xlu0 %5067
    %v5070 = vsel %vm5048, %v5064, 0.0
    %v5071 = vsel %vm5049, %v5068, 0.0
    %v5072 = vadd.f32 %v5014, %v5070
    %v5073 = vadd.f32 %v5015, %v5071
    %5074 = vset.pattern.permute.xlu0 12
    %5075 = vperm.xlu0 %5074, %v3863
    %v5076 = vpop.permute.xlu0 %5075
    %5078 = vset.pattern.permute.xlu0 12
    %5079 = vperm.xlu0 %5078, %v3864
    %v5080 = vpop.permute.xlu0 %5079
    %v5082 = vsel %vm5048, %v5076, 0.0
    %v5083 = vsel %vm5049, %v5080, 0.0
    %v5084 = vadd.f32 %v5026, %v5082
    %v5085 = vadd.f32 %v5027, %v5083
    %5086 = vset.pattern.permute.xlu0 12
    %5087 = vperm.xlu0 %5086, %v3869
    %v5088 = vpop.permute.xlu0 %5087
    %5090 = vset.pattern.permute.xlu0 12
    %5091 = vperm.xlu0 %5090, %v3870
    %v5092 = vpop.permute.xlu0 %5091
    %v5094 = vsel %vm5048, %v5088, 0.0
    %v5095 = vsel %vm5049, %v5092, 0.0
    %v5096 = vadd.f32 %v5038, %v5094
    %v5097 = vadd.f32 %v5039, %v5095
    %5098 = vset.pattern.permute.xlu0 13
    %5099 = vperm.xlu0 %5098, %v3878
    %v5100 = vpop.permute.xlu0 %5099
    %5102 = vset.pattern.permute.xlu0 13
    %5103 = vperm.xlu0 %5102, %v3879
    %v5104 = vpop.permute.xlu0 %5103
    %vm5106 = vcmp.eq.f32.partialorder %v5100, %v4276
    %vm5107 = vcmp.eq.f32.partialorder %v5104, %v4276
    %5108 = vset.pattern.permute.xlu0 13
    %5109 = vperm.xlu0 %5108, %v3849
    %v5110 = vpop.permute.xlu0 %5109
    %5112 = vset.pattern.permute.xlu0 13
    %5113 = vperm.xlu0 %5112, %v3850
    %v5114 = vpop.permute.xlu0 %5113
    %v5116 = vsel %vm5106, %v5110, 0.0
    %v5117 = vsel %vm5107, %v5114, 0.0
    %v5118 = vadd.f32 %v5060, %v5116
    %v5119 = vadd.f32 %v5061, %v5117
    %5120 = vset.pattern.permute.xlu0 13
    %5121 = vperm.xlu0 %5120, %v3857
    %v5122 = vpop.permute.xlu0 %5121
    %5124 = vset.pattern.permute.xlu0 13
    %5125 = vperm.xlu0 %5124, %v3858
    %v5126 = vpop.permute.xlu0 %5125
    %v5128 = vsel %vm5106, %v5122, 0.0
    %v5129 = vsel %vm5107, %v5126, 0.0
    %v5130 = vadd.f32 %v5072, %v5128
    %v5131 = vadd.f32 %v5073, %v5129
    %5132 = vset.pattern.permute.xlu0 13
    %5133 = vperm.xlu0 %5132, %v3863
    %v5134 = vpop.permute.xlu0 %5133
    %5136 = vset.pattern.permute.xlu0 13
    %5137 = vperm.xlu0 %5136, %v3864
    %v5138 = vpop.permute.xlu0 %5137
    %v5140 = vsel %vm5106, %v5134, 0.0
    %v5141 = vsel %vm5107, %v5138, 0.0
    %v5142 = vadd.f32 %v5084, %v5140
    %v5143 = vadd.f32 %v5085, %v5141
    %5144 = vset.pattern.permute.xlu0 13
    %5145 = vperm.xlu0 %5144, %v3869
    %v5146 = vpop.permute.xlu0 %5145
    %5148 = vset.pattern.permute.xlu0 13
    %5149 = vperm.xlu0 %5148, %v3870
    %v5150 = vpop.permute.xlu0 %5149
    %v5152 = vsel %vm5106, %v5146, 0.0
    %v5153 = vsel %vm5107, %v5150, 0.0
    %v5154 = vadd.f32 %v5096, %v5152
    %v5155 = vadd.f32 %v5097, %v5153
    %5156 = vset.pattern.permute.xlu0 14
    %5157 = vperm.xlu0 %5156, %v3878
    %v5158 = vpop.permute.xlu0 %5157
    %5160 = vset.pattern.permute.xlu0 14
    %5161 = vperm.xlu0 %5160, %v3879
    %v5162 = vpop.permute.xlu0 %5161
    %vm5164 = vcmp.eq.f32.partialorder %v5158, %v4276
    %vm5165 = vcmp.eq.f32.partialorder %v5162, %v4276
    %5166 = vset.pattern.permute.xlu0 14
    %5167 = vperm.xlu0 %5166, %v3849
    %v5168 = vpop.permute.xlu0 %5167
    %5170 = vset.pattern.permute.xlu0 14
    %5171 = vperm.xlu0 %5170, %v3850
    %v5172 = vpop.permute.xlu0 %5171
    %v5174 = vsel %vm5164, %v5168, 0.0
    %v5175 = vsel %vm5165, %v5172, 0.0
    %v5176 = vadd.f32 %v5118, %v5174
    %v5177 = vadd.f32 %v5119, %v5175
    %5178 = vset.pattern.permute.xlu0 14
    %5179 = vperm.xlu0 %5178, %v3857
    %v5180 = vpop.permute.xlu0 %5179
    %5182 = vset.pattern.permute.xlu0 14
    %5183 = vperm.xlu0 %5182, %v3858
    %v5184 = vpop.permute.xlu0 %5183
    %v5186 = vsel %vm5164, %v5180, 0.0
    %v5187 = vsel %vm5165, %v5184, 0.0
    %v5188 = vadd.f32 %v5130, %v5186
    %v5189 = vadd.f32 %v5131, %v5187
    %5190 = vset.pattern.permute.xlu0 14
    %5191 = vperm.xlu0 %5190, %v3863
    %v5192 = vpop.permute.xlu0 %5191
    %5194 = vset.pattern.permute.xlu0 14
    %5195 = vperm.xlu0 %5194, %v3864
    %v5196 = vpop.permute.xlu0 %5195
    %v5198 = vsel %vm5164, %v5192, 0.0
    %v5199 = vsel %vm5165, %v5196, 0.0
    %v5200 = vadd.f32 %v5142, %v5198
    %v5201 = vadd.f32 %v5143, %v5199
    %5202 = vset.pattern.permute.xlu0 14
    %5203 = vperm.xlu0 %5202, %v3869
    %v5204 = vpop.permute.xlu0 %5203
    %5206 = vset.pattern.permute.xlu0 14
    %5207 = vperm.xlu0 %5206, %v3870
    %v5208 = vpop.permute.xlu0 %5207
    %v5210 = vsel %vm5164, %v5204, 0.0
    %v5211 = vsel %vm5165, %v5208, 0.0
    %v5212 = vadd.f32 %v5154, %v5210
    %v5213 = vadd.f32 %v5155, %v5211
    %5214 = vset.pattern.permute.xlu0 15
    %5215 = vperm.xlu0 %5214, %v3878
    %v5216 = vpop.permute.xlu0 %5215
    %5218 = vset.pattern.permute.xlu0 15
    %5219 = vperm.xlu0 %5218, %v3879
    %v5220 = vpop.permute.xlu0 %5219
    %vm5222 = vcmp.eq.f32.partialorder %v5216, %v4276
    %vm5223 = vcmp.eq.f32.partialorder %v5220, %v4276
    %5224 = vset.pattern.permute.xlu0 15
    %5225 = vperm.xlu0 %5224, %v3849
    %v5226 = vpop.permute.xlu0 %5225
    %5228 = vset.pattern.permute.xlu0 15
    %5229 = vperm.xlu0 %5228, %v3850
    %v5230 = vpop.permute.xlu0 %5229
    %v5232 = vsel %vm5222, %v5226, 0.0
    %v5233 = vsel %vm5223, %v5230, 0.0
    %v5234 = vadd.f32 %v5176, %v5232
    %v5235 = vadd.f32 %v5177, %v5233
    %5236 = vset.pattern.permute.xlu0 15
    %5237 = vperm.xlu0 %5236, %v3857
    %v5238 = vpop.permute.xlu0 %5237
    %5240 = vset.pattern.permute.xlu0 15
    %5241 = vperm.xlu0 %5240, %v3858
    %v5242 = vpop.permute.xlu0 %5241
    %v5244 = vsel %vm5222, %v5238, 0.0
    %v5245 = vsel %vm5223, %v5242, 0.0
    %v5246 = vadd.f32 %v5188, %v5244
    %v5247 = vadd.f32 %v5189, %v5245
    %5248 = vset.pattern.permute.xlu0 15
    %5249 = vperm.xlu0 %5248, %v3863
    %v5250 = vpop.permute.xlu0 %5249
    %5252 = vset.pattern.permute.xlu0 15
    %5253 = vperm.xlu0 %5252, %v3864
    %v5254 = vpop.permute.xlu0 %5253
    %v5256 = vsel %vm5222, %v5250, 0.0
    %v5257 = vsel %vm5223, %v5254, 0.0
    %v5258 = vadd.f32 %v5200, %v5256
    %v5259 = vadd.f32 %v5201, %v5257
    %5260 = vset.pattern.permute.xlu0 15
    %5261 = vperm.xlu0 %5260, %v3869
    %v5262 = vpop.permute.xlu0 %5261
    %5264 = vset.pattern.permute.xlu0 15
    %5265 = vperm.xlu0 %5264, %v3870
    %v5266 = vpop.permute.xlu0 %5265
    %v5268 = vsel %vm5222, %v5262, 0.0
    %v5269 = vsel %vm5223, %v5266, 0.0
    %v5270 = vadd.f32 %v5212, %v5268
    %v5271 = vadd.f32 %v5213, %v5269
    %5274 = vrot.lane.b32.xlu0 %v5246, 65
    %v5275 = vpop.permute.xlu0 %5274
    %5276 = vrot.lane.b32.xlu0 %v5247, 65
    %v5277 = vpop.permute.xlu0 %5276
    %5280 = vrot.lane.b32.xlu0 %v5246, 1
    %v5281 = vpop.permute.xlu0 %5280
    %5282 = vrot.lane.b32.xlu0 %v5247, 1
    %v5283 = vpop.permute.xlu0 %5282
    %v5286 = vsel %vm4765, %v5275, %v5281
    %v5287 = vsel %vm4765, %v5277, %v5283
    %v5288 = vadd.f32 %v5234, %v5286
    %v5289 = vadd.f32 %v5235, %v5287
    %5292 = vrot.lane.b32.xlu0 %v5258, 68
    %v5293 = vpop.permute.xlu0 %5292
    %5294 = vrot.lane.b32.xlu0 %v5259, 68
    %v5295 = vpop.permute.xlu0 %5294
    %5298 = vrot.lane.b32.xlu0 %v5258, 4
    %v5299 = vpop.permute.xlu0 %5298
    %5300 = vrot.lane.b32.xlu0 %v5259, 4
    %v5301 = vpop.permute.xlu0 %5300
    %v5304 = vsel %vm4784, %v5293, %v5299
    %v5305 = vsel %vm4784, %v5295, %v5301
    %v5306 = vadd.f32 %v5288, %v5304
    %v5307 = vadd.f32 %v5289, %v5305
    %5310 = vrot.lane.b32.xlu0 %v5270, 69
    %v5311 = vpop.permute.xlu0 %5310
    %5312 = vrot.lane.b32.xlu0 %v5271, 69
    %v5313 = vpop.permute.xlu0 %5312
    %5316 = vrot.lane.b32.xlu0 %v5270, 5
    %v5317 = vpop.permute.xlu0 %5316
    %5318 = vrot.lane.b32.xlu0 %v5271, 5
    %v5319 = vpop.permute.xlu0 %5318
    %v5322 = vsel %vm4803, %v5311, %v5317
    %v5323 = vsel %vm4803, %v5313, %v5319
    %v5324 = vadd.f32 %v5306, %v5322
    %v5325 = vadd.f32 %v5307, %v5323
    %5326 = vset.pattern.permute.xlu0 16
    %5327 = vperm.xlu0 %5326, %v3878
    %v5328 = vpop.permute.xlu0 %5327
    %5330 = vset.pattern.permute.xlu0 16
    %5331 = vperm.xlu0 %5330, %v3879
    %v5332 = vpop.permute.xlu0 %5331
    %vm5334 = vcmp.eq.f32.partialorder %v5328, %v4276
    %vm5335 = vcmp.eq.f32.partialorder %v5332, %v4276
    %5336 = vset.pattern.permute.xlu0 16
    %5337 = vperm.xlu0 %5336, %v3849
    %v5338 = vpop.permute.xlu0 %5337
    %5340 = vset.pattern.permute.xlu0 16
    %5341 = vperm.xlu0 %5340, %v3850
    %v5342 = vpop.permute.xlu0 %5341
    %v5344 = vsel %vm5334, %v5338, 0.0
    %v5345 = vsel %vm5335, %v5342, 0.0
    %v5346 = vadd.f32 %v5344, 0.0
    %v5347 = vadd.f32 %v5345, 0.0
    %5348 = vset.pattern.permute.xlu0 16
    %5349 = vperm.xlu0 %5348, %v3857
    %v5350 = vpop.permute.xlu0 %5349
    %5352 = vset.pattern.permute.xlu0 16
    %5353 = vperm.xlu0 %5352, %v3858
    %v5354 = vpop.permute.xlu0 %5353
    %v5356 = vsel %vm5334, %v5350, 0.0
    %v5357 = vsel %vm5335, %v5354, 0.0
    %v5358 = vadd.f32 %v5356, 0.0
    %v5359 = vadd.f32 %v5357, 0.0
    %5360 = vset.pattern.permute.xlu0 16
    %5361 = vperm.xlu0 %5360, %v3863
    %v5362 = vpop.permute.xlu0 %5361
    %5364 = vset.pattern.permute.xlu0 16
    %5365 = vperm.xlu0 %5364, %v3864
    %v5366 = vpop.permute.xlu0 %5365
    %v5368 = vsel %vm5334, %v5362, 0.0
    %v5369 = vsel %vm5335, %v5366, 0.0
    %v5370 = vadd.f32 %v5368, 0.0
    %v5371 = vadd.f32 %v5369, 0.0
    %5372 = vset.pattern.permute.xlu0 16
    %5373 = vperm.xlu0 %5372, %v3869
    %v5374 = vpop.permute.xlu0 %5373
    %5376 = vset.pattern.permute.xlu0 16
    %5377 = vperm.xlu0 %5376, %v3870
    %v5378 = vpop.permute.xlu0 %5377
    %v5380 = vsel %vm5334, %v5374, 0.0
    %v5381 = vsel %vm5335, %v5378, 0.0
    %v5382 = vadd.f32 %v5380, 0.0
    %v5383 = vadd.f32 %v5381, 0.0
    %5384 = vset.pattern.permute.xlu0 17
    %5385 = vperm.xlu0 %5384, %v3878
    %v5386 = vpop.permute.xlu0 %5385
    %5388 = vset.pattern.permute.xlu0 17
    %5389 = vperm.xlu0 %5388, %v3879
    %v5390 = vpop.permute.xlu0 %5389
    %vm5392 = vcmp.eq.f32.partialorder %v5386, %v4276
    %vm5393 = vcmp.eq.f32.partialorder %v5390, %v4276
    %5394 = vset.pattern.permute.xlu0 17
    %5395 = vperm.xlu0 %5394, %v3849
    %v5396 = vpop.permute.xlu0 %5395
    %5398 = vset.pattern.permute.xlu0 17
    %5399 = vperm.xlu0 %5398, %v3850
    %v5400 = vpop.permute.xlu0 %5399
    %v5402 = vsel %vm5392, %v5396, 0.0
    %v5403 = vsel %vm5393, %v5400, 0.0
    %v5404 = vadd.f32 %v5346, %v5402
    %v5405 = vadd.f32 %v5347, %v5403
    %5406 = vset.pattern.permute.xlu0 17
    %5407 = vperm.xlu0 %5406, %v3857
    %v5408 = vpop.permute.xlu0 %5407
    %5410 = vset.pattern.permute.xlu0 17
    %5411 = vperm.xlu0 %5410, %v3858
    %v5412 = vpop.permute.xlu0 %5411
    %v5414 = vsel %vm5392, %v5408, 0.0
    %v5415 = vsel %vm5393, %v5412, 0.0
    %v5416 = vadd.f32 %v5358, %v5414
    %v5417 = vadd.f32 %v5359, %v5415
    %5418 = vset.pattern.permute.xlu0 17
    %5419 = vperm.xlu0 %5418, %v3863
    %v5420 = vpop.permute.xlu0 %5419
    %5422 = vset.pattern.permute.xlu0 17
    %5423 = vperm.xlu0 %5422, %v3864
    %v5424 = vpop.permute.xlu0 %5423
    %v5426 = vsel %vm5392, %v5420, 0.0
    %v5427 = vsel %vm5393, %v5424, 0.0
    %v5428 = vadd.f32 %v5370, %v5426
    %v5429 = vadd.f32 %v5371, %v5427
    %5430 = vset.pattern.permute.xlu0 17
    %5431 = vperm.xlu0 %5430, %v3869
    %v5432 = vpop.permute.xlu0 %5431
    %5434 = vset.pattern.permute.xlu0 17
    %5435 = vperm.xlu0 %5434, %v3870
    %v5436 = vpop.permute.xlu0 %5435
    %v5438 = vsel %vm5392, %v5432, 0.0
    %v5439 = vsel %vm5393, %v5436, 0.0
    %v5440 = vadd.f32 %v5382, %v5438
    %v5441 = vadd.f32 %v5383, %v5439
    %5442 = vset.pattern.permute.xlu0 18
    %5443 = vperm.xlu0 %5442, %v3878
    %v5444 = vpop.permute.xlu0 %5443
    %5446 = vset.pattern.permute.xlu0 18
    %5447 = vperm.xlu0 %5446, %v3879
    %v5448 = vpop.permute.xlu0 %5447
    %vm5450 = vcmp.eq.f32.partialorder %v5444, %v4276
    %vm5451 = vcmp.eq.f32.partialorder %v5448, %v4276
    %5452 = vset.pattern.permute.xlu0 18
    %5453 = vperm.xlu0 %5452, %v3849
    %v5454 = vpop.permute.xlu0 %5453
    %5456 = vset.pattern.permute.xlu0 18
    %5457 = vperm.xlu0 %5456, %v3850
    %v5458 = vpop.permute.xlu0 %5457
    %v5460 = vsel %vm5450, %v5454, 0.0
    %v5461 = vsel %vm5451, %v5458, 0.0
    %v5462 = vadd.f32 %v5404, %v5460
    %v5463 = vadd.f32 %v5405, %v5461
    %5464 = vset.pattern.permute.xlu0 18
    %5465 = vperm.xlu0 %5464, %v3857
    %v5466 = vpop.permute.xlu0 %5465
    %5468 = vset.pattern.permute.xlu0 18
    %5469 = vperm.xlu0 %5468, %v3858
    %v5470 = vpop.permute.xlu0 %5469
    %v5472 = vsel %vm5450, %v5466, 0.0
    %v5473 = vsel %vm5451, %v5470, 0.0
    %v5474 = vadd.f32 %v5416, %v5472
    %v5475 = vadd.f32 %v5417, %v5473
    %5476 = vset.pattern.permute.xlu0 18
    %5477 = vperm.xlu0 %5476, %v3863
    %v5478 = vpop.permute.xlu0 %5477
    %5480 = vset.pattern.permute.xlu0 18
    %5481 = vperm.xlu0 %5480, %v3864
    %v5482 = vpop.permute.xlu0 %5481
    %v5484 = vsel %vm5450, %v5478, 0.0
    %v5485 = vsel %vm5451, %v5482, 0.0
    %v5486 = vadd.f32 %v5428, %v5484
    %v5487 = vadd.f32 %v5429, %v5485
    %5488 = vset.pattern.permute.xlu0 18
    %5489 = vperm.xlu0 %5488, %v3869
    %v5490 = vpop.permute.xlu0 %5489
    %5492 = vset.pattern.permute.xlu0 18
    %5493 = vperm.xlu0 %5492, %v3870
    %v5494 = vpop.permute.xlu0 %5493
    %v5496 = vsel %vm5450, %v5490, 0.0
    %v5497 = vsel %vm5451, %v5494, 0.0
    %v5498 = vadd.f32 %v5440, %v5496
    %v5499 = vadd.f32 %v5441, %v5497
    %5500 = vset.pattern.permute.xlu0 19
    %5501 = vperm.xlu0 %5500, %v3878
    %v5502 = vpop.permute.xlu0 %5501
    %5504 = vset.pattern.permute.xlu0 19
    %5505 = vperm.xlu0 %5504, %v3879
    %v5506 = vpop.permute.xlu0 %5505
    %vm5508 = vcmp.eq.f32.partialorder %v5502, %v4276
    %vm5509 = vcmp.eq.f32.partialorder %v5506, %v4276
    %5510 = vset.pattern.permute.xlu0 19
    %5511 = vperm.xlu0 %5510, %v3849
    %v5512 = vpop.permute.xlu0 %5511
    %5514 = vset.pattern.permute.xlu0 19
    %5515 = vperm.xlu0 %5514, %v3850
    %v5516 = vpop.permute.xlu0 %5515
    %v5518 = vsel %vm5508, %v5512, 0.0
    %v5519 = vsel %vm5509, %v5516, 0.0
    %v5520 = vadd.f32 %v5462, %v5518
    %v5521 = vadd.f32 %v5463, %v5519
    %5522 = vset.pattern.permute.xlu0 19
    %5523 = vperm.xlu0 %5522, %v3857
    %v5524 = vpop.permute.xlu0 %5523
    %5526 = vset.pattern.permute.xlu0 19
    %5527 = vperm.xlu0 %5526, %v3858
    %v5528 = vpop.permute.xlu0 %5527
    %v5530 = vsel %vm5508, %v5524, 0.0
    %v5531 = vsel %vm5509, %v5528, 0.0
    %v5532 = vadd.f32 %v5474, %v5530
    %v5533 = vadd.f32 %v5475, %v5531
    %5534 = vset.pattern.permute.xlu0 19
    %5535 = vperm.xlu0 %5534, %v3863
    %v5536 = vpop.permute.xlu0 %5535
    %5538 = vset.pattern.permute.xlu0 19
    %5539 = vperm.xlu0 %5538, %v3864
    %v5540 = vpop.permute.xlu0 %5539
    %v5542 = vsel %vm5508, %v5536, 0.0
    %v5543 = vsel %vm5509, %v5540, 0.0
    %v5544 = vadd.f32 %v5486, %v5542
    %v5545 = vadd.f32 %v5487, %v5543
    %5546 = vset.pattern.permute.xlu0 19
    %5547 = vperm.xlu0 %5546, %v3869
    %v5548 = vpop.permute.xlu0 %5547
    %5550 = vset.pattern.permute.xlu0 19
    %5551 = vperm.xlu0 %5550, %v3870
    %v5552 = vpop.permute.xlu0 %5551
    %v5554 = vsel %vm5508, %v5548, 0.0
    %v5555 = vsel %vm5509, %v5552, 0.0
    %v5556 = vadd.f32 %v5498, %v5554
    %v5557 = vadd.f32 %v5499, %v5555
    %5558 = vset.pattern.permute.xlu0 20
    %5559 = vperm.xlu0 %5558, %v3878
    %v5560 = vpop.permute.xlu0 %5559
    %5562 = vset.pattern.permute.xlu0 20
    %5563 = vperm.xlu0 %5562, %v3879
    %v5564 = vpop.permute.xlu0 %5563
    %vm5566 = vcmp.eq.f32.partialorder %v5560, %v4276
    %vm5567 = vcmp.eq.f32.partialorder %v5564, %v4276
    %5568 = vset.pattern.permute.xlu0 20
    %5569 = vperm.xlu0 %5568, %v3849
    %v5570 = vpop.permute.xlu0 %5569
    %5572 = vset.pattern.permute.xlu0 20
    %5573 = vperm.xlu0 %5572, %v3850
    %v5574 = vpop.permute.xlu0 %5573
    %v5576 = vsel %vm5566, %v5570, 0.0
    %v5577 = vsel %vm5567, %v5574, 0.0
    %v5578 = vadd.f32 %v5520, %v5576
    %v5579 = vadd.f32 %v5521, %v5577
    %5580 = vset.pattern.permute.xlu0 20
    %5581 = vperm.xlu0 %5580, %v3857
    %v5582 = vpop.permute.xlu0 %5581
    %5584 = vset.pattern.permute.xlu0 20
    %5585 = vperm.xlu0 %5584, %v3858
    %v5586 = vpop.permute.xlu0 %5585
    %v5588 = vsel %vm5566, %v5582, 0.0
    %v5589 = vsel %vm5567, %v5586, 0.0
    %v5590 = vadd.f32 %v5532, %v5588
    %v5591 = vadd.f32 %v5533, %v5589
    %5592 = vset.pattern.permute.xlu0 20
    %5593 = vperm.xlu0 %5592, %v3863
    %v5594 = vpop.permute.xlu0 %5593
    %5596 = vset.pattern.permute.xlu0 20
    %5597 = vperm.xlu0 %5596, %v3864
    %v5598 = vpop.permute.xlu0 %5597
    %v5600 = vsel %vm5566, %v5594, 0.0
    %v5601 = vsel %vm5567, %v5598, 0.0
    %v5602 = vadd.f32 %v5544, %v5600
    %v5603 = vadd.f32 %v5545, %v5601
    %5604 = vset.pattern.permute.xlu0 20
    %5605 = vperm.xlu0 %5604, %v3869
    %v5606 = vpop.permute.xlu0 %5605
    %5608 = vset.pattern.permute.xlu0 20
    %5609 = vperm.xlu0 %5608, %v3870
    %v5610 = vpop.permute.xlu0 %5609
    %v5612 = vsel %vm5566, %v5606, 0.0
    %v5613 = vsel %vm5567, %v5610, 0.0
    %v5614 = vadd.f32 %v5556, %v5612
    %v5615 = vadd.f32 %v5557, %v5613
    %5616 = vset.pattern.permute.xlu0 21
    %5617 = vperm.xlu0 %5616, %v3878
    %v5618 = vpop.permute.xlu0 %5617
    %5620 = vset.pattern.permute.xlu0 21
    %5621 = vperm.xlu0 %5620, %v3879
    %v5622 = vpop.permute.xlu0 %5621
    %vm5624 = vcmp.eq.f32.partialorder %v5618, %v4276
    %vm5625 = vcmp.eq.f32.partialorder %v5622, %v4276
    %5626 = vset.pattern.permute.xlu0 21
    %5627 = vperm.xlu0 %5626, %v3849
    %v5628 = vpop.permute.xlu0 %5627
    %5630 = vset.pattern.permute.xlu0 21
    %5631 = vperm.xlu0 %5630, %v3850
    %v5632 = vpop.permute.xlu0 %5631
    %v5634 = vsel %vm5624, %v5628, 0.0
    %v5635 = vsel %vm5625, %v5632, 0.0
    %v5636 = vadd.f32 %v5578, %v5634
    %v5637 = vadd.f32 %v5579, %v5635
    %5638 = vset.pattern.permute.xlu0 21
    %5639 = vperm.xlu0 %5638, %v3857
    %v5640 = vpop.permute.xlu0 %5639
    %5642 = vset.pattern.permute.xlu0 21
    %5643 = vperm.xlu0 %5642, %v3858
    %v5644 = vpop.permute.xlu0 %5643
    %v5646 = vsel %vm5624, %v5640, 0.0
    %v5647 = vsel %vm5625, %v5644, 0.0
    %v5648 = vadd.f32 %v5590, %v5646
    %v5649 = vadd.f32 %v5591, %v5647
    %5650 = vset.pattern.permute.xlu0 21
    %5651 = vperm.xlu0 %5650, %v3863
    %v5652 = vpop.permute.xlu0 %5651
    %5654 = vset.pattern.permute.xlu0 21
    %5655 = vperm.xlu0 %5654, %v3864
    %v5656 = vpop.permute.xlu0 %5655
    %v5658 = vsel %vm5624, %v5652, 0.0
    %v5659 = vsel %vm5625, %v5656, 0.0
    %v5660 = vadd.f32 %v5602, %v5658
    %v5661 = vadd.f32 %v5603, %v5659
    %5662 = vset.pattern.permute.xlu0 21
    %5663 = vperm.xlu0 %5662, %v3869
    %v5664 = vpop.permute.xlu0 %5663
    %5666 = vset.pattern.permute.xlu0 21
    %5667 = vperm.xlu0 %5666, %v3870
    %v5668 = vpop.permute.xlu0 %5667
    %v5670 = vsel %vm5624, %v5664, 0.0
    %v5671 = vsel %vm5625, %v5668, 0.0
    %v5672 = vadd.f32 %v5614, %v5670
    %v5673 = vadd.f32 %v5615, %v5671
    %5674 = vset.pattern.permute.xlu0 22
    %5675 = vperm.xlu0 %5674, %v3878
    %v5676 = vpop.permute.xlu0 %5675
    %5678 = vset.pattern.permute.xlu0 22
    %5679 = vperm.xlu0 %5678, %v3879
    %v5680 = vpop.permute.xlu0 %5679
    %vm5682 = vcmp.eq.f32.partialorder %v5676, %v4276
    %vm5683 = vcmp.eq.f32.partialorder %v5680, %v4276
    %5684 = vset.pattern.permute.xlu0 22
    %5685 = vperm.xlu0 %5684, %v3849
    %v5686 = vpop.permute.xlu0 %5685
    %5688 = vset.pattern.permute.xlu0 22
    %5689 = vperm.xlu0 %5688, %v3850
    %v5690 = vpop.permute.xlu0 %5689
    %v5692 = vsel %vm5682, %v5686, 0.0
    %v5693 = vsel %vm5683, %v5690, 0.0
    %v5694 = vadd.f32 %v5636, %v5692
    %v5695 = vadd.f32 %v5637, %v5693
    %5696 = vset.pattern.permute.xlu0 22
    %5697 = vperm.xlu0 %5696, %v3857
    %v5698 = vpop.permute.xlu0 %5697
    %5700 = vset.pattern.permute.xlu0 22
    %5701 = vperm.xlu0 %5700, %v3858
    %v5702 = vpop.permute.xlu0 %5701
    %v5704 = vsel %vm5682, %v5698, 0.0
    %v5705 = vsel %vm5683, %v5702, 0.0
    %v5706 = vadd.f32 %v5648, %v5704
    %v5707 = vadd.f32 %v5649, %v5705
    %5708 = vset.pattern.permute.xlu0 22
    %5709 = vperm.xlu0 %5708, %v3863
    %v5710 = vpop.permute.xlu0 %5709
    %5712 = vset.pattern.permute.xlu0 22
    %5713 = vperm.xlu0 %5712, %v3864
    %v5714 = vpop.permute.xlu0 %5713
    %v5716 = vsel %vm5682, %v5710, 0.0
    %v5717 = vsel %vm5683, %v5714, 0.0
    %v5718 = vadd.f32 %v5660, %v5716
    %v5719 = vadd.f32 %v5661, %v5717
    %5720 = vset.pattern.permute.xlu0 22
    %5721 = vperm.xlu0 %5720, %v3869
    %v5722 = vpop.permute.xlu0 %5721
    %5724 = vset.pattern.permute.xlu0 22
    %5725 = vperm.xlu0 %5724, %v3870
    %v5726 = vpop.permute.xlu0 %5725
    %v5728 = vsel %vm5682, %v5722, 0.0
    %v5729 = vsel %vm5683, %v5726, 0.0
    %v5730 = vadd.f32 %v5672, %v5728
    %v5731 = vadd.f32 %v5673, %v5729
    %5732 = vset.pattern.permute.xlu0 23
    %5733 = vperm.xlu0 %5732, %v3878
    %v5734 = vpop.permute.xlu0 %5733
    %5736 = vset.pattern.permute.xlu0 23
    %5737 = vperm.xlu0 %5736, %v3879
    %v5738 = vpop.permute.xlu0 %5737
    %vm5740 = vcmp.eq.f32.partialorder %v5734, %v4276
    %vm5741 = vcmp.eq.f32.partialorder %v5738, %v4276
    %5742 = vset.pattern.permute.xlu0 23
    %5743 = vperm.xlu0 %5742, %v3849
    %v5744 = vpop.permute.xlu0 %5743
    %5746 = vset.pattern.permute.xlu0 23
    %5747 = vperm.xlu0 %5746, %v3850
    %v5748 = vpop.permute.xlu0 %5747
    %v5750 = vsel %vm5740, %v5744, 0.0
    %v5751 = vsel %vm5741, %v5748, 0.0
    %v5752 = vadd.f32 %v5694, %v5750
    %v5753 = vadd.f32 %v5695, %v5751
    %5754 = vset.pattern.permute.xlu0 23
    %5755 = vperm.xlu0 %5754, %v3857
    %v5756 = vpop.permute.xlu0 %5755
    %5758 = vset.pattern.permute.xlu0 23
    %5759 = vperm.xlu0 %5758, %v3858
    %v5760 = vpop.permute.xlu0 %5759
    %v5762 = vsel %vm5740, %v5756, 0.0
    %v5763 = vsel %vm5741, %v5760, 0.0
    %v5764 = vadd.f32 %v5706, %v5762
    %v5765 = vadd.f32 %v5707, %v5763
    %5766 = vset.pattern.permute.xlu0 23
    %5767 = vperm.xlu0 %5766, %v3863
    %v5768 = vpop.permute.xlu0 %5767
    %5770 = vset.pattern.permute.xlu0 23
    %5771 = vperm.xlu0 %5770, %v3864
    %v5772 = vpop.permute.xlu0 %5771
    %v5774 = vsel %vm5740, %v5768, 0.0
    %v5775 = vsel %vm5741, %v5772, 0.0
    %v5776 = vadd.f32 %v5718, %v5774
    %v5777 = vadd.f32 %v5719, %v5775
    %5778 = vset.pattern.permute.xlu0 23
    %5779 = vperm.xlu0 %5778, %v3869
    %v5780 = vpop.permute.xlu0 %5779
    %5782 = vset.pattern.permute.xlu0 23
    %5783 = vperm.xlu0 %5782, %v3870
    %v5784 = vpop.permute.xlu0 %5783
    %v5786 = vsel %vm5740, %v5780, 0.0
    %v5787 = vsel %vm5741, %v5784, 0.0
    %v5788 = vadd.f32 %v5730, %v5786
    %v5789 = vadd.f32 %v5731, %v5787
    %5792 = vrot.lane.b32.xlu0 %v5764, 65
    %v5793 = vpop.permute.xlu0 %5792
    %5794 = vrot.lane.b32.xlu0 %v5765, 65
    %v5795 = vpop.permute.xlu0 %5794
    %5798 = vrot.lane.b32.xlu0 %v5764, 1
    %v5799 = vpop.permute.xlu0 %5798
    %5800 = vrot.lane.b32.xlu0 %v5765, 1
    %v5801 = vpop.permute.xlu0 %5800
    %v5804 = vsel %vm4765, %v5793, %v5799
    %v5805 = vsel %vm4765, %v5795, %v5801
    %v5806 = vadd.f32 %v5752, %v5804
    %v5807 = vadd.f32 %v5753, %v5805
    %5810 = vrot.lane.b32.xlu0 %v5776, 68
    %v5811 = vpop.permute.xlu0 %5810
    %5812 = vrot.lane.b32.xlu0 %v5777, 68
    %v5813 = vpop.permute.xlu0 %5812
    %5816 = vrot.lane.b32.xlu0 %v5776, 4
    %v5817 = vpop.permute.xlu0 %5816
    %5818 = vrot.lane.b32.xlu0 %v5777, 4
    %v5819 = vpop.permute.xlu0 %5818
    %v5822 = vsel %vm4784, %v5811, %v5817
    %v5823 = vsel %vm4784, %v5813, %v5819
    %v5824 = vadd.f32 %v5806, %v5822
    %v5825 = vadd.f32 %v5807, %v5823
    %5828 = vrot.lane.b32.xlu0 %v5788, 69
    %v5829 = vpop.permute.xlu0 %5828
    %5830 = vrot.lane.b32.xlu0 %v5789, 69
    %v5831 = vpop.permute.xlu0 %5830
    %5834 = vrot.lane.b32.xlu0 %v5788, 5
    %v5835 = vpop.permute.xlu0 %5834
    %5836 = vrot.lane.b32.xlu0 %v5789, 5
    %v5837 = vpop.permute.xlu0 %5836
    %v5840 = vsel %vm4803, %v5829, %v5835
    %v5841 = vsel %vm4803, %v5831, %v5837
    %v5842 = vadd.f32 %v5824, %v5840
    %v5843 = vadd.f32 %v5825, %v5841
    %5844 = vset.pattern.permute.xlu0 24
    %5845 = vperm.xlu0 %5844, %v3878
    %v5846 = vpop.permute.xlu0 %5845
    %5848 = vset.pattern.permute.xlu0 24
    %5849 = vperm.xlu0 %5848, %v3879
    %v5850 = vpop.permute.xlu0 %5849
    %vm5852 = vcmp.eq.f32.partialorder %v5846, %v4276
    %vm5853 = vcmp.eq.f32.partialorder %v5850, %v4276
    %5854 = vset.pattern.permute.xlu0 24
    %5855 = vperm.xlu0 %5854, %v3849
    %v5856 = vpop.permute.xlu0 %5855
    %5858 = vset.pattern.permute.xlu0 24
    %5859 = vperm.xlu0 %5858, %v3850
    %v5860 = vpop.permute.xlu0 %5859
    %v5862 = vsel %vm5852, %v5856, 0.0
    %v5863 = vsel %vm5853, %v5860, 0.0
    %v5864 = vadd.f32 %v5862, 0.0
    %v5865 = vadd.f32 %v5863, 0.0
    %5866 = vset.pattern.permute.xlu0 24
    %5867 = vperm.xlu0 %5866, %v3857
    %v5868 = vpop.permute.xlu0 %5867
    %5870 = vset.pattern.permute.xlu0 24
    %5871 = vperm.xlu0 %5870, %v3858
    %v5872 = vpop.permute.xlu0 %5871
    %v5874 = vsel %vm5852, %v5868, 0.0
    %v5875 = vsel %vm5853, %v5872, 0.0
    %v5876 = vadd.f32 %v5874, 0.0
    %v5877 = vadd.f32 %v5875, 0.0
    %5878 = vset.pattern.permute.xlu0 24
    %5879 = vperm.xlu0 %5878, %v3863
    %v5880 = vpop.permute.xlu0 %5879
    %5882 = vset.pattern.permute.xlu0 24
    %5883 = vperm.xlu0 %5882, %v3864
    %v5884 = vpop.permute.xlu0 %5883
    %v5886 = vsel %vm5852, %v5880, 0.0
    %v5887 = vsel %vm5853, %v5884, 0.0
    %v5888 = vadd.f32 %v5886, 0.0
    %v5889 = vadd.f32 %v5887, 0.0
    %5890 = vset.pattern.permute.xlu0 24
    %5891 = vperm.xlu0 %5890, %v3869
    %v5892 = vpop.permute.xlu0 %5891
    %5894 = vset.pattern.permute.xlu0 24
    %5895 = vperm.xlu0 %5894, %v3870
    %v5896 = vpop.permute.xlu0 %5895
    %v5898 = vsel %vm5852, %v5892, 0.0
    %v5899 = vsel %vm5853, %v5896, 0.0
    %v5900 = vadd.f32 %v5898, 0.0
    %v5901 = vadd.f32 %v5899, 0.0
    %5902 = vset.pattern.permute.xlu0 25
    %5903 = vperm.xlu0 %5902, %v3878
    %v5904 = vpop.permute.xlu0 %5903
    %5906 = vset.pattern.permute.xlu0 25
    %5907 = vperm.xlu0 %5906, %v3879
    %v5908 = vpop.permute.xlu0 %5907
    %vm5910 = vcmp.eq.f32.partialorder %v5904, %v4276
    %vm5911 = vcmp.eq.f32.partialorder %v5908, %v4276
    %5912 = vset.pattern.permute.xlu0 25
    %5913 = vperm.xlu0 %5912, %v3849
    %v5914 = vpop.permute.xlu0 %5913
    %5916 = vset.pattern.permute.xlu0 25
    %5917 = vperm.xlu0 %5916, %v3850
    %v5918 = vpop.permute.xlu0 %5917
    %v5920 = vsel %vm5910, %v5914, 0.0
    %v5921 = vsel %vm5911, %v5918, 0.0
    %v5922 = vadd.f32 %v5864, %v5920
    %v5923 = vadd.f32 %v5865, %v5921
    %5924 = vset.pattern.permute.xlu0 25
    %5925 = vperm.xlu0 %5924, %v3857
    %v5926 = vpop.permute.xlu0 %5925
    %5928 = vset.pattern.permute.xlu0 25
    %5929 = vperm.xlu0 %5928, %v3858
    %v5930 = vpop.permute.xlu0 %5929
    %v5932 = vsel %vm5910, %v5926, 0.0
    %v5933 = vsel %vm5911, %v5930, 0.0
    %v5934 = vadd.f32 %v5876, %v5932
    %v5935 = vadd.f32 %v5877, %v5933
    %5936 = vset.pattern.permute.xlu0 25
    %5937 = vperm.xlu0 %5936, %v3863
    %v5938 = vpop.permute.xlu0 %5937
    %5940 = vset.pattern.permute.xlu0 25
    %5941 = vperm.xlu0 %5940, %v3864
    %v5942 = vpop.permute.xlu0 %5941
    %v5944 = vsel %vm5910, %v5938, 0.0
    %v5945 = vsel %vm5911, %v5942, 0.0
    %v5946 = vadd.f32 %v5888, %v5944
    %v5947 = vadd.f32 %v5889, %v5945
    %5948 = vset.pattern.permute.xlu0 25
    %5949 = vperm.xlu0 %5948, %v3869
    %v5950 = vpop.permute.xlu0 %5949
    %5952 = vset.pattern.permute.xlu0 25
    %5953 = vperm.xlu0 %5952, %v3870
    %v5954 = vpop.permute.xlu0 %5953
    %v5956 = vsel %vm5910, %v5950, 0.0
    %v5957 = vsel %vm5911, %v5954, 0.0
    %v5958 = vadd.f32 %v5900, %v5956
    %v5959 = vadd.f32 %v5901, %v5957
    %5960 = vset.pattern.permute.xlu0 26
    %5961 = vperm.xlu0 %5960, %v3878
    %v5962 = vpop.permute.xlu0 %5961
    %5964 = vset.pattern.permute.xlu0 26
    %5965 = vperm.xlu0 %5964, %v3879
    %v5966 = vpop.permute.xlu0 %5965
    %vm5968 = vcmp.eq.f32.partialorder %v5962, %v4276
    %vm5969 = vcmp.eq.f32.partialorder %v5966, %v4276
    %5970 = vset.pattern.permute.xlu0 26
    %5971 = vperm.xlu0 %5970, %v3849
    %v5972 = vpop.permute.xlu0 %5971
    %5974 = vset.pattern.permute.xlu0 26
    %5975 = vperm.xlu0 %5974, %v3850
    %v5976 = vpop.permute.xlu0 %5975
    %v5978 = vsel %vm5968, %v5972, 0.0
    %v5979 = vsel %vm5969, %v5976, 0.0
    %v5980 = vadd.f32 %v5922, %v5978
    %v5981 = vadd.f32 %v5923, %v5979
    %5982 = vset.pattern.permute.xlu0 26
    %5983 = vperm.xlu0 %5982, %v3857
    %v5984 = vpop.permute.xlu0 %5983
    %5986 = vset.pattern.permute.xlu0 26
    %5987 = vperm.xlu0 %5986, %v3858
    %v5988 = vpop.permute.xlu0 %5987
    %v5990 = vsel %vm5968, %v5984, 0.0
    %v5991 = vsel %vm5969, %v5988, 0.0
    %v5992 = vadd.f32 %v5934, %v5990
    %v5993 = vadd.f32 %v5935, %v5991
    %5994 = vset.pattern.permute.xlu0 26
    %5995 = vperm.xlu0 %5994, %v3863
    %v5996 = vpop.permute.xlu0 %5995
    %5998 = vset.pattern.permute.xlu0 26
    %5999 = vperm.xlu0 %5998, %v3864
    %v6000 = vpop.permute.xlu0 %5999
    %v6002 = vsel %vm5968, %v5996, 0.0
    %v6003 = vsel %vm5969, %v6000, 0.0
    %v6004 = vadd.f32 %v5946, %v6002
    %v6005 = vadd.f32 %v5947, %v6003
    %6006 = vset.pattern.permute.xlu0 26
    %6007 = vperm.xlu0 %6006, %v3869
    %v6008 = vpop.permute.xlu0 %6007
    %6010 = vset.pattern.permute.xlu0 26
    %6011 = vperm.xlu0 %6010, %v3870
    %v6012 = vpop.permute.xlu0 %6011
    %v6014 = vsel %vm5968, %v6008, 0.0
    %v6015 = vsel %vm5969, %v6012, 0.0
    %v6016 = vadd.f32 %v5958, %v6014
    %v6017 = vadd.f32 %v5959, %v6015
    %6018 = vset.pattern.permute.xlu0 27
    %6019 = vperm.xlu0 %6018, %v3878
    %v6020 = vpop.permute.xlu0 %6019
    %6022 = vset.pattern.permute.xlu0 27
    %6023 = vperm.xlu0 %6022, %v3879
    %v6024 = vpop.permute.xlu0 %6023
    %vm6026 = vcmp.eq.f32.partialorder %v6020, %v4276
    %vm6027 = vcmp.eq.f32.partialorder %v6024, %v4276
    %6028 = vset.pattern.permute.xlu0 27
    %6029 = vperm.xlu0 %6028, %v3849
    %v6030 = vpop.permute.xlu0 %6029
    %6032 = vset.pattern.permute.xlu0 27
    %6033 = vperm.xlu0 %6032, %v3850
    %v6034 = vpop.permute.xlu0 %6033
    %v6036 = vsel %vm6026, %v6030, 0.0
    %v6037 = vsel %vm6027, %v6034, 0.0
    %v6038 = vadd.f32 %v5980, %v6036
    %v6039 = vadd.f32 %v5981, %v6037
    %6040 = vset.pattern.permute.xlu0 27
    %6041 = vperm.xlu0 %6040, %v3857
    %v6042 = vpop.permute.xlu0 %6041
    %6044 = vset.pattern.permute.xlu0 27
    %6045 = vperm.xlu0 %6044, %v3858
    %v6046 = vpop.permute.xlu0 %6045
    %v6048 = vsel %vm6026, %v6042, 0.0
    %v6049 = vsel %vm6027, %v6046, 0.0
    %v6050 = vadd.f32 %v5992, %v6048
    %v6051 = vadd.f32 %v5993, %v6049
    %6052 = vset.pattern.permute.xlu0 27
    %6053 = vperm.xlu0 %6052, %v3863
    %v6054 = vpop.permute.xlu0 %6053
    %6056 = vset.pattern.permute.xlu0 27
    %6057 = vperm.xlu0 %6056, %v3864
    %v6058 = vpop.permute.xlu0 %6057
    %v6060 = vsel %vm6026, %v6054, 0.0
    %v6061 = vsel %vm6027, %v6058, 0.0
    %v6062 = vadd.f32 %v6004, %v6060
    %v6063 = vadd.f32 %v6005, %v6061
    %6064 = vset.pattern.permute.xlu0 27
    %6065 = vperm.xlu0 %6064, %v3869
    %v6066 = vpop.permute.xlu0 %6065
    %6068 = vset.pattern.permute.xlu0 27
    %6069 = vperm.xlu0 %6068, %v3870
    %v6070 = vpop.permute.xlu0 %6069
    %v6072 = vsel %vm6026, %v6066, 0.0
    %v6073 = vsel %vm6027, %v6070, 0.0
    %v6074 = vadd.f32 %v6016, %v6072
    %v6075 = vadd.f32 %v6017, %v6073
    %6076 = vset.pattern.permute.xlu0 28
    %6077 = vperm.xlu0 %6076, %v3878
    %v6078 = vpop.permute.xlu0 %6077
    %6080 = vset.pattern.permute.xlu0 28
    %6081 = vperm.xlu0 %6080, %v3879
    %v6082 = vpop.permute.xlu0 %6081
    %vm6084 = vcmp.eq.f32.partialorder %v6078, %v4276
    %vm6085 = vcmp.eq.f32.partialorder %v6082, %v4276
    %6086 = vset.pattern.permute.xlu0 28
    %6087 = vperm.xlu0 %6086, %v3849
    %v6088 = vpop.permute.xlu0 %6087
    %6090 = vset.pattern.permute.xlu0 28
    %6091 = vperm.xlu0 %6090, %v3850
    %v6092 = vpop.permute.xlu0 %6091
    %v6094 = vsel %vm6084, %v6088, 0.0
    %v6095 = vsel %vm6085, %v6092, 0.0
    %v6096 = vadd.f32 %v6038, %v6094
    %v6097 = vadd.f32 %v6039, %v6095
    %6098 = vset.pattern.permute.xlu0 28
    %6099 = vperm.xlu0 %6098, %v3857
    %v6100 = vpop.permute.xlu0 %6099
    %6102 = vset.pattern.permute.xlu0 28
    %6103 = vperm.xlu0 %6102, %v3858
    %v6104 = vpop.permute.xlu0 %6103
    %v6106 = vsel %vm6084, %v6100, 0.0
    %v6107 = vsel %vm6085, %v6104, 0.0
    %v6108 = vadd.f32 %v6050, %v6106
    %v6109 = vadd.f32 %v6051, %v6107
    %6110 = vset.pattern.permute.xlu0 28
    %6111 = vperm.xlu0 %6110, %v3863
    %v6112 = vpop.permute.xlu0 %6111
    %6114 = vset.pattern.permute.xlu0 28
    %6115 = vperm.xlu0 %6114, %v3864
    %v6116 = vpop.permute.xlu0 %6115
    %v6118 = vsel %vm6084, %v6112, 0.0
    %v6119 = vsel %vm6085, %v6116, 0.0
    %v6120 = vadd.f32 %v6062, %v6118
    %v6121 = vadd.f32 %v6063, %v6119
    %6122 = vset.pattern.permute.xlu0 28
    %6123 = vperm.xlu0 %6122, %v3869
    %v6124 = vpop.permute.xlu0 %6123
    %6126 = vset.pattern.permute.xlu0 28
    %6127 = vperm.xlu0 %6126, %v3870
    %v6128 = vpop.permute.xlu0 %6127
    %v6130 = vsel %vm6084, %v6124, 0.0
    %v6131 = vsel %vm6085, %v6128, 0.0
    %v6132 = vadd.f32 %v6074, %v6130
    %v6133 = vadd.f32 %v6075, %v6131
    %6134 = vset.pattern.permute.xlu0 29
    %6135 = vperm.xlu0 %6134, %v3878
    %v6136 = vpop.permute.xlu0 %6135
    %6138 = vset.pattern.permute.xlu0 29
    %6139 = vperm.xlu0 %6138, %v3879
    %v6140 = vpop.permute.xlu0 %6139
    %vm6142 = vcmp.eq.f32.partialorder %v6136, %v4276
    %vm6143 = vcmp.eq.f32.partialorder %v6140, %v4276
    %6144 = vset.pattern.permute.xlu0 29
    %6145 = vperm.xlu0 %6144, %v3849
    %v6146 = vpop.permute.xlu0 %6145
    %6148 = vset.pattern.permute.xlu0 29
    %6149 = vperm.xlu0 %6148, %v3850
    %v6150 = vpop.permute.xlu0 %6149
    %v6152 = vsel %vm6142, %v6146, 0.0
    %v6153 = vsel %vm6143, %v6150, 0.0
    %v6154 = vadd.f32 %v6096, %v6152
    %v6155 = vadd.f32 %v6097, %v6153
    %6156 = vset.pattern.permute.xlu0 29
    %6157 = vperm.xlu0 %6156, %v3857
    %v6158 = vpop.permute.xlu0 %6157
    %6160 = vset.pattern.permute.xlu0 29
    %6161 = vperm.xlu0 %6160, %v3858
    %v6162 = vpop.permute.xlu0 %6161
    %v6164 = vsel %vm6142, %v6158, 0.0
    %v6165 = vsel %vm6143, %v6162, 0.0
    %v6166 = vadd.f32 %v6108, %v6164
    %v6167 = vadd.f32 %v6109, %v6165
    %6168 = vset.pattern.permute.xlu0 29
    %6169 = vperm.xlu0 %6168, %v3863
    %v6170 = vpop.permute.xlu0 %6169
    %6172 = vset.pattern.permute.xlu0 29
    %6173 = vperm.xlu0 %6172, %v3864
    %v6174 = vpop.permute.xlu0 %6173
    %v6176 = vsel %vm6142, %v6170, 0.0
    %v6177 = vsel %vm6143, %v6174, 0.0
    %v6178 = vadd.f32 %v6120, %v6176
    %v6179 = vadd.f32 %v6121, %v6177
    %6180 = vset.pattern.permute.xlu0 29
    %6181 = vperm.xlu0 %6180, %v3869
    %v6182 = vpop.permute.xlu0 %6181
    %6184 = vset.pattern.permute.xlu0 29
    %6185 = vperm.xlu0 %6184, %v3870
    %v6186 = vpop.permute.xlu0 %6185
    %v6188 = vsel %vm6142, %v6182, 0.0
    %v6189 = vsel %vm6143, %v6186, 0.0
    %v6190 = vadd.f32 %v6132, %v6188
    %v6191 = vadd.f32 %v6133, %v6189
    %6192 = vset.pattern.permute.xlu0 30
    %6193 = vperm.xlu0 %6192, %v3878
    %v6194 = vpop.permute.xlu0 %6193
    %6196 = vset.pattern.permute.xlu0 30
    %6197 = vperm.xlu0 %6196, %v3879
    %v6198 = vpop.permute.xlu0 %6197
    %vm6200 = vcmp.eq.f32.partialorder %v6194, %v4276
    %vm6201 = vcmp.eq.f32.partialorder %v6198, %v4276
    %6202 = vset.pattern.permute.xlu0 30
    %6203 = vperm.xlu0 %6202, %v3849
    %v6204 = vpop.permute.xlu0 %6203
    %6206 = vset.pattern.permute.xlu0 30
    %6207 = vperm.xlu0 %6206, %v3850
    %v6208 = vpop.permute.xlu0 %6207
    %v6210 = vsel %vm6200, %v6204, 0.0
    %v6211 = vsel %vm6201, %v6208, 0.0
    %v6212 = vadd.f32 %v6154, %v6210
    %v6213 = vadd.f32 %v6155, %v6211
    %6214 = vset.pattern.permute.xlu0 30
    %6215 = vperm.xlu0 %6214, %v3857
    %v6216 = vpop.permute.xlu0 %6215
    %6218 = vset.pattern.permute.xlu0 30
    %6219 = vperm.xlu0 %6218, %v3858
    %v6220 = vpop.permute.xlu0 %6219
    %v6222 = vsel %vm6200, %v6216, 0.0
    %v6223 = vsel %vm6201, %v6220, 0.0
    %v6224 = vadd.f32 %v6166, %v6222
    %v6225 = vadd.f32 %v6167, %v6223
    %6226 = vset.pattern.permute.xlu0 30
    %6227 = vperm.xlu0 %6226, %v3863
    %v6228 = vpop.permute.xlu0 %6227
    %6230 = vset.pattern.permute.xlu0 30
    %6231 = vperm.xlu0 %6230, %v3864
    %v6232 = vpop.permute.xlu0 %6231
    %v6234 = vsel %vm6200, %v6228, 0.0
    %v6235 = vsel %vm6201, %v6232, 0.0
    %v6236 = vadd.f32 %v6178, %v6234
    %v6237 = vadd.f32 %v6179, %v6235
    %6238 = vset.pattern.permute.xlu0 30
    %6239 = vperm.xlu0 %6238, %v3869
    %v6240 = vpop.permute.xlu0 %6239
    %6242 = vset.pattern.permute.xlu0 30
    %6243 = vperm.xlu0 %6242, %v3870
    %v6244 = vpop.permute.xlu0 %6243
    %v6246 = vsel %vm6200, %v6240, 0.0
    %v6247 = vsel %vm6201, %v6244, 0.0
    %v6248 = vadd.f32 %v6190, %v6246
    %v6249 = vadd.f32 %v6191, %v6247
    %6250 = vset.pattern.permute.xlu0 31
    %6251 = vperm.xlu0 %6250, %v3878
    %v6252 = vpop.permute.xlu0 %6251
    %6254 = vset.pattern.permute.xlu0 31
    %6255 = vperm.xlu0 %6254, %v3879
    %v6256 = vpop.permute.xlu0 %6255
    %vm6258 = vcmp.eq.f32.partialorder %v6252, %v4276
    %vm6259 = vcmp.eq.f32.partialorder %v6256, %v4276
    %6260 = vset.pattern.permute.xlu0 31
    %6261 = vperm.xlu0 %6260, %v3849
    %v6262 = vpop.permute.xlu0 %6261
    %6264 = vset.pattern.permute.xlu0 31
    %6265 = vperm.xlu0 %6264, %v3850
    %v6266 = vpop.permute.xlu0 %6265
    %v6268 = vsel %vm6258, %v6262, 0.0
    %v6269 = vsel %vm6259, %v6266, 0.0
    %v6270 = vadd.f32 %v6212, %v6268
    %v6271 = vadd.f32 %v6213, %v6269
    %6272 = vset.pattern.permute.xlu0 31
    %6273 = vperm.xlu0 %6272, %v3857
    %v6274 = vpop.permute.xlu0 %6273
    %6276 = vset.pattern.permute.xlu0 31
    %6277 = vperm.xlu0 %6276, %v3858
    %v6278 = vpop.permute.xlu0 %6277
    %v6280 = vsel %vm6258, %v6274, 0.0
    %v6281 = vsel %vm6259, %v6278, 0.0
    %v6282 = vadd.f32 %v6224, %v6280
    %v6283 = vadd.f32 %v6225, %v6281
    %6284 = vset.pattern.permute.xlu0 31
    %6285 = vperm.xlu0 %6284, %v3863
    %v6286 = vpop.permute.xlu0 %6285
    %6288 = vset.pattern.permute.xlu0 31
    %6289 = vperm.xlu0 %6288, %v3864
    %v6290 = vpop.permute.xlu0 %6289
    %v6292 = vsel %vm6258, %v6286, 0.0
    %v6293 = vsel %vm6259, %v6290, 0.0
    %v6294 = vadd.f32 %v6236, %v6292
    %v6295 = vadd.f32 %v6237, %v6293
    %6296 = vset.pattern.permute.xlu0 31
    %6297 = vperm.xlu0 %6296, %v3869
    %v6298 = vpop.permute.xlu0 %6297
    %6300 = vset.pattern.permute.xlu0 31
    %6301 = vperm.xlu0 %6300, %v3870
    %v6302 = vpop.permute.xlu0 %6301
    %v6304 = vsel %vm6258, %v6298, 0.0
    %v6305 = vsel %vm6259, %v6302, 0.0
    %v6306 = vadd.f32 %v6248, %v6304
    %v6307 = vadd.f32 %v6249, %v6305
    %6310 = vrot.lane.b32.xlu0 %v6282, 65
    %v6311 = vpop.permute.xlu0 %6310
    %6312 = vrot.lane.b32.xlu0 %v6283, 65
    %v6313 = vpop.permute.xlu0 %6312
    %6316 = vrot.lane.b32.xlu0 %v6282, 1
    %v6317 = vpop.permute.xlu0 %6316
    %6318 = vrot.lane.b32.xlu0 %v6283, 1
    %v6319 = vpop.permute.xlu0 %6318
    %v6322 = vsel %vm4765, %v6311, %v6317
    %v6323 = vsel %vm4765, %v6313, %v6319
    %v6324 = vadd.f32 %v6270, %v6322
    %v6325 = vadd.f32 %v6271, %v6323
    %6328 = vrot.lane.b32.xlu0 %v6294, 68
    %v6329 = vpop.permute.xlu0 %6328
    %6330 = vrot.lane.b32.xlu0 %v6295, 68
    %v6331 = vpop.permute.xlu0 %6330
    %6334 = vrot.lane.b32.xlu0 %v6294, 4
    %v6335 = vpop.permute.xlu0 %6334
    %6336 = vrot.lane.b32.xlu0 %v6295, 4
    %v6337 = vpop.permute.xlu0 %6336
    %v6340 = vsel %vm4784, %v6329, %v6335
    %v6341 = vsel %vm4784, %v6331, %v6337
    %v6342 = vadd.f32 %v6324, %v6340
    %v6343 = vadd.f32 %v6325, %v6341
    %6346 = vrot.lane.b32.xlu0 %v6306, 69
    %v6347 = vpop.permute.xlu0 %6346
    %6348 = vrot.lane.b32.xlu0 %v6307, 69
    %v6349 = vpop.permute.xlu0 %6348
    %6352 = vrot.lane.b32.xlu0 %v6306, 5
    %v6353 = vpop.permute.xlu0 %6352
    %6354 = vrot.lane.b32.xlu0 %v6307, 5
    %v6355 = vpop.permute.xlu0 %6354
    %v6358 = vsel %vm4803, %v6347, %v6353
    %v6359 = vsel %vm4803, %v6349, %v6355
    %v6360 = vadd.f32 %v6342, %v6358
    %v6361 = vadd.f32 %v6343, %v6359
    %6364 = vrot.lane.b32.xlu0 %v5324, 64
    %v6365 = vpop.permute.xlu0 %6364
    %6366 = vrot.lane.b32.xlu0 %v5325, 64
    %v6367 = vpop.permute.xlu0 %6366
    %6372 = vrot.lane.b32.xlu0 %v6360, 64
    %v6373 = vpop.permute.xlu0 %6372
    %6374 = vrot.lane.b32.xlu0 %v6361, 64
    %v6375 = vpop.permute.xlu0 %6374
    %vm6378 = vcmask 523264
    %v6379 = vsel %vm6378, %v4806, %v6365
    %v6380 = vsel %vm6378, %v4807, %v6367
    %v6381 = vsel %vm6378, %v5842, %v6373
    %v6382 = vsel %vm6378, %v5843, %v6375
    %6383 = vmatpush.msra.mxu0 0.0
    %v6384 = vand.u32 %v4261, 4294901760
    %6385 = vmatpush.msra.mxu0 %v6384
    %v6386 = vand.u32 %v4260, 4294901760
    %6387 = vmatpush.msra.mxu0 %v6386
    %v6388 = vand.u32 %v4259, 4294901760
    %6389 = vmatpush.msra.mxu0 %v6388
    %v6390 = vand.u32 %v4258, 4294901760
    %6391 = vmatpush.msra.mxu0 %v6390
    %v6392 = vand.u32 %v4257, 4294901760
    %6393 = vmatpush.msra.mxu0 %v6392
    %v6394 = vand.u32 %v4256, 4294901760
    %6395 = vmatpush.msra.mxu0 %v6394
    %6396 = vmatpush.msra.mxu0 0.0
    %6397 = vmatpush.msra.mxu0 0.0
    %v6398 = vand.u32 %v4255, 4294901760
    %6399 = vmatpush.msra.mxu0 %v6398
    %v6400 = vand.u32 %v4254, 4294901760
    %6401 = vmatpush.msra.mxu0 %v6400
    %v6402 = vand.u32 %v4253, 4294901760
    %6403 = vmatpush.msra.mxu0 %v6402
    %v6404 = vand.u32 %v4252, 4294901760
    %6405 = vmatpush.msra.mxu0 %v6404
    %v6406 = vand.u32 %v4251, 4294901760
    %6407 = vmatpush.msra.mxu0 %v6406
    %v6408 = vand.u32 %v4250, 4294901760
    %6409 = vmatpush.msra.mxu0 %v6408
    %6410 = vmatpush.msra.mxu0 0.0
    %v6411 = vand.u32 %v6379, 4294901760
    %v6412 = vsub.f32 %v6379, %v6411
    %v6413 = vand.u32 %v6412, 4294901760
    %v6414 = vsub.f32 %v6412, %v6413
    %v6415 = vand.u32 %v6414, 4294901760
    %6416 = vmatmul.f32.gmra.mxu0 %v6415
    %v6417 = vpop.f32.mrf.mxu0
    %v6418 = vadd.f32 0.0, %v6417
    %v6419 = vand.u32 %v6380, 4294901760
    %v6420 = vsub.f32 %v6380, %v6419
    %v6421 = vand.u32 %v6420, 4294901760
    %v6422 = vsub.f32 %v6420, %v6421
    %v6423 = vand.u32 %v6422, 4294901760
    %6424 = vmatmul.f32.gmra.mxu0 %v6423
    %v6425 = vpop.f32.mrf.mxu0
    %v6426 = vadd.f32 0.0, %v6425
    %6427 = vdwg.mxu0
    %6428 = vmatpush.msra.mxu0 0.0
    %v6429 = vand.u32 %v4261, 4294901760
    %v6430 = vsub.f32 %v4261, %v6429
    %v6431 = vand.u32 %v6430, 4294901760
    %v6432 = vsub.f32 %v6430, %v6431
    %v6433 = vand.u32 %v6432, 4294901760
    %6434 = vmatpush.msra.mxu0 %v6433
    %v6435 = vand.u32 %v4260, 4294901760
    %v6436 = vsub.f32 %v4260, %v6435
    %v6437 = vand.u32 %v6436, 4294901760
    %v6438 = vsub.f32 %v6436, %v6437
    %v6439 = vand.u32 %v6438, 4294901760
    %6440 = vmatpush.msra.mxu0 %v6439
    %v6441 = vand.u32 %v4259, 4294901760
    %v6442 = vsub.f32 %v4259, %v6441
    %v6443 = vand.u32 %v6442, 4294901760
    %v6444 = vsub.f32 %v6442, %v6443
    %v6445 = vand.u32 %v6444, 4294901760
    %6446 = vmatpush.msra.mxu0 %v6445
    %v6447 = vand.u32 %v4258, 4294901760
    %v6448 = vsub.f32 %v4258, %v6447
    %v6449 = vand.u32 %v6448, 4294901760
    %v6450 = vsub.f32 %v6448, %v6449
    %v6451 = vand.u32 %v6450, 4294901760
    %6452 = vmatpush.msra.mxu0 %v6451
    %v6453 = vand.u32 %v4257, 4294901760
    %v6454 = vsub.f32 %v4257, %v6453
    %v6455 = vand.u32 %v6454, 4294901760
    %v6456 = vsub.f32 %v6454, %v6455
    %v6457 = vand.u32 %v6456, 4294901760
    %6458 = vmatpush.msra.mxu0 %v6457
    %v6459 = vand.u32 %v4256, 4294901760
    %v6460 = vsub.f32 %v4256, %v6459
    %v6461 = vand.u32 %v6460, 4294901760
    %v6462 = vsub.f32 %v6460, %v6461
    %v6463 = vand.u32 %v6462, 4294901760
    %6464 = vmatpush.msra.mxu0 %v6463
    %6465 = vmatpush.msra.mxu0 0.0
    %6466 = vmatpush.msra.mxu0 0.0
    %v6467 = vand.u32 %v4255, 4294901760
    %v6468 = vsub.f32 %v4255, %v6467
    %v6469 = vand.u32 %v6468, 4294901760
    %v6470 = vsub.f32 %v6468, %v6469
    %v6471 = vand.u32 %v6470, 4294901760
    %6472 = vmatpush.msra.mxu0 %v6471
    %v6473 = vand.u32 %v4254, 4294901760
    %v6474 = vsub.f32 %v4254, %v6473
    %v6475 = vand.u32 %v6474, 4294901760
    %v6476 = vsub.f32 %v6474, %v6475
    %v6477 = vand.u32 %v6476, 4294901760
    %6478 = vmatpush.msra.mxu0 %v6477
    %v6479 = vand.u32 %v4253, 4294901760
    %v6480 = vsub.f32 %v4253, %v6479
    %v6481 = vand.u32 %v6480, 4294901760
    %v6482 = vsub.f32 %v6480, %v6481
    %v6483 = vand.u32 %v6482, 4294901760
    %6484 = vmatpush.msra.mxu0 %v6483
    %v6485 = vand.u32 %v4252, 4294901760
    %v6486 = vsub.f32 %v4252, %v6485
    %v6487 = vand.u32 %v6486, 4294901760
    %v6488 = vsub.f32 %v6486, %v6487
    %v6489 = vand.u32 %v6488, 4294901760
    %6490 = vmatpush.msra.mxu0 %v6489
    %v6491 = vand.u32 %v4251, 4294901760
    %v6492 = vsub.f32 %v4251, %v6491
    %v6493 = vand.u32 %v6492, 4294901760
    %v6494 = vsub.f32 %v6492, %v6493
    %v6495 = vand.u32 %v6494, 4294901760
    %6496 = vmatpush.msra.mxu0 %v6495
    %v6497 = vand.u32 %v4250, 4294901760
    %v6498 = vsub.f32 %v4250, %v6497
    %v6499 = vand.u32 %v6498, 4294901760
    %v6500 = vsub.f32 %v6498, %v6499
    %v6501 = vand.u32 %v6500, 4294901760
    %6502 = vmatpush.msra.mxu0 %v6501
    %6503 = vmatpush.msra.mxu0 0.0
    %v6504 = vand.u32 %v6379, 4294901760
    %6505 = vmatmul.f32.gmra.mxu0 %v6504
    %v6506 = vpop.f32.mrf.mxu0
    %v6507 = vadd.f32 %v6418, %v6506
    %v6508 = vand.u32 %v6380, 4294901760
    %6509 = vmatmul.f32.gmra.mxu0 %v6508
    %v6510 = vpop.f32.mrf.mxu0
    %v6511 = vadd.f32 %v6426, %v6510
    %6512 = vdwg.mxu0
    %6513 = vmatpush.msra.mxu0 0.0
    %v6514 = vand.u32 %v4261, 4294901760
    %v6515 = vsub.f32 %v4261, %v6514
    %6516 = vmatpush.msra.mxu0 %v6515
    %v6517 = vand.u32 %v4260, 4294901760
    %v6518 = vsub.f32 %v4260, %v6517
    %6519 = vmatpush.msra.mxu0 %v6518
    %v6520 = vand.u32 %v4259, 4294901760
    %v6521 = vsub.f32 %v4259, %v6520
    %6522 = vmatpush.msra.mxu0 %v6521
    %v6523 = vand.u32 %v4258, 4294901760
    %v6524 = vsub.f32 %v4258, %v6523
    %6525 = vmatpush.msra.mxu0 %v6524
    %v6526 = vand.u32 %v4257, 4294901760
    %v6527 = vsub.f32 %v4257, %v6526
    %6528 = vmatpush.msra.mxu0 %v6527
    %v6529 = vand.u32 %v4256, 4294901760
    %v6530 = vsub.f32 %v4256, %v6529
    %6531 = vmatpush.msra.mxu0 %v6530
    %6532 = vmatpush.msra.mxu0 0.0
    %6533 = vmatpush.msra.mxu0 0.0
    %v6534 = vand.u32 %v4255, 4294901760
    %v6535 = vsub.f32 %v4255, %v6534
    %6536 = vmatpush.msra.mxu0 %v6535
    %v6537 = vand.u32 %v4254, 4294901760
    %v6538 = vsub.f32 %v4254, %v6537
    %6539 = vmatpush.msra.mxu0 %v6538
    %v6540 = vand.u32 %v4253, 4294901760
    %v6541 = vsub.f32 %v4253, %v6540
    %6542 = vmatpush.msra.mxu0 %v6541
    %v6543 = vand.u32 %v4252, 4294901760
    %v6544 = vsub.f32 %v4252, %v6543
    %6545 = vmatpush.msra.mxu0 %v6544
    %v6546 = vand.u32 %v4251, 4294901760
    %v6547 = vsub.f32 %v4251, %v6546
    %6548 = vmatpush.msra.mxu0 %v6547
    %v6549 = vand.u32 %v4250, 4294901760
    %v6550 = vsub.f32 %v4250, %v6549
    %6551 = vmatpush.msra.mxu0 %v6550
    %6552 = vmatpush.msra.mxu0 0.0
    %v6553 = vand.u32 %v6379, 4294901760
    %v6554 = vsub.f32 %v6379, %v6553
    %6555 = vmatmul.f32.gmra.mxu0 %v6554
    %v6556 = vpop.f32.mrf.mxu0
    %v6557 = vadd.f32 %v6507, %v6556
    %v6558 = vand.u32 %v6380, 4294901760
    %v6559 = vsub.f32 %v6380, %v6558
    %6560 = vmatmul.f32.gmra.mxu0 %v6559
    %v6561 = vpop.f32.mrf.mxu0
    %v6562 = vadd.f32 %v6511, %v6561
    %6563 = vdwg.mxu0
    %6564 = vmatpush.msra.mxu0 0.0
    %v6565 = vand.u32 %v4261, 4294901760
    %6566 = vmatpush.msra.mxu0 %v6565
    %v6567 = vand.u32 %v4260, 4294901760
    %6568 = vmatpush.msra.mxu0 %v6567
    %v6569 = vand.u32 %v4259, 4294901760
    %6570 = vmatpush.msra.mxu0 %v6569
    %v6571 = vand.u32 %v4258, 4294901760
    %6572 = vmatpush.msra.mxu0 %v6571
    %v6573 = vand.u32 %v4257, 4294901760
    %6574 = vmatpush.msra.mxu0 %v6573
    %v6575 = vand.u32 %v4256, 4294901760
    %6576 = vmatpush.msra.mxu0 %v6575
    %6577 = vmatpush.msra.mxu0 0.0
    %6578 = vmatpush.msra.mxu0 0.0
    %v6579 = vand.u32 %v4255, 4294901760
    %6580 = vmatpush.msra.mxu0 %v6579
    %v6581 = vand.u32 %v4254, 4294901760
    %6582 = vmatpush.msra.mxu0 %v6581
    %v6583 = vand.u32 %v4253, 4294901760
    %6584 = vmatpush.msra.mxu0 %v6583
    %v6585 = vand.u32 %v4252, 4294901760
    %6586 = vmatpush.msra.mxu0 %v6585
    %v6587 = vand.u32 %v4251, 4294901760
    %6588 = vmatpush.msra.mxu0 %v6587
    %v6589 = vand.u32 %v4250, 4294901760
    %6590 = vmatpush.msra.mxu0 %v6589
    %6591 = vmatpush.msra.mxu0 0.0
    %v6592 = vand.u32 %v6379, 4294901760
    %v6593 = vsub.f32 %v6379, %v6592
    %v6594 = vand.u32 %v6593, 4294901760
    %6595 = vmatmul.f32.gmra.mxu0 %v6594
    %v6596 = vpop.f32.mrf.mxu0
    %v6597 = vadd.f32 %v6557, %v6596
    %v6598 = vand.u32 %v6380, 4294901760
    %v6599 = vsub.f32 %v6380, %v6598
    %v6600 = vand.u32 %v6599, 4294901760
    %6601 = vmatmul.f32.gmra.mxu0 %v6600
    %v6602 = vpop.f32.mrf.mxu0
    %v6603 = vadd.f32 %v6562, %v6602
    %6604 = vdwg.mxu0
    %6605 = vmatpush.msra.mxu0 0.0
    %v6606 = vand.u32 %v4261, 4294901760
    %v6607 = vsub.f32 %v4261, %v6606
    %v6608 = vand.u32 %v6607, 4294901760
    %6609 = vmatpush.msra.mxu0 %v6608
    %v6610 = vand.u32 %v4260, 4294901760
    %v6611 = vsub.f32 %v4260, %v6610
    %v6612 = vand.u32 %v6611, 4294901760
    %6613 = vmatpush.msra.mxu0 %v6612
    %v6614 = vand.u32 %v4259, 4294901760
    %v6615 = vsub.f32 %v4259, %v6614
    %v6616 = vand.u32 %v6615, 4294901760
    %6617 = vmatpush.msra.mxu0 %v6616
    %v6618 = vand.u32 %v4258, 4294901760
    %v6619 = vsub.f32 %v4258, %v6618
    %v6620 = vand.u32 %v6619, 4294901760
    %6621 = vmatpush.msra.mxu0 %v6620
    %v6622 = vand.u32 %v4257, 4294901760
    %v6623 = vsub.f32 %v4257, %v6622
    %v6624 = vand.u32 %v6623, 4294901760
    %6625 = vmatpush.msra.mxu0 %v6624
    %v6626 = vand.u32 %v4256, 4294901760
    %v6627 = vsub.f32 %v4256, %v6626
    %v6628 = vand.u32 %v6627, 4294901760
    %6629 = vmatpush.msra.mxu0 %v6628
    %6630 = vmatpush.msra.mxu0 0.0
    %6631 = vmatpush.msra.mxu0 0.0
    %v6632 = vand.u32 %v4255, 4294901760
    %v6633 = vsub.f32 %v4255, %v6632
    %v6634 = vand.u32 %v6633, 4294901760
    %6635 = vmatpush.msra.mxu0 %v6634
    %v6636 = vand.u32 %v4254, 4294901760
    %v6637 = vsub.f32 %v4254, %v6636
    %v6638 = vand.u32 %v6637, 4294901760
    %6639 = vmatpush.msra.mxu0 %v6638
    %v6640 = vand.u32 %v4253, 4294901760
    %v6641 = vsub.f32 %v4253, %v6640
    %v6642 = vand.u32 %v6641, 4294901760
    %6643 = vmatpush.msra.mxu0 %v6642
    %v6644 = vand.u32 %v4252, 4294901760
    %v6645 = vsub.f32 %v4252, %v6644
    %v6646 = vand.u32 %v6645, 4294901760
    %6647 = vmatpush.msra.mxu0 %v6646
    %v6648 = vand.u32 %v4251, 4294901760
    %v6649 = vsub.f32 %v4251, %v6648
    %v6650 = vand.u32 %v6649, 4294901760
    %6651 = vmatpush.msra.mxu0 %v6650
    %v6652 = vand.u32 %v4250, 4294901760
    %v6653 = vsub.f32 %v4250, %v6652
    %v6654 = vand.u32 %v6653, 4294901760
    %6655 = vmatpush.msra.mxu0 %v6654
    %6656 = vmatpush.msra.mxu0 0.0
    %v6657 = vand.u32 %v6379, 4294901760
    %6658 = vmatmul.f32.gmra.mxu0 %v6657
    %v6659 = vpop.f32.mrf.mxu0
    %v6660 = vadd.f32 %v6597, %v6659
    %v6661 = vand.u32 %v6380, 4294901760
    %6662 = vmatmul.f32.gmra.mxu0 %v6661
    %v6663 = vpop.f32.mrf.mxu0
    %v6664 = vadd.f32 %v6603, %v6663
    %6665 = vdwg.mxu0
    %6666 = vmatpush.msra.mxu0 0.0
    %v6667 = vand.u32 %v4261, 4294901760
    %6668 = vmatpush.msra.mxu0 %v6667
    %v6669 = vand.u32 %v4260, 4294901760
    %6670 = vmatpush.msra.mxu0 %v6669
    %v6671 = vand.u32 %v4259, 4294901760
    %6672 = vmatpush.msra.mxu0 %v6671
    %v6673 = vand.u32 %v4258, 4294901760
    %6674 = vmatpush.msra.mxu0 %v6673
    %v6675 = vand.u32 %v4257, 4294901760
    %6676 = vmatpush.msra.mxu0 %v6675
    %v6677 = vand.u32 %v4256, 4294901760
    %6678 = vmatpush.msra.mxu0 %v6677
    %6679 = vmatpush.msra.mxu0 0.0
    %6680 = vmatpush.msra.mxu0 0.0
    %v6681 = vand.u32 %v4255, 4294901760
    %6682 = vmatpush.msra.mxu0 %v6681
    %v6683 = vand.u32 %v4254, 4294901760
    %6684 = vmatpush.msra.mxu0 %v6683
    %v6685 = vand.u32 %v4253, 4294901760
    %6686 = vmatpush.msra.mxu0 %v6685
    %v6687 = vand.u32 %v4252, 4294901760
    %6688 = vmatpush.msra.mxu0 %v6687
    %v6689 = vand.u32 %v4251, 4294901760
    %6690 = vmatpush.msra.mxu0 %v6689
    %v6691 = vand.u32 %v4250, 4294901760
    %6692 = vmatpush.msra.mxu0 %v6691
    %6693 = vmatpush.msra.mxu0 0.0
    %v6694 = vand.u32 %v6379, 4294901760
    %6695 = vmatmul.f32.gmra.mxu0 %v6694
    %v6696 = vpop.f32.mrf.mxu0
    %v6697 = vadd.f32 %v6660, %v6696
    %v6698 = vand.u32 %v6380, 4294901760
    %6699 = vmatmul.f32.gmra.mxu0 %v6698
    %v6700 = vpop.f32.mrf.mxu0
    %v6701 = vadd.f32 %v6664, %v6700
    %6702 = vdwg.mxu0
    %6703 = vmatpush.msra.mxu0 0.0
    %v6704 = vand.u32 %v4273, 4294901760
    %6705 = vmatpush.msra.mxu0 %v6704
    %v6706 = vand.u32 %v4272, 4294901760
    %6707 = vmatpush.msra.mxu0 %v6706
    %v6708 = vand.u32 %v4271, 4294901760
    %6709 = vmatpush.msra.mxu0 %v6708
    %v6710 = vand.u32 %v4270, 4294901760
    %6711 = vmatpush.msra.mxu0 %v6710
    %v6712 = vand.u32 %v4269, 4294901760
    %6713 = vmatpush.msra.mxu0 %v6712
    %v6714 = vand.u32 %v4268, 4294901760
    %6715 = vmatpush.msra.mxu0 %v6714
    %6716 = vmatpush.msra.mxu0 0.0
    %6717 = vmatpush.msra.mxu0 0.0
    %v6718 = vand.u32 %v4267, 4294901760
    %6719 = vmatpush.msra.mxu0 %v6718
    %v6720 = vand.u32 %v4266, 4294901760
    %6721 = vmatpush.msra.mxu0 %v6720
    %v6722 = vand.u32 %v4265, 4294901760
    %6723 = vmatpush.msra.mxu0 %v6722
    %v6724 = vand.u32 %v4264, 4294901760
    %6725 = vmatpush.msra.mxu0 %v6724
    %v6726 = vand.u32 %v4263, 4294901760
    %6727 = vmatpush.msra.mxu0 %v6726
    %v6728 = vand.u32 %v4262, 4294901760
    %6729 = vmatpush.msra.mxu0 %v6728
    %6730 = vmatpush.msra.mxu0 0.0
    %v6731 = vand.u32 %v6381, 4294901760
    %v6732 = vsub.f32 %v6381, %v6731
    %v6733 = vand.u32 %v6732, 4294901760
    %v6734 = vsub.f32 %v6732, %v6733
    %v6735 = vand.u32 %v6734, 4294901760
    %6736 = vmatmul.f32.gmra.mxu0 %v6735
    %v6737 = vpop.f32.mrf.mxu0
    %v6738 = vadd.f32 %v6697, %v6737
    %v6739 = vand.u32 %v6382, 4294901760
    %v6740 = vsub.f32 %v6382, %v6739
    %v6741 = vand.u32 %v6740, 4294901760
    %v6742 = vsub.f32 %v6740, %v6741
    %v6743 = vand.u32 %v6742, 4294901760
    %6744 = vmatmul.f32.gmra.mxu0 %v6743
    %v6745 = vpop.f32.mrf.mxu0
    %v6746 = vadd.f32 %v6701, %v6745
    %6747 = vdwg.mxu0
    %6748 = vmatpush.msra.mxu0 0.0
    %v6749 = vand.u32 %v4273, 4294901760
    %v6750 = vsub.f32 %v4273, %v6749
    %v6751 = vand.u32 %v6750, 4294901760
    %v6752 = vsub.f32 %v6750, %v6751
    %v6753 = vand.u32 %v6752, 4294901760
    %6754 = vmatpush.msra.mxu0 %v6753
    %v6755 = vand.u32 %v4272, 4294901760
    %v6756 = vsub.f32 %v4272, %v6755
    %v6757 = vand.u32 %v6756, 4294901760
    %v6758 = vsub.f32 %v6756, %v6757
    %v6759 = vand.u32 %v6758, 4294901760
    %6760 = vmatpush.msra.mxu0 %v6759
    %v6761 = vand.u32 %v4271, 4294901760
    %v6762 = vsub.f32 %v4271, %v6761
    %v6763 = vand.u32 %v6762, 4294901760
    %v6764 = vsub.f32 %v6762, %v6763
    %v6765 = vand.u32 %v6764, 4294901760
    %6766 = vmatpush.msra.mxu0 %v6765
    %v6767 = vand.u32 %v4270, 4294901760
    %v6768 = vsub.f32 %v4270, %v6767
    %v6769 = vand.u32 %v6768, 4294901760
    %v6770 = vsub.f32 %v6768, %v6769
    %v6771 = vand.u32 %v6770, 4294901760
    %6772 = vmatpush.msra.mxu0 %v6771
    %v6773 = vand.u32 %v4269, 4294901760
    %v6774 = vsub.f32 %v4269, %v6773
    %v6775 = vand.u32 %v6774, 4294901760
    %v6776 = vsub.f32 %v6774, %v6775
    %v6777 = vand.u32 %v6776, 4294901760
    %6778 = vmatpush.msra.mxu0 %v6777
    %v6779 = vand.u32 %v4268, 4294901760
    %v6780 = vsub.f32 %v4268, %v6779
    %v6781 = vand.u32 %v6780, 4294901760
    %v6782 = vsub.f32 %v6780, %v6781
    %v6783 = vand.u32 %v6782, 4294901760
    %6784 = vmatpush.msra.mxu0 %v6783
    %6785 = vmatpush.msra.mxu0 0.0
    %6786 = vmatpush.msra.mxu0 0.0
    %v6787 = vand.u32 %v4267, 4294901760
    %v6788 = vsub.f32 %v4267, %v6787
    %v6789 = vand.u32 %v6788, 4294901760
    %v6790 = vsub.f32 %v6788, %v6789
    %v6791 = vand.u32 %v6790, 4294901760
    %6792 = vmatpush.msra.mxu0 %v6791
    %v6793 = vand.u32 %v4266, 4294901760
    %v6794 = vsub.f32 %v4266, %v6793
    %v6795 = vand.u32 %v6794, 4294901760
    %v6796 = vsub.f32 %v6794, %v6795
    %v6797 = vand.u32 %v6796, 4294901760
    %6798 = vmatpush.msra.mxu0 %v6797
    %v6799 = vand.u32 %v4265, 4294901760
    %v6800 = vsub.f32 %v4265, %v6799
    %v6801 = vand.u32 %v6800, 4294901760
    %v6802 = vsub.f32 %v6800, %v6801
    %v6803 = vand.u32 %v6802, 4294901760
    %6804 = vmatpush.msra.mxu0 %v6803
    %v6805 = vand.u32 %v4264, 4294901760
    %v6806 = vsub.f32 %v4264, %v6805
    %v6807 = vand.u32 %v6806, 4294901760
    %v6808 = vsub.f32 %v6806, %v6807
    %v6809 = vand.u32 %v6808, 4294901760
    %6810 = vmatpush.msra.mxu0 %v6809
    %v6811 = vand.u32 %v4263, 4294901760
    %v6812 = vsub.f32 %v4263, %v6811
    %v6813 = vand.u32 %v6812, 4294901760
    %v6814 = vsub.f32 %v6812, %v6813
    %v6815 = vand.u32 %v6814, 4294901760
    %6816 = vmatpush.msra.mxu0 %v6815
    %v6817 = vand.u32 %v4262, 4294901760
    %v6818 = vsub.f32 %v4262, %v6817
    %v6819 = vand.u32 %v6818, 4294901760
    %v6820 = vsub.f32 %v6818, %v6819
    %v6821 = vand.u32 %v6820, 4294901760
    %6822 = vmatpush.msra.mxu0 %v6821
    %6823 = vmatpush.msra.mxu0 0.0
    %v6824 = vand.u32 %v6381, 4294901760
    %6825 = vmatmul.f32.gmra.mxu0 %v6824
    %v6826 = vpop.f32.mrf.mxu0
    %v6827 = vadd.f32 %v6738, %v6826
    %v6828 = vand.u32 %v6382, 4294901760
    %6829 = vmatmul.f32.gmra.mxu0 %v6828
    %v6830 = vpop.f32.mrf.mxu0
    %v6831 = vadd.f32 %v6746, %v6830
    %6832 = vdwg.mxu0
    %6833 = vmatpush.msra.mxu0 0.0
    %v6834 = vand.u32 %v4273, 4294901760
    %v6835 = vsub.f32 %v4273, %v6834
    %6836 = vmatpush.msra.mxu0 %v6835
    %v6837 = vand.u32 %v4272, 4294901760
    %v6838 = vsub.f32 %v4272, %v6837
    %6839 = vmatpush.msra.mxu0 %v6838
    %v6840 = vand.u32 %v4271, 4294901760
    %v6841 = vsub.f32 %v4271, %v6840
    %6842 = vmatpush.msra.mxu0 %v6841
    %v6843 = vand.u32 %v4270, 4294901760
    %v6844 = vsub.f32 %v4270, %v6843
    %6845 = vmatpush.msra.mxu0 %v6844
    %v6846 = vand.u32 %v4269, 4294901760
    %v6847 = vsub.f32 %v4269, %v6846
    %6848 = vmatpush.msra.mxu0 %v6847
    %v6849 = vand.u32 %v4268, 4294901760
    %v6850 = vsub.f32 %v4268, %v6849
    %6851 = vmatpush.msra.mxu0 %v6850
    %6852 = vmatpush.msra.mxu0 0.0
    %6853 = vmatpush.msra.mxu0 0.0
    %v6854 = vand.u32 %v4267, 4294901760
    %v6855 = vsub.f32 %v4267, %v6854
    %6856 = vmatpush.msra.mxu0 %v6855
    %v6857 = vand.u32 %v4266, 4294901760
    %v6858 = vsub.f32 %v4266, %v6857
    %6859 = vmatpush.msra.mxu0 %v6858
    %v6860 = vand.u32 %v4265, 4294901760
    %v6861 = vsub.f32 %v4265, %v6860
    %6862 = vmatpush.msra.mxu0 %v6861
    %v6863 = vand.u32 %v4264, 4294901760
    %v6864 = vsub.f32 %v4264, %v6863
    %6865 = vmatpush.msra.mxu0 %v6864
    %v6866 = vand.u32 %v4263, 4294901760
    %v6867 = vsub.f32 %v4263, %v6866
    %6868 = vmatpush.msra.mxu0 %v6867
    %v6869 = vand.u32 %v4262, 4294901760
    %v6870 = vsub.f32 %v4262, %v6869
    %6871 = vmatpush.msra.mxu0 %v6870
    %6872 = vmatpush.msra.mxu0 0.0
    %v6873 = vand.u32 %v6381, 4294901760
    %v6874 = vsub.f32 %v6381, %v6873
    %6875 = vmatmul.f32.gmra.mxu0 %v6874
    %v6876 = vpop.f32.mrf.mxu0
    %v6877 = vadd.f32 %v6827, %v6876
    %v6878 = vand.u32 %v6382, 4294901760
    %v6879 = vsub.f32 %v6382, %v6878
    %6880 = vmatmul.f32.gmra.mxu0 %v6879
    %v6881 = vpop.f32.mrf.mxu0
    %v6882 = vadd.f32 %v6831, %v6881
    %6883 = vdwg.mxu0
    %6884 = vmatpush.msra.mxu0 0.0
    %v6885 = vand.u32 %v4273, 4294901760
    %6886 = vmatpush.msra.mxu0 %v6885
    %v6887 = vand.u32 %v4272, 4294901760
    %6888 = vmatpush.msra.mxu0 %v6887
    %v6889 = vand.u32 %v4271, 4294901760
    %6890 = vmatpush.msra.mxu0 %v6889
    %v6891 = vand.u32 %v4270, 4294901760
    %6892 = vmatpush.msra.mxu0 %v6891
    %v6893 = vand.u32 %v4269, 4294901760
    %6894 = vmatpush.msra.mxu0 %v6893
    %v6895 = vand.u32 %v4268, 4294901760
    %6896 = vmatpush.msra.mxu0 %v6895
    %6897 = vmatpush.msra.mxu0 0.0
    %6898 = vmatpush.msra.mxu0 0.0
    %v6899 = vand.u32 %v4267, 4294901760
    %6900 = vmatpush.msra.mxu0 %v6899
    %v6901 = vand.u32 %v4266, 4294901760
    %6902 = vmatpush.msra.mxu0 %v6901
    %v6903 = vand.u32 %v4265, 4294901760
    %6904 = vmatpush.msra.mxu0 %v6903
    %v6905 = vand.u32 %v4264, 4294901760
    %6906 = vmatpush.msra.mxu0 %v6905
    %v6907 = vand.u32 %v4263, 4294901760
    %6908 = vmatpush.msra.mxu0 %v6907
    %v6909 = vand.u32 %v4262, 4294901760
    %6910 = vmatpush.msra.mxu0 %v6909
    %6911 = vmatpush.msra.mxu0 0.0
    %v6912 = vand.u32 %v6381, 4294901760
    %v6913 = vsub.f32 %v6381, %v6912
    %v6914 = vand.u32 %v6913, 4294901760
    %6915 = vmatmul.f32.gmra.mxu0 %v6914
    %v6916 = vpop.f32.mrf.mxu0
    %v6917 = vadd.f32 %v6877, %v6916
    %v6918 = vand.u32 %v6382, 4294901760
    %v6919 = vsub.f32 %v6382, %v6918
    %v6920 = vand.u32 %v6919, 4294901760
    %6921 = vmatmul.f32.gmra.mxu0 %v6920
    %v6922 = vpop.f32.mrf.mxu0
    %v6923 = vadd.f32 %v6882, %v6922
    %6924 = vdwg.mxu0
    %6925 = vmatpush.msra.mxu0 0.0
    %v6926 = vand.u32 %v4273, 4294901760
    %v6927 = vsub.f32 %v4273, %v6926
    %v6928 = vand.u32 %v6927, 4294901760
    %6929 = vmatpush.msra.mxu0 %v6928
    %v6930 = vand.u32 %v4272, 4294901760
    %v6931 = vsub.f32 %v4272, %v6930
    %v6932 = vand.u32 %v6931, 4294901760
    %6933 = vmatpush.msra.mxu0 %v6932
    %v6934 = vand.u32 %v4271, 4294901760
    %v6935 = vsub.f32 %v4271, %v6934
    %v6936 = vand.u32 %v6935, 4294901760
    %6937 = vmatpush.msra.mxu0 %v6936
    %v6938 = vand.u32 %v4270, 4294901760
    %v6939 = vsub.f32 %v4270, %v6938
    %v6940 = vand.u32 %v6939, 4294901760
    %6941 = vmatpush.msra.mxu0 %v6940
    %v6942 = vand.u32 %v4269, 4294901760
    %v6943 = vsub.f32 %v4269, %v6942
    %v6944 = vand.u32 %v6943, 4294901760
    %6945 = vmatpush.msra.mxu0 %v6944
    %v6946 = vand.u32 %v4268, 4294901760
    %v6947 = vsub.f32 %v4268, %v6946
    %v6948 = vand.u32 %v6947, 4294901760
    %6949 = vmatpush.msra.mxu0 %v6948
    %6950 = vmatpush.msra.mxu0 0.0
    %6951 = vmatpush.msra.mxu0 0.0
    %v6952 = vand.u32 %v4267, 4294901760
    %v6953 = vsub.f32 %v4267, %v6952
    %v6954 = vand.u32 %v6953, 4294901760
    %6955 = vmatpush.msra.mxu0 %v6954
    %v6956 = vand.u32 %v4266, 4294901760
    %v6957 = vsub.f32 %v4266, %v6956
    %v6958 = vand.u32 %v6957, 4294901760
    %6959 = vmatpush.msra.mxu0 %v6958
    %v6960 = vand.u32 %v4265, 4294901760
    %v6961 = vsub.f32 %v4265, %v6960
    %v6962 = vand.u32 %v6961, 4294901760
    %6963 = vmatpush.msra.mxu0 %v6962
    %v6964 = vand.u32 %v4264, 4294901760
    %v6965 = vsub.f32 %v4264, %v6964
    %v6966 = vand.u32 %v6965, 4294901760
    %6967 = vmatpush.msra.mxu0 %v6966
    %v6968 = vand.u32 %v4263, 4294901760
    %v6969 = vsub.f32 %v4263, %v6968
    %v6970 = vand.u32 %v6969, 4294901760
    %6971 = vmatpush.msra.mxu0 %v6970
    %v6972 = vand.u32 %v4262, 4294901760
    %v6973 = vsub.f32 %v4262, %v6972
    %v6974 = vand.u32 %v6973, 4294901760
    %6975 = vmatpush.msra.mxu0 %v6974
    %6976 = vmatpush.msra.mxu0 0.0
    %v6977 = vand.u32 %v6381, 4294901760
    %6978 = vmatmul.f32.gmra.mxu0 %v6977
    %v6979 = vpop.f32.mrf.mxu0
    %v6980 = vadd.f32 %v6917, %v6979
    %v6981 = vand.u32 %v6382, 4294901760
    %6982 = vmatmul.f32.gmra.mxu0 %v6981
    %v6983 = vpop.f32.mrf.mxu0
    %v6984 = vadd.f32 %v6923, %v6983
    %6985 = vdwg.mxu0
    %6986 = vmatpush.msra.mxu0 0.0
    %v6987 = vand.u32 %v4273, 4294901760
    %6988 = vmatpush.msra.mxu0 %v6987
    %v6989 = vand.u32 %v4272, 4294901760
    %6990 = vmatpush.msra.mxu0 %v6989
    %v6991 = vand.u32 %v4271, 4294901760
    %6992 = vmatpush.msra.mxu0 %v6991
    %v6993 = vand.u32 %v4270, 4294901760
    %6994 = vmatpush.msra.mxu0 %v6993
    %v6995 = vand.u32 %v4269, 4294901760
    %6996 = vmatpush.msra.mxu0 %v6995
    %v6997 = vand.u32 %v4268, 4294901760
    %6998 = vmatpush.msra.mxu0 %v6997
    %6999 = vmatpush.msra.mxu0 0.0
    %7000 = vmatpush.msra.mxu0 0.0
    %v7001 = vand.u32 %v4267, 4294901760
    %7002 = vmatpush.msra.mxu0 %v7001
    %v7003 = vand.u32 %v4266, 4294901760
    %7004 = vmatpush.msra.mxu0 %v7003
    %v7005 = vand.u32 %v4265, 4294901760
    %7006 = vmatpush.msra.mxu0 %v7005
    %v7007 = vand.u32 %v4264, 4294901760
    %7008 = vmatpush.msra.mxu0 %v7007
    %v7009 = vand.u32 %v4263, 4294901760
    %7010 = vmatpush.msra.mxu0 %v7009
    %v7011 = vand.u32 %v4262, 4294901760
    %7012 = vmatpush.msra.mxu0 %v7011
    %7013 = vmatpush.msra.mxu0 0.0
    %v7014 = vand.u32 %v6381, 4294901760
    %7015 = vmatmul.f32.gmra.mxu0 %v7014
    %v7016 = vpop.f32.mrf.mxu0
    %v7017 = vadd.f32 %v6980, %v7016
    %v7018 = vand.u32 %v6382, 4294901760
    %7019 = vmatmul.f32.gmra.mxu0 %v7018
    %v7020 = vpop.f32.mrf.mxu0
    %v7021 = vadd.f32 %v6984, %v7020
    %7022 = vdwg.mxu0
    %v7023 = vld [vmem:[%s2 + $0x100] sm:$0xff]
    %v7024 = vld [vmem:[%s2 + $0x108] sm:$0xff]
    %v7025 = vld [vmem:[%s2 + $0x110] sm:$0xff]
    %v7026 = vld [vmem:[%s2 + $0x118] sm:$0xff]
    %v7027 = vld [vmem:[%s2 + $0x1bc] sm:$0x1]
    %v7028 = vperm.slane %v7027, 0
    %v7030 = vsel %vm38, %v7017, 0
    %v7033 = vsel %vm38, %v7021, 0
    %7035 = vmatpush.msra.mxu0 0.0
    %7036 = vmatpush.msra.mxu0 0.0
    %7037 = vmatpush.msra.mxu0 0.0
    %7038 = vmatpush.msra.mxu0 0.0
    %7039 = vmatpush.msra.mxu0 0.0
    %7040 = vmatpush.msra.mxu0 0.0
    %7041 = vmatpush.msra.mxu0 0.0
    %7042 = vmatpush.msra.mxu0 0.0
    %7043 = vmatpush.msra.mxu0 0.0
    %7044 = vmatpush.msra.mxu0 0.0
    %7045 = vmatpush.msra.mxu0 0.0
    %7046 = vmatpush.msra.mxu0 0.0
    %v7047 = vand.u32 %v7026, 4294901760
    %7048 = vmatpush.msra.mxu0 %v7047
    %v7049 = vand.u32 %v7025, 4294901760
    %7050 = vmatpush.msra.mxu0 %v7049
    %v7051 = vand.u32 %v7024, 4294901760
    %7052 = vmatpush.msra.mxu0 %v7051
    %v7053 = vand.u32 %v7023, 4294901760
    %7054 = vmatpush.msra.mxu0 %v7053
    %v7055 = vand.u32 %v7030, 4294901760
    %v7056 = vsub.f32 %v7030, %v7055
    %v7057 = vand.u32 %v7056, 4294901760
    %v7058 = vsub.f32 %v7056, %v7057
    %v7059 = vand.u32 %v7058, 4294901760
    %7060 = vmatmul.f32.gmra.mxu0 %v7059
    %v7061 = vpop.f32.mrf.mxu0
    %v7062 = vadd.f32 %v7028, %v7061
    %v7063 = vand.u32 %v7033, 4294901760
    %v7064 = vsub.f32 %v7033, %v7063
    %v7065 = vand.u32 %v7064, 4294901760
    %v7066 = vsub.f32 %v7064, %v7065
    %v7067 = vand.u32 %v7066, 4294901760
    %7068 = vmatmul.f32.gmra.mxu0 %v7067
    %v7069 = vpop.f32.mrf.mxu0
    %v7070 = vadd.f32 %v7028, %v7069
    %7071 = vdwg.mxu0
    %7072 = vmatpush.msra.mxu0 0.0
    %7073 = vmatpush.msra.mxu0 0.0
    %7074 = vmatpush.msra.mxu0 0.0
    %7075 = vmatpush.msra.mxu0 0.0
    %7076 = vmatpush.msra.mxu0 0.0
    %7077 = vmatpush.msra.mxu0 0.0
    %7078 = vmatpush.msra.mxu0 0.0
    %7079 = vmatpush.msra.mxu0 0.0
    %7080 = vmatpush.msra.mxu0 0.0
    %7081 = vmatpush.msra.mxu0 0.0
    %7082 = vmatpush.msra.mxu0 0.0
    %7083 = vmatpush.msra.mxu0 0.0
    %v7084 = vand.u32 %v7026, 4294901760
    %v7085 = vsub.f32 %v7026, %v7084
    %v7086 = vand.u32 %v7085, 4294901760
    %v7087 = vsub.f32 %v7085, %v7086
    %v7088 = vand.u32 %v7087, 4294901760
    %7089 = vmatpush.msra.mxu0 %v7088
    %v7090 = vand.u32 %v7025, 4294901760
    %v7091 = vsub.f32 %v7025, %v7090
    %v7092 = vand.u32 %v7091, 4294901760
    %v7093 = vsub.f32 %v7091, %v7092
    %v7094 = vand.u32 %v7093, 4294901760
    %7095 = vmatpush.msra.mxu0 %v7094
    %v7096 = vand.u32 %v7024, 4294901760
    %v7097 = vsub.f32 %v7024, %v7096
    %v7098 = vand.u32 %v7097, 4294901760
    %v7099 = vsub.f32 %v7097, %v7098
    %v7100 = vand.u32 %v7099, 4294901760
    %7101 = vmatpush.msra.mxu0 %v7100
    %v7102 = vand.u32 %v7023, 4294901760
    %v7103 = vsub.f32 %v7023, %v7102
    %v7104 = vand.u32 %v7103, 4294901760
    %v7105 = vsub.f32 %v7103, %v7104
    %v7106 = vand.u32 %v7105, 4294901760
    %7107 = vmatpush.msra.mxu0 %v7106
    %v7108 = vand.u32 %v7030, 4294901760
    %7109 = vmatmul.f32.gmra.mxu0 %v7108
    %v7110 = vpop.f32.mrf.mxu0
    %v7111 = vadd.f32 %v7062, %v7110
    %v7112 = vand.u32 %v7033, 4294901760
    %7113 = vmatmul.f32.gmra.mxu0 %v7112
    %v7114 = vpop.f32.mrf.mxu0
    %v7115 = vadd.f32 %v7070, %v7114
    %7116 = vdwg.mxu0
    %7117 = vmatpush.msra.mxu0 0.0
    %7118 = vmatpush.msra.mxu0 0.0
    %7119 = vmatpush.msra.mxu0 0.0
    %7120 = vmatpush.msra.mxu0 0.0
    %7121 = vmatpush.msra.mxu0 0.0
    %7122 = vmatpush.msra.mxu0 0.0
    %7123 = vmatpush.msra.mxu0 0.0
    %7124 = vmatpush.msra.mxu0 0.0
    %7125 = vmatpush.msra.mxu0 0.0
    %7126 = vmatpush.msra.mxu0 0.0
    %7127 = vmatpush.msra.mxu0 0.0
    %7128 = vmatpush.msra.mxu0 0.0
    %v7129 = vand.u32 %v7026, 4294901760
    %v7130 = vsub.f32 %v7026, %v7129
    %7131 = vmatpush.msra.mxu0 %v7130
    %v7132 = vand.u32 %v7025, 4294901760
    %v7133 = vsub.f32 %v7025, %v7132
    %7134 = vmatpush.msra.mxu0 %v7133
    %v7135 = vand.u32 %v7024, 4294901760
    %v7136 = vsub.f32 %v7024, %v7135
    %7137 = vmatpush.msra.mxu0 %v7136
    %v7138 = vand.u32 %v7023, 4294901760
    %v7139 = vsub.f32 %v7023, %v7138
    %7140 = vmatpush.msra.mxu0 %v7139
    %v7141 = vand.u32 %v7030, 4294901760
    %v7142 = vsub.f32 %v7030, %v7141
    %7143 = vmatmul.f32.gmra.mxu0 %v7142
    %v7144 = vpop.f32.mrf.mxu0
    %v7145 = vadd.f32 %v7111, %v7144
    %v7146 = vand.u32 %v7033, 4294901760
    %v7147 = vsub.f32 %v7033, %v7146
    %7148 = vmatmul.f32.gmra.mxu0 %v7147
    %v7149 = vpop.f32.mrf.mxu0
    %v7150 = vadd.f32 %v7115, %v7149
    %7151 = vdwg.mxu0
    %7152 = vmatpush.msra.mxu0 0.0
    %7153 = vmatpush.msra.mxu0 0.0
    %7154 = vmatpush.msra.mxu0 0.0
    %7155 = vmatpush.msra.mxu0 0.0
    %7156 = vmatpush.msra.mxu0 0.0
    %7157 = vmatpush.msra.mxu0 0.0
    %7158 = vmatpush.msra.mxu0 0.0
    %7159 = vmatpush.msra.mxu0 0.0
    %7160 = vmatpush.msra.mxu0 0.0
    %7161 = vmatpush.msra.mxu0 0.0
    %7162 = vmatpush.msra.mxu0 0.0
    %7163 = vmatpush.msra.mxu0 0.0
    %v7164 = vand.u32 %v7026, 4294901760
    %7165 = vmatpush.msra.mxu0 %v7164
    %v7166 = vand.u32 %v7025, 4294901760
    %7167 = vmatpush.msra.mxu0 %v7166
    %v7168 = vand.u32 %v7024, 4294901760
    %7169 = vmatpush.msra.mxu0 %v7168
    %v7170 = vand.u32 %v7023, 4294901760
    %7171 = vmatpush.msra.mxu0 %v7170
    %v7172 = vand.u32 %v7030, 4294901760
    %v7173 = vsub.f32 %v7030, %v7172
    %v7174 = vand.u32 %v7173, 4294901760
    %7175 = vmatmul.f32.gmra.mxu0 %v7174
    %v7176 = vpop.f32.mrf.mxu0
    %v7177 = vadd.f32 %v7145, %v7176
    %v7178 = vand.u32 %v7033, 4294901760
    %v7179 = vsub.f32 %v7033, %v7178
    %v7180 = vand.u32 %v7179, 4294901760
    %7181 = vmatmul.f32.gmra.mxu0 %v7180
    %v7182 = vpop.f32.mrf.mxu0
    %v7183 = vadd.f32 %v7150, %v7182
    %7184 = vdwg.mxu0
    %7185 = vmatpush.msra.mxu0 0.0
    %7186 = vmatpush.msra.mxu0 0.0
    %7187 = vmatpush.msra.mxu0 0.0
    %7188 = vmatpush.msra.mxu0 0.0
    %7189 = vmatpush.msra.mxu0 0.0
    %7190 = vmatpush.msra.mxu0 0.0
    %7191 = vmatpush.msra.mxu0 0.0
    %7192 = vmatpush.msra.mxu0 0.0
    %7193 = vmatpush.msra.mxu0 0.0
    %7194 = vmatpush.msra.mxu0 0.0
    %7195 = vmatpush.msra.mxu0 0.0
    %7196 = vmatpush.msra.mxu0 0.0
    %v7197 = vand.u32 %v7026, 4294901760
    %v7198 = vsub.f32 %v7026, %v7197
    %v7199 = vand.u32 %v7198, 4294901760
    %7200 = vmatpush.msra.mxu0 %v7199
    %v7201 = vand.u32 %v7025, 4294901760
    %v7202 = vsub.f32 %v7025, %v7201
    %v7203 = vand.u32 %v7202, 4294901760
    %7204 = vmatpush.msra.mxu0 %v7203
    %v7205 = vand.u32 %v7024, 4294901760
    %v7206 = vsub.f32 %v7024, %v7205
    %v7207 = vand.u32 %v7206, 4294901760
    %7208 = vmatpush.msra.mxu0 %v7207
    %v7209 = vand.u32 %v7023, 4294901760
    %v7210 = vsub.f32 %v7023, %v7209
    %v7211 = vand.u32 %v7210, 4294901760
    %7212 = vmatpush.msra.mxu0 %v7211
    %v7213 = vand.u32 %v7030, 4294901760
    %7214 = vmatmul.f32.gmra.mxu0 %v7213
    %v7215 = vpop.f32.mrf.mxu0
    %v7216 = vadd.f32 %v7177, %v7215
    %v7217 = vand.u32 %v7033, 4294901760
    %7218 = vmatmul.f32.gmra.mxu0 %v7217
    %v7219 = vpop.f32.mrf.mxu0
    %v7220 = vadd.f32 %v7183, %v7219
    %7221 = vdwg.mxu0
    %7222 = vmatpush.msra.mxu0 0.0
    %7223 = vmatpush.msra.mxu0 0.0
    %7224 = vmatpush.msra.mxu0 0.0
    %7225 = vmatpush.msra.mxu0 0.0
    %7226 = vmatpush.msra.mxu0 0.0
    %7227 = vmatpush.msra.mxu0 0.0
    %7228 = vmatpush.msra.mxu0 0.0
    %7229 = vmatpush.msra.mxu0 0.0
    %7230 = vmatpush.msra.mxu0 0.0
    %7231 = vmatpush.msra.mxu0 0.0
    %7232 = vmatpush.msra.mxu0 0.0
    %7233 = vmatpush.msra.mxu0 0.0
    %v7234 = vand.u32 %v7026, 4294901760
    %7235 = vmatpush.msra.mxu0 %v7234
    %v7236 = vand.u32 %v7025, 4294901760
    %7237 = vmatpush.msra.mxu0 %v7236
    %v7238 = vand.u32 %v7024, 4294901760
    %7239 = vmatpush.msra.mxu0 %v7238
    %v7240 = vand.u32 %v7023, 4294901760
    %7241 = vmatpush.msra.mxu0 %v7240
    %v7242 = vand.u32 %v7030, 4294901760
    %7243 = vmatmul.f32.gmra.mxu0 %v7242
    %v7244 = vpop.f32.mrf.mxu0
    %v7245 = vadd.f32 %v7216, %v7244
    %v7246 = vand.u32 %v7033, 4294901760
    %7247 = vmatmul.f32.gmra.mxu0 %v7246
    %v7248 = vpop.f32.mrf.mxu0
    %v7249 = vadd.f32 %v7220, %v7248
    %7250 = vdwg.mxu0
    %v7251 = vadd.f32 %v2814, %v7245
    %v7252 = vadd.f32 %v2815, %v7249
    %v7253 = vld [vmem:[%s2 + $0x1c1] sm:$0x1]
    %v7254 = vld [vmem:[%s2 + $0x1c2] sm:$0x1]
    %v7255 = vsel %vm38, %v7251, 0.0
    %7256 = vadd.xlane.f32.xlu0 %v7255
    %v7257 = vpop.xlane.xlu0 %7256
    %v7258 = vsel %vm38, %v7252, 0.0
    %7259 = vadd.xlane.f32.xlu0 %v7258
    %v7260 = vpop.xlane.xlu0 %7259
    %v7261 = vmul.f32 %v7257, %v2771
    %v7262 = vmul.f32 %v7260, %v2771
    %v7263 = vsub.f32 %v7251, %v7261
    %v7264 = vsub.f32 %v7252, %v7262
    %v7265 = vmul.f32 %v7263, %v7263
    %v7266 = vmul.f32 %v7264, %v7264
    %v7267 = vsel %vm38, %v7265, 0.0
    %7268 = vadd.xlane.f32.xlu0 %v7267
    %v7269 = vpop.xlane.xlu0 %7268
    %v7270 = vsel %vm38, %v7266, 0.0
    %7271 = vadd.xlane.f32.xlu0 %v7270
    %v7272 = vpop.xlane.xlu0 %7271
    %v7273 = vmul.f32 %v7269, %v2771
    %v7274 = vmul.f32 %v7272, %v2771
    %v7275 = vadd.f32 %v7273, 1e-05
    %v7276 = vadd.f32 %v7274, 1e-05
    %v7277 = vrsqrt.pop %v7275
    %v7278 = vmul.f32 %v7277, %v7275
    %v7279 = vmul.f32 %v7278, %v7277
    %v7280 = vmul.f32 0.5, %v7279
    %v7281 = vsub.f32 1.5, %v7280
    %v7282 = vmul.f32 %v7277, %v7281
    %vm7283 = vweird.f32 %v7275
    %vm7284 = vweird.f32 %v7277
    %vm7285 = vmor %vm7283, %vm7284
    %v7286 = vsel %vm7285, %v7277, %v7282
    %v7287 = vrsqrt.pop %v7276
    %v7288 = vmul.f32 %v7287, %v7276
    %v7289 = vmul.f32 %v7288, %v7287
    %v7290 = vmul.f32 0.5, %v7289
    %v7291 = vsub.f32 1.5, %v7290
    %v7292 = vmul.f32 %v7287, %v7291
    %vm7293 = vweird.f32 %v7276
    %vm7294 = vweird.f32 %v7287
    %vm7295 = vmor %vm7293, %vm7294
    %v7296 = vsel %vm7295, %v7287, %v7292
    %v7297 = vmul.f32 %v7263, %v7286
    %v7298 = vmul.f32 %v7264, %v7296
    %v7299 = vperm.slane %v7253, 0
    %v7300 = vmul.f32 %v7297, %v7299
    %v7301 = vmul.f32 %v7298, %v7299
    %v7302 = vperm.slane %v7254, 0
    %v7303 = vadd.f32 %v7300, %v7302
    %v7304 = vadd.f32 %v7301, %v7302
    %v7305 = vld [vmem:[%s2 + $0x120] sm:$0xff]
    %v7306 = vld [vmem:[%s2 + $0x128] sm:$0xff]
    %v7307 = vld [vmem:[%s2 + $0x130] sm:$0xff]
    %v7308 = vld [vmem:[%s2 + $0x138] sm:$0xff]
    %v7309 = vld [vmem:[%s2 + $0x1bd] sm:$0x1]
    %v7310 = vperm.slane %v7309, 0
    %v7312 = vsel %vm38, %v7303, 0
    %v7315 = vsel %vm38, %v7304, 0
    %7317 = vmatpush.msra.mxu0 0.0
    %7318 = vmatpush.msra.mxu0 0.0
    %7319 = vmatpush.msra.mxu0 0.0
    %7320 = vmatpush.msra.mxu0 0.0
    %7321 = vmatpush.msra.mxu0 0.0
    %7322 = vmatpush.msra.mxu0 0.0
    %7323 = vmatpush.msra.mxu0 0.0
    %7324 = vmatpush.msra.mxu0 0.0
    %7325 = vmatpush.msra.mxu0 0.0
    %7326 = vmatpush.msra.mxu0 0.0
    %7327 = vmatpush.msra.mxu0 0.0
    %7328 = vmatpush.msra.mxu0 0.0
    %v7329 = vand.u32 %v7308, 4294901760
    %7330 = vmatpush.msra.mxu0 %v7329
    %v7331 = vand.u32 %v7307, 4294901760
    %7332 = vmatpush.msra.mxu0 %v7331
    %v7333 = vand.u32 %v7306, 4294901760
    %7334 = vmatpush.msra.mxu0 %v7333
    %v7335 = vand.u32 %v7305, 4294901760
    %7336 = vmatpush.msra.mxu0 %v7335
    %v7337 = vand.u32 %v7312, 4294901760
    %v7338 = vsub.f32 %v7312, %v7337
    %v7339 = vand.u32 %v7338, 4294901760
    %v7340 = vsub.f32 %v7338, %v7339
    %v7341 = vand.u32 %v7340, 4294901760
    %7342 = vmatmul.f32.gmra.mxu0 %v7341
    %v7343 = vpop.f32.mrf.mxu0
    %v7344 = vadd.f32 %v7310, %v7343
    %v7345 = vand.u32 %v7315, 4294901760
    %v7346 = vsub.f32 %v7315, %v7345
    %v7347 = vand.u32 %v7346, 4294901760
    %v7348 = vsub.f32 %v7346, %v7347
    %v7349 = vand.u32 %v7348, 4294901760
    %7350 = vmatmul.f32.gmra.mxu0 %v7349
    %v7351 = vpop.f32.mrf.mxu0
    %v7352 = vadd.f32 %v7310, %v7351
    %7353 = vdwg.mxu0
    %7354 = vmatpush.msra.mxu0 0.0
    %7355 = vmatpush.msra.mxu0 0.0
    %7356 = vmatpush.msra.mxu0 0.0
    %7357 = vmatpush.msra.mxu0 0.0
    %7358 = vmatpush.msra.mxu0 0.0
    %7359 = vmatpush.msra.mxu0 0.0
    %7360 = vmatpush.msra.mxu0 0.0
    %7361 = vmatpush.msra.mxu0 0.0
    %7362 = vmatpush.msra.mxu0 0.0
    %7363 = vmatpush.msra.mxu0 0.0
    %7364 = vmatpush.msra.mxu0 0.0
    %7365 = vmatpush.msra.mxu0 0.0
    %v7366 = vand.u32 %v7308, 4294901760
    %v7367 = vsub.f32 %v7308, %v7366
    %v7368 = vand.u32 %v7367, 4294901760
    %v7369 = vsub.f32 %v7367, %v7368
    %v7370 = vand.u32 %v7369, 4294901760
    %7371 = vmatpush.msra.mxu0 %v7370
    %v7372 = vand.u32 %v7307, 4294901760
    %v7373 = vsub.f32 %v7307, %v7372
    %v7374 = vand.u32 %v7373, 4294901760
    %v7375 = vsub.f32 %v7373, %v7374
    %v7376 = vand.u32 %v7375, 4294901760
    %7377 = vmatpush.msra.mxu0 %v7376
    %v7378 = vand.u32 %v7306, 4294901760
    %v7379 = vsub.f32 %v7306, %v7378
    %v7380 = vand.u32 %v7379, 4294901760
    %v7381 = vsub.f32 %v7379, %v7380
    %v7382 = vand.u32 %v7381, 4294901760
    %7383 = vmatpush.msra.mxu0 %v7382
    %v7384 = vand.u32 %v7305, 4294901760
    %v7385 = vsub.f32 %v7305, %v7384
    %v7386 = vand.u32 %v7385, 4294901760
    %v7387 = vsub.f32 %v7385, %v7386
    %v7388 = vand.u32 %v7387, 4294901760
    %7389 = vmatpush.msra.mxu0 %v7388
    %v7390 = vand.u32 %v7312, 4294901760
    %7391 = vmatmul.f32.gmra.mxu0 %v7390
    %v7392 = vpop.f32.mrf.mxu0
    %v7393 = vadd.f32 %v7344, %v7392
    %v7394 = vand.u32 %v7315, 4294901760
    %7395 = vmatmul.f32.gmra.mxu0 %v7394
    %v7396 = vpop.f32.mrf.mxu0
    %v7397 = vadd.f32 %v7352, %v7396
    %7398 = vdwg.mxu0
    %7399 = vmatpush.msra.mxu0 0.0
    %7400 = vmatpush.msra.mxu0 0.0
    %7401 = vmatpush.msra.mxu0 0.0
    %7402 = vmatpush.msra.mxu0 0.0
    %7403 = vmatpush.msra.mxu0 0.0
    %7404 = vmatpush.msra.mxu0 0.0
    %7405 = vmatpush.msra.mxu0 0.0
    %7406 = vmatpush.msra.mxu0 0.0
    %7407 = vmatpush.msra.mxu0 0.0
    %7408 = vmatpush.msra.mxu0 0.0
    %7409 = vmatpush.msra.mxu0 0.0
    %7410 = vmatpush.msra.mxu0 0.0
    %v7411 = vand.u32 %v7308, 4294901760
    %v7412 = vsub.f32 %v7308, %v7411
    %7413 = vmatpush.msra.mxu0 %v7412
    %v7414 = vand.u32 %v7307, 4294901760
    %v7415 = vsub.f32 %v7307, %v7414
    %7416 = vmatpush.msra.mxu0 %v7415
    %v7417 = vand.u32 %v7306, 4294901760
    %v7418 = vsub.f32 %v7306, %v7417
    %7419 = vmatpush.msra.mxu0 %v7418
    %v7420 = vand.u32 %v7305, 4294901760
    %v7421 = vsub.f32 %v7305, %v7420
    %7422 = vmatpush.msra.mxu0 %v7421
    %v7423 = vand.u32 %v7312, 4294901760
    %v7424 = vsub.f32 %v7312, %v7423
    %7425 = vmatmul.f32.gmra.mxu0 %v7424
    %v7426 = vpop.f32.mrf.mxu0
    %v7427 = vadd.f32 %v7393, %v7426
    %v7428 = vand.u32 %v7315, 4294901760
    %v7429 = vsub.f32 %v7315, %v7428
    %7430 = vmatmul.f32.gmra.mxu0 %v7429
    %v7431 = vpop.f32.mrf.mxu0
    %v7432 = vadd.f32 %v7397, %v7431
    %7433 = vdwg.mxu0
    %7434 = vmatpush.msra.mxu0 0.0
    %7435 = vmatpush.msra.mxu0 0.0
    %7436 = vmatpush.msra.mxu0 0.0
    %7437 = vmatpush.msra.mxu0 0.0
    %7438 = vmatpush.msra.mxu0 0.0
    %7439 = vmatpush.msra.mxu0 0.0
    %7440 = vmatpush.msra.mxu0 0.0
    %7441 = vmatpush.msra.mxu0 0.0
    %7442 = vmatpush.msra.mxu0 0.0
    %7443 = vmatpush.msra.mxu0 0.0
    %7444 = vmatpush.msra.mxu0 0.0
    %7445 = vmatpush.msra.mxu0 0.0
    %v7446 = vand.u32 %v7308, 4294901760
    %7447 = vmatpush.msra.mxu0 %v7446
    %v7448 = vand.u32 %v7307, 4294901760
    %7449 = vmatpush.msra.mxu0 %v7448
    %v7450 = vand.u32 %v7306, 4294901760
    %7451 = vmatpush.msra.mxu0 %v7450
    %v7452 = vand.u32 %v7305, 4294901760
    %7453 = vmatpush.msra.mxu0 %v7452
    %v7454 = vand.u32 %v7312, 4294901760
    %v7455 = vsub.f32 %v7312, %v7454
    %v7456 = vand.u32 %v7455, 4294901760
    %7457 = vmatmul.f32.gmra.mxu0 %v7456
    %v7458 = vpop.f32.mrf.mxu0
    %v7459 = vadd.f32 %v7427, %v7458
    %v7460 = vand.u32 %v7315, 4294901760
    %v7461 = vsub.f32 %v7315, %v7460
    %v7462 = vand.u32 %v7461, 4294901760
    %7463 = vmatmul.f32.gmra.mxu0 %v7462
    %v7464 = vpop.f32.mrf.mxu0
    %v7465 = vadd.f32 %v7432, %v7464
    %7466 = vdwg.mxu0
    %7467 = vmatpush.msra.mxu0 0.0
    %7468 = vmatpush.msra.mxu0 0.0
    %7469 = vmatpush.msra.mxu0 0.0
    %7470 = vmatpush.msra.mxu0 0.0
    %7471 = vmatpush.msra.mxu0 0.0
    %7472 = vmatpush.msra.mxu0 0.0
    %7473 = vmatpush.msra.mxu0 0.0
    %7474 = vmatpush.msra.mxu0 0.0
    %7475 = vmatpush.msra.mxu0 0.0
    %7476 = vmatpush.msra.mxu0 0.0
    %7477 = vmatpush.msra.mxu0 0.0
    %7478 = vmatpush.msra.mxu0 0.0
    %v7479 = vand.u32 %v7308, 4294901760
    %v7480 = vsub.f32 %v7308, %v7479
    %v7481 = vand.u32 %v7480, 4294901760
    %7482 = vmatpush.msra.mxu0 %v7481
    %v7483 = vand.u32 %v7307, 4294901760
    %v7484 = vsub.f32 %v7307, %v7483
    %v7485 = vand.u32 %v7484, 4294901760
    %7486 = vmatpush.msra.mxu0 %v7485
    %v7487 = vand.u32 %v7306, 4294901760
    %v7488 = vsub.f32 %v7306, %v7487
    %v7489 = vand.u32 %v7488, 4294901760
    %7490 = vmatpush.msra.mxu0 %v7489
    %v7491 = vand.u32 %v7305, 4294901760
    %v7492 = vsub.f32 %v7305, %v7491
    %v7493 = vand.u32 %v7492, 4294901760
    %7494 = vmatpush.msra.mxu0 %v7493
    %v7495 = vand.u32 %v7312, 4294901760
    %7496 = vmatmul.f32.gmra.mxu0 %v7495
    %v7497 = vpop.f32.mrf.mxu0
    %v7498 = vadd.f32 %v7459, %v7497
    %v7499 = vand.u32 %v7315, 4294901760
    %7500 = vmatmul.f32.gmra.mxu0 %v7499
    %v7501 = vpop.f32.mrf.mxu0
    %v7502 = vadd.f32 %v7465, %v7501
    %7503 = vdwg.mxu0
    %7504 = vmatpush.msra.mxu0 0.0
    %7505 = vmatpush.msra.mxu0 0.0
    %7506 = vmatpush.msra.mxu0 0.0
    %7507 = vmatpush.msra.mxu0 0.0
    %7508 = vmatpush.msra.mxu0 0.0
    %7509 = vmatpush.msra.mxu0 0.0
    %7510 = vmatpush.msra.mxu0 0.0
    %7511 = vmatpush.msra.mxu0 0.0
    %7512 = vmatpush.msra.mxu0 0.0
    %7513 = vmatpush.msra.mxu0 0.0
    %7514 = vmatpush.msra.mxu0 0.0
    %7515 = vmatpush.msra.mxu0 0.0
    %v7516 = vand.u32 %v7308, 4294901760
    %7517 = vmatpush.msra.mxu0 %v7516
    %v7518 = vand.u32 %v7307, 4294901760
    %7519 = vmatpush.msra.mxu0 %v7518
    %v7520 = vand.u32 %v7306, 4294901760
    %7521 = vmatpush.msra.mxu0 %v7520
    %v7522 = vand.u32 %v7305, 4294901760
    %7523 = vmatpush.msra.mxu0 %v7522
    %v7524 = vand.u32 %v7312, 4294901760
    %7525 = vmatmul.f32.gmra.mxu0 %v7524
    %v7526 = vpop.f32.mrf.mxu0
    %v7527 = vadd.f32 %v7498, %v7526
    %v7528 = vand.u32 %v7315, 4294901760
    %7529 = vmatmul.f32.gmra.mxu0 %v7528
    %v7530 = vpop.f32.mrf.mxu0
    %v7531 = vadd.f32 %v7502, %v7530
    %7532 = vdwg.mxu0
    %v7533 = vmax.f32 %v7527, 0.0
    %v7534 = vmax.f32 %v7531, 0.0
    %v7535 = vld [vmem:[%s2 + $0x140] sm:$0xff]
    %v7536 = vld [vmem:[%s2 + $0x148] sm:$0xff]
    %v7537 = vld [vmem:[%s2 + $0x150] sm:$0xff]
    %v7538 = vld [vmem:[%s2 + $0x158] sm:$0xff]
    %v7539 = vld [vmem:[%s2 + $0x160] sm:$0xff]
    %v7540 = vld [vmem:[%s2 + $0x168] sm:$0xff]
    %v7541 = vld [vmem:[%s2 + $0x170] sm:$0xff]
    %v7542 = vld [vmem:[%s2 + $0x178] sm:$0xff]
    %v7543 = vld [vmem:[%s2 + $0x1be] sm:$0x1]
    %v7544 = vperm.slane %v7543, 0
    %v7546 = vsel %vm6378, %v7533, 0
    %v7549 = vsel %vm6378, %v7534, 0
    %7551 = vmatpush.msra.mxu0 0.0
    %7552 = vmatpush.msra.mxu0 0.0
    %7553 = vmatpush.msra.mxu0 0.0
    %7554 = vmatpush.msra.mxu0 0.0
    %7555 = vmatpush.msra.mxu0 0.0
    %7556 = vmatpush.msra.mxu0 0.0
    %7557 = vmatpush.msra.mxu0 0.0
    %7558 = vmatpush.msra.mxu0 0.0
    %v7559 = vand.u32 %v7542, 4294901760
    %7560 = vmatpush.msra.mxu0 %v7559
    %v7561 = vand.u32 %v7541, 4294901760
    %7562 = vmatpush.msra.mxu0 %v7561
    %v7563 = vand.u32 %v7540, 4294901760
    %7564 = vmatpush.msra.mxu0 %v7563
    %v7565 = vand.u32 %v7539, 4294901760
    %7566 = vmatpush.msra.mxu0 %v7565
    %v7567 = vand.u32 %v7538, 4294901760
    %7568 = vmatpush.msra.mxu0 %v7567
    %v7569 = vand.u32 %v7537, 4294901760
    %7570 = vmatpush.msra.mxu0 %v7569
    %v7571 = vand.u32 %v7536, 4294901760
    %7572 = vmatpush.msra.mxu0 %v7571
    %v7573 = vand.u32 %v7535, 4294901760
    %7574 = vmatpush.msra.mxu0 %v7573
    %v7575 = vand.u32 %v7546, 4294901760
    %v7576 = vsub.f32 %v7546, %v7575
    %v7577 = vand.u32 %v7576, 4294901760
    %v7578 = vsub.f32 %v7576, %v7577
    %v7579 = vand.u32 %v7578, 4294901760
    %7580 = vmatmul.f32.gmra.mxu0 %v7579
    %v7581 = vpop.f32.mrf.mxu0
    %v7582 = vadd.f32 %v7544, %v7581
    %v7583 = vand.u32 %v7549, 4294901760
    %v7584 = vsub.f32 %v7549, %v7583
    %v7585 = vand.u32 %v7584, 4294901760
    %v7586 = vsub.f32 %v7584, %v7585
    %v7587 = vand.u32 %v7586, 4294901760
    %7588 = vmatmul.f32.gmra.mxu0 %v7587
    %v7589 = vpop.f32.mrf.mxu0
    %v7590 = vadd.f32 %v7544, %v7589
    %7591 = vdwg.mxu0
    %7592 = vmatpush.msra.mxu0 0.0
    %7593 = vmatpush.msra.mxu0 0.0
    %7594 = vmatpush.msra.mxu0 0.0
    %7595 = vmatpush.msra.mxu0 0.0
    %7596 = vmatpush.msra.mxu0 0.0
    %7597 = vmatpush.msra.mxu0 0.0
    %7598 = vmatpush.msra.mxu0 0.0
    %7599 = vmatpush.msra.mxu0 0.0
    %v7600 = vand.u32 %v7542, 4294901760
    %v7601 = vsub.f32 %v7542, %v7600
    %v7602 = vand.u32 %v7601, 4294901760
    %v7603 = vsub.f32 %v7601, %v7602
    %v7604 = vand.u32 %v7603, 4294901760
    %7605 = vmatpush.msra.mxu0 %v7604
    %v7606 = vand.u32 %v7541, 4294901760
    %v7607 = vsub.f32 %v7541, %v7606
    %v7608 = vand.u32 %v7607, 4294901760
    %v7609 = vsub.f32 %v7607, %v7608
    %v7610 = vand.u32 %v7609, 4294901760
    %7611 = vmatpush.msra.mxu0 %v7610
    %v7612 = vand.u32 %v7540, 4294901760
    %v7613 = vsub.f32 %v7540, %v7612
    %v7614 = vand.u32 %v7613, 4294901760
    %v7615 = vsub.f32 %v7613, %v7614
    %v7616 = vand.u32 %v7615, 4294901760
    %7617 = vmatpush.msra.mxu0 %v7616
    %v7618 = vand.u32 %v7539, 4294901760
    %v7619 = vsub.f32 %v7539, %v7618
    %v7620 = vand.u32 %v7619, 4294901760
    %v7621 = vsub.f32 %v7619, %v7620
    %v7622 = vand.u32 %v7621, 4294901760
    %7623 = vmatpush.msra.mxu0 %v7622
    %v7624 = vand.u32 %v7538, 4294901760
    %v7625 = vsub.f32 %v7538, %v7624
    %v7626 = vand.u32 %v7625, 4294901760
    %v7627 = vsub.f32 %v7625, %v7626
    %v7628 = vand.u32 %v7627, 4294901760
    %7629 = vmatpush.msra.mxu0 %v7628
    %v7630 = vand.u32 %v7537, 4294901760
    %v7631 = vsub.f32 %v7537, %v7630
    %v7632 = vand.u32 %v7631, 4294901760
    %v7633 = vsub.f32 %v7631, %v7632
    %v7634 = vand.u32 %v7633, 4294901760
    %7635 = vmatpush.msra.mxu0 %v7634
    %v7636 = vand.u32 %v7536, 4294901760
    %v7637 = vsub.f32 %v7536, %v7636
    %v7638 = vand.u32 %v7637, 4294901760
    %v7639 = vsub.f32 %v7637, %v7638
    %v7640 = vand.u32 %v7639, 4294901760
    %7641 = vmatpush.msra.mxu0 %v7640
    %v7642 = vand.u32 %v7535, 4294901760
    %v7643 = vsub.f32 %v7535, %v7642
    %v7644 = vand.u32 %v7643, 4294901760
    %v7645 = vsub.f32 %v7643, %v7644
    %v7646 = vand.u32 %v7645, 4294901760
    %7647 = vmatpush.msra.mxu0 %v7646
    %v7648 = vand.u32 %v7546, 4294901760
    %7649 = vmatmul.f32.gmra.mxu0 %v7648
    %v7650 = vpop.f32.mrf.mxu0
    %v7651 = vadd.f32 %v7582, %v7650
    %v7652 = vand.u32 %v7549, 4294901760
    %7653 = vmatmul.f32.gmra.mxu0 %v7652
    %v7654 = vpop.f32.mrf.mxu0
    %v7655 = vadd.f32 %v7590, %v7654
    %7656 = vdwg.mxu0
    %7657 = vmatpush.msra.mxu0 0.0
    %7658 = vmatpush.msra.mxu0 0.0
    %7659 = vmatpush.msra.mxu0 0.0
    %7660 = vmatpush.msra.mxu0 0.0
    %7661 = vmatpush.msra.mxu0 0.0
    %7662 = vmatpush.msra.mxu0 0.0
    %7663 = vmatpush.msra.mxu0 0.0
    %7664 = vmatpush.msra.mxu0 0.0
    %v7665 = vand.u32 %v7542, 4294901760
    %v7666 = vsub.f32 %v7542, %v7665
    %7667 = vmatpush.msra.mxu0 %v7666
    %v7668 = vand.u32 %v7541, 4294901760
    %v7669 = vsub.f32 %v7541, %v7668
    %7670 = vmatpush.msra.mxu0 %v7669
    %v7671 = vand.u32 %v7540, 4294901760
    %v7672 = vsub.f32 %v7540, %v7671
    %7673 = vmatpush.msra.mxu0 %v7672
    %v7674 = vand.u32 %v7539, 4294901760
    %v7675 = vsub.f32 %v7539, %v7674
    %7676 = vmatpush.msra.mxu0 %v7675
    %v7677 = vand.u32 %v7538, 4294901760
    %v7678 = vsub.f32 %v7538, %v7677
    %7679 = vmatpush.msra.mxu0 %v7678
    %v7680 = vand.u32 %v7537, 4294901760
    %v7681 = vsub.f32 %v7537, %v7680
    %7682 = vmatpush.msra.mxu0 %v7681
    %v7683 = vand.u32 %v7536, 4294901760
    %v7684 = vsub.f32 %v7536, %v7683
    %7685 = vmatpush.msra.mxu0 %v7684
    %v7686 = vand.u32 %v7535, 4294901760
    %v7687 = vsub.f32 %v7535, %v7686
    %7688 = vmatpush.msra.mxu0 %v7687
    %v7689 = vand.u32 %v7546, 4294901760
    %v7690 = vsub.f32 %v7546, %v7689
    %7691 = vmatmul.f32.gmra.mxu0 %v7690
    %v7692 = vpop.f32.mrf.mxu0
    %v7693 = vadd.f32 %v7651, %v7692
    %v7694 = vand.u32 %v7549, 4294901760
    %v7695 = vsub.f32 %v7549, %v7694
    %7696 = vmatmul.f32.gmra.mxu0 %v7695
    %v7697 = vpop.f32.mrf.mxu0
    %v7698 = vadd.f32 %v7655, %v7697
    %7699 = vdwg.mxu0
    %7700 = vmatpush.msra.mxu0 0.0
    %7701 = vmatpush.msra.mxu0 0.0
    %7702 = vmatpush.msra.mxu0 0.0
    %7703 = vmatpush.msra.mxu0 0.0
    %7704 = vmatpush.msra.mxu0 0.0
    %7705 = vmatpush.msra.mxu0 0.0
    %7706 = vmatpush.msra.mxu0 0.0
    %7707 = vmatpush.msra.mxu0 0.0
    %v7708 = vand.u32 %v7542, 4294901760
    %7709 = vmatpush.msra.mxu0 %v7708
    %v7710 = vand.u32 %v7541, 4294901760
    %7711 = vmatpush.msra.mxu0 %v7710
    %v7712 = vand.u32 %v7540, 4294901760
    %7713 = vmatpush.msra.mxu0 %v7712
    %v7714 = vand.u32 %v7539, 4294901760
    %7715 = vmatpush.msra.mxu0 %v7714
    %v7716 = vand.u32 %v7538, 4294901760
    %7717 = vmatpush.msra.mxu0 %v7716
    %v7718 = vand.u32 %v7537, 4294901760
    %7719 = vmatpush.msra.mxu0 %v7718
    %v7720 = vand.u32 %v7536, 4294901760
    %7721 = vmatpush.msra.mxu0 %v7720
    %v7722 = vand.u32 %v7535, 4294901760
    %7723 = vmatpush.msra.mxu0 %v7722
    %v7724 = vand.u32 %v7546, 4294901760
    %v7725 = vsub.f32 %v7546, %v7724
    %v7726 = vand.u32 %v7725, 4294901760
    %7727 = vmatmul.f32.gmra.mxu0 %v7726
    %v7728 = vpop.f32.mrf.mxu0
    %v7729 = vadd.f32 %v7693, %v7728
    %v7730 = vand.u32 %v7549, 4294901760
    %v7731 = vsub.f32 %v7549, %v7730
    %v7732 = vand.u32 %v7731, 4294901760
    %7733 = vmatmul.f32.gmra.mxu0 %v7732
    %v7734 = vpop.f32.mrf.mxu0
    %v7735 = vadd.f32 %v7698, %v7734
    %7736 = vdwg.mxu0
    %7737 = vmatpush.msra.mxu0 0.0
    %7738 = vmatpush.msra.mxu0 0.0
    %7739 = vmatpush.msra.mxu0 0.0
    %7740 = vmatpush.msra.mxu0 0.0
    %7741 = vmatpush.msra.mxu0 0.0
    %7742 = vmatpush.msra.mxu0 0.0
    %7743 = vmatpush.msra.mxu0 0.0
    %7744 = vmatpush.msra.mxu0 0.0
    %v7745 = vand.u32 %v7542, 4294901760
    %v7746 = vsub.f32 %v7542, %v7745
    %v7747 = vand.u32 %v7746, 4294901760
    %7748 = vmatpush.msra.mxu0 %v7747
    %v7749 = vand.u32 %v7541, 4294901760
    %v7750 = vsub.f32 %v7541, %v7749
    %v7751 = vand.u32 %v7750, 4294901760
    %7752 = vmatpush.msra.mxu0 %v7751
    %v7753 = vand.u32 %v7540, 4294901760
    %v7754 = vsub.f32 %v7540, %v7753
    %v7755 = vand.u32 %v7754, 4294901760
    %7756 = vmatpush.msra.mxu0 %v7755
    %v7757 = vand.u32 %v7539, 4294901760
    %v7758 = vsub.f32 %v7539, %v7757
    %v7759 = vand.u32 %v7758, 4294901760
    %7760 = vmatpush.msra.mxu0 %v7759
    %v7761 = vand.u32 %v7538, 4294901760
    %v7762 = vsub.f32 %v7538, %v7761
    %v7763 = vand.u32 %v7762, 4294901760
    %7764 = vmatpush.msra.mxu0 %v7763
    %v7765 = vand.u32 %v7537, 4294901760
    %v7766 = vsub.f32 %v7537, %v7765
    %v7767 = vand.u32 %v7766, 4294901760
    %7768 = vmatpush.msra.mxu0 %v7767
    %v7769 = vand.u32 %v7536, 4294901760
    %v7770 = vsub.f32 %v7536, %v7769
    %v7771 = vand.u32 %v7770, 4294901760
    %7772 = vmatpush.msra.mxu0 %v7771
    %v7773 = vand.u32 %v7535, 4294901760
    %v7774 = vsub.f32 %v7535, %v7773
    %v7775 = vand.u32 %v7774, 4294901760
    %7776 = vmatpush.msra.mxu0 %v7775
    %v7777 = vand.u32 %v7546, 4294901760
    %7778 = vmatmul.f32.gmra.mxu0 %v7777
    %v7779 = vpop.f32.mrf.mxu0
    %v7780 = vadd.f32 %v7729, %v7779
    %v7781 = vand.u32 %v7549, 4294901760
    %7782 = vmatmul.f32.gmra.mxu0 %v7781
    %v7783 = vpop.f32.mrf.mxu0
    %v7784 = vadd.f32 %v7735, %v7783
    %7785 = vdwg.mxu0
    %7786 = vmatpush.msra.mxu0 0.0
    %7787 = vmatpush.msra.mxu0 0.0
    %7788 = vmatpush.msra.mxu0 0.0
    %7789 = vmatpush.msra.mxu0 0.0
    %7790 = vmatpush.msra.mxu0 0.0
    %7791 = vmatpush.msra.mxu0 0.0
    %7792 = vmatpush.msra.mxu0 0.0
    %7793 = vmatpush.msra.mxu0 0.0
    %v7794 = vand.u32 %v7542, 4294901760
    %7795 = vmatpush.msra.mxu0 %v7794
    %v7796 = vand.u32 %v7541, 4294901760
    %7797 = vmatpush.msra.mxu0 %v7796
    %v7798 = vand.u32 %v7540, 4294901760
    %7799 = vmatpush.msra.mxu0 %v7798
    %v7800 = vand.u32 %v7539, 4294901760
    %7801 = vmatpush.msra.mxu0 %v7800
    %v7802 = vand.u32 %v7538, 4294901760
    %7803 = vmatpush.msra.mxu0 %v7802
    %v7804 = vand.u32 %v7537, 4294901760
    %7805 = vmatpush.msra.mxu0 %v7804
    %v7806 = vand.u32 %v7536, 4294901760
    %7807 = vmatpush.msra.mxu0 %v7806
    %v7808 = vand.u32 %v7535, 4294901760
    %7809 = vmatpush.msra.mxu0 %v7808
    %v7810 = vand.u32 %v7546, 4294901760
    %7811 = vmatmul.f32.gmra.mxu0 %v7810
    %v7812 = vpop.f32.mrf.mxu0
    %v7813 = vadd.f32 %v7780, %v7812
    %v7814 = vand.u32 %v7549, 4294901760
    %7815 = vmatmul.f32.gmra.mxu0 %v7814
    %v7816 = vpop.f32.mrf.mxu0
    %v7817 = vadd.f32 %v7784, %v7816
    %7818 = vdwg.mxu0
    %v7819 = vadd.f32 %v7303, %v7813
    %v7820 = vadd.f32 %v7304, %v7817
    %v7821 = vld [vmem:[%s2 + $0x1c3] sm:$0x1]
    %v7822 = vld [vmem:[%s2 + $0x1c4] sm:$0x1]
    %v7823 = vsel %vm38, %v7819, 0.0
    %7824 = vadd.xlane.f32.xlu0 %v7823
    %v7825 = vpop.xlane.xlu0 %7824
    %v7826 = vsel %vm38, %v7820, 0.0
    %7827 = vadd.xlane.f32.xlu0 %v7826
    %v7828 = vpop.xlane.xlu0 %7827
    %v7829 = vmul.f32 %v7825, %v2771
    %v7830 = vmul.f32 %v7828, %v2771
    %v7831 = vsub.f32 %v7819, %v7829
    %v7832 = vsub.f32 %v7820, %v7830
    %v7833 = vmul.f32 %v7831, %v7831
    %v7834 = vmul.f32 %v7832, %v7832
    %v7835 = vsel %vm38, %v7833, 0.0
    %7836 = vadd.xlane.f32.xlu0 %v7835
    %v7837 = vpop.xlane.xlu0 %7836
    %v7838 = vsel %vm38, %v7834, 0.0
    %7839 = vadd.xlane.f32.xlu0 %v7838
    %v7840 = vpop.xlane.xlu0 %7839
    %v7841 = vmul.f32 %v7837, %v2771
    %v7842 = vmul.f32 %v7840, %v2771
    %v7843 = vadd.f32 %v7841, 1e-05
    %v7844 = vadd.f32 %v7842, 1e-05
    %v7845 = vrsqrt.pop %v7843
    %v7846 = vmul.f32 %v7845, %v7843
    %v7847 = vmul.f32 %v7846, %v7845
    %v7848 = vmul.f32 0.5, %v7847
    %v7849 = vsub.f32 1.5, %v7848
    %v7850 = vmul.f32 %v7845, %v7849
    %vm7851 = vweird.f32 %v7843
    %vm7852 = vweird.f32 %v7845
    %vm7853 = vmor %vm7851, %vm7852
    %v7854 = vsel %vm7853, %v7845, %v7850
    %v7855 = vrsqrt.pop %v7844
    %v7856 = vmul.f32 %v7855, %v7844
    %v7857 = vmul.f32 %v7856, %v7855
    %v7858 = vmul.f32 0.5, %v7857
    %v7859 = vsub.f32 1.5, %v7858
    %v7860 = vmul.f32 %v7855, %v7859
    %vm7861 = vweird.f32 %v7844
    %vm7862 = vweird.f32 %v7855
    %vm7863 = vmor %vm7861, %vm7862
    %v7864 = vsel %vm7863, %v7855, %v7860
    %v7865 = vmul.f32 %v7831, %v7854
    %v7866 = vmul.f32 %v7832, %v7864
    %v7867 = vperm.slane %v7821, 0
    %v7868 = vmul.f32 %v7865, %v7867
    %v7869 = vmul.f32 %v7866, %v7867
    %v7870 = vperm.slane %v7822, 0
    %v7871 = vadd.f32 %v7868, %v7870
    %v7872 = vadd.f32 %v7869, %v7870
    %7873 = vst.msk [vmem:[#allocation2] sm:$0xff] %vm38, %v7871
    %7874 = vst.msk [vmem:[#allocation2 + $0x8] sm:$0xff] %vm38, %v7872
    // Predicated region
    $region14: #{decoder_layer_forward.1} parent=1 // pred_check
      _
    $region15: #{decoder_layer_forward.1} parent=1 // pred_check_branch
      %7876 = sbr.rel (0) target = $region17
    $region16: #{decoder_layer_forward.1} parent=1 // pred_region
      %7878 = vsyncadd [#allocation3], 0
      %s7879 = sshll.u32 [#allocation2], 4
      %s7880 = int_to_ptr.vmem [resolvable:$true] %s7879
      %s7881 = sshll.u32 %s3, 4
      %s7882 = int_to_ptr.hbm [resolvable:$true] %s7881
      %7887 = dma.vmem_to_hbm [thread:$0]  %s7880, 256, %s7882, [#allocation3], 128, 128, 8
    $region17: #{decoder_layer_forward.1} parent=1 // pred_fallthru
      _
    // Predicated region
    $region18: #{decoder_layer_forward.1} parent=1 // pred_check
      _
    $region19: #{decoder_layer_forward.1} parent=1 // pred_check_branch
      %7889 = sbr.rel (0) target = $region21
    $region20: #{decoder_layer_forward.1} parent=1 // pred_region
      %7891 = dma.done [#allocation3], 256
    $region21: #{decoder_layer_forward.1} parent=1 // pred_fallthru
      _
    %7892 = vsyncpa [#allocation3], 1

</llo_original>
